<compile_context>
chip_gen: v6e
topology: v6e:2x2x1
jax: 0.10.0
libtpu: 0.0.40
codegen_flags: <defaults>
</compile_context>

<pallas_src>
import functools

import numpy as np
import jax
import jax.numpy as jnp
from jax.experimental import pallas as pl
from jax.experimental.pallas import tpu as pltpu


LANES = 128          # TPU lane width; all kernel output lane-dims are multiples of this
_FC_ROW_ALIGN = 16   # sublane/bf16-friendly row padding for the FC stage
_FC_TM = 128         # FC row tile (decoupled from conv blocking per review)


def _round_up(x, m):
    return (x + m - 1) // m * m


def _vmem_limit_bytes():
    # Size the scoped-VMEM request per generation (v7x: 64 MiB/TC, v5e/v6e: 128 MiB).
    try:
        cap = int(pltpu.get_tpu_info().vmem_capacity_bytes)
    except Exception:
        cap = 64 * 1024 * 1024
    return min(int(cap * 0.45), 48 * 1024 * 1024)


def _compiler_params():
    return pltpu.CompilerParams(
        dimension_semantics=("parallel",),
        vmem_limit_bytes=_vmem_limit_bytes(),
    )


def _pick_images_per_block(n):
    """Images per grid step: amortize per-step overhead while keeping >= 2 grid
    steps whenever possible so the 'parallel' axis spans both v7x TensorCores."""
    if n <= 2:
        return 1
    return max(1, min(8, n // 2))


# ----------------------------------------------------------------------------
# Pallas kernels
# ----------------------------------------------------------------------------
def _make_conv_kernel(nb, kh, hp, wblk):
    """Fused conv(5x5, pad 1) + bias + ReLU + maxpool(2x2, stride 2, pad 1).

    x_ref: (nb, 2, Hh, Lin) bf16  input, rows split by parity, (width*cin) on lanes
    w_ref: (kh, Lin, 2*wblk) bf16 row-tap Toeplitz weights (kj taps + output column
                                  + the two pool column-corners baked into columns)
    b_ref: (1, 2*wblk) f32        bias (0 in pool-padding / lane-padding columns)
    o_ref: (nb, hp, wblk) bf16    pooled activations, lanes ordered (w, cout)
    """
    nl = 2 * wblk

    def kernel(x_ref, w_ref, b_ref, o_ref):
        bias = b_ref[...]
        rows = jax.lax.broadcasted_iota(jnp.int32, (hp, 1), 0)
        for img in range(nb):              # static unroll over the images in this block
            acc0 = jnp.zeros((hp, nl), jnp.float32)   # conv rows 2i-1 (upper pool corner)
            acc1 = jnp.zeros((hp, nl), jnp.float32)   # conv rows 2i   (lower pool corner)
            for s in range(kh + 1):        # s = (row corner dr) + (row tap ki)
                # Contiguous static view of the parity-split input: zero-cost gather,
                # no HBM im2col slab.
                xs = x_ref[img, s % 2, pl.ds(s // 2, hp), :]        # (hp, Lin)
                if s < kh:                 # dr = 0, ki = s
                    acc0 = acc0 + jnp.dot(xs, w_ref[s],
                                          preferred_element_type=jnp.float32)
                if s >= 1:                 # dr = 1, ki = s - 1
                    acc1 = acc1 + jnp.dot(xs, w_ref[s - 1],
                                          preferred_element_type=jnp.float32)
            a0 = jnp.maximum(acc0 + bias, 0.0)
            a1 = jnp.maximum(acc1 + bias, 0.0)
            # Pool-padding rows (conv rows -1 and Ho) are zeroed post-ReLU: equivalent
            # to PyTorch's -inf pool padding because every window has a valid corner
            # and all valid values are >= 0.  Mask is an in-kernel iota compare
            # (no (4, TM, 1) HBM mask stream any more).
            a0 = jnp.where(rows >= 1, a0, 0.0)
            a1 = jnp.where(rows <= hp - 2, a1, 0.0)
            m = jnp.maximum(a0, a1)                        # max over the two row corners
            # Column corners were packed into the two 128-aligned lane halves.
            o_ref[img] = jnp.maximum(m[:, :wblk], m[:, wblk:]).astype(o_ref.dtype)

    return kernel


def _fc_kernel(x_ref, w1_ref, b1_ref, w2_ref, b2_ref, o_ref):
    """Fused fc1 + bias + ReLU + fc2 + bias; the 512-wide hidden never leaves VMEM."""
    h = jnp.dot(x_ref[...], w1_ref[...], preferred_element_type=jnp.float32)
    h = jnp.maximum(h + b1_ref[...], 0.0)
    o = jnp.dot(h.astype(jnp.bfloat16), w2_ref[...],
                preferred_element_type=jnp.float32)
    o_ref[...] = o + b2_ref[...]


# ----------------------------------------------------------------------------
# Stage wrappers
# ----------------------------------------------------------------------------
def conv_relu_pool(x_nhwc, wt, bvec, *, images_per_block):
    """x_nhwc: (N, H, W, Cin);  wt: (5, (W+4)*Cin, 2*wblk) bf16;  bvec: (1, 2*wblk) f32.
    Returns (N, H//2, wblk) bf16, lanes ordered (w, cout); first (W//2)*Cout lanes real.
    """
    n, h, w, cin = x_nhwc.shape
    assert h % 2 == 0 and w % 2 == 0, "even input spatial size assumed"
    hp = (h - 2) // 2 + 1          # pooled height (== H // 2)
    hh = (h + 4) // 2              # parity-split padded height
    lin = (w + 4) * cin
    kh = wt.shape[0]
    assert wt.shape[1] == lin, (wt.shape, lin)
    nl = wt.shape[2]
    wblk = nl // 2

    # Pad by the conv padding (1) plus one ring for pool-corner overrun, split rows by
    # parity and flatten (width, channels) onto lanes.  This is the only XLA-side prep
    # and touches ~2x the activation bytes (the old im2col slab + pad copy are gone).
    x2 = jnp.pad(x_nhwc.astype(jnp.bfloat16), ((0, 0), (2, 2), (2, 2), (0, 0)))
    xph = x2.reshape(n, hh, 2, lin).transpose(0, 2, 1, 3)           # (N, 2, Hh, Lin)

    nb = images_per_block
    n_pad = _round_up(n, nb)
    if n_pad != n:
        xph = jnp.pad(xph, ((0, n_pad - n), (0, 0), (0, 0), (0, 0)))

    out = pl.pallas_call(
        _make_conv_kernel(nb, kh, hp, wblk),
        out_shape=jax.ShapeDtypeStruct((n_pad, hp, wblk), jnp.bfloat16),
        grid=(n_pad // nb,),
        in_specs=[
            pl.BlockSpec((nb, 2, hh, lin), lambda i: (i, 0, 0, 0)),
            pl.BlockSpec((kh, lin, nl), lambda i: (0, 0, 0)),   # resident across grid
            pl.BlockSpec((1, nl), lambda i: (0, 0)),
        ],
        out_specs=pl.BlockSpec((nb, hp, wblk), lambda i: (i, 0, 0)),
        compiler_params=_compiler_params(),
    )(xph, wt, bvec)
    return out[:n]


def fc_fused(x_flat, w1, b1, w2, b2):
    """x_flat: (B, Kin) bf16; w1: (Kin, 512) bf16; w2: (512, 128) bf16."""
    bsz, kin = x_flat.shape
    nh = w1.shape[1]
    nout = w2.shape[1]
    m_pad = _round_up(bsz, _FC_ROW_ALIGN)
    tm = m_pad if m_pad <= _FC_TM else _FC_TM
    m_pad = _round_up(m_pad, tm)
    x = jnp.pad(x_flat, ((0, m_pad - bsz), (0, 0))) if m_pad != bsz else x_flat

    out = pl.pallas_call(
        _fc_kernel,
        out_shape=jax.ShapeDtypeStruct((m_pad, nout), jnp.float32),
        grid=(m_pad // tm,),
        in_specs=[
            pl.BlockSpec((tm, kin), lambda i: (i, 0)),
            pl.BlockSpec((kin, nh), lambda i: (0, 0)),
            pl.BlockSpec((1, nh), lambda i: (0, 0)),
            pl.BlockSpec((nh, nout), lambda i: (0, 0)),
            pl.BlockSpec((1, nout), lambda i: (0, 0)),
        ],
        out_specs=pl.BlockSpec((tm, nout), lambda i: (i, 0)),
        compiler_params=_compiler_params(),
    )(x, w1, b1, w2, b2)
    return out[:bsz]


# ----------------------------------------------------------------------------
# Parameters: PyTorch-layout init + one-time repack to kernel-friendly layouts
# ----------------------------------------------------------------------------
def init_params(key, in_channels, out_channels, linp):
    def uniform(k, shape, fan_in):
        bound = 1.0 / float(np.sqrt(fan_in))
        return jax.random.uniform(k, shape, jnp.float32, -bound, bound)

    ks = jax.random.split(key, 8)
    fc1_in = 64 * linp * linp
    return {
        "conv1_w": uniform(ks[0], (5, 5, in_channels, 32), in_channels * 25),
        "conv1_b": uniform(ks[1], (32,), in_channels * 25),
        "conv2_w": uniform(ks[2], (5, 5, 32, 64), 32 * 25),
        "conv2_b": uniform(ks[3], (64,), 32 * 25),
        "fc1_w": uniform(ks[4], (fc1_in, 512), fc1_in),   # rows in PyTorch (c,h,w) order
        "fc1_b": uniform(ks[5], (512,), fc1_in),
        "fc2_w": uniform(ks[6], (512, out_channels), 512),
        "fc2_b": uniform(ks[7], (out_channels,), 512),
    }


def _pack_conv_toeplitz(w, b, h_in, w_in):
    """Pack (5,5,Cin,Cout) conv weights for the fused conv+pool kernel.

    Produces kh matrices of shape ((W_in+4)*Cin, 2*wblk): the kj taps, the sliding
    output column, and the two pooling column-corners are baked into the columns.
    Columns that correspond to pool padding (conv col -1 or Wo) and lane-padding
    columns are all-zero (bias too), which is safe post-ReLU."""
    w = np.asarray(w, np.float32)
    b = np.asarray(b, np.float32)
    kh, kw, cin, cout = w.shape
    wo = w_in - kw + 3                           # conv padding = 1
    wp = wo // 2 + 1                             # pooled width
    lin = (w_in + 4) * cin
    wblk = _round_up(wp * cout, LANES)
    wt = np.zeros((kh, lin, 2 * wblk), np.float32)
    bv = np.zeros((1, 2 * wblk), np.float32)
    for dc in (0, 1):                            # pooling-window column corner
        for j in range(wp):                      # pooled output column
            cc = 2 * j - 1 + dc                  # conv output column
            if not 0 <= cc < wo:
                continue                         # pool padding: zero weights & bias
            col = dc * wblk + j * cout
            bv[0, col:col + cout] = b
            for ki in range(kh):
                for kj in range(kw):
                    w2 = cc + 1 + kj             # column in the pad-2 input
                    wt[ki, w2 * cin:(w2 + 1) * cin, col:col + cout] = w[ki, kj]
    del h_in  # (height handled by the kernel's row taps; kept for symmetry)
    return jnp.asarray(wt, jnp.bfloat16), jnp.asarray(bv, jnp.float32)


def pack_params(params, linp):
    """One-time repack:
       * conv weights -> row-tap Toeplitz matrices (kj taps + pool column-corners
         baked in), bf16, with 128-aligned lane halves per column-corner
       * fc1 rows permuted from NCHW-flatten order to (h, w, c) order (no zero rows)
       * fc2 output dim zero-padded to 128 lanes."""
    h1 = 4 * linp                                # conv1 input spatial size
    h2 = 2 * linp                                # conv2 input spatial size
    c1w, c1b = _pack_conv_toeplitz(params["conv1_w"], params["conv1_b"], h1, h1)
    c2w, c2b = _pack_conv_toeplitz(params["conv2_w"], params["conv2_b"], h2, h2)

    fc1_w = params["fc1_w"].reshape(64, linp, linp, 512)
    fc1_w = jnp.transpose(fc1_w, (1, 2, 0, 3)).reshape(linp * linp * 64, 512)

    n_out = params["fc2_w"].shape[1]
    assert n_out <= LANES
    fc2_w = jnp.pad(params["fc2_w"], ((0, 0), (0, LANES - n_out)))
    fc2_b = jnp.pad(params["fc2_b"], (0, LANES - n_out)).reshape(1, LANES)

    return {
        "conv1_wt": c1w, "conv1_bv": c1b,
        "conv2_wt": c2w, "conv2_bv": c2b,
        "fc1_w": fc1_w.astype(jnp.bfloat16),
        "fc1_b": params["fc1_b"].reshape(1, 512).astype(jnp.float32),
        "fc2_w": fc2_w.astype(jnp.bfloat16),
        "fc2_b": fc2_b.astype(jnp.float32),
    }


# ----------------------------------------------------------------------------
# Forward pass
# ----------------------------------------------------------------------------
@functools.partial(jax.jit, static_argnames=("out_channels", "linp"))
def cnn_forward(packed, x_nchw, *, out_channels, linp):
    n, _, h, w = x_nchw.shape
    assert h == 4 * linp and w == 4 * linp, "input spatial size must be 4*linp"
    nb = _pick_images_per_block(n)

    x = jnp.transpose(x_nchw, (0, 2, 3, 1))                        # NCHW -> NHWC
    a1 = conv_relu_pool(x, packed["conv1_wt"], packed["conv1_bv"],
                        images_per_block=nb)                       # (N, 2*linp, wblk1)
    wp1 = 2 * linp
    a1 = a1[:, :, :wp1 * 32].reshape(n, 2 * linp, wp1, 32)

    a2 = conv_relu_pool(a1, packed["conv2_wt"], packed["conv2_bv"],
                        images_per_block=nb)                       # (N, linp, wblk2)
    a2 = a2[:, :, :linp * 64].reshape(n, linp * linp * 64)         # (h, w, c) flatten

    logits = fc_fused(a2, packed["fc1_w"], packed["fc1_b"],
                      packed["fc2_w"], packed["fc2_b"])            # (N, 128) f32
    return logits[:, :out_channels]


# ----------------------------------------------------------------------------
# Pure-JAX f32 reference (PyTorch semantics) for a loose numerical check
# ----------------------------------------------------------------------------
def _reference_forward(params, x_nchw):
    x = jnp.transpose(x_nchw, (0, 2, 3, 1)).astype(jnp.float32)

    def conv(z, w, b):
        y = jax.lax.conv_general_dilated(
            z, w, window_strides=(1, 1), padding=((1, 1), (1, 1)),
            dimension_numbers=("NHWC", "HWIO", "NHWC"))
        return y + b

    def pool(z):
        return jax.lax.reduce_window(
            z, -jnp.inf, jax.lax.max, (1, 2, 2, 1), (1, 2, 2, 1),
            ((0, 0), (1, 1), (1, 1), (0, 0)))

    a = pool(jax.nn.relu(conv(x, params["conv1_w"], params["conv1_b"])))
    a = pool(jax.nn.relu(conv(a, params["conv2_w"], params["conv2_b"])))
    a = jnp.transpose(a, (0, 3, 1, 2)).reshape(a.shape[0], -1)     # PyTorch NCHW flatten
    h = jax.nn.relu(a @ params["fc1_w"] + params["fc1_b"])
    return h @ params["fc2_w"] + params["fc2_b"]


if __name__ == "__main__":
    # Shape-consistent small config: 16x16 input -> conv1(pad=1,k=5)->14 ->
    # pool(pad=1)->8 -> conv2->6 -> pool->4  =>  linp = 4, fc1_in = 64*4*4 = 1024
    batch, in_channels, spatial = 2, 3, 16
    out_channels, linp = 10, 4

    key = jax.random.PRNGKey(0)
    pkey, xkey = jax.random.split(key)
    params = init_params(pkey, in_channels, out_channels, linp)
    packed = pack_params(params, linp)
    x = jax.random.normal(xkey, (batch, in_channels, spatial, spatial), jnp.float32)

    logits = cnn_forward(packed, x, out_channels=out_channels, linp=linp)
    logits = jax.block_until_ready(logits)

    assert logits.shape == (batch, out_channels), logits.shape
    assert logits.dtype == jnp.float32
    assert bool(jnp.all(jnp.isfinite(logits)))

    # Loose check vs an f32 reference (kernel uses bf16 matmul operands).
    ref = _reference_forward(params, x)
    err = float(jnp.max(jnp.abs(logits - ref)))
    tol = 5e-2 * (1.0 + float(jnp.max(jnp.abs(ref))))
    assert err <= tol, (err, tol)

    print("KERNEL_OK")
</pallas_src>

<mosaic_0001>
module attributes {stable_mosaic.version = 11 : i64} {
  func.func @kernel(%arg0: i32, %arg1: memref<1x2x10x60xbf16, #tpu.memory_space<vmem>>, %arg2: memref<5x60x512xbf16, #tpu.memory_space<vmem>>, %arg3: memref<1x512xf32, #tpu.memory_space<vmem>>, %arg4: memref<1x8x256xbf16, #tpu.memory_space<vmem>>) attributes {dimension_semantics = [#tpu.dimension_semantics<parallel>], iteration_bounds = array<i64: 2>, scalar_prefetch = 0 : i64, scratch_operands = 0 : i64, tpu.core_type = #tpu.core_type<tc>, window_params = [{transform_indices = @transform_0, window_bounds = array<i64: 1, 2, 10, 60>}, {pipeline_mode = #tpu.pipeline_mode<synchronous>, transform_indices = @transform_1, window_bounds = array<i64: 5, 60, 512>}, {pipeline_mode = #tpu.pipeline_mode<synchronous>, transform_indices = @transform_2, window_bounds = array<i64: 1, 512>}, {transform_indices = @transform_3, window_bounds = array<i64: 1, 8, 256>}]} {
    %c0 = arith.constant 0 : index
    %c0_0 = arith.constant 0 : index
    %0 = vector.load %arg3[%c0, %c0_0] : memref<1x512xf32, #tpu.memory_space<vmem>>, vector<1x512xf32>
    %1 = tpu.iota {dimensions = array<i32: 0>} : vector<8x1xi32>
    %cst = arith.constant 0.000000e+00 : f32
    %2 = vector.broadcast %cst : f32 to vector<8x512xf32>
    %cst_1 = arith.constant 0.000000e+00 : f32
    %3 = vector.broadcast %cst_1 : f32 to vector<8x512xf32>
    %c0_2 = arith.constant 0 : index
    %c0_3 = arith.constant 0 : index
    %c0_4 = arith.constant 0 : index
    %c0_5 = arith.constant 0 : index
    %4 = vector.load %arg1[%c0_2, %c0_3, %c0_4, %c0_5] : memref<1x2x10x60xbf16, #tpu.memory_space<vmem>>, vector<1x1x8x60xbf16>
    %5 = vector.shape_cast %4 : vector<1x1x8x60xbf16> to vector<8x60xbf16>
    %c0_6 = arith.constant 0 : index
    %c0_7 = arith.constant 0 : index
    %c0_8 = arith.constant 0 : index
    %6 = vector.load %arg2[%c0_6, %c0_7, %c0_8] : memref<5x60x512xbf16, #tpu.memory_space<vmem>>, vector<1x60x512xbf16>
    %7 = vector.shape_cast %6 : vector<1x60x512xbf16> to vector<60x512xbf16>
    %cst_9 = arith.constant dense<0.000000e+00> : vector<8x512xf32>
    %8 = tpu.matmul %5, %7, %cst_9 {dimension_numbers = #tpu.dot_dimension_numbers<[1], [0], [0], [1], [0, 0, 1, 1], [], []>} : vector<8x60xbf16>, vector<60x512xbf16>, vector<8x512xf32> -> vector<8x512xf32>
    %9 = arith.addf %2, %8 : vector<8x512xf32>
    %c0_10 = arith.constant 0 : index
    %c1 = arith.constant 1 : index
    %c0_11 = arith.constant 0 : index
    %c0_12 = arith.constant 0 : index
    %10 = vector.load %arg1[%c0_10, %c1, %c0_11, %c0_12] : memref<1x2x10x60xbf16, #tpu.memory_space<vmem>>, vector<1x1x8x60xbf16>
    %11 = vector.shape_cast %10 : vector<1x1x8x60xbf16> to vector<8x60xbf16>
    %c1_13 = arith.constant 1 : index
    %c0_14 = arith.constant 0 : index
    %c0_15 = arith.constant 0 : index
    %12 = vector.load %arg2[%c1_13, %c0_14, %c0_15] : memref<5x60x512xbf16, #tpu.memory_space<vmem>>, vector<1x60x512xbf16>
    %13 = vector.shape_cast %12 : vector<1x60x512xbf16> to vector<60x512xbf16>
    %cst_16 = arith.constant dense<0.000000e+00> : vector<8x512xf32>
    %14 = tpu.matmul %11, %13, %cst_16 {dimension_numbers = #tpu.dot_dimension_numbers<[1], [0], [0], [1], [0, 0, 1, 1], [], []>} : vector<8x60xbf16>, vector<60x512xbf16>, vector<8x512xf32> -> vector<8x512xf32>
    %15 = arith.addf %9, %14 : vector<8x512xf32>
    %c0_17 = arith.constant 0 : index
    %c0_18 = arith.constant 0 : index
    %c0_19 = arith.constant 0 : index
    %16 = vector.load %arg2[%c0_17, %c0_18, %c0_19] : memref<5x60x512xbf16, #tpu.memory_space<vmem>>, vector<1x60x512xbf16>
    %17 = vector.shape_cast %16 : vector<1x60x512xbf16> to vector<60x512xbf16>
    %cst_20 = arith.constant dense<0.000000e+00> : vector<8x512xf32>
    %18 = tpu.matmul %11, %17, %cst_20 {dimension_numbers = #tpu.dot_dimension_numbers<[1], [0], [0], [1], [0, 0, 1, 1], [], []>} : vector<8x60xbf16>, vector<60x512xbf16>, vector<8x512xf32> -> vector<8x512xf32>
    %19 = arith.addf %3, %18 : vector<8x512xf32>
    %c0_21 = arith.constant 0 : index
    %c0_22 = arith.constant 0 : index
    %c1_23 = arith.constant 1 : index
    %c0_24 = arith.constant 0 : index
    %20 = vector.load %arg1[%c0_21, %c0_22, %c1_23, %c0_24] : memref<1x2x10x60xbf16, #tpu.memory_space<vmem>>, vector<1x1x8x60xbf16>
    %21 = vector.shape_cast %20 : vector<1x1x8x60xbf16> to vector<8x60xbf16>
    %c2 = arith.constant 2 : index
    %c0_25 = arith.constant 0 : index
    %c0_26 = arith.constant 0 : index
    %22 = vector.load %arg2[%c2, %c0_25, %c0_26] : memref<5x60x512xbf16, #tpu.memory_space<vmem>>, vector<1x60x512xbf16>
    %23 = vector.shape_cast %22 : vector<1x60x512xbf16> to vector<60x512xbf16>
    %cst_27 = arith.constant dense<0.000000e+00> : vector<8x512xf32>
    %24 = tpu.matmul %21, %23, %cst_27 {dimension_numbers = #tpu.dot_dimension_numbers<[1], [0], [0], [1], [0, 0, 1, 1], [], []>} : vector<8x60xbf16>, vector<60x512xbf16>, vector<8x512xf32> -> vector<8x512xf32>
    %25 = arith.addf %15, %24 : vector<8x512xf32>
    %c1_28 = arith.constant 1 : index
    %c0_29 = arith.constant 0 : index
    %c0_30 = arith.constant 0 : index
    %26 = vector.load %arg2[%c1_28, %c0_29, %c0_30] : memref<5x60x512xbf16, #tpu.memory_space<vmem>>, vector<1x60x512xbf16>
    %27 = vector.shape_cast %26 : vector<1x60x512xbf16> to vector<60x512xbf16>
    %cst_31 = arith.constant dense<0.000000e+00> : vector<8x512xf32>
    %28 = tpu.matmul %21, %27, %cst_31 {dimension_numbers = #tpu.dot_dimension_numbers<[1], [0], [0], [1], [0, 0, 1, 1], [], []>} : vector<8x60xbf16>, vector<60x512xbf16>, vector<8x512xf32> -> vector<8x512xf32>
    %29 = arith.addf %19, %28 : vector<8x512xf32>
    %c0_32 = arith.constant 0 : index
    %c1_33 = arith.constant 1 : index
    %c1_34 = arith.constant 1 : index
    %c0_35 = arith.constant 0 : index
    %30 = vector.load %arg1[%c0_32, %c1_33, %c1_34, %c0_35] : memref<1x2x10x60xbf16, #tpu.memory_space<vmem>>, vector<1x1x8x60xbf16>
    %31 = vector.shape_cast %30 : vector<1x1x8x60xbf16> to vector<8x60xbf16>
    %c3 = arith.constant 3 : index
    %c0_36 = arith.constant 0 : index
    %c0_37 = arith.constant 0 : index
    %32 = vector.load %arg2[%c3, %c0_36, %c0_37] : memref<5x60x512xbf16, #tpu.memory_space<vmem>>, vector<1x60x512xbf16>
    %33 = vector.shape_cast %32 : vector<1x60x512xbf16> to vector<60x512xbf16>
    %cst_38 = arith.constant dense<0.000000e+00> : vector<8x512xf32>
    %34 = tpu.matmul %31, %33, %cst_38 {dimension_numbers = #tpu.dot_dimension_numbers<[1], [0], [0], [1], [0, 0, 1, 1], [], []>} : vector<8x60xbf16>, vector<60x512xbf16>, vector<8x512xf32> -> vector<8x512xf32>
    %35 = arith.addf %25, %34 : vector<8x512xf32>
    %c2_39 = arith.constant 2 : index
    %c0_40 = arith.constant 0 : index
    %c0_41 = arith.constant 0 : index
    %36 = vector.load %arg2[%c2_39, %c0_40, %c0_41] : memref<5x60x512xbf16, #tpu.memory_space<vmem>>, vector<1x60x512xbf16>
    %37 = vector.shape_cast %36 : vector<1x60x512xbf16> to vector<60x512xbf16>
    %cst_42 = arith.constant dense<0.000000e+00> : vector<8x512xf32>
    %38 = tpu.matmul %31, %37, %cst_42 {dimension_numbers = #tpu.dot_dimension_numbers<[1], [0], [0], [1], [0, 0, 1, 1], [], []>} : vector<8x60xbf16>, vector<60x512xbf16>, vector<8x512xf32> -> vector<8x512xf32>
    %39 = arith.addf %29, %38 : vector<8x512xf32>
    %c0_43 = arith.constant 0 : index
    %c0_44 = arith.constant 0 : index
    %c2_45 = arith.constant 2 : index
    %c0_46 = arith.constant 0 : index
    %40 = vector.load %arg1[%c0_43, %c0_44, %c2_45, %c0_46] : memref<1x2x10x60xbf16, #tpu.memory_space<vmem>>, vector<1x1x8x60xbf16>
    %41 = vector.shape_cast %40 : vector<1x1x8x60xbf16> to vector<8x60xbf16>
    %c4 = arith.constant 4 : index
    %c0_47 = arith.constant 0 : index
    %c0_48 = arith.constant 0 : index
    %42 = vector.load %arg2[%c4, %c0_47, %c0_48] : memref<5x60x512xbf16, #tpu.memory_space<vmem>>, vector<1x60x512xbf16>
    %43 = vector.shape_cast %42 : vector<1x60x512xbf16> to vector<60x512xbf16>
    %cst_49 = arith.constant dense<0.000000e+00> : vector<8x512xf32>
    %44 = tpu.matmul %41, %43, %cst_49 {dimension_numbers = #tpu.dot_dimension_numbers<[1], [0], [0], [1], [0, 0, 1, 1], [], []>} : vector<8x60xbf16>, vector<60x512xbf16>, vector<8x512xf32> -> vector<8x512xf32>
    %45 = arith.addf %35, %44 : vector<8x512xf32>
    %c3_50 = arith.constant 3 : index
    %c0_51 = arith.constant 0 : index
    %c0_52 = arith.constant 0 : index
    %46 = vector.load %arg2[%c3_50, %c0_51, %c0_52] : memref<5x60x512xbf16, #tpu.memory_space<vmem>>, vector<1x60x512xbf16>
    %47 = vector.shape_cast %46 : vector<1x60x512xbf16> to vector<60x512xbf16>
    %cst_53 = arith.constant dense<0.000000e+00> : vector<8x512xf32>
    %48 = tpu.matmul %41, %47, %cst_53 {dimension_numbers = #tpu.dot_dimension_numbers<[1], [0], [0], [1], [0, 0, 1, 1], [], []>} : vector<8x60xbf16>, vector<60x512xbf16>, vector<8x512xf32> -> vector<8x512xf32>
    %49 = arith.addf %39, %48 : vector<8x512xf32>
    %c0_54 = arith.constant 0 : index
    %c1_55 = arith.constant 1 : index
    %c2_56 = arith.constant 2 : index
    %c0_57 = arith.constant 0 : index
    %50 = vector.load %arg1[%c0_54, %c1_55, %c2_56, %c0_57] : memref<1x2x10x60xbf16, #tpu.memory_space<vmem>>, vector<1x1x8x60xbf16>
    %51 = vector.shape_cast %50 : vector<1x1x8x60xbf16> to vector<8x60xbf16>
    %c4_58 = arith.constant 4 : index
    %c0_59 = arith.constant 0 : index
    %c0_60 = arith.constant 0 : index
    %52 = vector.load %arg2[%c4_58, %c0_59, %c0_60] : memref<5x60x512xbf16, #tpu.memory_space<vmem>>, vector<1x60x512xbf16>
    %53 = vector.shape_cast %52 : vector<1x60x512xbf16> to vector<60x512xbf16>
    %cst_61 = arith.constant dense<0.000000e+00> : vector<8x512xf32>
    %54 = tpu.matmul %51, %53, %cst_61 {dimension_numbers = #tpu.dot_dimension_numbers<[1], [0], [0], [1], [0, 0, 1, 1], [], []>} : vector<8x60xbf16>, vector<60x512xbf16>, vector<8x512xf32> -> vector<8x512xf32>
    %55 = arith.addf %49, %54 : vector<8x512xf32>
    %56 = vector.broadcast %0 : vector<1x512xf32> to vector<8x512xf32>
    %57 = arith.addf %45, %56 : vector<8x512xf32>
    %cst_62 = arith.constant 0.000000e+00 : f32
    %58 = vector.broadcast %cst_62 : f32 to vector<8x512xf32>
    %59 = arith.maximumf %57, %58 : vector<8x512xf32>
    %60 = vector.broadcast %0 : vector<1x512xf32> to vector<8x512xf32>
    %61 = arith.addf %55, %60 : vector<8x512xf32>
    %cst_63 = arith.constant 0.000000e+00 : f32
    %62 = vector.broadcast %cst_63 : f32 to vector<8x512xf32>
    %63 = arith.maximumf %61, %62 : vector<8x512xf32>
    %c1_i32 = arith.constant 1 : i32
    %64 = vector.broadcast %c1_i32 : i32 to vector<8x1xi32>
    %65 = arith.cmpi sge, %1, %64 : vector<8x1xi32>
    %cst_64 = arith.constant 0.000000e+00 : f32
    %66 = vector.shape_cast %65 : vector<8x1xi1> to vector<8x1xi1>
    %67 = vector.broadcast %66 : vector<8x1xi1> to vector<8x512xi1>
    %68 = vector.broadcast %cst_64 : f32 to vector<8x512xf32>
    %69 = arith.select %67, %59, %68 : vector<8x512xi1>, vector<8x512xf32>
    %c6_i32 = arith.constant 6 : i32
    %70 = vector.broadcast %c6_i32 : i32 to vector<8x1xi32>
    %71 = arith.cmpi sle, %1, %70 : vector<8x1xi32>
    %cst_65 = arith.constant 0.000000e+00 : f32
    %72 = vector.shape_cast %71 : vector<8x1xi1> to vector<8x1xi1>
    %73 = vector.broadcast %72 : vector<8x1xi1> to vector<8x512xi1>
    %74 = vector.broadcast %cst_65 : f32 to vector<8x512xf32>
    %75 = arith.select %73, %63, %74 : vector<8x512xi1>, vector<8x512xf32>
    %76 = arith.maximumf %69, %75 : vector<8x512xf32>
    %77 = vector.extract_strided_slice %76 {offsets = [0, 0], sizes = [8, 256], strides = [1, 1]} : vector<8x512xf32> to vector<8x256xf32>
    %78 = vector.extract_strided_slice %76 {offsets = [0, 256], sizes = [8, 256], strides = [1, 1]} : vector<8x512xf32> to vector<8x256xf32>
    %79 = arith.maximumf %77, %78 : vector<8x256xf32>
    %80 = arith.truncf %79 : vector<8x256xf32> to vector<8x256xbf16>
    %c0_66 = arith.constant 0 : index
    %c0_67 = arith.constant 0 : index
    %c0_68 = arith.constant 0 : index
    %81 = vector.load %arg4[%c0_66, %c0_67, %c0_68] : memref<1x8x256xbf16, #tpu.memory_space<vmem>>, vector<1x8x256xbf16>
    %82 = vector.shape_cast %81 : vector<1x8x256xbf16> to vector<8x256xbf16>
    %83 = vector.shape_cast %80 : vector<8x256xbf16> to vector<1x8x256xbf16>
    tpu.vector_store %arg4[%c0_66, %c0_67, %c0_68], %83 {strides = array<i32>} : memref<1x8x256xbf16, #tpu.memory_space<vmem>>, vector<1x8x256xbf16>,
    return
  }
  func.func @transform_0(%arg0: i32) -> (i32, i32, i32, i32) {
    %c0_i32 = arith.constant 0 : i32
    %c0_i32_0 = arith.constant 0 : i32
    %c0_i32_1 = arith.constant 0 : i32
    %c0_i32_2 = arith.constant 0 : i32
    return %arg0, %c0_i32, %c0_i32_0, %c0_i32_1 : i32, i32, i32, i32
  }
  func.func @transform_1(%arg0: i32) -> (i32, i32, i32) {
    %c0_i32 = arith.constant 0 : i32
    %c0_i32_0 = arith.constant 0 : i32
    %c0_i32_1 = arith.constant 0 : i32
    %c0_i32_2 = arith.constant 0 : i32
    return %c0_i32, %c0_i32_0, %c0_i32_1 : i32, i32, i32
  }
  func.func @transform_2(%arg0: i32) -> (i32, i32) {
    %c0_i32 = arith.constant 0 : i32
    %c0_i32_0 = arith.constant 0 : i32
    %c0_i32_1 = arith.constant 0 : i32
    return %c0_i32, %c0_i32_0 : i32, i32
  }
  func.func @transform_3(%arg0: i32) -> (i32, i32, i32) {
    %c0_i32 = arith.constant 0 : i32
    %c0_i32_0 = arith.constant 0 : i32
    %c0_i32_1 = arith.constant 0 : i32
    return %arg0, %c0_i32, %c0_i32_0 : i32, i32, i32
  }
}

module attributes {stable_mosaic.version = 11 : i64} {
  func.func @kernel(%arg0: i32, %arg1: memref<1x2x6x384xbf16, #tpu.memory_space<vmem>>, %arg2: memref<5x384x512xbf16, #tpu.memory_space<vmem>>, %arg3: memref<1x512xf32, #tpu.memory_space<vmem>>, %arg4: memref<1x4x256xbf16, #tpu.memory_space<vmem>>) attributes {dimension_semantics = [#tpu.dimension_semantics<parallel>], iteration_bounds = array<i64: 2>, scalar_prefetch = 0 : i64, scratch_operands = 0 : i64, tpu.core_type = #tpu.core_type<tc>, window_params = [{transform_indices = @transform_0, window_bounds = array<i64: 1, 2, 6, 384>}, {pipeline_mode = #tpu.pipeline_mode<synchronous>, transform_indices = @transform_1, window_bounds = array<i64: 5, 384, 512>}, {pipeline_mode = #tpu.pipeline_mode<synchronous>, transform_indices = @transform_2, window_bounds = array<i64: 1, 512>}, {transform_indices = @transform_3, window_bounds = array<i64: 1, 4, 256>}]} {
    %c0 = arith.constant 0 : index
    %c0_0 = arith.constant 0 : index
    %0 = vector.load %arg3[%c0, %c0_0] : memref<1x512xf32, #tpu.memory_space<vmem>>, vector<1x512xf32>
    %1 = tpu.iota {dimensions = array<i32: 0>} : vector<4x1xi32>
    %cst = arith.constant 0.000000e+00 : f32
    %2 = vector.broadcast %cst : f32 to vector<4x512xf32>
    %cst_1 = arith.constant 0.000000e+00 : f32
    %3 = vector.broadcast %cst_1 : f32 to vector<4x512xf32>
    %c0_2 = arith.constant 0 : index
    %c0_3 = arith.constant 0 : index
    %c0_4 = arith.constant 0 : index
    %c0_5 = arith.constant 0 : index
    %4 = vector.load %arg1[%c0_2, %c0_3, %c0_4, %c0_5] : memref<1x2x6x384xbf16, #tpu.memory_space<vmem>>, vector<1x1x4x384xbf16>
    %5 = vector.shape_cast %4 : vector<1x1x4x384xbf16> to vector<4x384xbf16>
    %c0_6 = arith.constant 0 : index
    %c0_7 = arith.constant 0 : index
    %c0_8 = arith.constant 0 : index
    %6 = vector.load %arg2[%c0_6, %c0_7, %c0_8] : memref<5x384x512xbf16, #tpu.memory_space<vmem>>, vector<1x384x512xbf16>
    %7 = vector.shape_cast %6 : vector<1x384x512xbf16> to vector<384x512xbf16>
    %cst_9 = arith.constant dense<0.000000e+00> : vector<4x512xf32>
    %8 = tpu.matmul %5, %7, %cst_9 {dimension_numbers = #tpu.dot_dimension_numbers<[1], [0], [0], [1], [0, 0, 1, 1], [], []>} : vector<4x384xbf16>, vector<384x512xbf16>, vector<4x512xf32> -> vector<4x512xf32>
    %9 = arith.addf %2, %8 : vector<4x512xf32>
    %c0_10 = arith.constant 0 : index
    %c1 = arith.constant 1 : index
    %c0_11 = arith.constant 0 : index
    %c0_12 = arith.constant 0 : index
    %10 = vector.load %arg1[%c0_10, %c1, %c0_11, %c0_12] : memref<1x2x6x384xbf16, #tpu.memory_space<vmem>>, vector<1x1x4x384xbf16>
    %11 = vector.shape_cast %10 : vector<1x1x4x384xbf16> to vector<4x384xbf16>
    %c1_13 = arith.constant 1 : index
    %c0_14 = arith.constant 0 : index
    %c0_15 = arith.constant 0 : index
    %12 = vector.load %arg2[%c1_13, %c0_14, %c0_15] : memref<5x384x512xbf16, #tpu.memory_space<vmem>>, vector<1x384x512xbf16>
    %13 = vector.shape_cast %12 : vector<1x384x512xbf16> to vector<384x512xbf16>
    %cst_16 = arith.constant dense<0.000000e+00> : vector<4x512xf32>
    %14 = tpu.matmul %11, %13, %cst_16 {dimension_numbers = #tpu.dot_dimension_numbers<[1], [0], [0], [1], [0, 0, 1, 1], [], []>} : vector<4x384xbf16>, vector<384x512xbf16>, vector<4x512xf32> -> vector<4x512xf32>
    %15 = arith.addf %9, %14 : vector<4x512xf32>
    %c0_17 = arith.constant 0 : index
    %c0_18 = arith.constant 0 : index
    %c0_19 = arith.constant 0 : index
    %16 = vector.load %arg2[%c0_17, %c0_18, %c0_19] : memref<5x384x512xbf16, #tpu.memory_space<vmem>>, vector<1x384x512xbf16>
    %17 = vector.shape_cast %16 : vector<1x384x512xbf16> to vector<384x512xbf16>
    %cst_20 = arith.constant dense<0.000000e+00> : vector<4x512xf32>
    %18 = tpu.matmul %11, %17, %cst_20 {dimension_numbers = #tpu.dot_dimension_numbers<[1], [0], [0], [1], [0, 0, 1, 1], [], []>} : vector<4x384xbf16>, vector<384x512xbf16>, vector<4x512xf32> -> vector<4x512xf32>
    %19 = arith.addf %3, %18 : vector<4x512xf32>
    %c0_21 = arith.constant 0 : index
    %c0_22 = arith.constant 0 : index
    %c1_23 = arith.constant 1 : index
    %c0_24 = arith.constant 0 : index
    %20 = vector.load %arg1[%c0_21, %c0_22, %c1_23, %c0_24] : memref<1x2x6x384xbf16, #tpu.memory_space<vmem>>, vector<1x1x4x384xbf16>
    %21 = vector.shape_cast %20 : vector<1x1x4x384xbf16> to vector<4x384xbf16>
    %c2 = arith.constant 2 : index
    %c0_25 = arith.constant 0 : index
    %c0_26 = arith.constant 0 : index
    %22 = vector.load %arg2[%c2, %c0_25, %c0_26] : memref<5x384x512xbf16, #tpu.memory_space<vmem>>, vector<1x384x512xbf16>
    %23 = vector.shape_cast %22 : vector<1x384x512xbf16> to vector<384x512xbf16>
    %cst_27 = arith.constant dense<0.000000e+00> : vector<4x512xf32>
    %24 = tpu.matmul %21, %23, %cst_27 {dimension_numbers = #tpu.dot_dimension_numbers<[1], [0], [0], [1], [0, 0, 1, 1], [], []>} : vector<4x384xbf16>, vector<384x512xbf16>, vector<4x512xf32> -> vector<4x512xf32>
    %25 = arith.addf %15, %24 : vector<4x512xf32>
    %c1_28 = arith.constant 1 : index
    %c0_29 = arith.constant 0 : index
    %c0_30 = arith.constant 0 : index
    %26 = vector.load %arg2[%c1_28, %c0_29, %c0_30] : memref<5x384x512xbf16, #tpu.memory_space<vmem>>, vector<1x384x512xbf16>
    %27 = vector.shape_cast %26 : vector<1x384x512xbf16> to vector<384x512xbf16>
    %cst_31 = arith.constant dense<0.000000e+00> : vector<4x512xf32>
    %28 = tpu.matmul %21, %27, %cst_31 {dimension_numbers = #tpu.dot_dimension_numbers<[1], [0], [0], [1], [0, 0, 1, 1], [], []>} : vector<4x384xbf16>, vector<384x512xbf16>, vector<4x512xf32> -> vector<4x512xf32>
    %29 = arith.addf %19, %28 : vector<4x512xf32>
    %c0_32 = arith.constant 0 : index
    %c1_33 = arith.constant 1 : index
    %c1_34 = arith.constant 1 : index
    %c0_35 = arith.constant 0 : index
    %30 = vector.load %arg1[%c0_32, %c1_33, %c1_34, %c0_35] : memref<1x2x6x384xbf16, #tpu.memory_space<vmem>>, vector<1x1x4x384xbf16>
    %31 = vector.shape_cast %30 : vector<1x1x4x384xbf16> to vector<4x384xbf16>
    %c3 = arith.constant 3 : index
    %c0_36 = arith.constant 0 : index
    %c0_37 = arith.constant 0 : index
    %32 = vector.load %arg2[%c3, %c0_36, %c0_37] : memref<5x384x512xbf16, #tpu.memory_space<vmem>>, vector<1x384x512xbf16>
    %33 = vector.shape_cast %32 : vector<1x384x512xbf16> to vector<384x512xbf16>
    %cst_38 = arith.constant dense<0.000000e+00> : vector<4x512xf32>
    %34 = tpu.matmul %31, %33, %cst_38 {dimension_numbers = #tpu.dot_dimension_numbers<[1], [0], [0], [1], [0, 0, 1, 1], [], []>} : vector<4x384xbf16>, vector<384x512xbf16>, vector<4x512xf32> -> vector<4x512xf32>
    %35 = arith.addf %25, %34 : vector<4x512xf32>
    %c2_39 = arith.constant 2 : index
    %c0_40 = arith.constant 0 : index
    %c0_41 = arith.constant 0 : index
    %36 = vector.load %arg2[%c2_39, %c0_40, %c0_41] : memref<5x384x512xbf16, #tpu.memory_space<vmem>>, vector<1x384x512xbf16>
    %37 = vector.shape_cast %36 : vector<1x384x512xbf16> to vector<384x512xbf16>
    %cst_42 = arith.constant dense<0.000000e+00> : vector<4x512xf32>
    %38 = tpu.matmul %31, %37, %cst_42 {dimension_numbers = #tpu.dot_dimension_numbers<[1], [0], [0], [1], [0, 0, 1, 1], [], []>} : vector<4x384xbf16>, vector<384x512xbf16>, vector<4x512xf32> -> vector<4x512xf32>
    %39 = arith.addf %29, %38 : vector<4x512xf32>
    %c0_43 = arith.constant 0 : index
    %c0_44 = arith.constant 0 : index
    %c2_45 = arith.constant 2 : index
    %c0_46 = arith.constant 0 : index
    %40 = vector.load %arg1[%c0_43, %c0_44, %c2_45, %c0_46] : memref<1x2x6x384xbf16, #tpu.memory_space<vmem>>, vector<1x1x4x384xbf16>
    %41 = vector.shape_cast %40 : vector<1x1x4x384xbf16> to vector<4x384xbf16>
    %c4 = arith.constant 4 : index
    %c0_47 = arith.constant 0 : index
    %c0_48 = arith.constant 0 : index
    %42 = vector.load %arg2[%c4, %c0_47, %c0_48] : memref<5x384x512xbf16, #tpu.memory_space<vmem>>, vector<1x384x512xbf16>
    %43 = vector.shape_cast %42 : vector<1x384x512xbf16> to vector<384x512xbf16>
    %cst_49 = arith.constant dense<0.000000e+00> : vector<4x512xf32>
    %44 = tpu.matmul %41, %43, %cst_49 {dimension_numbers = #tpu.dot_dimension_numbers<[1], [0], [0], [1], [0, 0, 1, 1], [], []>} : vector<4x384xbf16>, vector<384x512xbf16>, vector<4x512xf32> -> vector<4x512xf32>
    %45 = arith.addf %35, %44 : vector<4x512xf32>
    %c3_50 = arith.constant 3 : index
    %c0_51 = arith.constant 0 : index
    %c0_52 = arith.constant 0 : index
    %46 = vector.load %arg2[%c3_50, %c0_51, %c0_52] : memref<5x384x512xbf16, #tpu.memory_space<vmem>>, vector<1x384x512xbf16>
    %47 = vector.shape_cast %46 : vector<1x384x512xbf16> to vector<384x512xbf16>
    %cst_53 = arith.constant dense<0.000000e+00> : vector<4x512xf32>
    %48 = tpu.matmul %41, %47, %cst_53 {dimension_numbers = #tpu.dot_dimension_numbers<[1], [0], [0], [1], [0, 0, 1, 1], [], []>} : vector<4x384xbf16>, vector<384x512xbf16>, vector<4x512xf32> -> vector<4x512xf32>
    %49 = arith.addf %39, %48 : vector<4x512xf32>
    %c0_54 = arith.constant 0 : index
    %c1_55 = arith.constant 1 : index
    %c2_56 = arith.constant 2 : index
    %c0_57 = arith.constant 0 : index
    %50 = vector.load %arg1[%c0_54, %c1_55, %c2_56, %c0_57] : memref<1x2x6x384xbf16, #tpu.memory_space<vmem>>, vector<1x1x4x384xbf16>
    %51 = vector.shape_cast %50 : vector<1x1x4x384xbf16> to vector<4x384xbf16>
    %c4_58 = arith.constant 4 : index
    %c0_59 = arith.constant 0 : index
    %c0_60 = arith.constant 0 : index
    %52 = vector.load %arg2[%c4_58, %c0_59, %c0_60] : memref<5x384x512xbf16, #tpu.memory_space<vmem>>, vector<1x384x512xbf16>
    %53 = vector.shape_cast %52 : vector<1x384x512xbf16> to vector<384x512xbf16>
    %cst_61 = arith.constant dense<0.000000e+00> : vector<4x512xf32>
    %54 = tpu.matmul %51, %53, %cst_61 {dimension_numbers = #tpu.dot_dimension_numbers<[1], [0], [0], [1], [0, 0, 1, 1], [], []>} : vector<4x384xbf16>, vector<384x512xbf16>, vector<4x512xf32> -> vector<4x512xf32>
    %55 = arith.addf %49, %54 : vector<4x512xf32>
    %56 = vector.broadcast %0 : vector<1x512xf32> to vector<4x512xf32>
    %57 = arith.addf %45, %56 : vector<4x512xf32>
    %cst_62 = arith.constant 0.000000e+00 : f32
    %58 = vector.broadcast %cst_62 : f32 to vector<4x512xf32>
    %59 = arith.maximumf %57, %58 : vector<4x512xf32>
    %60 = vector.broadcast %0 : vector<1x512xf32> to vector<4x512xf32>
    %61 = arith.addf %55, %60 : vector<4x512xf32>
    %cst_63 = arith.constant 0.000000e+00 : f32
    %62 = vector.broadcast %cst_63 : f32 to vector<4x512xf32>
    %63 = arith.maximumf %61, %62 : vector<4x512xf32>
    %c1_i32 = arith.constant 1 : i32
    %64 = vector.broadcast %c1_i32 : i32 to vector<4x1xi32>
    %65 = arith.cmpi sge, %1, %64 : vector<4x1xi32>
    %cst_64 = arith.constant 0.000000e+00 : f32
    %66 = vector.shape_cast %65 : vector<4x1xi1> to vector<4x1xi1>
    %67 = vector.broadcast %66 : vector<4x1xi1> to vector<4x512xi1>
    %68 = vector.broadcast %cst_64 : f32 to vector<4x512xf32>
    %69 = arith.select %67, %59, %68 : vector<4x512xi1>, vector<4x512xf32>
    %c2_i32 = arith.constant 2 : i32
    %70 = vector.broadcast %c2_i32 : i32 to vector<4x1xi32>
    %71 = arith.cmpi sle, %1, %70 : vector<4x1xi32>
    %cst_65 = arith.constant 0.000000e+00 : f32
    %72 = vector.shape_cast %71 : vector<4x1xi1> to vector<4x1xi1>
    %73 = vector.broadcast %72 : vector<4x1xi1> to vector<4x512xi1>
    %74 = vector.broadcast %cst_65 : f32 to vector<4x512xf32>
    %75 = arith.select %73, %63, %74 : vector<4x512xi1>, vector<4x512xf32>
    %76 = arith.maximumf %69, %75 : vector<4x512xf32>
    %77 = vector.extract_strided_slice %76 {offsets = [0, 0], sizes = [4, 256], strides = [1, 1]} : vector<4x512xf32> to vector<4x256xf32>
    %78 = vector.extract_strided_slice %76 {offsets = [0, 256], sizes = [4, 256], strides = [1, 1]} : vector<4x512xf32> to vector<4x256xf32>
    %79 = arith.maximumf %77, %78 : vector<4x256xf32>
    %80 = arith.truncf %79 : vector<4x256xf32> to vector<4x256xbf16>
    %c0_66 = arith.constant 0 : index
    %c0_67 = arith.constant 0 : index
    %c0_68 = arith.constant 0 : index
    %81 = vector.load %arg4[%c0_66, %c0_67, %c0_68] : memref<1x4x256xbf16, #tpu.memory_space<vmem>>, vector<1x4x256xbf16>
    %82 = vector.shape_cast %81 : vector<1x4x256xbf16> to vector<4x256xbf16>
    %83 = vector.shape_cast %80 : vector<4x256xbf16> to vector<1x4x256xbf16>
    tpu.vector_store %arg4[%c0_66, %c0_67, %c0_68], %83 {strides = array<i32>} : memref<1x4x256xbf16, #tpu.memory_space<vmem>>, vector<1x4x256xbf16>,
    return
  }
  func.func @transform_0(%arg0: i32) -> (i32, i32, i32, i32) {
    %c0_i32 = arith.constant 0 : i32
    %c0_i32_0 = arith.constant 0 : i32
    %c0_i32_1 = arith.constant 0 : i32
    %c0_i32_2 = arith.constant 0 : i32
    return %arg0, %c0_i32, %c0_i32_0, %c0_i32_1 : i32, i32, i32, i32
  }
  func.func @transform_1(%arg0: i32) -> (i32, i32, i32) {
    %c0_i32 = arith.constant 0 : i32
    %c0_i32_0 = arith.constant 0 : i32
    %c0_i32_1 = arith.constant 0 : i32
    %c0_i32_2 = arith.constant 0 : i32
    return %c0_i32, %c0_i32_0, %c0_i32_1 : i32, i32, i32
  }
  func.func @transform_2(%arg0: i32) -> (i32, i32) {
    %c0_i32 = arith.constant 0 : i32
    %c0_i32_0 = arith.constant 0 : i32
    %c0_i32_1 = arith.constant 0 : i32
    return %c0_i32, %c0_i32_0 : i32, i32
  }
  func.func @transform_3(%arg0: i32) -> (i32, i32, i32) {
    %c0_i32 = arith.constant 0 : i32
    %c0_i32_0 = arith.constant 0 : i32
    %c0_i32_1 = arith.constant 0 : i32
    return %arg0, %c0_i32, %c0_i32_0 : i32, i32, i32
  }
}

module attributes {stable_mosaic.version = 11 : i64} {
  func.func @_fc_kernel(%arg0: i32, %arg1: memref<16x1024xbf16, #tpu.memory_space<vmem>>, %arg2: memref<1024x512xbf16, #tpu.memory_space<vmem>>, %arg3: memref<1x512xf32, #tpu.memory_space<vmem>>, %arg4: memref<512x128xbf16, #tpu.memory_space<vmem>>, %arg5: memref<1x128xf32, #tpu.memory_space<vmem>>, %arg6: memref<16x128xf32, #tpu.memory_space<vmem>>) attributes {dimension_semantics = [#tpu.dimension_semantics<parallel>], iteration_bounds = array<i64: 1>, scalar_prefetch = 0 : i64, scratch_operands = 0 : i64, tpu.core_type = #tpu.core_type<tc>, window_params = [{transform_indices = @transform_0, window_bounds = array<i64: 16, 1024>}, {pipeline_mode = #tpu.pipeline_mode<synchronous>, transform_indices = @transform_1, window_bounds = array<i64: 1024, 512>}, {pipeline_mode = #tpu.pipeline_mode<synchronous>, transform_indices = @transform_2, window_bounds = array<i64: 1, 512>}, {pipeline_mode = #tpu.pipeline_mode<synchronous>, transform_indices = @transform_3, window_bounds = array<i64: 512, 128>}, {pipeline_mode = #tpu.pipeline_mode<synchronous>, transform_indices = @transform_4, window_bounds = array<i64: 1, 128>}, {transform_indices = @transform_5, window_bounds = array<i64: 16, 128>}]} {
    %c0 = arith.constant 0 : index
    %c0_0 = arith.constant 0 : index
    %0 = vector.load %arg1[%c0, %c0_0] : memref<16x1024xbf16, #tpu.memory_space<vmem>>, vector<16x1024xbf16>
    %c0_1 = arith.constant 0 : index
    %c0_2 = arith.constant 0 : index
    %1 = vector.load %arg2[%c0_1, %c0_2] : memref<1024x512xbf16, #tpu.memory_space<vmem>>, vector<1024x512xbf16>
    %cst = arith.constant dense<0.000000e+00> : vector<16x512xf32>
    %2 = tpu.matmul %0, %1, %cst {dimension_numbers = #tpu.dot_dimension_numbers<[1], [0], [0], [1], [0, 0, 1, 1], [], []>} : vector<16x1024xbf16>, vector<1024x512xbf16>, vector<16x512xf32> -> vector<16x512xf32>
    %c0_3 = arith.constant 0 : index
    %c0_4 = arith.constant 0 : index
    %3 = vector.load %arg3[%c0_3, %c0_4] : memref<1x512xf32, #tpu.memory_space<vmem>>, vector<1x512xf32>
    %4 = vector.broadcast %3 : vector<1x512xf32> to vector<16x512xf32>
    %5 = arith.addf %2, %4 : vector<16x512xf32>
    %cst_5 = arith.constant 0.000000e+00 : f32
    %6 = vector.broadcast %cst_5 : f32 to vector<16x512xf32>
    %7 = arith.maximumf %5, %6 : vector<16x512xf32>
    %8 = arith.truncf %7 : vector<16x512xf32> to vector<16x512xbf16>
    %c0_6 = arith.constant 0 : index
    %c0_7 = arith.constant 0 : index
    %9 = vector.load %arg4[%c0_6, %c0_7] : memref<512x128xbf16, #tpu.memory_space<vmem>>, vector<512x128xbf16>
    %cst_8 = arith.constant dense<0.000000e+00> : vector<16x128xf32>
    %10 = tpu.matmul %8, %9, %cst_8 {dimension_numbers = #tpu.dot_dimension_numbers<[1], [0], [0], [1], [0, 0, 1, 1], [], []>} : vector<16x512xbf16>, vector<512x128xbf16>, vector<16x128xf32> -> vector<16x128xf32>
    %c0_9 = arith.constant 0 : index
    %c0_10 = arith.constant 0 : index
    %11 = vector.load %arg5[%c0_9, %c0_10] : memref<1x128xf32, #tpu.memory_space<vmem>>, vector<1x128xf32>
    %12 = vector.broadcast %11 : vector<1x128xf32> to vector<16x128xf32>
    %13 = arith.addf %10, %12 : vector<16x128xf32>
    %c0_11 = arith.constant 0 : index
    %c0_12 = arith.constant 0 : index
    %14 = vector.load %arg6[%c0_11, %c0_12] : memref<16x128xf32, #tpu.memory_space<vmem>>, vector<16x128xf32>
    tpu.vector_store %arg6[%c0_11, %c0_12], %13 {strides = array<i32>} : memref<16x128xf32, #tpu.memory_space<vmem>>, vector<16x128xf32>,
    return
  }
  func.func @transform_0(%arg0: i32) -> (i32, i32) {
    %c0_i32 = arith.constant 0 : i32
    %c0_i32_0 = arith.constant 0 : i32
    return %arg0, %c0_i32 : i32, i32
  }
  func.func @transform_1(%arg0: i32) -> (i32, i32) {
    %c0_i32 = arith.constant 0 : i32
    %c0_i32_0 = arith.constant 0 : i32
    %c0_i32_1 = arith.constant 0 : i32
    return %c0_i32, %c0_i32_0 : i32, i32
  }
  func.func @transform_2(%arg0: i32) -> (i32, i32) {
    %c0_i32 = arith.constant 0 : i32
    %c0_i32_0 = arith.constant 0 : i32
    %c0_i32_1 = arith.constant 0 : i32
    return %c0_i32, %c0_i32_0 : i32, i32
  }
  func.func @transform_3(%arg0: i32) -> (i32, i32) {
    %c0_i32 = arith.constant 0 : i32
    %c0_i32_0 = arith.constant 0 : i32
    %c0_i32_1 = arith.constant 0 : i32
    return %c0_i32, %c0_i32_0 : i32, i32
  }
  func.func @transform_4(%arg0: i32) -> (i32, i32) {
    %c0_i32 = arith.constant 0 : i32
    %c0_i32_0 = arith.constant 0 : i32
    %c0_i32_1 = arith.constant 0 : i32
    return %c0_i32, %c0_i32_0 : i32, i32
  }
  func.func @transform_5(%arg0: i32) -> (i32, i32) {
    %c0_i32 = arith.constant 0 : i32
    %c0_i32_0 = arith.constant 0 : i32
    return %arg0, %c0_i32 : i32, i32
  }
}

</mosaic_0001>

<llo_original>
// kernel: cnn_forward.3
$region0: #{cnn_forward.3}
  #allocation0 [shape = 'u32[]', space=smem, size = 0x4, offset = 0x4, fixed_abs, tag = 'smem constant byte address 0x4 - core index']
  #allocation1 [shape = 'u32[144,128]{1,0:T(1,128)}', space=vmem, size = 0x12000, scoped, tag = 'internal scratch']
  %s0 = inlined_call_operand.vmem [shape: bf16[2,2,10,60], index: 0, kind: input, shape index: {}]
  %s1 = inlined_call_operand.hbm [shape: bf16[5,60,512], index: 1, kind: input, shape index: {}]
  %s2 = inlined_call_operand.hbm [shape: f32[1,512], index: 2, kind: input, shape index: {}]
  %s3 = inlined_call_operand.vmem [shape: bf16[2,8,256], index: 3, kind: output, shape index: {}]
  %s4 = sld [smem:[#allocation0]]
  $region53: #{cnn_forward.3} parent=0
    _
  %s6 = ssub.s32 1, %s4
  %s7 = scalar_select 0, %s6, %s4
  $region1: #{cnn_forward.3} parent=0
    #allocation2 [shape = 'u8[327680]{0}', space=vmem, size = 0x50000, scoped, tag = 'input window, operand 1, single buffered']
    #allocation3 [shape = 's32[2]{0}', space=sflag, size = 0x8, scoped, tag = 'scoped memory for cnn_forward.3']
    #allocation4 [shape = 'u8[2048]{0}', space=vmem, size = 0x800, scoped, tag = 'input window, operand 2, single buffered']
    #allocation5 [shape = 's32[1]{0}', space=sflag, size = 0x4, scoped, tag = 'scoped memory for cnn_forward.3']
    %8 = vsyncpa [#allocation3], 0
    %9 = vsyncpa [#allocation5], 0
    loop: start=0, step=1, limit=4
    $region2: #{cnn_forward.3} parent=1 // loop_pre_header
      _
    $region3: #{cnn_forward.3} parent=1 // loop_header
      %s11 = sphi 0, %s15
      %p12 = scmp.ge.s32.totalorder %s11, 4
      %s21 = sphi 0, %s23
      %s24 = sphi 0, %s21
      %s25 = sphi 0, %s24
      %s41 = sphi 0, %s25
      %s45 = sphi 0, %s45
      %s47 = sphi 0, %s45
      %s48 = sphi 0, %s47
      %s62 = sphi 0, %s48
      %s66 = sphi 0, %s66
      %s68 = sphi 0, %s66
      %s69 = sphi 0, %s68
      %s83 = sphi 0, %s69
      %s89 = sphi 0, %s91
      %s92 = sphi 0, %s89
      %s93 = sphi 0, %s92
      %s109 = sphi 0, %s93
    $region4: #{cnn_forward.3} parent=1 // loop_header_branch
      %14 = sbr.rel (%p12) target = $region8
    $region5: #{cnn_forward.3} parent=1 // loop_body
      %s16 = ssub.s32 %s11, 1
      %s17 = ssub.s32 %s11, 2
      %s18 = sadd.s32 %s11, 1
      %s19 = ssub.s32 %s11, %s18
      %p20 = scmp.eq.s32.totalorder %s19, 0
      %s22 = sadd.s32 %s21, 1
      %s23 = scalar_select %p20, %s21, %s22
      %p26 = pneg %p20
      %p27 = scmp.eq.s32.totalorder %s11, 1
      %p28 = por %p26, %p27
      %p29 = scmp.ne.s32.totalorder %s21, %s24
      %p30 = scmp.eq.s32.totalorder %s11, 0
      %p31 = por %p29, %p30
      %p32 = scmp.ne.s32.totalorder %s21, %s24
      %p33 = scmp.eq.s32.totalorder %s16, 1
      %p34 = por %p32, %p33
      %p35 = scmp.ne.s32.totalorder %s24, %s25
      %p36 = scmp.eq.s32.totalorder %s16, 0
      %p37 = por %p35, %p36
      %p38 = scmp.ne.s32.totalorder %s24, %s25
      %p39 = scmp.eq.s32.totalorder %s17, 1
      %p40 = por %p38, %p39
      %p42 = scmp.ne.s32.totalorder %s25, %s41
      %p43 = scmp.eq.s32.totalorder %s17, 0
      %p44 = por %p42, %p43
      %s46 = sadd.s32 %s45, 1
      %p49 = scmp.eq.s32.totalorder %s11, 1
      %p50 = scmp.ne.s32.totalorder %s45, %s47
      %p51 = scmp.eq.s32.totalorder %s11, 0
      %p52 = por %p50, %p51
      %p53 = scmp.ne.s32.totalorder %s45, %s47
      %p54 = scmp.eq.s32.totalorder %s16, 1
      %p55 = por %p53, %p54
      %p56 = scmp.ne.s32.totalorder %s47, %s48
      %p57 = scmp.eq.s32.totalorder %s16, 0
      %p58 = por %p56, %p57
      %p59 = scmp.ne.s32.totalorder %s47, %s48
      %p60 = scmp.eq.s32.totalorder %s17, 1
      %p61 = por %p59, %p60
      %p63 = scmp.ne.s32.totalorder %s48, %s62
      %p64 = scmp.eq.s32.totalorder %s17, 0
      %p65 = por %p63, %p64
      %s67 = sadd.s32 %s66, 1
      %p70 = scmp.eq.s32.totalorder %s11, 1
      %p71 = scmp.ne.s32.totalorder %s66, %s68
      %p72 = scmp.eq.s32.totalorder %s11, 0
      %p73 = por %p71, %p72
      %p74 = scmp.ne.s32.totalorder %s66, %s68
      %p75 = scmp.eq.s32.totalorder %s16, 1
      %p76 = por %p74, %p75
      %p77 = scmp.ne.s32.totalorder %s68, %s69
      %p78 = scmp.eq.s32.totalorder %s16, 0
      %p79 = por %p77, %p78
      %p80 = scmp.ne.s32.totalorder %s68, %s69
      %p81 = scmp.eq.s32.totalorder %s17, 1
      %p82 = por %p80, %p81
      %p84 = scmp.ne.s32.totalorder %s69, %s83
      %p85 = scmp.eq.s32.totalorder %s17, 0
      %p86 = por %p84, %p85
      %s87 = ssub.s32 %s11, %s18
      %p88 = scmp.eq.s32.totalorder %s87, 0
      %s90 = sadd.s32 %s89, 1
      %s91 = scalar_select %p88, %s89, %s90
      %p94 = pneg %p88
      %p95 = scmp.eq.s32.totalorder %s11, 1
      %p96 = por %p94, %p95
      %p97 = scmp.ne.s32.totalorder %s89, %s92
      %p98 = scmp.eq.s32.totalorder %s11, 0
      %p99 = por %p97, %p98
      %p100 = scmp.ne.s32.totalorder %s89, %s92
      %p101 = scmp.eq.s32.totalorder %s16, 1
      %p102 = por %p100, %p101
      %p103 = scmp.ne.s32.totalorder %s92, %s93
      %p104 = scmp.eq.s32.totalorder %s16, 0
      %p105 = por %p103, %p104
      %p106 = scmp.ne.s32.totalorder %s92, %s93
      %p107 = scmp.eq.s32.totalorder %s17, 1
      %p108 = por %p106, %p107
      %p110 = scmp.ne.s32.totalorder %s93, %s109
      %p111 = scmp.eq.s32.totalorder %s17, 0
      %p112 = por %p110, %p111
      %p113 = scmp.le.s32.totalorder 1, %s11
      %p114 = scmp.lt.s32.totalorder %s11, 3
      %p115 = pnand %p113, %p114
      %p116 = pneg %p115
      // Predicated region
      $region9: #{cnn_forward.3} parent=5 // pred_check
        _
      $region10: #{cnn_forward.3} parent=5 // pred_check_branch
        %118 = sbr.rel (%p115) target = $region12
      $region11: #{cnn_forward.3} parent=5 // pred_region
        %s119 = ssub.s32 %s11, 1
        // Predicated region
        $region13: #{cnn_forward.3} parent=11 // pred_check
          %p120 = pneg %p58
        $region14: #{cnn_forward.3} parent=11 // pred_check_branch
          %122 = sbr.rel (%p120) target = $region16
        $region15: #{cnn_forward.3} parent=11 // pred_region
          %s124 = ssub.s32 10240, 10240
          %125 = vsyncadd [#allocation3], %s124
          %s126 = sshll.u32 [#allocation2], 4
          %s127 = int_to_ptr.vmem [resolvable:$true] %s126
          %132 = dma.hbm_to_vmem [thread:$0]  %s1, 10240, %s127, [#allocation3], 256, 256, 16
        $region16: #{cnn_forward.3} parent=11 // pred_fallthru
          _
        // Predicated region
        $region17: #{cnn_forward.3} parent=11 // pred_check
          %p133 = pneg %p79
        $region18: #{cnn_forward.3} parent=11 // pred_check_branch
          %135 = sbr.rel (%p133) target = $region20
        $region19: #{cnn_forward.3} parent=11 // pred_region
          %s137 = ssub.s32 64, 64
          %138 = vsyncadd [#allocation5], %s137
          %s140 = sshll.u32 [#allocation4], 4
          %s141 = int_to_ptr.vmem [resolvable:$true] %s140
          %143 = dma.hbm_to_vmem [thread:$0]  %s2, 64, %s141, [#allocation5]
        $region20: #{cnn_forward.3} parent=11 // pred_fallthru
          _
      $region12: #{cnn_forward.3} parent=5 // pred_fallthru
        _
      %p144 = scmp.lt.s32.totalorder %s11, 2
      // Predicated region
      $region21: #{cnn_forward.3} parent=5 // pred_check
        %p145 = pneg %p144
      $region22: #{cnn_forward.3} parent=5 // pred_check_branch
        %147 = sbr.rel (%p145) target = $region24
      $region23: #{cnn_forward.3} parent=5 // pred_region
        // Predicated region
        $region25: #{cnn_forward.3} parent=23 // pred_check
          %p148 = pneg %p31
        $region26: #{cnn_forward.3} parent=23 // pred_check_branch
          %150 = sbr.rel (%p148) target = $region28
        $region27: #{cnn_forward.3} parent=23 // pred_region
          %p151 = scmp.lt.s32.totalorder %s11, 1
          %s152 = scalar_select %p151, %s11, 1
          %s153 = smul.addr %s152, 4
          %s154 = smul.addr %s153, 4
          %s155 = scalar_lea.vmem %s0, %s154
        $region28: #{cnn_forward.3} parent=23 // pred_fallthru
          _
      $region24: #{cnn_forward.3} parent=5 // pred_fallthru
        _
      %p156 = scmp.le.s32.totalorder 1, %s11
      %p157 = scmp.lt.s32.totalorder %s11, 3
      %p158 = pnand %p156, %p157
      %p159 = pneg %p158
      // Predicated region
      $region29: #{cnn_forward.3} parent=5 // pred_check
        _
      $region30: #{cnn_forward.3} parent=5 // pred_check_branch
        %161 = sbr.rel (%p158) target = $region32
      $region31: #{cnn_forward.3} parent=5 // pred_region
        %s162 = ssub.s32 %s11, 1
        // Predicated region
        $region33: #{cnn_forward.3} parent=31 // pred_check
          %p163 = pneg %p58
        $region34: #{cnn_forward.3} parent=31 // pred_check_branch
          %165 = sbr.rel (%p163) target = $region36
        $region35: #{cnn_forward.3} parent=31 // pred_region
          %166 = dma.done [#allocation3], 10240
        $region36: #{cnn_forward.3} parent=31 // pred_fallthru
          _
        // Predicated region
        $region37: #{cnn_forward.3} parent=31 // pred_check
          %p167 = pneg %p79
        $region38: #{cnn_forward.3} parent=31 // pred_check_branch
          %169 = sbr.rel (%p167) target = $region40
        $region39: #{cnn_forward.3} parent=31 // pred_region
          %170 = dma.done [#allocation5], 64
        $region40: #{cnn_forward.3} parent=31 // pred_fallthru
          _
        %p171 = scmp.lt.s32.totalorder %s16, 1
        %s172 = scalar_select %p171, %s16, 1
        %s173 = smul.addr %s172, 4
        %s174 = smul.addr %s173, 4
        %s175 = scalar_lea.vmem %s0, %s174
        %p176 = pneg %p37
        %p177 = pneg %p34
        %p178 = pneg %p58
        %p179 = pneg %p55
        %p180 = pneg %p79
        %p181 = pneg %p76
        %p182 = pneg %p105
        %p183 = pneg %p102
        %p184 = scmp.lt.s32.totalorder %s16, 1
        %s185 = scalar_select %p184, %s16, 1
        %s186 = smul.addr %s185, 2
        %s187 = smul.addr %s186, 4
        %s188 = scalar_lea.vmem %s3, %s187
        %p189 = scmp.lt.s32.totalorder %s16, 1
        %s190 = scalar_select %p189, %s16, 1
        %s191 = smul.addr %s190, 4
        %s192 = smul.addr %s191, 4
        %s193 = scalar_lea.vmem %s0, %s192
        %p194 = scmp.lt.s32.totalorder %s16, 1
        %s195 = scalar_select %p194, %s16, 1
        %s196 = smul.addr %s195, 2
        %s197 = smul.addr %s196, 4
        %s198 = scalar_lea.vmem %s3, %s197
        %v200 = vld [vmem:[#allocation4] sm:$0xf]
        %v201 = vlaneseq
        %v202 = vshrl.u32 %v201, 7
        %v203 = vld [vmem:[%s193] sm:$0xf]
        %v204 = vld [vmem:[#allocation2] sm:$0xff]
        %v205 = vld [vmem:[#allocation2 + $0x8] sm:$0xff]
        %v206 = vld [vmem:[#allocation2 + $0x10] sm:$0xff]
        %v207 = vld [vmem:[#allocation2 + $0x18] sm:$0xff]
        %v208 = vld [vmem:[#allocation2 + $0x20] sm:$0xff]
        %v209 = vld [vmem:[#allocation2 + $0x28] sm:$0xff]
        %v210 = vld [vmem:[#allocation2 + $0x30] sm:$0xff]
        %v211 = vld [vmem:[#allocation2 + $0x38] sm:$0xff]
        %v212 = vld [vmem:[#allocation2 + $0x40] sm:$0xff]
        %v213 = vld [vmem:[#allocation2 + $0x48] sm:$0xff]
        %v214 = vld [vmem:[#allocation2 + $0x50] sm:$0xff]
        %v215 = vld [vmem:[#allocation2 + $0x58] sm:$0xff]
        %v216 = vld [vmem:[#allocation2 + $0x60] sm:$0xff]
        %v217 = vld [vmem:[#allocation2 + $0x68] sm:$0xff]
        %v218 = vld [vmem:[#allocation2 + $0x70] sm:$0x33]
        %v219 = vld [vmem:[#allocation2 + $0x78] sm:$0x33]
        %s220 = scalar_lea.vmem %s193, 8
        %v221 = vld [vmem:[%s220] sm:$0xf]
        %s222 = scalar_lea.vmem [#allocation2], 128
        %v223 = vld [vmem:[%s222] sm:$0xff]
        %v224 = vld [vmem:[%s222 + $0x8] sm:$0xff]
        %v225 = vld [vmem:[%s222 + $0x10] sm:$0xff]
        %v226 = vld [vmem:[%s222 + $0x18] sm:$0xff]
        %v227 = vld [vmem:[%s222 + $0x20] sm:$0xff]
        %v228 = vld [vmem:[%s222 + $0x28] sm:$0xff]
        %v229 = vld [vmem:[%s222 + $0x30] sm:$0xff]
        %v230 = vld [vmem:[%s222 + $0x38] sm:$0xff]
        %v231 = vld [vmem:[%s222 + $0x40] sm:$0xff]
        %v232 = vld [vmem:[%s222 + $0x48] sm:$0xff]
        %v233 = vld [vmem:[%s222 + $0x50] sm:$0xff]
        %v234 = vld [vmem:[%s222 + $0x58] sm:$0xff]
        %v235 = vld [vmem:[%s222 + $0x60] sm:$0xff]
        %v236 = vld [vmem:[%s222 + $0x68] sm:$0xff]
        %v237 = vld [vmem:[%s222 + $0x70] sm:$0x33]
        %v238 = vld [vmem:[%s222 + $0x78] sm:$0x33]
        %v255 = vunpack.c.l.b16 %v223
        %v256 = vunpack.c.h.b16 %v223
        %v257 = vunpack.c.l.b16 %v224
        %v258 = vunpack.c.h.b16 %v224
        %v259 = vunpack.c.l.b16 %v225
        %v260 = vunpack.c.h.b16 %v225
        %v261 = vunpack.c.l.b16 %v226
        %v262 = vunpack.c.h.b16 %v226
        %v263 = vunpack.c.l.b16 %v227
        %v264 = vunpack.c.h.b16 %v227
        %v265 = vunpack.c.l.b16 %v228
        %v266 = vunpack.c.h.b16 %v228
        %v267 = vunpack.c.l.b16 %v229
        %v268 = vunpack.c.h.b16 %v229
        %v269 = vunpack.c.l.b16 %v230
        %v270 = vunpack.c.h.b16 %v230
        %v271 = vunpack.c.l.b16 %v231
        %v272 = vunpack.c.h.b16 %v231
        %v273 = vunpack.c.l.b16 %v232
        %v274 = vunpack.c.h.b16 %v232
        %v275 = vunpack.c.l.b16 %v233
        %v276 = vunpack.c.h.b16 %v233
        %v277 = vunpack.c.l.b16 %v234
        %v278 = vunpack.c.h.b16 %v234
        %v279 = vunpack.c.l.b16 %v235
        %v280 = vunpack.c.h.b16 %v235
        %v281 = vunpack.c.l.b16 %v236
        %v282 = vunpack.c.h.b16 %v236
        %v283 = vunpack.c.l.b16 %v237
        %v284 = vunpack.c.h.b16 %v237
        %v285 = vunpack.c.l.b16 %v238
        %v286 = vunpack.c.h.b16 %v238
        %v287 = vpack.c.b16 %v259, %v255
        %v288 = vpack.c.b16 %v260, %v256
        %v289 = vpack.c.b16 %v261, %v257
        %v290 = vpack.c.b16 %v262, %v258
        %v291 = vpack.c.b16 %v267, %v263
        %v292 = vpack.c.b16 %v268, %v264
        %v293 = vpack.c.b16 %v269, %v265
        %v294 = vpack.c.b16 %v270, %v266
        %v295 = vpack.c.b16 %v275, %v271
        %v296 = vpack.c.b16 %v276, %v272
        %v297 = vpack.c.b16 %v277, %v273
        %v298 = vpack.c.b16 %v278, %v274
        %v299 = vpack.c.b16 %v283, %v279
        %v300 = vpack.c.b16 %v284, %v280
        %v301 = vpack.c.b16 %v285, %v281
        %v302 = vpack.c.b16 %v286, %v282
        %vm315 = vcmask 490496
        %v317 = vsel %vm315, %v221, 0
        %vm319 = vcmask 1045504
        %v321 = vsel %vm319, %v299, 0
        %v324 = vsel %vm319, %v300, 0
        %v327 = vsel %vm319, %v301, 0
        %v330 = vsel %vm319, %v302, 0
        %332 = vmatprep.subr.bf16.mxu0 0
        %333 = vmatpush1.bf16.msra.mxu0 0
        %334 = vmatprep.subr.bf16.mxu0 0
        %335 = vmatpush1.bf16.msra.mxu0 0
        %336 = vmatprep.subr.bf16.mxu0 0
        %337 = vmatpush1.bf16.msra.mxu0 0
        %338 = vmatprep.subr.bf16.mxu0 0
        %339 = vmatpush1.bf16.msra.mxu0 0
        %340 = vmatprep.subr.bf16.mxu0 %v324
        %341 = vmatpush1.bf16.msra.mxu0 %v321
        %342 = vmatprep.subr.bf16.mxu0 %v296
        %343 = vmatpush1.bf16.msra.mxu0 %v295
        %344 = vmatprep.subr.bf16.mxu0 %v292
        %345 = vmatpush1.bf16.msra.mxu0 %v291
        %346 = vmatprep.subr.bf16.mxu0 %v288
        %347 = vmatpush1.bf16.msra.mxu0 %v287
        %348 = vmatprep.subr.bf16.mxu0 0
        %349 = vmatpush2.bf16.msra.mxu0 0
        %350 = vmatprep.subr.bf16.mxu0 0
        %351 = vmatpush2.bf16.msra.mxu0 0
        %352 = vmatprep.subr.bf16.mxu0 0
        %353 = vmatpush2.bf16.msra.mxu0 0
        %354 = vmatprep.subr.bf16.mxu0 0
        %355 = vmatpush2.bf16.msra.mxu0 0
        %356 = vmatprep.subr.bf16.mxu0 0
        %357 = vmatpush2.bf16.msra.mxu0 0
        %358 = vmatprep.subr.bf16.mxu0 0
        %359 = vmatpush2.bf16.msra.mxu0 0
        %360 = vmatprep.subr.bf16.mxu0 0
        %361 = vmatpush2.bf16.msra.mxu0 0
        %362 = vmatprep.subr.bf16.mxu0 0
        %363 = vmatpush2.bf16.msra.mxu0 0
        %364 = vmatprep.mubr.bf16.mxu0 0
        %365 = vmatmul.mubr.bf16.gmra.mxu0 %v317
        %v366 = vpop.f32.mrf.mxu0
        %v367 = vadd.f32 0.0, %v366
        %v368 = vpop.f32.mrf.mxu0
        %v369 = vadd.f32 0.0, %v368
        %v370 = vpop.f32.mrf.mxu0
        %v371 = vpop.f32.mrf.mxu0
        %372 = vdwg.mxu0
        %373 = vmatprep.subr.bf16.mxu0 0
        %374 = vmatpush1.bf16.msra.mxu0 0
        %375 = vmatprep.subr.bf16.mxu0 0
        %376 = vmatpush1.bf16.msra.mxu0 0
        %377 = vmatprep.subr.bf16.mxu0 0
        %378 = vmatpush1.bf16.msra.mxu0 0
        %379 = vmatprep.subr.bf16.mxu0 0
        %380 = vmatpush1.bf16.msra.mxu0 0
        %381 = vmatprep.subr.bf16.mxu0 %v330
        %382 = vmatpush1.bf16.msra.mxu0 %v327
        %383 = vmatprep.subr.bf16.mxu0 %v298
        %384 = vmatpush1.bf16.msra.mxu0 %v297
        %385 = vmatprep.subr.bf16.mxu0 %v294
        %386 = vmatpush1.bf16.msra.mxu0 %v293
        %387 = vmatprep.subr.bf16.mxu0 %v290
        %388 = vmatpush1.bf16.msra.mxu0 %v289
        %389 = vmatprep.subr.bf16.mxu0 0
        %390 = vmatpush2.bf16.msra.mxu0 0
        %391 = vmatprep.subr.bf16.mxu0 0
        %392 = vmatpush2.bf16.msra.mxu0 0
        %393 = vmatprep.subr.bf16.mxu0 0
        %394 = vmatpush2.bf16.msra.mxu0 0
        %395 = vmatprep.subr.bf16.mxu0 0
        %396 = vmatpush2.bf16.msra.mxu0 0
        %397 = vmatprep.subr.bf16.mxu0 0
        %398 = vmatpush2.bf16.msra.mxu0 0
        %399 = vmatprep.subr.bf16.mxu0 0
        %400 = vmatpush2.bf16.msra.mxu0 0
        %401 = vmatprep.subr.bf16.mxu0 0
        %402 = vmatpush2.bf16.msra.mxu0 0
        %403 = vmatprep.subr.bf16.mxu0 0
        %404 = vmatpush2.bf16.msra.mxu0 0
        %405 = vmatprep.mubr.bf16.mxu0 0
        %406 = vmatmul.mubr.bf16.gmra.mxu0 %v317
        %v407 = vpop.f32.mrf.mxu0
        %v408 = vadd.f32 0.0, %v407
        %v409 = vpop.f32.mrf.mxu0
        %v410 = vadd.f32 0.0, %v409
        %v411 = vpop.f32.mrf.mxu0
        %v412 = vpop.f32.mrf.mxu0
        %413 = vdwg.mxu0
        %v430 = vunpack.c.l.b16 %v204
        %v431 = vunpack.c.h.b16 %v204
        %v432 = vunpack.c.l.b16 %v205
        %v433 = vunpack.c.h.b16 %v205
        %v434 = vunpack.c.l.b16 %v206
        %v435 = vunpack.c.h.b16 %v206
        %v436 = vunpack.c.l.b16 %v207
        %v437 = vunpack.c.h.b16 %v207
        %v438 = vunpack.c.l.b16 %v208
        %v439 = vunpack.c.h.b16 %v208
        %v440 = vunpack.c.l.b16 %v209
        %v441 = vunpack.c.h.b16 %v209
        %v442 = vunpack.c.l.b16 %v210
        %v443 = vunpack.c.h.b16 %v210
        %v444 = vunpack.c.l.b16 %v211
        %v445 = vunpack.c.h.b16 %v211
        %v446 = vunpack.c.l.b16 %v212
        %v447 = vunpack.c.h.b16 %v212
        %v448 = vunpack.c.l.b16 %v213
        %v449 = vunpack.c.h.b16 %v213
        %v450 = vunpack.c.l.b16 %v214
        %v451 = vunpack.c.h.b16 %v214
        %v452 = vunpack.c.l.b16 %v215
        %v453 = vunpack.c.h.b16 %v215
        %v454 = vunpack.c.l.b16 %v216
        %v455 = vunpack.c.h.b16 %v216
        %v456 = vunpack.c.l.b16 %v217
        %v457 = vunpack.c.h.b16 %v217
        %v458 = vunpack.c.l.b16 %v218
        %v459 = vunpack.c.h.b16 %v218
        %v460 = vunpack.c.l.b16 %v219
        %v461 = vunpack.c.h.b16 %v219
        %v462 = vpack.c.b16 %v434, %v430
        %v463 = vpack.c.b16 %v435, %v431
        %v464 = vpack.c.b16 %v436, %v432
        %v465 = vpack.c.b16 %v437, %v433
        %v466 = vpack.c.b16 %v442, %v438
        %v467 = vpack.c.b16 %v443, %v439
        %v468 = vpack.c.b16 %v444, %v440
        %v469 = vpack.c.b16 %v445, %v441
        %v470 = vpack.c.b16 %v450, %v446
        %v471 = vpack.c.b16 %v451, %v447
        %v472 = vpack.c.b16 %v452, %v448
        %v473 = vpack.c.b16 %v453, %v449
        %v474 = vpack.c.b16 %v458, %v454
        %v475 = vpack.c.b16 %v459, %v455
        %v476 = vpack.c.b16 %v460, %v456
        %v477 = vpack.c.b16 %v461, %v457
        %v491 = vsel %vm315, %v203, 0
        %v494 = vsel %vm319, %v474, 0
        %v497 = vsel %vm319, %v475, 0
        %v500 = vsel %vm319, %v476, 0
        %v503 = vsel %vm319, %v477, 0
        %505 = vmatprep.subr.bf16.mxu0 0
        %506 = vmatpush1.bf16.msra.mxu0 0
        %507 = vmatprep.subr.bf16.mxu0 0
        %508 = vmatpush1.bf16.msra.mxu0 0
        %509 = vmatprep.subr.bf16.mxu0 0
        %510 = vmatpush1.bf16.msra.mxu0 0
        %511 = vmatprep.subr.bf16.mxu0 0
        %512 = vmatpush1.bf16.msra.mxu0 0
        %513 = vmatprep.subr.bf16.mxu0 %v497
        %514 = vmatpush1.bf16.msra.mxu0 %v494
        %515 = vmatprep.subr.bf16.mxu0 %v471
        %516 = vmatpush1.bf16.msra.mxu0 %v470
        %517 = vmatprep.subr.bf16.mxu0 %v467
        %518 = vmatpush1.bf16.msra.mxu0 %v466
        %519 = vmatprep.subr.bf16.mxu0 %v463
        %520 = vmatpush1.bf16.msra.mxu0 %v462
        %521 = vmatprep.subr.bf16.mxu0 0
        %522 = vmatpush2.bf16.msra.mxu0 0
        %523 = vmatprep.subr.bf16.mxu0 0
        %524 = vmatpush2.bf16.msra.mxu0 0
        %525 = vmatprep.subr.bf16.mxu0 0
        %526 = vmatpush2.bf16.msra.mxu0 0
        %527 = vmatprep.subr.bf16.mxu0 0
        %528 = vmatpush2.bf16.msra.mxu0 0
        %529 = vmatprep.subr.bf16.mxu0 0
        %530 = vmatpush2.bf16.msra.mxu0 0
        %531 = vmatprep.subr.bf16.mxu0 0
        %532 = vmatpush2.bf16.msra.mxu0 0
        %533 = vmatprep.subr.bf16.mxu0 0
        %534 = vmatpush2.bf16.msra.mxu0 0
        %535 = vmatprep.subr.bf16.mxu0 0
        %536 = vmatpush2.bf16.msra.mxu0 0
        %537 = vmatprep.mubr.bf16.mxu0 0
        %538 = vmatmul.mubr.bf16.gmra.mxu0 %v491
        %v539 = vpop.f32.mrf.mxu0
        %v540 = vadd.f32 %v367, %v539
        %v541 = vpop.f32.mrf.mxu0
        %v542 = vadd.f32 %v369, %v541
        %v543 = vpop.f32.mrf.mxu0
        %v544 = vpop.f32.mrf.mxu0
        %545 = vdwg.mxu0
        %546 = vmatprep.subr.bf16.mxu0 0
        %547 = vmatpush1.bf16.msra.mxu0 0
        %548 = vmatprep.subr.bf16.mxu0 0
        %549 = vmatpush1.bf16.msra.mxu0 0
        %550 = vmatprep.subr.bf16.mxu0 0
        %551 = vmatpush1.bf16.msra.mxu0 0
        %552 = vmatprep.subr.bf16.mxu0 0
        %553 = vmatpush1.bf16.msra.mxu0 0
        %554 = vmatprep.subr.bf16.mxu0 %v503
        %555 = vmatpush1.bf16.msra.mxu0 %v500
        %556 = vmatprep.subr.bf16.mxu0 %v473
        %557 = vmatpush1.bf16.msra.mxu0 %v472
        %558 = vmatprep.subr.bf16.mxu0 %v469
        %559 = vmatpush1.bf16.msra.mxu0 %v468
        %560 = vmatprep.subr.bf16.mxu0 %v465
        %561 = vmatpush1.bf16.msra.mxu0 %v464
        %562 = vmatprep.subr.bf16.mxu0 0
        %563 = vmatpush2.bf16.msra.mxu0 0
        %564 = vmatprep.subr.bf16.mxu0 0
        %565 = vmatpush2.bf16.msra.mxu0 0
        %566 = vmatprep.subr.bf16.mxu0 0
        %567 = vmatpush2.bf16.msra.mxu0 0
        %568 = vmatprep.subr.bf16.mxu0 0
        %569 = vmatpush2.bf16.msra.mxu0 0
        %570 = vmatprep.subr.bf16.mxu0 0
        %571 = vmatpush2.bf16.msra.mxu0 0
        %572 = vmatprep.subr.bf16.mxu0 0
        %573 = vmatpush2.bf16.msra.mxu0 0
        %574 = vmatprep.subr.bf16.mxu0 0
        %575 = vmatpush2.bf16.msra.mxu0 0
        %576 = vmatprep.subr.bf16.mxu0 0
        %577 = vmatpush2.bf16.msra.mxu0 0
        %578 = vmatprep.mubr.bf16.mxu0 0
        %579 = vmatmul.mubr.bf16.gmra.mxu0 %v491
        %v580 = vpop.f32.mrf.mxu0
        %v581 = vadd.f32 %v408, %v580
        %v582 = vpop.f32.mrf.mxu0
        %v583 = vadd.f32 %v410, %v582
        %v584 = vpop.f32.mrf.mxu0
        %v585 = vpop.f32.mrf.mxu0
        %586 = vdwg.mxu0
        %v587 = vld [vmem:[%s193] sm:$0xf]
        %v588 = vld [vmem:[%s193 + $0x4] sm:$0x1]
        %s589 = scalar_lea.vmem [#allocation2], 256
        %v590 = vld [vmem:[%s589] sm:$0xff]
        %v591 = vld [vmem:[%s589 + $0x8] sm:$0xff]
        %v592 = vld [vmem:[%s589 + $0x10] sm:$0xff]
        %v593 = vld [vmem:[%s589 + $0x18] sm:$0xff]
        %v594 = vld [vmem:[%s589 + $0x20] sm:$0xff]
        %v595 = vld [vmem:[%s589 + $0x28] sm:$0xff]
        %v596 = vld [vmem:[%s589 + $0x30] sm:$0xff]
        %v597 = vld [vmem:[%s589 + $0x38] sm:$0xff]
        %v598 = vld [vmem:[%s589 + $0x40] sm:$0xff]
        %v599 = vld [vmem:[%s589 + $0x48] sm:$0xff]
        %v600 = vld [vmem:[%s589 + $0x50] sm:$0xff]
        %v601 = vld [vmem:[%s589 + $0x58] sm:$0xff]
        %v602 = vld [vmem:[%s589 + $0x60] sm:$0xff]
        %v603 = vld [vmem:[%s589 + $0x68] sm:$0xff]
        %v604 = vld [vmem:[%s589 + $0x70] sm:$0x33]
        %v605 = vld [vmem:[%s589 + $0x78] sm:$0x33]
        %v608 = vunpack.c.l.b16 %v587
        %v609 = vunpack.c.l.b16 %v588
        %v610 = vpack.c.b16 %v609, %v608
        %v612 = vshrl.u32 %v610, 16
        %v614 = vshll.u32 %v610, 16
        %v616 = vrot.slane %v614, 1
        %v617 = vor.u32 %v612, %v616
        %v634 = vunpack.c.l.b16 %v590
        %v635 = vunpack.c.h.b16 %v590
        %v636 = vunpack.c.l.b16 %v591
        %v637 = vunpack.c.h.b16 %v591
        %v638 = vunpack.c.l.b16 %v592
        %v639 = vunpack.c.h.b16 %v592
        %v640 = vunpack.c.l.b16 %v593
        %v641 = vunpack.c.h.b16 %v593
        %v642 = vunpack.c.l.b16 %v594
        %v643 = vunpack.c.h.b16 %v594
        %v644 = vunpack.c.l.b16 %v595
        %v645 = vunpack.c.h.b16 %v595
        %v646 = vunpack.c.l.b16 %v596
        %v647 = vunpack.c.h.b16 %v596
        %v648 = vunpack.c.l.b16 %v597
        %v649 = vunpack.c.h.b16 %v597
        %v650 = vunpack.c.l.b16 %v598
        %v651 = vunpack.c.h.b16 %v598
        %v652 = vunpack.c.l.b16 %v599
        %v653 = vunpack.c.h.b16 %v599
        %v654 = vunpack.c.l.b16 %v600
        %v655 = vunpack.c.h.b16 %v600
        %v656 = vunpack.c.l.b16 %v601
        %v657 = vunpack.c.h.b16 %v601
        %v658 = vunpack.c.l.b16 %v602
        %v659 = vunpack.c.h.b16 %v602
        %v660 = vunpack.c.l.b16 %v603
        %v661 = vunpack.c.h.b16 %v603
        %v662 = vunpack.c.l.b16 %v604
        %v663 = vunpack.c.h.b16 %v604
        %v664 = vunpack.c.l.b16 %v605
        %v665 = vunpack.c.h.b16 %v605
        %v666 = vpack.c.b16 %v638, %v634
        %v667 = vpack.c.b16 %v639, %v635
        %v668 = vpack.c.b16 %v640, %v636
        %v669 = vpack.c.b16 %v641, %v637
        %v670 = vpack.c.b16 %v646, %v642
        %v671 = vpack.c.b16 %v647, %v643
        %v672 = vpack.c.b16 %v648, %v644
        %v673 = vpack.c.b16 %v649, %v645
        %v674 = vpack.c.b16 %v654, %v650
        %v675 = vpack.c.b16 %v655, %v651
        %v676 = vpack.c.b16 %v656, %v652
        %v677 = vpack.c.b16 %v657, %v653
        %v678 = vpack.c.b16 %v662, %v658
        %v679 = vpack.c.b16 %v663, %v659
        %v680 = vpack.c.b16 %v664, %v660
        %v681 = vpack.c.b16 %v665, %v661
        %v695 = vsel %vm315, %v617, 0
        %v698 = vsel %vm319, %v678, 0
        %v701 = vsel %vm319, %v679, 0
        %v704 = vsel %vm319, %v680, 0
        %v707 = vsel %vm319, %v681, 0
        %709 = vmatprep.subr.bf16.mxu0 0
        %710 = vmatpush1.bf16.msra.mxu0 0
        %711 = vmatprep.subr.bf16.mxu0 0
        %712 = vmatpush1.bf16.msra.mxu0 0
        %713 = vmatprep.subr.bf16.mxu0 0
        %714 = vmatpush1.bf16.msra.mxu0 0
        %715 = vmatprep.subr.bf16.mxu0 0
        %716 = vmatpush1.bf16.msra.mxu0 0
        %717 = vmatprep.subr.bf16.mxu0 %v701
        %718 = vmatpush1.bf16.msra.mxu0 %v698
        %719 = vmatprep.subr.bf16.mxu0 %v675
        %720 = vmatpush1.bf16.msra.mxu0 %v674
        %721 = vmatprep.subr.bf16.mxu0 %v671
        %722 = vmatpush1.bf16.msra.mxu0 %v670
        %723 = vmatprep.subr.bf16.mxu0 %v667
        %724 = vmatpush1.bf16.msra.mxu0 %v666
        %725 = vmatprep.subr.bf16.mxu0 0
        %726 = vmatpush2.bf16.msra.mxu0 0
        %727 = vmatprep.subr.bf16.mxu0 0
        %728 = vmatpush2.bf16.msra.mxu0 0
        %729 = vmatprep.subr.bf16.mxu0 0
        %730 = vmatpush2.bf16.msra.mxu0 0
        %731 = vmatprep.subr.bf16.mxu0 0
        %732 = vmatpush2.bf16.msra.mxu0 0
        %733 = vmatprep.subr.bf16.mxu0 0
        %734 = vmatpush2.bf16.msra.mxu0 0
        %735 = vmatprep.subr.bf16.mxu0 0
        %736 = vmatpush2.bf16.msra.mxu0 0
        %737 = vmatprep.subr.bf16.mxu0 0
        %738 = vmatpush2.bf16.msra.mxu0 0
        %739 = vmatprep.subr.bf16.mxu0 0
        %740 = vmatpush2.bf16.msra.mxu0 0
        %741 = vmatprep.mubr.bf16.mxu0 0
        %742 = vmatmul.mubr.bf16.gmra.mxu0 %v695
        %v743 = vpop.f32.mrf.mxu0
        %v744 = vadd.f32 0.0, %v743
        %v745 = vpop.f32.mrf.mxu0
        %v746 = vadd.f32 0.0, %v745
        %v747 = vpop.f32.mrf.mxu0
        %v748 = vpop.f32.mrf.mxu0
        %749 = vdwg.mxu0
        %750 = vmatprep.subr.bf16.mxu0 0
        %751 = vmatpush1.bf16.msra.mxu0 0
        %752 = vmatprep.subr.bf16.mxu0 0
        %753 = vmatpush1.bf16.msra.mxu0 0
        %754 = vmatprep.subr.bf16.mxu0 0
        %755 = vmatpush1.bf16.msra.mxu0 0
        %756 = vmatprep.subr.bf16.mxu0 0
        %757 = vmatpush1.bf16.msra.mxu0 0
        %758 = vmatprep.subr.bf16.mxu0 %v707
        %759 = vmatpush1.bf16.msra.mxu0 %v704
        %760 = vmatprep.subr.bf16.mxu0 %v677
        %761 = vmatpush1.bf16.msra.mxu0 %v676
        %762 = vmatprep.subr.bf16.mxu0 %v673
        %763 = vmatpush1.bf16.msra.mxu0 %v672
        %764 = vmatprep.subr.bf16.mxu0 %v669
        %765 = vmatpush1.bf16.msra.mxu0 %v668
        %766 = vmatprep.subr.bf16.mxu0 0
        %767 = vmatpush2.bf16.msra.mxu0 0
        %768 = vmatprep.subr.bf16.mxu0 0
        %769 = vmatpush2.bf16.msra.mxu0 0
        %770 = vmatprep.subr.bf16.mxu0 0
        %771 = vmatpush2.bf16.msra.mxu0 0
        %772 = vmatprep.subr.bf16.mxu0 0
        %773 = vmatpush2.bf16.msra.mxu0 0
        %774 = vmatprep.subr.bf16.mxu0 0
        %775 = vmatpush2.bf16.msra.mxu0 0
        %776 = vmatprep.subr.bf16.mxu0 0
        %777 = vmatpush2.bf16.msra.mxu0 0
        %778 = vmatprep.subr.bf16.mxu0 0
        %779 = vmatpush2.bf16.msra.mxu0 0
        %780 = vmatprep.subr.bf16.mxu0 0
        %781 = vmatpush2.bf16.msra.mxu0 0
        %782 = vmatprep.mubr.bf16.mxu0 0
        %783 = vmatmul.mubr.bf16.gmra.mxu0 %v695
        %v784 = vpop.f32.mrf.mxu0
        %v785 = vadd.f32 0.0, %v784
        %v786 = vpop.f32.mrf.mxu0
        %v787 = vadd.f32 0.0, %v786
        %v788 = vpop.f32.mrf.mxu0
        %v789 = vpop.f32.mrf.mxu0
        %790 = vdwg.mxu0
        %v791 = vadd.f32 %v540, %v744
        %v792 = vadd.f32 %v542, %v746
        %v793 = vadd.f32 %v581, %v785
        %v794 = vadd.f32 %v583, %v787
        %795 = vmatprep.subr.bf16.mxu0 0
        %796 = vmatpush1.bf16.msra.mxu0 0
        %797 = vmatprep.subr.bf16.mxu0 0
        %798 = vmatpush1.bf16.msra.mxu0 0
        %799 = vmatprep.subr.bf16.mxu0 0
        %800 = vmatpush1.bf16.msra.mxu0 0
        %801 = vmatprep.subr.bf16.mxu0 0
        %802 = vmatpush1.bf16.msra.mxu0 0
        %803 = vmatprep.subr.bf16.mxu0 %v324
        %804 = vmatpush1.bf16.msra.mxu0 %v321
        %805 = vmatprep.subr.bf16.mxu0 %v296
        %806 = vmatpush1.bf16.msra.mxu0 %v295
        %807 = vmatprep.subr.bf16.mxu0 %v292
        %808 = vmatpush1.bf16.msra.mxu0 %v291
        %809 = vmatprep.subr.bf16.mxu0 %v288
        %810 = vmatpush1.bf16.msra.mxu0 %v287
        %811 = vmatprep.subr.bf16.mxu0 0
        %812 = vmatpush2.bf16.msra.mxu0 0
        %813 = vmatprep.subr.bf16.mxu0 0
        %814 = vmatpush2.bf16.msra.mxu0 0
        %815 = vmatprep.subr.bf16.mxu0 0
        %816 = vmatpush2.bf16.msra.mxu0 0
        %817 = vmatprep.subr.bf16.mxu0 0
        %818 = vmatpush2.bf16.msra.mxu0 0
        %819 = vmatprep.subr.bf16.mxu0 0
        %820 = vmatpush2.bf16.msra.mxu0 0
        %821 = vmatprep.subr.bf16.mxu0 0
        %822 = vmatpush2.bf16.msra.mxu0 0
        %823 = vmatprep.subr.bf16.mxu0 0
        %824 = vmatpush2.bf16.msra.mxu0 0
        %825 = vmatprep.subr.bf16.mxu0 0
        %826 = vmatpush2.bf16.msra.mxu0 0
        %827 = vmatprep.mubr.bf16.mxu0 0
        %828 = vmatmul.mubr.bf16.gmra.mxu0 %v695
        %v829 = vpop.f32.mrf.mxu0
        %v830 = vadd.f32 0.0, %v829
        %v831 = vpop.f32.mrf.mxu0
        %v832 = vadd.f32 0.0, %v831
        %v833 = vpop.f32.mrf.mxu0
        %v834 = vpop.f32.mrf.mxu0
        %835 = vdwg.mxu0
        %836 = vmatprep.subr.bf16.mxu0 0
        %837 = vmatpush1.bf16.msra.mxu0 0
        %838 = vmatprep.subr.bf16.mxu0 0
        %839 = vmatpush1.bf16.msra.mxu0 0
        %840 = vmatprep.subr.bf16.mxu0 0
        %841 = vmatpush1.bf16.msra.mxu0 0
        %842 = vmatprep.subr.bf16.mxu0 0
        %843 = vmatpush1.bf16.msra.mxu0 0
        %844 = vmatprep.subr.bf16.mxu0 %v330
        %845 = vmatpush1.bf16.msra.mxu0 %v327
        %846 = vmatprep.subr.bf16.mxu0 %v298
        %847 = vmatpush1.bf16.msra.mxu0 %v297
        %848 = vmatprep.subr.bf16.mxu0 %v294
        %849 = vmatpush1.bf16.msra.mxu0 %v293
        %850 = vmatprep.subr.bf16.mxu0 %v290
        %851 = vmatpush1.bf16.msra.mxu0 %v289
        %852 = vmatprep.subr.bf16.mxu0 0
        %853 = vmatpush2.bf16.msra.mxu0 0
        %854 = vmatprep.subr.bf16.mxu0 0
        %855 = vmatpush2.bf16.msra.mxu0 0
        %856 = vmatprep.subr.bf16.mxu0 0
        %857 = vmatpush2.bf16.msra.mxu0 0
        %858 = vmatprep.subr.bf16.mxu0 0
        %859 = vmatpush2.bf16.msra.mxu0 0
        %860 = vmatprep.subr.bf16.mxu0 0
        %861 = vmatpush2.bf16.msra.mxu0 0
        %862 = vmatprep.subr.bf16.mxu0 0
        %863 = vmatpush2.bf16.msra.mxu0 0
        %864 = vmatprep.subr.bf16.mxu0 0
        %865 = vmatpush2.bf16.msra.mxu0 0
        %866 = vmatprep.subr.bf16.mxu0 0
        %867 = vmatpush2.bf16.msra.mxu0 0
        %868 = vmatprep.mubr.bf16.mxu0 0
        %869 = vmatmul.mubr.bf16.gmra.mxu0 %v695
        %v870 = vpop.f32.mrf.mxu0
        %v871 = vadd.f32 0.0, %v870
        %v872 = vpop.f32.mrf.mxu0
        %v873 = vadd.f32 0.0, %v872
        %v874 = vpop.f32.mrf.mxu0
        %v875 = vpop.f32.mrf.mxu0
        %876 = vdwg.mxu0
        %877 = vmatprep.subr.bf16.mxu0 0
        %878 = vmatpush1.bf16.msra.mxu0 0
        %879 = vmatprep.subr.bf16.mxu0 0
        %880 = vmatpush1.bf16.msra.mxu0 0
        %881 = vmatprep.subr.bf16.mxu0 0
        %882 = vmatpush1.bf16.msra.mxu0 0
        %883 = vmatprep.subr.bf16.mxu0 0
        %884 = vmatpush1.bf16.msra.mxu0 0
        %885 = vmatprep.subr.bf16.mxu0 %v497
        %886 = vmatpush1.bf16.msra.mxu0 %v494
        %887 = vmatprep.subr.bf16.mxu0 %v471
        %888 = vmatpush1.bf16.msra.mxu0 %v470
        %889 = vmatprep.subr.bf16.mxu0 %v467
        %890 = vmatpush1.bf16.msra.mxu0 %v466
        %891 = vmatprep.subr.bf16.mxu0 %v463
        %892 = vmatpush1.bf16.msra.mxu0 %v462
        %893 = vmatprep.subr.bf16.mxu0 0
        %894 = vmatpush2.bf16.msra.mxu0 0
        %895 = vmatprep.subr.bf16.mxu0 0
        %896 = vmatpush2.bf16.msra.mxu0 0
        %897 = vmatprep.subr.bf16.mxu0 0
        %898 = vmatpush2.bf16.msra.mxu0 0
        %899 = vmatprep.subr.bf16.mxu0 0
        %900 = vmatpush2.bf16.msra.mxu0 0
        %901 = vmatprep.subr.bf16.mxu0 0
        %902 = vmatpush2.bf16.msra.mxu0 0
        %903 = vmatprep.subr.bf16.mxu0 0
        %904 = vmatpush2.bf16.msra.mxu0 0
        %905 = vmatprep.subr.bf16.mxu0 0
        %906 = vmatpush2.bf16.msra.mxu0 0
        %907 = vmatprep.subr.bf16.mxu0 0
        %908 = vmatpush2.bf16.msra.mxu0 0
        %909 = vmatprep.mubr.bf16.mxu0 0
        %910 = vmatmul.mubr.bf16.gmra.mxu0 %v317
        %v911 = vpop.f32.mrf.mxu0
        %v912 = vadd.f32 %v830, %v911
        %v913 = vpop.f32.mrf.mxu0
        %v914 = vadd.f32 %v832, %v913
        %v915 = vpop.f32.mrf.mxu0
        %v916 = vpop.f32.mrf.mxu0
        %917 = vdwg.mxu0
        %918 = vmatprep.subr.bf16.mxu0 0
        %919 = vmatpush1.bf16.msra.mxu0 0
        %920 = vmatprep.subr.bf16.mxu0 0
        %921 = vmatpush1.bf16.msra.mxu0 0
        %922 = vmatprep.subr.bf16.mxu0 0
        %923 = vmatpush1.bf16.msra.mxu0 0
        %924 = vmatprep.subr.bf16.mxu0 0
        %925 = vmatpush1.bf16.msra.mxu0 0
        %926 = vmatprep.subr.bf16.mxu0 %v503
        %927 = vmatpush1.bf16.msra.mxu0 %v500
        %928 = vmatprep.subr.bf16.mxu0 %v473
        %929 = vmatpush1.bf16.msra.mxu0 %v472
        %930 = vmatprep.subr.bf16.mxu0 %v469
        %931 = vmatpush1.bf16.msra.mxu0 %v468
        %932 = vmatprep.subr.bf16.mxu0 %v465
        %933 = vmatpush1.bf16.msra.mxu0 %v464
        %934 = vmatprep.subr.bf16.mxu0 0
        %935 = vmatpush2.bf16.msra.mxu0 0
        %936 = vmatprep.subr.bf16.mxu0 0
        %937 = vmatpush2.bf16.msra.mxu0 0
        %938 = vmatprep.subr.bf16.mxu0 0
        %939 = vmatpush2.bf16.msra.mxu0 0
        %940 = vmatprep.subr.bf16.mxu0 0
        %941 = vmatpush2.bf16.msra.mxu0 0
        %942 = vmatprep.subr.bf16.mxu0 0
        %943 = vmatpush2.bf16.msra.mxu0 0
        %944 = vmatprep.subr.bf16.mxu0 0
        %945 = vmatpush2.bf16.msra.mxu0 0
        %946 = vmatprep.subr.bf16.mxu0 0
        %947 = vmatpush2.bf16.msra.mxu0 0
        %948 = vmatprep.subr.bf16.mxu0 0
        %949 = vmatpush2.bf16.msra.mxu0 0
        %950 = vmatprep.mubr.bf16.mxu0 0
        %951 = vmatmul.mubr.bf16.gmra.mxu0 %v317
        %v952 = vpop.f32.mrf.mxu0
        %v953 = vadd.f32 %v871, %v952
        %v954 = vpop.f32.mrf.mxu0
        %v955 = vadd.f32 %v873, %v954
        %v956 = vpop.f32.mrf.mxu0
        %v957 = vpop.f32.mrf.mxu0
        %958 = vdwg.mxu0
        %v959 = vld [vmem:[%s220] sm:$0xf]
        %v960 = vld [vmem:[%s220 + $0x4] sm:$0x1]
        %s961 = scalar_lea.vmem [#allocation2], 384
        %v962 = vld [vmem:[%s961] sm:$0xff]
        %v963 = vld [vmem:[%s961 + $0x8] sm:$0xff]
        %v964 = vld [vmem:[%s961 + $0x10] sm:$0xff]
        %v965 = vld [vmem:[%s961 + $0x18] sm:$0xff]
        %v966 = vld [vmem:[%s961 + $0x20] sm:$0xff]
        %v967 = vld [vmem:[%s961 + $0x28] sm:$0xff]
        %v968 = vld [vmem:[%s961 + $0x30] sm:$0xff]
        %v969 = vld [vmem:[%s961 + $0x38] sm:$0xff]
        %v970 = vld [vmem:[%s961 + $0x40] sm:$0xff]
        %v971 = vld [vmem:[%s961 + $0x48] sm:$0xff]
        %v972 = vld [vmem:[%s961 + $0x50] sm:$0xff]
        %v973 = vld [vmem:[%s961 + $0x58] sm:$0xff]
        %v974 = vld [vmem:[%s961 + $0x60] sm:$0xff]
        %v975 = vld [vmem:[%s961 + $0x68] sm:$0xff]
        %v976 = vld [vmem:[%s961 + $0x70] sm:$0x33]
        %v977 = vld [vmem:[%s961 + $0x78] sm:$0x33]
        %v980 = vunpack.c.l.b16 %v959
        %v981 = vunpack.c.l.b16 %v960
        %v982 = vpack.c.b16 %v981, %v980
        %v984 = vshrl.u32 %v982, 16
        %v986 = vshll.u32 %v982, 16
        %v988 = vrot.slane %v986, 1
        %v989 = vor.u32 %v984, %v988
        %v1006 = vunpack.c.l.b16 %v962
        %v1007 = vunpack.c.h.b16 %v962
        %v1008 = vunpack.c.l.b16 %v963
        %v1009 = vunpack.c.h.b16 %v963
        %v1010 = vunpack.c.l.b16 %v964
        %v1011 = vunpack.c.h.b16 %v964
        %v1012 = vunpack.c.l.b16 %v965
        %v1013 = vunpack.c.h.b16 %v965
        %v1014 = vunpack.c.l.b16 %v966
        %v1015 = vunpack.c.h.b16 %v966
        %v1016 = vunpack.c.l.b16 %v967
        %v1017 = vunpack.c.h.b16 %v967
        %v1018 = vunpack.c.l.b16 %v968
        %v1019 = vunpack.c.h.b16 %v968
        %v1020 = vunpack.c.l.b16 %v969
        %v1021 = vunpack.c.h.b16 %v969
        %v1022 = vunpack.c.l.b16 %v970
        %v1023 = vunpack.c.h.b16 %v970
        %v1024 = vunpack.c.l.b16 %v971
        %v1025 = vunpack.c.h.b16 %v971
        %v1026 = vunpack.c.l.b16 %v972
        %v1027 = vunpack.c.h.b16 %v972
        %v1028 = vunpack.c.l.b16 %v973
        %v1029 = vunpack.c.h.b16 %v973
        %v1030 = vunpack.c.l.b16 %v974
        %v1031 = vunpack.c.h.b16 %v974
        %v1032 = vunpack.c.l.b16 %v975
        %v1033 = vunpack.c.h.b16 %v975
        %v1034 = vunpack.c.l.b16 %v976
        %v1035 = vunpack.c.h.b16 %v976
        %v1036 = vunpack.c.l.b16 %v977
        %v1037 = vunpack.c.h.b16 %v977
        %v1038 = vpack.c.b16 %v1010, %v1006
        %v1039 = vpack.c.b16 %v1011, %v1007
        %v1040 = vpack.c.b16 %v1012, %v1008
        %v1041 = vpack.c.b16 %v1013, %v1009
        %v1042 = vpack.c.b16 %v1018, %v1014
        %v1043 = vpack.c.b16 %v1019, %v1015
        %v1044 = vpack.c.b16 %v1020, %v1016
        %v1045 = vpack.c.b16 %v1021, %v1017
        %v1046 = vpack.c.b16 %v1026, %v1022
        %v1047 = vpack.c.b16 %v1027, %v1023
        %v1048 = vpack.c.b16 %v1028, %v1024
        %v1049 = vpack.c.b16 %v1029, %v1025
        %v1050 = vpack.c.b16 %v1034, %v1030
        %v1051 = vpack.c.b16 %v1035, %v1031
        %v1052 = vpack.c.b16 %v1036, %v1032
        %v1053 = vpack.c.b16 %v1037, %v1033
        %v1067 = vsel %vm315, %v989, 0
        %v1070 = vsel %vm319, %v1050, 0
        %v1073 = vsel %vm319, %v1051, 0
        %v1076 = vsel %vm319, %v1052, 0
        %v1079 = vsel %vm319, %v1053, 0
        %1081 = vmatprep.subr.bf16.mxu0 0
        %1082 = vmatpush1.bf16.msra.mxu0 0
        %1083 = vmatprep.subr.bf16.mxu0 0
        %1084 = vmatpush1.bf16.msra.mxu0 0
        %1085 = vmatprep.subr.bf16.mxu0 0
        %1086 = vmatpush1.bf16.msra.mxu0 0
        %1087 = vmatprep.subr.bf16.mxu0 0
        %1088 = vmatpush1.bf16.msra.mxu0 0
        %1089 = vmatprep.subr.bf16.mxu0 %v1073
        %1090 = vmatpush1.bf16.msra.mxu0 %v1070
        %1091 = vmatprep.subr.bf16.mxu0 %v1047
        %1092 = vmatpush1.bf16.msra.mxu0 %v1046
        %1093 = vmatprep.subr.bf16.mxu0 %v1043
        %1094 = vmatpush1.bf16.msra.mxu0 %v1042
        %1095 = vmatprep.subr.bf16.mxu0 %v1039
        %1096 = vmatpush1.bf16.msra.mxu0 %v1038
        %1097 = vmatprep.subr.bf16.mxu0 0
        %1098 = vmatpush2.bf16.msra.mxu0 0
        %1099 = vmatprep.subr.bf16.mxu0 0
        %1100 = vmatpush2.bf16.msra.mxu0 0
        %1101 = vmatprep.subr.bf16.mxu0 0
        %1102 = vmatpush2.bf16.msra.mxu0 0
        %1103 = vmatprep.subr.bf16.mxu0 0
        %1104 = vmatpush2.bf16.msra.mxu0 0
        %1105 = vmatprep.subr.bf16.mxu0 0
        %1106 = vmatpush2.bf16.msra.mxu0 0
        %1107 = vmatprep.subr.bf16.mxu0 0
        %1108 = vmatpush2.bf16.msra.mxu0 0
        %1109 = vmatprep.subr.bf16.mxu0 0
        %1110 = vmatpush2.bf16.msra.mxu0 0
        %1111 = vmatprep.subr.bf16.mxu0 0
        %1112 = vmatpush2.bf16.msra.mxu0 0
        %1113 = vmatprep.mubr.bf16.mxu0 0
        %1114 = vmatmul.mubr.bf16.gmra.mxu0 %v1067
        %v1115 = vpop.f32.mrf.mxu0
        %v1116 = vadd.f32 0.0, %v1115
        %v1117 = vpop.f32.mrf.mxu0
        %v1118 = vadd.f32 0.0, %v1117
        %v1119 = vpop.f32.mrf.mxu0
        %v1120 = vpop.f32.mrf.mxu0
        %1121 = vdwg.mxu0
        %1122 = vmatprep.subr.bf16.mxu0 0
        %1123 = vmatpush1.bf16.msra.mxu0 0
        %1124 = vmatprep.subr.bf16.mxu0 0
        %1125 = vmatpush1.bf16.msra.mxu0 0
        %1126 = vmatprep.subr.bf16.mxu0 0
        %1127 = vmatpush1.bf16.msra.mxu0 0
        %1128 = vmatprep.subr.bf16.mxu0 0
        %1129 = vmatpush1.bf16.msra.mxu0 0
        %1130 = vmatprep.subr.bf16.mxu0 %v1079
        %1131 = vmatpush1.bf16.msra.mxu0 %v1076
        %1132 = vmatprep.subr.bf16.mxu0 %v1049
        %1133 = vmatpush1.bf16.msra.mxu0 %v1048
        %1134 = vmatprep.subr.bf16.mxu0 %v1045
        %1135 = vmatpush1.bf16.msra.mxu0 %v1044
        %1136 = vmatprep.subr.bf16.mxu0 %v1041
        %1137 = vmatpush1.bf16.msra.mxu0 %v1040
        %1138 = vmatprep.subr.bf16.mxu0 0
        %1139 = vmatpush2.bf16.msra.mxu0 0
        %1140 = vmatprep.subr.bf16.mxu0 0
        %1141 = vmatpush2.bf16.msra.mxu0 0
        %1142 = vmatprep.subr.bf16.mxu0 0
        %1143 = vmatpush2.bf16.msra.mxu0 0
        %1144 = vmatprep.subr.bf16.mxu0 0
        %1145 = vmatpush2.bf16.msra.mxu0 0
        %1146 = vmatprep.subr.bf16.mxu0 0
        %1147 = vmatpush2.bf16.msra.mxu0 0
        %1148 = vmatprep.subr.bf16.mxu0 0
        %1149 = vmatpush2.bf16.msra.mxu0 0
        %1150 = vmatprep.subr.bf16.mxu0 0
        %1151 = vmatpush2.bf16.msra.mxu0 0
        %1152 = vmatprep.subr.bf16.mxu0 0
        %1153 = vmatpush2.bf16.msra.mxu0 0
        %1154 = vmatprep.mubr.bf16.mxu0 0
        %1155 = vmatmul.mubr.bf16.gmra.mxu0 %v1067
        %v1156 = vpop.f32.mrf.mxu0
        %v1157 = vadd.f32 0.0, %v1156
        %v1158 = vpop.f32.mrf.mxu0
        %v1159 = vadd.f32 0.0, %v1158
        %v1160 = vpop.f32.mrf.mxu0
        %v1161 = vpop.f32.mrf.mxu0
        %1162 = vdwg.mxu0
        %v1163 = vadd.f32 %v791, %v1116
        %v1164 = vadd.f32 %v792, %v1118
        %v1165 = vadd.f32 %v793, %v1157
        %v1166 = vadd.f32 %v794, %v1159
        %1167 = vmatprep.subr.bf16.mxu0 0
        %1168 = vmatpush1.bf16.msra.mxu0 0
        %1169 = vmatprep.subr.bf16.mxu0 0
        %1170 = vmatpush1.bf16.msra.mxu0 0
        %1171 = vmatprep.subr.bf16.mxu0 0
        %1172 = vmatpush1.bf16.msra.mxu0 0
        %1173 = vmatprep.subr.bf16.mxu0 0
        %1174 = vmatpush1.bf16.msra.mxu0 0
        %1175 = vmatprep.subr.bf16.mxu0 %v701
        %1176 = vmatpush1.bf16.msra.mxu0 %v698
        %1177 = vmatprep.subr.bf16.mxu0 %v675
        %1178 = vmatpush1.bf16.msra.mxu0 %v674
        %1179 = vmatprep.subr.bf16.mxu0 %v671
        %1180 = vmatpush1.bf16.msra.mxu0 %v670
        %1181 = vmatprep.subr.bf16.mxu0 %v667
        %1182 = vmatpush1.bf16.msra.mxu0 %v666
        %1183 = vmatprep.subr.bf16.mxu0 0
        %1184 = vmatpush2.bf16.msra.mxu0 0
        %1185 = vmatprep.subr.bf16.mxu0 0
        %1186 = vmatpush2.bf16.msra.mxu0 0
        %1187 = vmatprep.subr.bf16.mxu0 0
        %1188 = vmatpush2.bf16.msra.mxu0 0
        %1189 = vmatprep.subr.bf16.mxu0 0
        %1190 = vmatpush2.bf16.msra.mxu0 0
        %1191 = vmatprep.subr.bf16.mxu0 0
        %1192 = vmatpush2.bf16.msra.mxu0 0
        %1193 = vmatprep.subr.bf16.mxu0 0
        %1194 = vmatpush2.bf16.msra.mxu0 0
        %1195 = vmatprep.subr.bf16.mxu0 0
        %1196 = vmatpush2.bf16.msra.mxu0 0
        %1197 = vmatprep.subr.bf16.mxu0 0
        %1198 = vmatpush2.bf16.msra.mxu0 0
        %1199 = vmatprep.mubr.bf16.mxu0 0
        %1200 = vmatmul.mubr.bf16.gmra.mxu0 %v1067
        %v1201 = vpop.f32.mrf.mxu0
        %v1202 = vadd.f32 0.0, %v1201
        %v1203 = vpop.f32.mrf.mxu0
        %v1204 = vadd.f32 0.0, %v1203
        %v1205 = vpop.f32.mrf.mxu0
        %v1206 = vpop.f32.mrf.mxu0
        %1207 = vdwg.mxu0
        %1208 = vmatprep.subr.bf16.mxu0 0
        %1209 = vmatpush1.bf16.msra.mxu0 0
        %1210 = vmatprep.subr.bf16.mxu0 0
        %1211 = vmatpush1.bf16.msra.mxu0 0
        %1212 = vmatprep.subr.bf16.mxu0 0
        %1213 = vmatpush1.bf16.msra.mxu0 0
        %1214 = vmatprep.subr.bf16.mxu0 0
        %1215 = vmatpush1.bf16.msra.mxu0 0
        %1216 = vmatprep.subr.bf16.mxu0 %v707
        %1217 = vmatpush1.bf16.msra.mxu0 %v704
        %1218 = vmatprep.subr.bf16.mxu0 %v677
        %1219 = vmatpush1.bf16.msra.mxu0 %v676
        %1220 = vmatprep.subr.bf16.mxu0 %v673
        %1221 = vmatpush1.bf16.msra.mxu0 %v672
        %1222 = vmatprep.subr.bf16.mxu0 %v669
        %1223 = vmatpush1.bf16.msra.mxu0 %v668
        %1224 = vmatprep.subr.bf16.mxu0 0
        %1225 = vmatpush2.bf16.msra.mxu0 0
        %1226 = vmatprep.subr.bf16.mxu0 0
        %1227 = vmatpush2.bf16.msra.mxu0 0
        %1228 = vmatprep.subr.bf16.mxu0 0
        %1229 = vmatpush2.bf16.msra.mxu0 0
        %1230 = vmatprep.subr.bf16.mxu0 0
        %1231 = vmatpush2.bf16.msra.mxu0 0
        %1232 = vmatprep.subr.bf16.mxu0 0
        %1233 = vmatpush2.bf16.msra.mxu0 0
        %1234 = vmatprep.subr.bf16.mxu0 0
        %1235 = vmatpush2.bf16.msra.mxu0 0
        %1236 = vmatprep.subr.bf16.mxu0 0
        %1237 = vmatpush2.bf16.msra.mxu0 0
        %1238 = vmatprep.subr.bf16.mxu0 0
        %1239 = vmatpush2.bf16.msra.mxu0 0
        %1240 = vmatprep.mubr.bf16.mxu0 0
        %1241 = vmatmul.mubr.bf16.gmra.mxu0 %v1067
        %v1242 = vpop.f32.mrf.mxu0
        %v1243 = vadd.f32 0.0, %v1242
        %v1244 = vpop.f32.mrf.mxu0
        %v1245 = vadd.f32 0.0, %v1244
        %v1246 = vpop.f32.mrf.mxu0
        %v1247 = vpop.f32.mrf.mxu0
        %1248 = vdwg.mxu0
        %v1249 = vadd.f32 %v912, %v1202
        %v1250 = vadd.f32 %v914, %v1204
        %v1251 = vadd.f32 %v953, %v1243
        %v1252 = vadd.f32 %v955, %v1245
        %v1253 = vld [vmem:[%s193] sm:$0xe]
        %s1254 = scalar_lea.vmem [#allocation2], 512
        %v1255 = vld [vmem:[%s1254] sm:$0xff]
        %v1256 = vld [vmem:[%s1254 + $0x8] sm:$0xff]
        %v1257 = vld [vmem:[%s1254 + $0x10] sm:$0xff]
        %v1258 = vld [vmem:[%s1254 + $0x18] sm:$0xff]
        %v1259 = vld [vmem:[%s1254 + $0x20] sm:$0xff]
        %v1260 = vld [vmem:[%s1254 + $0x28] sm:$0xff]
        %v1261 = vld [vmem:[%s1254 + $0x30] sm:$0xff]
        %v1262 = vld [vmem:[%s1254 + $0x38] sm:$0xff]
        %v1263 = vld [vmem:[%s1254 + $0x40] sm:$0xff]
        %v1264 = vld [vmem:[%s1254 + $0x48] sm:$0xff]
        %v1265 = vld [vmem:[%s1254 + $0x50] sm:$0xff]
        %v1266 = vld [vmem:[%s1254 + $0x58] sm:$0xff]
        %v1267 = vld [vmem:[%s1254 + $0x60] sm:$0xff]
        %v1268 = vld [vmem:[%s1254 + $0x68] sm:$0xff]
        %v1269 = vld [vmem:[%s1254 + $0x70] sm:$0x33]
        %v1270 = vld [vmem:[%s1254 + $0x78] sm:$0x33]
        %v1272 = vunpack.c.l.b16 %v1253
        %v1273 = vpack.c.b16 %v609, %v1272
        %v1274 = vrot.slane %v1273, 1
        %v1291 = vunpack.c.l.b16 %v1255
        %v1292 = vunpack.c.h.b16 %v1255
        %v1293 = vunpack.c.l.b16 %v1256
        %v1294 = vunpack.c.h.b16 %v1256
        %v1295 = vunpack.c.l.b16 %v1257
        %v1296 = vunpack.c.h.b16 %v1257
        %v1297 = vunpack.c.l.b16 %v1258
        %v1298 = vunpack.c.h.b16 %v1258
        %v1299 = vunpack.c.l.b16 %v1259
        %v1300 = vunpack.c.h.b16 %v1259
        %v1301 = vunpack.c.l.b16 %v1260
        %v1302 = vunpack.c.h.b16 %v1260
        %v1303 = vunpack.c.l.b16 %v1261
        %v1304 = vunpack.c.h.b16 %v1261
        %v1305 = vunpack.c.l.b16 %v1262
        %v1306 = vunpack.c.h.b16 %v1262
        %v1307 = vunpack.c.l.b16 %v1263
        %v1308 = vunpack.c.h.b16 %v1263
        %v1309 = vunpack.c.l.b16 %v1264
        %v1310 = vunpack.c.h.b16 %v1264
        %v1311 = vunpack.c.l.b16 %v1265
        %v1312 = vunpack.c.h.b16 %v1265
        %v1313 = vunpack.c.l.b16 %v1266
        %v1314 = vunpack.c.h.b16 %v1266
        %v1315 = vunpack.c.l.b16 %v1267
        %v1316 = vunpack.c.h.b16 %v1267
        %v1317 = vunpack.c.l.b16 %v1268
        %v1318 = vunpack.c.h.b16 %v1268
        %v1319 = vunpack.c.l.b16 %v1269
        %v1320 = vunpack.c.h.b16 %v1269
        %v1321 = vunpack.c.l.b16 %v1270
        %v1322 = vunpack.c.h.b16 %v1270
        %v1323 = vpack.c.b16 %v1295, %v1291
        %v1324 = vpack.c.b16 %v1296, %v1292
        %v1325 = vpack.c.b16 %v1297, %v1293
        %v1326 = vpack.c.b16 %v1298, %v1294
        %v1327 = vpack.c.b16 %v1303, %v1299
        %v1328 = vpack.c.b16 %v1304, %v1300
        %v1329 = vpack.c.b16 %v1305, %v1301
        %v1330 = vpack.c.b16 %v1306, %v1302
        %v1331 = vpack.c.b16 %v1311, %v1307
        %v1332 = vpack.c.b16 %v1312, %v1308
        %v1333 = vpack.c.b16 %v1313, %v1309
        %v1334 = vpack.c.b16 %v1314, %v1310
        %v1335 = vpack.c.b16 %v1319, %v1315
        %v1336 = vpack.c.b16 %v1320, %v1316
        %v1337 = vpack.c.b16 %v1321, %v1317
        %v1338 = vpack.c.b16 %v1322, %v1318
        %v1352 = vsel %vm315, %v1274, 0
        %v1355 = vsel %vm319, %v1335, 0
        %v1358 = vsel %vm319, %v1336, 0
        %v1361 = vsel %vm319, %v1337, 0
        %v1364 = vsel %vm319, %v1338, 0
        %1366 = vmatprep.subr.bf16.mxu0 0
        %1367 = vmatpush1.bf16.msra.mxu0 0
        %1368 = vmatprep.subr.bf16.mxu0 0
        %1369 = vmatpush1.bf16.msra.mxu0 0
        %1370 = vmatprep.subr.bf16.mxu0 0
        %1371 = vmatpush1.bf16.msra.mxu0 0
        %1372 = vmatprep.subr.bf16.mxu0 0
        %1373 = vmatpush1.bf16.msra.mxu0 0
        %1374 = vmatprep.subr.bf16.mxu0 %v1358
        %1375 = vmatpush1.bf16.msra.mxu0 %v1355
        %1376 = vmatprep.subr.bf16.mxu0 %v1332
        %1377 = vmatpush1.bf16.msra.mxu0 %v1331
        %1378 = vmatprep.subr.bf16.mxu0 %v1328
        %1379 = vmatpush1.bf16.msra.mxu0 %v1327
        %1380 = vmatprep.subr.bf16.mxu0 %v1324
        %1381 = vmatpush1.bf16.msra.mxu0 %v1323
        %1382 = vmatprep.subr.bf16.mxu0 0
        %1383 = vmatpush2.bf16.msra.mxu0 0
        %1384 = vmatprep.subr.bf16.mxu0 0
        %1385 = vmatpush2.bf16.msra.mxu0 0
        %1386 = vmatprep.subr.bf16.mxu0 0
        %1387 = vmatpush2.bf16.msra.mxu0 0
        %1388 = vmatprep.subr.bf16.mxu0 0
        %1389 = vmatpush2.bf16.msra.mxu0 0
        %1390 = vmatprep.subr.bf16.mxu0 0
        %1391 = vmatpush2.bf16.msra.mxu0 0
        %1392 = vmatprep.subr.bf16.mxu0 0
        %1393 = vmatpush2.bf16.msra.mxu0 0
        %1394 = vmatprep.subr.bf16.mxu0 0
        %1395 = vmatpush2.bf16.msra.mxu0 0
        %1396 = vmatprep.subr.bf16.mxu0 0
        %1397 = vmatpush2.bf16.msra.mxu0 0
        %1398 = vmatprep.mubr.bf16.mxu0 0
        %1399 = vmatmul.mubr.bf16.gmra.mxu0 %v1352
        %v1400 = vpop.f32.mrf.mxu0
        %v1401 = vadd.f32 0.0, %v1400
        %v1402 = vpop.f32.mrf.mxu0
        %v1403 = vadd.f32 0.0, %v1402
        %v1404 = vpop.f32.mrf.mxu0
        %v1405 = vpop.f32.mrf.mxu0
        %1406 = vdwg.mxu0
        %1407 = vmatprep.subr.bf16.mxu0 0
        %1408 = vmatpush1.bf16.msra.mxu0 0
        %1409 = vmatprep.subr.bf16.mxu0 0
        %1410 = vmatpush1.bf16.msra.mxu0 0
        %1411 = vmatprep.subr.bf16.mxu0 0
        %1412 = vmatpush1.bf16.msra.mxu0 0
        %1413 = vmatprep.subr.bf16.mxu0 0
        %1414 = vmatpush1.bf16.msra.mxu0 0
        %1415 = vmatprep.subr.bf16.mxu0 %v1364
        %1416 = vmatpush1.bf16.msra.mxu0 %v1361
        %1417 = vmatprep.subr.bf16.mxu0 %v1334
        %1418 = vmatpush1.bf16.msra.mxu0 %v1333
        %1419 = vmatprep.subr.bf16.mxu0 %v1330
        %1420 = vmatpush1.bf16.msra.mxu0 %v1329
        %1421 = vmatprep.subr.bf16.mxu0 %v1326
        %1422 = vmatpush1.bf16.msra.mxu0 %v1325
        %1423 = vmatprep.subr.bf16.mxu0 0
        %1424 = vmatpush2.bf16.msra.mxu0 0
        %1425 = vmatprep.subr.bf16.mxu0 0
        %1426 = vmatpush2.bf16.msra.mxu0 0
        %1427 = vmatprep.subr.bf16.mxu0 0
        %1428 = vmatpush2.bf16.msra.mxu0 0
        %1429 = vmatprep.subr.bf16.mxu0 0
        %1430 = vmatpush2.bf16.msra.mxu0 0
        %1431 = vmatprep.subr.bf16.mxu0 0
        %1432 = vmatpush2.bf16.msra.mxu0 0
        %1433 = vmatprep.subr.bf16.mxu0 0
        %1434 = vmatpush2.bf16.msra.mxu0 0
        %1435 = vmatprep.subr.bf16.mxu0 0
        %1436 = vmatpush2.bf16.msra.mxu0 0
        %1437 = vmatprep.subr.bf16.mxu0 0
        %1438 = vmatpush2.bf16.msra.mxu0 0
        %1439 = vmatprep.mubr.bf16.mxu0 0
        %1440 = vmatmul.mubr.bf16.gmra.mxu0 %v1352
        %v1441 = vpop.f32.mrf.mxu0
        %v1442 = vadd.f32 0.0, %v1441
        %v1443 = vpop.f32.mrf.mxu0
        %v1444 = vadd.f32 0.0, %v1443
        %v1445 = vpop.f32.mrf.mxu0
        %v1446 = vpop.f32.mrf.mxu0
        %1447 = vdwg.mxu0
        %v1448 = vadd.f32 %v1163, %v1401
        %v1449 = vadd.f32 %v1164, %v1403
        %v1450 = vadd.f32 %v1165, %v1442
        %v1451 = vadd.f32 %v1166, %v1444
        %1452 = vmatprep.subr.bf16.mxu0 0
        %1453 = vmatpush1.bf16.msra.mxu0 0
        %1454 = vmatprep.subr.bf16.mxu0 0
        %1455 = vmatpush1.bf16.msra.mxu0 0
        %1456 = vmatprep.subr.bf16.mxu0 0
        %1457 = vmatpush1.bf16.msra.mxu0 0
        %1458 = vmatprep.subr.bf16.mxu0 0
        %1459 = vmatpush1.bf16.msra.mxu0 0
        %1460 = vmatprep.subr.bf16.mxu0 %v1073
        %1461 = vmatpush1.bf16.msra.mxu0 %v1070
        %1462 = vmatprep.subr.bf16.mxu0 %v1047
        %1463 = vmatpush1.bf16.msra.mxu0 %v1046
        %1464 = vmatprep.subr.bf16.mxu0 %v1043
        %1465 = vmatpush1.bf16.msra.mxu0 %v1042
        %1466 = vmatprep.subr.bf16.mxu0 %v1039
        %1467 = vmatpush1.bf16.msra.mxu0 %v1038
        %1468 = vmatprep.subr.bf16.mxu0 0
        %1469 = vmatpush2.bf16.msra.mxu0 0
        %1470 = vmatprep.subr.bf16.mxu0 0
        %1471 = vmatpush2.bf16.msra.mxu0 0
        %1472 = vmatprep.subr.bf16.mxu0 0
        %1473 = vmatpush2.bf16.msra.mxu0 0
        %1474 = vmatprep.subr.bf16.mxu0 0
        %1475 = vmatpush2.bf16.msra.mxu0 0
        %1476 = vmatprep.subr.bf16.mxu0 0
        %1477 = vmatpush2.bf16.msra.mxu0 0
        %1478 = vmatprep.subr.bf16.mxu0 0
        %1479 = vmatpush2.bf16.msra.mxu0 0
        %1480 = vmatprep.subr.bf16.mxu0 0
        %1481 = vmatpush2.bf16.msra.mxu0 0
        %1482 = vmatprep.subr.bf16.mxu0 0
        %1483 = vmatpush2.bf16.msra.mxu0 0
        %1484 = vmatprep.mubr.bf16.mxu0 0
        %1485 = vmatmul.mubr.bf16.gmra.mxu0 %v1352
        %v1486 = vpop.f32.mrf.mxu0
        %v1487 = vadd.f32 0.0, %v1486
        %v1488 = vpop.f32.mrf.mxu0
        %v1489 = vadd.f32 0.0, %v1488
        %v1490 = vpop.f32.mrf.mxu0
        %v1491 = vpop.f32.mrf.mxu0
        %1492 = vdwg.mxu0
        %1493 = vmatprep.subr.bf16.mxu0 0
        %1494 = vmatpush1.bf16.msra.mxu0 0
        %1495 = vmatprep.subr.bf16.mxu0 0
        %1496 = vmatpush1.bf16.msra.mxu0 0
        %1497 = vmatprep.subr.bf16.mxu0 0
        %1498 = vmatpush1.bf16.msra.mxu0 0
        %1499 = vmatprep.subr.bf16.mxu0 0
        %1500 = vmatpush1.bf16.msra.mxu0 0
        %1501 = vmatprep.subr.bf16.mxu0 %v1079
        %1502 = vmatpush1.bf16.msra.mxu0 %v1076
        %1503 = vmatprep.subr.bf16.mxu0 %v1049
        %1504 = vmatpush1.bf16.msra.mxu0 %v1048
        %1505 = vmatprep.subr.bf16.mxu0 %v1045
        %1506 = vmatpush1.bf16.msra.mxu0 %v1044
        %1507 = vmatprep.subr.bf16.mxu0 %v1041
        %1508 = vmatpush1.bf16.msra.mxu0 %v1040
        %1509 = vmatprep.subr.bf16.mxu0 0
        %1510 = vmatpush2.bf16.msra.mxu0 0
        %1511 = vmatprep.subr.bf16.mxu0 0
        %1512 = vmatpush2.bf16.msra.mxu0 0
        %1513 = vmatprep.subr.bf16.mxu0 0
        %1514 = vmatpush2.bf16.msra.mxu0 0
        %1515 = vmatprep.subr.bf16.mxu0 0
        %1516 = vmatpush2.bf16.msra.mxu0 0
        %1517 = vmatprep.subr.bf16.mxu0 0
        %1518 = vmatpush2.bf16.msra.mxu0 0
        %1519 = vmatprep.subr.bf16.mxu0 0
        %1520 = vmatpush2.bf16.msra.mxu0 0
        %1521 = vmatprep.subr.bf16.mxu0 0
        %1522 = vmatpush2.bf16.msra.mxu0 0
        %1523 = vmatprep.subr.bf16.mxu0 0
        %1524 = vmatpush2.bf16.msra.mxu0 0
        %1525 = vmatprep.mubr.bf16.mxu0 0
        %1526 = vmatmul.mubr.bf16.gmra.mxu0 %v1352
        %v1527 = vpop.f32.mrf.mxu0
        %v1528 = vadd.f32 0.0, %v1527
        %v1529 = vpop.f32.mrf.mxu0
        %v1530 = vadd.f32 0.0, %v1529
        %v1531 = vpop.f32.mrf.mxu0
        %v1532 = vpop.f32.mrf.mxu0
        %1533 = vdwg.mxu0
        %v1534 = vadd.f32 %v1249, %v1487
        %v1535 = vadd.f32 %v1250, %v1489
        %v1536 = vadd.f32 %v1251, %v1528
        %v1537 = vadd.f32 %v1252, %v1530
        %v1538 = vld [vmem:[%s220] sm:$0xe]
        %v1540 = vunpack.c.l.b16 %v1538
        %v1541 = vpack.c.b16 %v981, %v1540
        %v1542 = vrot.slane %v1541, 1
        %v1544 = vsel %vm315, %v1542, 0
        %1546 = vmatprep.subr.bf16.mxu0 0
        %1547 = vmatpush1.bf16.msra.mxu0 0
        %1548 = vmatprep.subr.bf16.mxu0 0
        %1549 = vmatpush1.bf16.msra.mxu0 0
        %1550 = vmatprep.subr.bf16.mxu0 0
        %1551 = vmatpush1.bf16.msra.mxu0 0
        %1552 = vmatprep.subr.bf16.mxu0 0
        %1553 = vmatpush1.bf16.msra.mxu0 0
        %1554 = vmatprep.subr.bf16.mxu0 %v1358
        %1555 = vmatpush1.bf16.msra.mxu0 %v1355
        %1556 = vmatprep.subr.bf16.mxu0 %v1332
        %1557 = vmatpush1.bf16.msra.mxu0 %v1331
        %1558 = vmatprep.subr.bf16.mxu0 %v1328
        %1559 = vmatpush1.bf16.msra.mxu0 %v1327
        %1560 = vmatprep.subr.bf16.mxu0 %v1324
        %1561 = vmatpush1.bf16.msra.mxu0 %v1323
        %1562 = vmatprep.subr.bf16.mxu0 0
        %1563 = vmatpush2.bf16.msra.mxu0 0
        %1564 = vmatprep.subr.bf16.mxu0 0
        %1565 = vmatpush2.bf16.msra.mxu0 0
        %1566 = vmatprep.subr.bf16.mxu0 0
        %1567 = vmatpush2.bf16.msra.mxu0 0
        %1568 = vmatprep.subr.bf16.mxu0 0
        %1569 = vmatpush2.bf16.msra.mxu0 0
        %1570 = vmatprep.subr.bf16.mxu0 0
        %1571 = vmatpush2.bf16.msra.mxu0 0
        %1572 = vmatprep.subr.bf16.mxu0 0
        %1573 = vmatpush2.bf16.msra.mxu0 0
        %1574 = vmatprep.subr.bf16.mxu0 0
        %1575 = vmatpush2.bf16.msra.mxu0 0
        %1576 = vmatprep.subr.bf16.mxu0 0
        %1577 = vmatpush2.bf16.msra.mxu0 0
        %1578 = vmatprep.mubr.bf16.mxu0 0
        %1579 = vmatmul.mubr.bf16.gmra.mxu0 %v1544
        %v1580 = vpop.f32.mrf.mxu0
        %v1581 = vadd.f32 0.0, %v1580
        %v1582 = vpop.f32.mrf.mxu0
        %v1583 = vadd.f32 0.0, %v1582
        %v1584 = vpop.f32.mrf.mxu0
        %v1585 = vpop.f32.mrf.mxu0
        %1586 = vdwg.mxu0
        %1587 = vmatprep.subr.bf16.mxu0 0
        %1588 = vmatpush1.bf16.msra.mxu0 0
        %1589 = vmatprep.subr.bf16.mxu0 0
        %1590 = vmatpush1.bf16.msra.mxu0 0
        %1591 = vmatprep.subr.bf16.mxu0 0
        %1592 = vmatpush1.bf16.msra.mxu0 0
        %1593 = vmatprep.subr.bf16.mxu0 0
        %1594 = vmatpush1.bf16.msra.mxu0 0
        %1595 = vmatprep.subr.bf16.mxu0 %v1364
        %1596 = vmatpush1.bf16.msra.mxu0 %v1361
        %1597 = vmatprep.subr.bf16.mxu0 %v1334
        %1598 = vmatpush1.bf16.msra.mxu0 %v1333
        %1599 = vmatprep.subr.bf16.mxu0 %v1330
        %1600 = vmatpush1.bf16.msra.mxu0 %v1329
        %1601 = vmatprep.subr.bf16.mxu0 %v1326
        %1602 = vmatpush1.bf16.msra.mxu0 %v1325
        %1603 = vmatprep.subr.bf16.mxu0 0
        %1604 = vmatpush2.bf16.msra.mxu0 0
        %1605 = vmatprep.subr.bf16.mxu0 0
        %1606 = vmatpush2.bf16.msra.mxu0 0
        %1607 = vmatprep.subr.bf16.mxu0 0
        %1608 = vmatpush2.bf16.msra.mxu0 0
        %1609 = vmatprep.subr.bf16.mxu0 0
        %1610 = vmatpush2.bf16.msra.mxu0 0
        %1611 = vmatprep.subr.bf16.mxu0 0
        %1612 = vmatpush2.bf16.msra.mxu0 0
        %1613 = vmatprep.subr.bf16.mxu0 0
        %1614 = vmatpush2.bf16.msra.mxu0 0
        %1615 = vmatprep.subr.bf16.mxu0 0
        %1616 = vmatpush2.bf16.msra.mxu0 0
        %1617 = vmatprep.subr.bf16.mxu0 0
        %1618 = vmatpush2.bf16.msra.mxu0 0
        %1619 = vmatprep.mubr.bf16.mxu0 0
        %1620 = vmatmul.mubr.bf16.gmra.mxu0 %v1544
        %v1621 = vpop.f32.mrf.mxu0
        %v1622 = vadd.f32 0.0, %v1621
        %v1623 = vpop.f32.mrf.mxu0
        %v1624 = vadd.f32 0.0, %v1623
        %v1625 = vpop.f32.mrf.mxu0
        %v1626 = vpop.f32.mrf.mxu0
        %1627 = vdwg.mxu0
        %v1628 = vadd.f32 %v1534, %v1581
        %v1629 = vadd.f32 %v1535, %v1583
        %v1630 = vadd.f32 %v1536, %v1622
        %v1631 = vadd.f32 %v1537, %v1624
        %v1633 = vlaneseq
        %v1634 = vshrl.u32 %v1633, 7
        %v1635 = vsub.s32 0, %v1634
        %v1636 = vrot.slane %v200, %v1635
        %v1637 = vlaneseq
        %v1638 = vshrl.u32 %v1637, 7
        %v1639 = vsub.s32 1, %v1638
        %v1640 = vrot.slane %v200, %v1639
        %v1641 = vlaneseq
        %v1642 = vshrl.u32 %v1641, 7
        %v1643 = vsub.s32 2, %v1642
        %v1644 = vrot.slane %v200, %v1643
        %v1645 = vlaneseq
        %v1646 = vshrl.u32 %v1645, 7
        %v1647 = vsub.s32 3, %v1646
        %v1648 = vrot.slane %v200, %v1647
        %v1653 = vadd.f32 %v1448, %v1636
        %v1654 = vadd.f32 %v1449, %v1640
        %v1655 = vadd.f32 %v1450, %v1644
        %v1656 = vadd.f32 %v1451, %v1648
        %v1657 = vmax.f32 %v1653, 0.0
        %v1658 = vmax.f32 %v1654, 0.0
        %v1659 = vmax.f32 %v1655, 0.0
        %v1660 = vmax.f32 %v1656, 0.0
        %v1661 = vadd.f32 %v1628, %v1636
        %v1662 = vadd.f32 %v1629, %v1640
        %v1663 = vadd.f32 %v1630, %v1644
        %v1664 = vadd.f32 %v1631, %v1648
        %v1665 = vmax.f32 %v1661, 0.0
        %v1666 = vmax.f32 %v1662, 0.0
        %v1667 = vmax.f32 %v1663, 0.0
        %v1668 = vmax.f32 %v1664, 0.0
        %vm1669 = vcmp.ge.s32.totalorder %v202, 1
        %v1670 = vsel %vm1669, 1, 0
        %vm1671 = vcmp.eq.s32.totalorder %v1670, 1
        %v1672 = vsel %vm1671, %v1657, 0.0
        %v1673 = vsel %vm1671, %v1658, 0.0
        %v1674 = vsel %vm1671, %v1659, 0.0
        %v1675 = vsel %vm1671, %v1660, 0.0
        %vm1676 = vcmp.le.s32.totalorder %v202, 6
        %v1677 = vsel %vm1676, 1, 0
        %vm1678 = vcmp.eq.s32.totalorder %v1677, 1
        %v1679 = vsel %vm1678, %v1665, 0.0
        %v1680 = vsel %vm1678, %v1666, 0.0
        %v1681 = vsel %vm1678, %v1667, 0.0
        %v1682 = vsel %vm1678, %v1668, 0.0
        %v1683 = vmax.f32 %v1672, %v1679
        %v1684 = vmax.f32 %v1673, %v1680
        %v1685 = vmax.f32 %v1674, %v1681
        %v1686 = vmax.f32 %v1675, %v1682
        %v1687 = vmax.f32 %v1683, %v1685
        %v1688 = vmax.f32 %v1684, %v1686
        %v1689 = vpack.c.bf16 %v1687, %v1687
        %v1690 = vpack.c.bf16 %v1688, %v1688
        %v1693 = vunpack.c.l.b16 %v1689
        %v1694 = vunpack.c.l.b16 %v1690
        %v1695 = vpack.c.b16 %v1694, %v1693
        %1697 = vst [vmem:[%s198] sm:$0xff] %v1695
        %p1698 = scmp.lt.s32.totalorder %s16, 1
        %s1699 = scalar_select %p1698, %s16, 1
        %s1700 = smul.addr %s1699, 2
        %s1701 = smul.addr %s1700, 4
        %s1702 = scalar_lea.vmem %s3, %s1701
        // Predicated region
        $region41: #{cnn_forward.3} parent=31 // pred_check
          %p1703 = pneg %p102
        $region42: #{cnn_forward.3} parent=31 // pred_check_branch
          %1705 = sbr.rel (%p1703) target = $region44
        $region43: #{cnn_forward.3} parent=31 // pred_region
          _
        $region44: #{cnn_forward.3} parent=31 // pred_fallthru
          _
      $region32: #{cnn_forward.3} parent=5 // pred_fallthru
        _
      %p1706 = scmp.le.s32.totalorder 2, %s11
      // Predicated region
      $region45: #{cnn_forward.3} parent=5 // pred_check
        %p1707 = pneg %p1706
      $region46: #{cnn_forward.3} parent=5 // pred_check_branch
        %1709 = sbr.rel (%p1707) target = $region48
      $region47: #{cnn_forward.3} parent=5 // pred_region
        %s1710 = ssub.s32 %s11, 2
        // Predicated region
        $region49: #{cnn_forward.3} parent=47 // pred_check
          %p1711 = pneg %p108
        $region50: #{cnn_forward.3} parent=47 // pred_check_branch
          %1713 = sbr.rel (%p1711) target = $region52
        $region51: #{cnn_forward.3} parent=47 // pred_region
          %p1714 = scmp.lt.s32.totalorder %s17, 1
          %s1715 = scalar_select %p1714, %s17, 1
          %s1716 = smul.addr %s1715, 2
          %s1717 = smul.addr %s1716, 4
          %s1718 = scalar_lea.vmem %s3, %s1717
        $region52: #{cnn_forward.3} parent=47 // pred_fallthru
          _
      $region48: #{cnn_forward.3} parent=5 // pred_fallthru
        _
    $region6: #{cnn_forward.3} parent=1 // loop_footer
      %s15 = sadd.s32 1, %s11
    $region7: #{cnn_forward.3} parent=1 // loop_footer_branch
      %10 = sbr.rel target = $region3
    $region8: #{cnn_forward.3} parent=1 // loop_exit
      _
    %1719 = vsyncpa [#allocation3], 1
    %s1720 = scalar_lea.sflag [#allocation3], 1
    %1721 = vsyncpa %s1720, 1
    %1722 = vsyncpa [#allocation5], 1

// kernel: cnn_forward.5
$region0: #{cnn_forward.5}
  #allocation0 [shape = 'u32[]', space=smem, size = 0x4, offset = 0x4, fixed_abs, tag = 'smem constant byte address 0x4 - core index']
  #allocation1 [shape = 'u32[144,128]{1,0:T(1,128)}', space=vmem, size = 0x12000, scoped, tag = 'internal scratch']
  %s0 = inlined_call_operand.vmem [shape: bf16[16,1024], index: 0, kind: input, shape index: {}]
  %s1 = inlined_call_operand.vmem [shape: bf16[1024,512], index: 1, kind: input, shape index: {}]
  %s2 = inlined_call_operand.vmem [shape: f32[1,512], index: 2, kind: input, shape index: {}]
  %s3 = inlined_call_operand.vmem [shape: bf16[512,128], index: 3, kind: input, shape index: {}]
  %s4 = inlined_call_operand.vmem [shape: f32[1,128], index: 4, kind: input, shape index: {}]
  %s5 = inlined_call_operand.vmem [shape: f32[16,128], index: 5, kind: output, shape index: {}]
  %s6 = sld [smem:[#allocation0]]
  $region30: #{cnn_forward.5} parent=0
    _
  %s8 = ssub.s32 1, %s6
  %s9 = scalar_select 0, %s8, %s6
  // Predicated region
  $region2: #{cnn_forward.5} parent=0 // pred_check
    _
  $region3: #{cnn_forward.5} parent=0 // pred_check_branch
    %11 = sbr.rel (0) target = $region5
  $region4: #{cnn_forward.5} parent=0 // pred_region
    _
  $region5: #{cnn_forward.5} parent=0 // pred_fallthru
    _
  // Predicated region
  $region6: #{cnn_forward.5} parent=0 // pred_check
    _
  $region7: #{cnn_forward.5} parent=0 // pred_check_branch
    %13 = sbr.rel (0) target = $region9
  $region8: #{cnn_forward.5} parent=0 // pred_region
    _
  $region9: #{cnn_forward.5} parent=0 // pred_fallthru
    _
  // Predicated region
  $region10: #{cnn_forward.5} parent=0 // pred_check
    _
  $region11: #{cnn_forward.5} parent=0 // pred_check_branch
    %15 = sbr.rel (0) target = $region13
  $region12: #{cnn_forward.5} parent=0 // pred_region
    _
  $region13: #{cnn_forward.5} parent=0 // pred_fallthru
    _
  // Predicated region
  $region14: #{cnn_forward.5} parent=0 // pred_check
    _
  $region15: #{cnn_forward.5} parent=0 // pred_check_branch
    %17 = sbr.rel (0) target = $region17
  $region16: #{cnn_forward.5} parent=0 // pred_region
    _
  $region17: #{cnn_forward.5} parent=0 // pred_fallthru
    _
  // Predicated region
  $region18: #{cnn_forward.5} parent=0 // pred_check
    _
  $region19: #{cnn_forward.5} parent=0 // pred_check_branch
    %19 = sbr.rel (0) target = $region21
  $region20: #{cnn_forward.5} parent=0 // pred_region
    _
  $region21: #{cnn_forward.5} parent=0 // pred_fallthru
    _
  %v21 = vld [vmem:[%s0] sm:$0xff]
  %v22 = vld [vmem:[%s0 + $0x8] sm:$0xff]
  %v23 = vld [vmem:[%s0 + $0x10] sm:$0xff]
  %v24 = vld [vmem:[%s0 + $0x18] sm:$0xff]
  %v25 = vld [vmem:[%s0 + $0x20] sm:$0xff]
  %v26 = vld [vmem:[%s0 + $0x28] sm:$0xff]
  %v27 = vld [vmem:[%s0 + $0x30] sm:$0xff]
  %v28 = vld [vmem:[%s0 + $0x38] sm:$0xff]
  %v29 = vld [vmem:[%s1] sm:$0xff]
  %v30 = vld [vmem:[%s1 + $0x8] sm:$0xff]
  %v31 = vld [vmem:[%s1 + $0x10] sm:$0xff]
  %v32 = vld [vmem:[%s1 + $0x18] sm:$0xff]
  %v33 = vld [vmem:[%s1 + $0x20] sm:$0xff]
  %v34 = vld [vmem:[%s1 + $0x28] sm:$0xff]
  %v35 = vld [vmem:[%s1 + $0x30] sm:$0xff]
  %v36 = vld [vmem:[%s1 + $0x38] sm:$0xff]
  %v37 = vld [vmem:[%s1 + $0x40] sm:$0xff]
  %v38 = vld [vmem:[%s1 + $0x48] sm:$0xff]
  %v39 = vld [vmem:[%s1 + $0x50] sm:$0xff]
  %v40 = vld [vmem:[%s1 + $0x58] sm:$0xff]
  %v41 = vld [vmem:[%s1 + $0x60] sm:$0xff]
  %v42 = vld [vmem:[%s1 + $0x68] sm:$0xff]
  %v43 = vld [vmem:[%s1 + $0x70] sm:$0xff]
  %v44 = vld [vmem:[%s1 + $0x78] sm:$0xff]
  %v45 = vld [vmem:[%s1 + $0x80] sm:$0xff]
  %v46 = vld [vmem:[%s1 + $0x88] sm:$0xff]
  %v47 = vld [vmem:[%s1 + $0x90] sm:$0xff]
  %v48 = vld [vmem:[%s1 + $0x98] sm:$0xff]
  %v49 = vld [vmem:[%s1 + $0xa0] sm:$0xff]
  %v50 = vld [vmem:[%s1 + $0xa8] sm:$0xff]
  %v51 = vld [vmem:[%s1 + $0xb0] sm:$0xff]
  %v52 = vld [vmem:[%s1 + $0xb8] sm:$0xff]
  %v53 = vld [vmem:[%s1 + $0xc0] sm:$0xff]
  %v54 = vld [vmem:[%s1 + $0xc8] sm:$0xff]
  %v55 = vld [vmem:[%s1 + $0xd0] sm:$0xff]
  %v56 = vld [vmem:[%s1 + $0xd8] sm:$0xff]
  %v57 = vld [vmem:[%s1 + $0xe0] sm:$0xff]
  %v58 = vld [vmem:[%s1 + $0xe8] sm:$0xff]
  %v59 = vld [vmem:[%s1 + $0xf0] sm:$0xff]
  %v60 = vld [vmem:[%s1 + $0xf8] sm:$0xff]
  %v61 = vld [vmem:[%s1 + $0x100] sm:$0xff]
  %v62 = vld [vmem:[%s1 + $0x108] sm:$0xff]
  %v63 = vld [vmem:[%s1 + $0x110] sm:$0xff]
  %v64 = vld [vmem:[%s1 + $0x118] sm:$0xff]
  %v65 = vld [vmem:[%s1 + $0x120] sm:$0xff]
  %v66 = vld [vmem:[%s1 + $0x128] sm:$0xff]
  %v67 = vld [vmem:[%s1 + $0x130] sm:$0xff]
  %v68 = vld [vmem:[%s1 + $0x138] sm:$0xff]
  %v69 = vld [vmem:[%s1 + $0x140] sm:$0xff]
  %v70 = vld [vmem:[%s1 + $0x148] sm:$0xff]
  %v71 = vld [vmem:[%s1 + $0x150] sm:$0xff]
  %v72 = vld [vmem:[%s1 + $0x158] sm:$0xff]
  %v73 = vld [vmem:[%s1 + $0x160] sm:$0xff]
  %v74 = vld [vmem:[%s1 + $0x168] sm:$0xff]
  %v75 = vld [vmem:[%s1 + $0x170] sm:$0xff]
  %v76 = vld [vmem:[%s1 + $0x178] sm:$0xff]
  %v77 = vld [vmem:[%s1 + $0x180] sm:$0xff]
  %v78 = vld [vmem:[%s1 + $0x188] sm:$0xff]
  %v79 = vld [vmem:[%s1 + $0x190] sm:$0xff]
  %v80 = vld [vmem:[%s1 + $0x198] sm:$0xff]
  %v81 = vld [vmem:[%s1 + $0x1a0] sm:$0xff]
  %v82 = vld [vmem:[%s1 + $0x1a8] sm:$0xff]
  %v83 = vld [vmem:[%s1 + $0x1b0] sm:$0xff]
  %v84 = vld [vmem:[%s1 + $0x1b8] sm:$0xff]
  %v85 = vld [vmem:[%s1 + $0x1c0] sm:$0xff]
  %v86 = vld [vmem:[%s1 + $0x1c8] sm:$0xff]
  %v87 = vld [vmem:[%s1 + $0x1d0] sm:$0xff]
  %v88 = vld [vmem:[%s1 + $0x1d8] sm:$0xff]
  %v89 = vld [vmem:[%s1 + $0x1e0] sm:$0xff]
  %v90 = vld [vmem:[%s1 + $0x1e8] sm:$0xff]
  %v91 = vld [vmem:[%s1 + $0x1f0] sm:$0xff]
  %v92 = vld [vmem:[%s1 + $0x1f8] sm:$0xff]
  %v93 = vld [vmem:[%s1 + $0x200] sm:$0xff]
  %v94 = vld [vmem:[%s1 + $0x208] sm:$0xff]
  %v95 = vld [vmem:[%s1 + $0x210] sm:$0xff]
  %v96 = vld [vmem:[%s1 + $0x218] sm:$0xff]
  %v97 = vld [vmem:[%s1 + $0x220] sm:$0xff]
  %v98 = vld [vmem:[%s1 + $0x228] sm:$0xff]
  %v99 = vld [vmem:[%s1 + $0x230] sm:$0xff]
  %v100 = vld [vmem:[%s1 + $0x238] sm:$0xff]
  %v101 = vld [vmem:[%s1 + $0x240] sm:$0xff]
  %v102 = vld [vmem:[%s1 + $0x248] sm:$0xff]
  %v103 = vld [vmem:[%s1 + $0x250] sm:$0xff]
  %v104 = vld [vmem:[%s1 + $0x258] sm:$0xff]
  %v105 = vld [vmem:[%s1 + $0x260] sm:$0xff]
  %v106 = vld [vmem:[%s1 + $0x268] sm:$0xff]
  %v107 = vld [vmem:[%s1 + $0x270] sm:$0xff]
  %v108 = vld [vmem:[%s1 + $0x278] sm:$0xff]
  %v109 = vld [vmem:[%s1 + $0x280] sm:$0xff]
  %v110 = vld [vmem:[%s1 + $0x288] sm:$0xff]
  %v111 = vld [vmem:[%s1 + $0x290] sm:$0xff]
  %v112 = vld [vmem:[%s1 + $0x298] sm:$0xff]
  %v113 = vld [vmem:[%s1 + $0x2a0] sm:$0xff]
  %v114 = vld [vmem:[%s1 + $0x2a8] sm:$0xff]
  %v115 = vld [vmem:[%s1 + $0x2b0] sm:$0xff]
  %v116 = vld [vmem:[%s1 + $0x2b8] sm:$0xff]
  %v117 = vld [vmem:[%s1 + $0x2c0] sm:$0xff]
  %v118 = vld [vmem:[%s1 + $0x2c8] sm:$0xff]
  %v119 = vld [vmem:[%s1 + $0x2d0] sm:$0xff]
  %v120 = vld [vmem:[%s1 + $0x2d8] sm:$0xff]
  %v121 = vld [vmem:[%s1 + $0x2e0] sm:$0xff]
  %v122 = vld [vmem:[%s1 + $0x2e8] sm:$0xff]
  %v123 = vld [vmem:[%s1 + $0x2f0] sm:$0xff]
  %v124 = vld [vmem:[%s1 + $0x2f8] sm:$0xff]
  %v125 = vld [vmem:[%s1 + $0x300] sm:$0xff]
  %v126 = vld [vmem:[%s1 + $0x308] sm:$0xff]
  %v127 = vld [vmem:[%s1 + $0x310] sm:$0xff]
  %v128 = vld [vmem:[%s1 + $0x318] sm:$0xff]
  %v129 = vld [vmem:[%s1 + $0x320] sm:$0xff]
  %v130 = vld [vmem:[%s1 + $0x328] sm:$0xff]
  %v131 = vld [vmem:[%s1 + $0x330] sm:$0xff]
  %v132 = vld [vmem:[%s1 + $0x338] sm:$0xff]
  %v133 = vld [vmem:[%s1 + $0x340] sm:$0xff]
  %v134 = vld [vmem:[%s1 + $0x348] sm:$0xff]
  %v135 = vld [vmem:[%s1 + $0x350] sm:$0xff]
  %v136 = vld [vmem:[%s1 + $0x358] sm:$0xff]
  %v137 = vld [vmem:[%s1 + $0x360] sm:$0xff]
  %v138 = vld [vmem:[%s1 + $0x368] sm:$0xff]
  %v139 = vld [vmem:[%s1 + $0x370] sm:$0xff]
  %v140 = vld [vmem:[%s1 + $0x378] sm:$0xff]
  %v141 = vld [vmem:[%s1 + $0x380] sm:$0xff]
  %v142 = vld [vmem:[%s1 + $0x388] sm:$0xff]
  %v143 = vld [vmem:[%s1 + $0x390] sm:$0xff]
  %v144 = vld [vmem:[%s1 + $0x398] sm:$0xff]
  %v145 = vld [vmem:[%s1 + $0x3a0] sm:$0xff]
  %v146 = vld [vmem:[%s1 + $0x3a8] sm:$0xff]
  %v147 = vld [vmem:[%s1 + $0x3b0] sm:$0xff]
  %v148 = vld [vmem:[%s1 + $0x3b8] sm:$0xff]
  %v149 = vld [vmem:[%s1 + $0x3c0] sm:$0xff]
  %v150 = vld [vmem:[%s1 + $0x3c8] sm:$0xff]
  %v151 = vld [vmem:[%s1 + $0x3d0] sm:$0xff]
  %v152 = vld [vmem:[%s1 + $0x3d8] sm:$0xff]
  %v153 = vld [vmem:[%s1 + $0x3e0] sm:$0xff]
  %v154 = vld [vmem:[%s1 + $0x3e8] sm:$0xff]
  %v155 = vld [vmem:[%s1 + $0x3f0] sm:$0xff]
  %v156 = vld [vmem:[%s1 + $0x3f8] sm:$0xff]
  %v157 = vld [vmem:[%s1 + $0x400] sm:$0xff]
  %v158 = vld [vmem:[%s1 + $0x408] sm:$0xff]
  %v159 = vld [vmem:[%s1 + $0x410] sm:$0xff]
  %v160 = vld [vmem:[%s1 + $0x418] sm:$0xff]
  %v161 = vld [vmem:[%s1 + $0x420] sm:$0xff]
  %v162 = vld [vmem:[%s1 + $0x428] sm:$0xff]
  %v163 = vld [vmem:[%s1 + $0x430] sm:$0xff]
  %v164 = vld [vmem:[%s1 + $0x438] sm:$0xff]
  %v165 = vld [vmem:[%s1 + $0x440] sm:$0xff]
  %v166 = vld [vmem:[%s1 + $0x448] sm:$0xff]
  %v167 = vld [vmem:[%s1 + $0x450] sm:$0xff]
  %v168 = vld [vmem:[%s1 + $0x458] sm:$0xff]
  %v169 = vld [vmem:[%s1 + $0x460] sm:$0xff]
  %v170 = vld [vmem:[%s1 + $0x468] sm:$0xff]
  %v171 = vld [vmem:[%s1 + $0x470] sm:$0xff]
  %v172 = vld [vmem:[%s1 + $0x478] sm:$0xff]
  %v173 = vld [vmem:[%s1 + $0x480] sm:$0xff]
  %v174 = vld [vmem:[%s1 + $0x488] sm:$0xff]
  %v175 = vld [vmem:[%s1 + $0x490] sm:$0xff]
  %v176 = vld [vmem:[%s1 + $0x498] sm:$0xff]
  %v177 = vld [vmem:[%s1 + $0x4a0] sm:$0xff]
  %v178 = vld [vmem:[%s1 + $0x4a8] sm:$0xff]
  %v179 = vld [vmem:[%s1 + $0x4b0] sm:$0xff]
  %v180 = vld [vmem:[%s1 + $0x4b8] sm:$0xff]
  %v181 = vld [vmem:[%s1 + $0x4c0] sm:$0xff]
  %v182 = vld [vmem:[%s1 + $0x4c8] sm:$0xff]
  %v183 = vld [vmem:[%s1 + $0x4d0] sm:$0xff]
  %v184 = vld [vmem:[%s1 + $0x4d8] sm:$0xff]
  %v185 = vld [vmem:[%s1 + $0x4e0] sm:$0xff]
  %v186 = vld [vmem:[%s1 + $0x4e8] sm:$0xff]
  %v187 = vld [vmem:[%s1 + $0x4f0] sm:$0xff]
  %v188 = vld [vmem:[%s1 + $0x4f8] sm:$0xff]
  %v189 = vld [vmem:[%s1 + $0x500] sm:$0xff]
  %v190 = vld [vmem:[%s1 + $0x508] sm:$0xff]
  %v191 = vld [vmem:[%s1 + $0x510] sm:$0xff]
  %v192 = vld [vmem:[%s1 + $0x518] sm:$0xff]
  %v193 = vld [vmem:[%s1 + $0x520] sm:$0xff]
  %v194 = vld [vmem:[%s1 + $0x528] sm:$0xff]
  %v195 = vld [vmem:[%s1 + $0x530] sm:$0xff]
  %v196 = vld [vmem:[%s1 + $0x538] sm:$0xff]
  %v197 = vld [vmem:[%s1 + $0x540] sm:$0xff]
  %v198 = vld [vmem:[%s1 + $0x548] sm:$0xff]
  %v199 = vld [vmem:[%s1 + $0x550] sm:$0xff]
  %v200 = vld [vmem:[%s1 + $0x558] sm:$0xff]
  %v201 = vld [vmem:[%s1 + $0x560] sm:$0xff]
  %v202 = vld [vmem:[%s1 + $0x568] sm:$0xff]
  %v203 = vld [vmem:[%s1 + $0x570] sm:$0xff]
  %v204 = vld [vmem:[%s1 + $0x578] sm:$0xff]
  %v205 = vld [vmem:[%s1 + $0x580] sm:$0xff]
  %v206 = vld [vmem:[%s1 + $0x588] sm:$0xff]
  %v207 = vld [vmem:[%s1 + $0x590] sm:$0xff]
  %v208 = vld [vmem:[%s1 + $0x598] sm:$0xff]
  %v209 = vld [vmem:[%s1 + $0x5a0] sm:$0xff]
  %v210 = vld [vmem:[%s1 + $0x5a8] sm:$0xff]
  %v211 = vld [vmem:[%s1 + $0x5b0] sm:$0xff]
  %v212 = vld [vmem:[%s1 + $0x5b8] sm:$0xff]
  %v213 = vld [vmem:[%s1 + $0x5c0] sm:$0xff]
  %v214 = vld [vmem:[%s1 + $0x5c8] sm:$0xff]
  %v215 = vld [vmem:[%s1 + $0x5d0] sm:$0xff]
  %v216 = vld [vmem:[%s1 + $0x5d8] sm:$0xff]
  %v217 = vld [vmem:[%s1 + $0x5e0] sm:$0xff]
  %v218 = vld [vmem:[%s1 + $0x5e8] sm:$0xff]
  %v219 = vld [vmem:[%s1 + $0x5f0] sm:$0xff]
  %v220 = vld [vmem:[%s1 + $0x5f8] sm:$0xff]
  %v221 = vld [vmem:[%s1 + $0x600] sm:$0xff]
  %v222 = vld [vmem:[%s1 + $0x608] sm:$0xff]
  %v223 = vld [vmem:[%s1 + $0x610] sm:$0xff]
  %v224 = vld [vmem:[%s1 + $0x618] sm:$0xff]
  %v225 = vld [vmem:[%s1 + $0x620] sm:$0xff]
  %v226 = vld [vmem:[%s1 + $0x628] sm:$0xff]
  %v227 = vld [vmem:[%s1 + $0x630] sm:$0xff]
  %v228 = vld [vmem:[%s1 + $0x638] sm:$0xff]
  %v229 = vld [vmem:[%s1 + $0x640] sm:$0xff]
  %v230 = vld [vmem:[%s1 + $0x648] sm:$0xff]
  %v231 = vld [vmem:[%s1 + $0x650] sm:$0xff]
  %v232 = vld [vmem:[%s1 + $0x658] sm:$0xff]
  %v233 = vld [vmem:[%s1 + $0x660] sm:$0xff]
  %v234 = vld [vmem:[%s1 + $0x668] sm:$0xff]
  %v235 = vld [vmem:[%s1 + $0x670] sm:$0xff]
  %v236 = vld [vmem:[%s1 + $0x678] sm:$0xff]
  %v237 = vld [vmem:[%s1 + $0x680] sm:$0xff]
  %v238 = vld [vmem:[%s1 + $0x688] sm:$0xff]
  %v239 = vld [vmem:[%s1 + $0x690] sm:$0xff]
  %v240 = vld [vmem:[%s1 + $0x698] sm:$0xff]
  %v241 = vld [vmem:[%s1 + $0x6a0] sm:$0xff]
  %v242 = vld [vmem:[%s1 + $0x6a8] sm:$0xff]
  %v243 = vld [vmem:[%s1 + $0x6b0] sm:$0xff]
  %v244 = vld [vmem:[%s1 + $0x6b8] sm:$0xff]
  %v245 = vld [vmem:[%s1 + $0x6c0] sm:$0xff]
  %v246 = vld [vmem:[%s1 + $0x6c8] sm:$0xff]
  %v247 = vld [vmem:[%s1 + $0x6d0] sm:$0xff]
  %v248 = vld [vmem:[%s1 + $0x6d8] sm:$0xff]
  %v249 = vld [vmem:[%s1 + $0x6e0] sm:$0xff]
  %v250 = vld [vmem:[%s1 + $0x6e8] sm:$0xff]
  %v251 = vld [vmem:[%s1 + $0x6f0] sm:$0xff]
  %v252 = vld [vmem:[%s1 + $0x6f8] sm:$0xff]
  %v253 = vld [vmem:[%s1 + $0x700] sm:$0xff]
  %v254 = vld [vmem:[%s1 + $0x708] sm:$0xff]
  %v255 = vld [vmem:[%s1 + $0x710] sm:$0xff]
  %v256 = vld [vmem:[%s1 + $0x718] sm:$0xff]
  %v257 = vld [vmem:[%s1 + $0x720] sm:$0xff]
  %v258 = vld [vmem:[%s1 + $0x728] sm:$0xff]
  %v259 = vld [vmem:[%s1 + $0x730] sm:$0xff]
  %v260 = vld [vmem:[%s1 + $0x738] sm:$0xff]
  %v261 = vld [vmem:[%s1 + $0x740] sm:$0xff]
  %v262 = vld [vmem:[%s1 + $0x748] sm:$0xff]
  %v263 = vld [vmem:[%s1 + $0x750] sm:$0xff]
  %v264 = vld [vmem:[%s1 + $0x758] sm:$0xff]
  %v265 = vld [vmem:[%s1 + $0x760] sm:$0xff]
  %v266 = vld [vmem:[%s1 + $0x768] sm:$0xff]
  %v267 = vld [vmem:[%s1 + $0x770] sm:$0xff]
  %v268 = vld [vmem:[%s1 + $0x778] sm:$0xff]
  %v269 = vld [vmem:[%s1 + $0x780] sm:$0xff]
  %v270 = vld [vmem:[%s1 + $0x788] sm:$0xff]
  %v271 = vld [vmem:[%s1 + $0x790] sm:$0xff]
  %v272 = vld [vmem:[%s1 + $0x798] sm:$0xff]
  %v273 = vld [vmem:[%s1 + $0x7a0] sm:$0xff]
  %v274 = vld [vmem:[%s1 + $0x7a8] sm:$0xff]
  %v275 = vld [vmem:[%s1 + $0x7b0] sm:$0xff]
  %v276 = vld [vmem:[%s1 + $0x7b8] sm:$0xff]
  %v277 = vld [vmem:[%s1 + $0x7c0] sm:$0xff]
  %v278 = vld [vmem:[%s1 + $0x7c8] sm:$0xff]
  %v279 = vld [vmem:[%s1 + $0x7d0] sm:$0xff]
  %v280 = vld [vmem:[%s1 + $0x7d8] sm:$0xff]
  %v281 = vld [vmem:[%s1 + $0x7e0] sm:$0xff]
  %v282 = vld [vmem:[%s1 + $0x7e8] sm:$0xff]
  %v283 = vld [vmem:[%s1 + $0x7f0] sm:$0xff]
  %v284 = vld [vmem:[%s1 + $0x7f8] sm:$0xff]
  %v285 = vld [vmem:[%s2] sm:$0xf]
  %v287 = vlaneseq
  %v288 = vshrl.u32 %v287, 7
  %v289 = vsub.s32 0, %v288
  %v290 = vrot.slane %v285, %v289
  %v291 = vlaneseq
  %v292 = vshrl.u32 %v291, 7
  %v293 = vsub.s32 1, %v292
  %v294 = vrot.slane %v285, %v293
  %v295 = vlaneseq
  %v296 = vshrl.u32 %v295, 7
  %v297 = vsub.s32 2, %v296
  %v298 = vrot.slane %v285, %v297
  %v299 = vlaneseq
  %v300 = vshrl.u32 %v299, 7
  %v301 = vsub.s32 3, %v300
  %v302 = vrot.slane %v285, %v301
  %v315 = vunpack.c.l.b16 %v21
  %v316 = vunpack.c.h.b16 %v21
  %v317 = vunpack.c.l.b16 %v22
  %v318 = vunpack.c.h.b16 %v22
  %v319 = vunpack.c.l.b16 %v23
  %v320 = vunpack.c.h.b16 %v23
  %v321 = vunpack.c.l.b16 %v24
  %v322 = vunpack.c.h.b16 %v24
  %v323 = vunpack.c.l.b16 %v25
  %v324 = vunpack.c.h.b16 %v25
  %v325 = vunpack.c.l.b16 %v26
  %v326 = vunpack.c.h.b16 %v26
  %v327 = vunpack.c.l.b16 %v27
  %v328 = vunpack.c.h.b16 %v27
  %v329 = vunpack.c.l.b16 %v28
  %v330 = vunpack.c.h.b16 %v28
  %v331 = vpack.c.b16 %v323, %v315
  %v332 = vpack.c.b16 %v324, %v316
  %v333 = vpack.c.b16 %v325, %v317
  %v334 = vpack.c.b16 %v326, %v318
  %v335 = vpack.c.b16 %v327, %v319
  %v336 = vpack.c.b16 %v328, %v320
  %v337 = vpack.c.b16 %v329, %v321
  %v338 = vpack.c.b16 %v330, %v322
  %v603 = vunpack.c.l.b16 %v29
  %v604 = vunpack.c.h.b16 %v29
  %v605 = vunpack.c.l.b16 %v30
  %v606 = vunpack.c.h.b16 %v30
  %v607 = vunpack.c.l.b16 %v31
  %v608 = vunpack.c.h.b16 %v31
  %v609 = vunpack.c.l.b16 %v32
  %v610 = vunpack.c.h.b16 %v32
  %v611 = vunpack.c.l.b16 %v33
  %v612 = vunpack.c.h.b16 %v33
  %v613 = vunpack.c.l.b16 %v34
  %v614 = vunpack.c.h.b16 %v34
  %v615 = vunpack.c.l.b16 %v35
  %v616 = vunpack.c.h.b16 %v35
  %v617 = vunpack.c.l.b16 %v36
  %v618 = vunpack.c.h.b16 %v36
  %v619 = vunpack.c.l.b16 %v37
  %v620 = vunpack.c.h.b16 %v37
  %v621 = vunpack.c.l.b16 %v38
  %v622 = vunpack.c.h.b16 %v38
  %v623 = vunpack.c.l.b16 %v39
  %v624 = vunpack.c.h.b16 %v39
  %v625 = vunpack.c.l.b16 %v40
  %v626 = vunpack.c.h.b16 %v40
  %v627 = vunpack.c.l.b16 %v41
  %v628 = vunpack.c.h.b16 %v41
  %v629 = vunpack.c.l.b16 %v42
  %v630 = vunpack.c.h.b16 %v42
  %v631 = vunpack.c.l.b16 %v43
  %v632 = vunpack.c.h.b16 %v43
  %v633 = vunpack.c.l.b16 %v44
  %v634 = vunpack.c.h.b16 %v44
  %v635 = vunpack.c.l.b16 %v45
  %v636 = vunpack.c.h.b16 %v45
  %v637 = vunpack.c.l.b16 %v46
  %v638 = vunpack.c.h.b16 %v46
  %v639 = vunpack.c.l.b16 %v47
  %v640 = vunpack.c.h.b16 %v47
  %v641 = vunpack.c.l.b16 %v48
  %v642 = vunpack.c.h.b16 %v48
  %v643 = vunpack.c.l.b16 %v49
  %v644 = vunpack.c.h.b16 %v49
  %v645 = vunpack.c.l.b16 %v50
  %v646 = vunpack.c.h.b16 %v50
  %v647 = vunpack.c.l.b16 %v51
  %v648 = vunpack.c.h.b16 %v51
  %v649 = vunpack.c.l.b16 %v52
  %v650 = vunpack.c.h.b16 %v52
  %v651 = vunpack.c.l.b16 %v53
  %v652 = vunpack.c.h.b16 %v53
  %v653 = vunpack.c.l.b16 %v54
  %v654 = vunpack.c.h.b16 %v54
  %v655 = vunpack.c.l.b16 %v55
  %v656 = vunpack.c.h.b16 %v55
  %v657 = vunpack.c.l.b16 %v56
  %v658 = vunpack.c.h.b16 %v56
  %v659 = vunpack.c.l.b16 %v57
  %v660 = vunpack.c.h.b16 %v57
  %v661 = vunpack.c.l.b16 %v58
  %v662 = vunpack.c.h.b16 %v58
  %v663 = vunpack.c.l.b16 %v59
  %v664 = vunpack.c.h.b16 %v59
  %v665 = vunpack.c.l.b16 %v60
  %v666 = vunpack.c.h.b16 %v60
  %v667 = vunpack.c.l.b16 %v61
  %v668 = vunpack.c.h.b16 %v61
  %v669 = vunpack.c.l.b16 %v62
  %v670 = vunpack.c.h.b16 %v62
  %v671 = vunpack.c.l.b16 %v63
  %v672 = vunpack.c.h.b16 %v63
  %v673 = vunpack.c.l.b16 %v64
  %v674 = vunpack.c.h.b16 %v64
  %v675 = vunpack.c.l.b16 %v65
  %v676 = vunpack.c.h.b16 %v65
  %v677 = vunpack.c.l.b16 %v66
  %v678 = vunpack.c.h.b16 %v66
  %v679 = vunpack.c.l.b16 %v67
  %v680 = vunpack.c.h.b16 %v67
  %v681 = vunpack.c.l.b16 %v68
  %v682 = vunpack.c.h.b16 %v68
  %v683 = vunpack.c.l.b16 %v69
  %v684 = vunpack.c.h.b16 %v69
  %v685 = vunpack.c.l.b16 %v70
  %v686 = vunpack.c.h.b16 %v70
  %v687 = vunpack.c.l.b16 %v71
  %v688 = vunpack.c.h.b16 %v71
  %v689 = vunpack.c.l.b16 %v72
  %v690 = vunpack.c.h.b16 %v72
  %v691 = vunpack.c.l.b16 %v73
  %v692 = vunpack.c.h.b16 %v73
  %v693 = vunpack.c.l.b16 %v74
  %v694 = vunpack.c.h.b16 %v74
  %v695 = vunpack.c.l.b16 %v75
  %v696 = vunpack.c.h.b16 %v75
  %v697 = vunpack.c.l.b16 %v76
  %v698 = vunpack.c.h.b16 %v76
  %v699 = vunpack.c.l.b16 %v77
  %v700 = vunpack.c.h.b16 %v77
  %v701 = vunpack.c.l.b16 %v78
  %v702 = vunpack.c.h.b16 %v78
  %v703 = vunpack.c.l.b16 %v79
  %v704 = vunpack.c.h.b16 %v79
  %v705 = vunpack.c.l.b16 %v80
  %v706 = vunpack.c.h.b16 %v80
  %v707 = vunpack.c.l.b16 %v81
  %v708 = vunpack.c.h.b16 %v81
  %v709 = vunpack.c.l.b16 %v82
  %v710 = vunpack.c.h.b16 %v82
  %v711 = vunpack.c.l.b16 %v83
  %v712 = vunpack.c.h.b16 %v83
  %v713 = vunpack.c.l.b16 %v84
  %v714 = vunpack.c.h.b16 %v84
  %v715 = vunpack.c.l.b16 %v85
  %v716 = vunpack.c.h.b16 %v85
  %v717 = vunpack.c.l.b16 %v86
  %v718 = vunpack.c.h.b16 %v86
  %v719 = vunpack.c.l.b16 %v87
  %v720 = vunpack.c.h.b16 %v87
  %v721 = vunpack.c.l.b16 %v88
  %v722 = vunpack.c.h.b16 %v88
  %v723 = vunpack.c.l.b16 %v89
  %v724 = vunpack.c.h.b16 %v89
  %v725 = vunpack.c.l.b16 %v90
  %v726 = vunpack.c.h.b16 %v90
  %v727 = vunpack.c.l.b16 %v91
  %v728 = vunpack.c.h.b16 %v91
  %v729 = vunpack.c.l.b16 %v92
  %v730 = vunpack.c.h.b16 %v92
  %v731 = vunpack.c.l.b16 %v93
  %v732 = vunpack.c.h.b16 %v93
  %v733 = vunpack.c.l.b16 %v94
  %v734 = vunpack.c.h.b16 %v94
  %v735 = vunpack.c.l.b16 %v95
  %v736 = vunpack.c.h.b16 %v95
  %v737 = vunpack.c.l.b16 %v96
  %v738 = vunpack.c.h.b16 %v96
  %v739 = vunpack.c.l.b16 %v97
  %v740 = vunpack.c.h.b16 %v97
  %v741 = vunpack.c.l.b16 %v98
  %v742 = vunpack.c.h.b16 %v98
  %v743 = vunpack.c.l.b16 %v99
  %v744 = vunpack.c.h.b16 %v99
  %v745 = vunpack.c.l.b16 %v100
  %v746 = vunpack.c.h.b16 %v100
  %v747 = vunpack.c.l.b16 %v101
  %v748 = vunpack.c.h.b16 %v101
  %v749 = vunpack.c.l.b16 %v102
  %v750 = vunpack.c.h.b16 %v102
  %v751 = vunpack.c.l.b16 %v103
  %v752 = vunpack.c.h.b16 %v103
  %v753 = vunpack.c.l.b16 %v104
  %v754 = vunpack.c.h.b16 %v104
  %v755 = vunpack.c.l.b16 %v105
  %v756 = vunpack.c.h.b16 %v105
  %v757 = vunpack.c.l.b16 %v106
  %v758 = vunpack.c.h.b16 %v106
  %v759 = vunpack.c.l.b16 %v107
  %v760 = vunpack.c.h.b16 %v107
  %v761 = vunpack.c.l.b16 %v108
  %v762 = vunpack.c.h.b16 %v108
  %v763 = vunpack.c.l.b16 %v109
  %v764 = vunpack.c.h.b16 %v109
  %v765 = vunpack.c.l.b16 %v110
  %v766 = vunpack.c.h.b16 %v110
  %v767 = vunpack.c.l.b16 %v111
  %v768 = vunpack.c.h.b16 %v111
  %v769 = vunpack.c.l.b16 %v112
  %v770 = vunpack.c.h.b16 %v112
  %v771 = vunpack.c.l.b16 %v113
  %v772 = vunpack.c.h.b16 %v113
  %v773 = vunpack.c.l.b16 %v114
  %v774 = vunpack.c.h.b16 %v114
  %v775 = vunpack.c.l.b16 %v115
  %v776 = vunpack.c.h.b16 %v115
  %v777 = vunpack.c.l.b16 %v116
  %v778 = vunpack.c.h.b16 %v116
  %v779 = vunpack.c.l.b16 %v117
  %v780 = vunpack.c.h.b16 %v117
  %v781 = vunpack.c.l.b16 %v118
  %v782 = vunpack.c.h.b16 %v118
  %v783 = vunpack.c.l.b16 %v119
  %v784 = vunpack.c.h.b16 %v119
  %v785 = vunpack.c.l.b16 %v120
  %v786 = vunpack.c.h.b16 %v120
  %v787 = vunpack.c.l.b16 %v121
  %v788 = vunpack.c.h.b16 %v121
  %v789 = vunpack.c.l.b16 %v122
  %v790 = vunpack.c.h.b16 %v122
  %v791 = vunpack.c.l.b16 %v123
  %v792 = vunpack.c.h.b16 %v123
  %v793 = vunpack.c.l.b16 %v124
  %v794 = vunpack.c.h.b16 %v124
  %v795 = vunpack.c.l.b16 %v125
  %v796 = vunpack.c.h.b16 %v125
  %v797 = vunpack.c.l.b16 %v126
  %v798 = vunpack.c.h.b16 %v126
  %v799 = vunpack.c.l.b16 %v127
  %v800 = vunpack.c.h.b16 %v127
  %v801 = vunpack.c.l.b16 %v128
  %v802 = vunpack.c.h.b16 %v128
  %v803 = vunpack.c.l.b16 %v129
  %v804 = vunpack.c.h.b16 %v129
  %v805 = vunpack.c.l.b16 %v130
  %v806 = vunpack.c.h.b16 %v130
  %v807 = vunpack.c.l.b16 %v131
  %v808 = vunpack.c.h.b16 %v131
  %v809 = vunpack.c.l.b16 %v132
  %v810 = vunpack.c.h.b16 %v132
  %v811 = vunpack.c.l.b16 %v133
  %v812 = vunpack.c.h.b16 %v133
  %v813 = vunpack.c.l.b16 %v134
  %v814 = vunpack.c.h.b16 %v134
  %v815 = vunpack.c.l.b16 %v135
  %v816 = vunpack.c.h.b16 %v135
  %v817 = vunpack.c.l.b16 %v136
  %v818 = vunpack.c.h.b16 %v136
  %v819 = vunpack.c.l.b16 %v137
  %v820 = vunpack.c.h.b16 %v137
  %v821 = vunpack.c.l.b16 %v138
  %v822 = vunpack.c.h.b16 %v138
  %v823 = vunpack.c.l.b16 %v139
  %v824 = vunpack.c.h.b16 %v139
  %v825 = vunpack.c.l.b16 %v140
  %v826 = vunpack.c.h.b16 %v140
  %v827 = vunpack.c.l.b16 %v141
  %v828 = vunpack.c.h.b16 %v141
  %v829 = vunpack.c.l.b16 %v142
  %v830 = vunpack.c.h.b16 %v142
  %v831 = vunpack.c.l.b16 %v143
  %v832 = vunpack.c.h.b16 %v143
  %v833 = vunpack.c.l.b16 %v144
  %v834 = vunpack.c.h.b16 %v144
  %v835 = vunpack.c.l.b16 %v145
  %v836 = vunpack.c.h.b16 %v145
  %v837 = vunpack.c.l.b16 %v146
  %v838 = vunpack.c.h.b16 %v146
  %v839 = vunpack.c.l.b16 %v147
  %v840 = vunpack.c.h.b16 %v147
  %v841 = vunpack.c.l.b16 %v148
  %v842 = vunpack.c.h.b16 %v148
  %v843 = vunpack.c.l.b16 %v149
  %v844 = vunpack.c.h.b16 %v149
  %v845 = vunpack.c.l.b16 %v150
  %v846 = vunpack.c.h.b16 %v150
  %v847 = vunpack.c.l.b16 %v151
  %v848 = vunpack.c.h.b16 %v151
  %v849 = vunpack.c.l.b16 %v152
  %v850 = vunpack.c.h.b16 %v152
  %v851 = vunpack.c.l.b16 %v153
  %v852 = vunpack.c.h.b16 %v153
  %v853 = vunpack.c.l.b16 %v154
  %v854 = vunpack.c.h.b16 %v154
  %v855 = vunpack.c.l.b16 %v155
  %v856 = vunpack.c.h.b16 %v155
  %v857 = vunpack.c.l.b16 %v156
  %v858 = vunpack.c.h.b16 %v156
  %v859 = vunpack.c.l.b16 %v157
  %v860 = vunpack.c.h.b16 %v157
  %v861 = vunpack.c.l.b16 %v158
  %v862 = vunpack.c.h.b16 %v158
  %v863 = vunpack.c.l.b16 %v159
  %v864 = vunpack.c.h.b16 %v159
  %v865 = vunpack.c.l.b16 %v160
  %v866 = vunpack.c.h.b16 %v160
  %v867 = vunpack.c.l.b16 %v161
  %v868 = vunpack.c.h.b16 %v161
  %v869 = vunpack.c.l.b16 %v162
  %v870 = vunpack.c.h.b16 %v162
  %v871 = vunpack.c.l.b16 %v163
  %v872 = vunpack.c.h.b16 %v163
  %v873 = vunpack.c.l.b16 %v164
  %v874 = vunpack.c.h.b16 %v164
  %v875 = vunpack.c.l.b16 %v165
  %v876 = vunpack.c.h.b16 %v165
  %v877 = vunpack.c.l.b16 %v166
  %v878 = vunpack.c.h.b16 %v166
  %v879 = vunpack.c.l.b16 %v167
  %v880 = vunpack.c.h.b16 %v167
  %v881 = vunpack.c.l.b16 %v168
  %v882 = vunpack.c.h.b16 %v168
  %v883 = vunpack.c.l.b16 %v169
  %v884 = vunpack.c.h.b16 %v169
  %v885 = vunpack.c.l.b16 %v170
  %v886 = vunpack.c.h.b16 %v170
  %v887 = vunpack.c.l.b16 %v171
  %v888 = vunpack.c.h.b16 %v171
  %v889 = vunpack.c.l.b16 %v172
  %v890 = vunpack.c.h.b16 %v172
  %v891 = vunpack.c.l.b16 %v173
  %v892 = vunpack.c.h.b16 %v173
  %v893 = vunpack.c.l.b16 %v174
  %v894 = vunpack.c.h.b16 %v174
  %v895 = vunpack.c.l.b16 %v175
  %v896 = vunpack.c.h.b16 %v175
  %v897 = vunpack.c.l.b16 %v176
  %v898 = vunpack.c.h.b16 %v176
  %v899 = vunpack.c.l.b16 %v177
  %v900 = vunpack.c.h.b16 %v177
  %v901 = vunpack.c.l.b16 %v178
  %v902 = vunpack.c.h.b16 %v178
  %v903 = vunpack.c.l.b16 %v179
  %v904 = vunpack.c.h.b16 %v179
  %v905 = vunpack.c.l.b16 %v180
  %v906 = vunpack.c.h.b16 %v180
  %v907 = vunpack.c.l.b16 %v181
  %v908 = vunpack.c.h.b16 %v181
  %v909 = vunpack.c.l.b16 %v182
  %v910 = vunpack.c.h.b16 %v182
  %v911 = vunpack.c.l.b16 %v183
  %v912 = vunpack.c.h.b16 %v183
  %v913 = vunpack.c.l.b16 %v184
  %v914 = vunpack.c.h.b16 %v184
  %v915 = vunpack.c.l.b16 %v185
  %v916 = vunpack.c.h.b16 %v185
  %v917 = vunpack.c.l.b16 %v186
  %v918 = vunpack.c.h.b16 %v186
  %v919 = vunpack.c.l.b16 %v187
  %v920 = vunpack.c.h.b16 %v187
  %v921 = vunpack.c.l.b16 %v188
  %v922 = vunpack.c.h.b16 %v188
  %v923 = vunpack.c.l.b16 %v189
  %v924 = vunpack.c.h.b16 %v189
  %v925 = vunpack.c.l.b16 %v190
  %v926 = vunpack.c.h.b16 %v190
  %v927 = vunpack.c.l.b16 %v191
  %v928 = vunpack.c.h.b16 %v191
  %v929 = vunpack.c.l.b16 %v192
  %v930 = vunpack.c.h.b16 %v192
  %v931 = vunpack.c.l.b16 %v193
  %v932 = vunpack.c.h.b16 %v193
  %v933 = vunpack.c.l.b16 %v194
  %v934 = vunpack.c.h.b16 %v194
  %v935 = vunpack.c.l.b16 %v195
  %v936 = vunpack.c.h.b16 %v195
  %v937 = vunpack.c.l.b16 %v196
  %v938 = vunpack.c.h.b16 %v196
  %v939 = vunpack.c.l.b16 %v197
  %v940 = vunpack.c.h.b16 %v197
  %v941 = vunpack.c.l.b16 %v198
  %v942 = vunpack.c.h.b16 %v198
  %v943 = vunpack.c.l.b16 %v199
  %v944 = vunpack.c.h.b16 %v199
  %v945 = vunpack.c.l.b16 %v200
  %v946 = vunpack.c.h.b16 %v200
  %v947 = vunpack.c.l.b16 %v201
  %v948 = vunpack.c.h.b16 %v201
  %v949 = vunpack.c.l.b16 %v202
  %v950 = vunpack.c.h.b16 %v202
  %v951 = vunpack.c.l.b16 %v203
  %v952 = vunpack.c.h.b16 %v203
  %v953 = vunpack.c.l.b16 %v204
  %v954 = vunpack.c.h.b16 %v204
  %v955 = vunpack.c.l.b16 %v205
  %v956 = vunpack.c.h.b16 %v205
  %v957 = vunpack.c.l.b16 %v206
  %v958 = vunpack.c.h.b16 %v206
  %v959 = vunpack.c.l.b16 %v207
  %v960 = vunpack.c.h.b16 %v207
  %v961 = vunpack.c.l.b16 %v208
  %v962 = vunpack.c.h.b16 %v208
  %v963 = vunpack.c.l.b16 %v209
  %v964 = vunpack.c.h.b16 %v209
  %v965 = vunpack.c.l.b16 %v210
  %v966 = vunpack.c.h.b16 %v210
  %v967 = vunpack.c.l.b16 %v211
  %v968 = vunpack.c.h.b16 %v211
  %v969 = vunpack.c.l.b16 %v212
  %v970 = vunpack.c.h.b16 %v212
  %v971 = vunpack.c.l.b16 %v213
  %v972 = vunpack.c.h.b16 %v213
  %v973 = vunpack.c.l.b16 %v214
  %v974 = vunpack.c.h.b16 %v214
  %v975 = vunpack.c.l.b16 %v215
  %v976 = vunpack.c.h.b16 %v215
  %v977 = vunpack.c.l.b16 %v216
  %v978 = vunpack.c.h.b16 %v216
  %v979 = vunpack.c.l.b16 %v217
  %v980 = vunpack.c.h.b16 %v217
  %v981 = vunpack.c.l.b16 %v218
  %v982 = vunpack.c.h.b16 %v218
  %v983 = vunpack.c.l.b16 %v219
  %v984 = vunpack.c.h.b16 %v219
  %v985 = vunpack.c.l.b16 %v220
  %v986 = vunpack.c.h.b16 %v220
  %v987 = vunpack.c.l.b16 %v221
  %v988 = vunpack.c.h.b16 %v221
  %v989 = vunpack.c.l.b16 %v222
  %v990 = vunpack.c.h.b16 %v222
  %v991 = vunpack.c.l.b16 %v223
  %v992 = vunpack.c.h.b16 %v223
  %v993 = vunpack.c.l.b16 %v224
  %v994 = vunpack.c.h.b16 %v224
  %v995 = vunpack.c.l.b16 %v225
  %v996 = vunpack.c.h.b16 %v225
  %v997 = vunpack.c.l.b16 %v226
  %v998 = vunpack.c.h.b16 %v226
  %v999 = vunpack.c.l.b16 %v227
  %v1000 = vunpack.c.h.b16 %v227
  %v1001 = vunpack.c.l.b16 %v228
  %v1002 = vunpack.c.h.b16 %v228
  %v1003 = vunpack.c.l.b16 %v229
  %v1004 = vunpack.c.h.b16 %v229
  %v1005 = vunpack.c.l.b16 %v230
  %v1006 = vunpack.c.h.b16 %v230
  %v1007 = vunpack.c.l.b16 %v231
  %v1008 = vunpack.c.h.b16 %v231
  %v1009 = vunpack.c.l.b16 %v232
  %v1010 = vunpack.c.h.b16 %v232
  %v1011 = vunpack.c.l.b16 %v233
  %v1012 = vunpack.c.h.b16 %v233
  %v1013 = vunpack.c.l.b16 %v234
  %v1014 = vunpack.c.h.b16 %v234
  %v1015 = vunpack.c.l.b16 %v235
  %v1016 = vunpack.c.h.b16 %v235
  %v1017 = vunpack.c.l.b16 %v236
  %v1018 = vunpack.c.h.b16 %v236
  %v1019 = vunpack.c.l.b16 %v237
  %v1020 = vunpack.c.h.b16 %v237
  %v1021 = vunpack.c.l.b16 %v238
  %v1022 = vunpack.c.h.b16 %v238
  %v1023 = vunpack.c.l.b16 %v239
  %v1024 = vunpack.c.h.b16 %v239
  %v1025 = vunpack.c.l.b16 %v240
  %v1026 = vunpack.c.h.b16 %v240
  %v1027 = vunpack.c.l.b16 %v241
  %v1028 = vunpack.c.h.b16 %v241
  %v1029 = vunpack.c.l.b16 %v242
  %v1030 = vunpack.c.h.b16 %v242
  %v1031 = vunpack.c.l.b16 %v243
  %v1032 = vunpack.c.h.b16 %v243
  %v1033 = vunpack.c.l.b16 %v244
  %v1034 = vunpack.c.h.b16 %v244
  %v1035 = vunpack.c.l.b16 %v245
  %v1036 = vunpack.c.h.b16 %v245
  %v1037 = vunpack.c.l.b16 %v246
  %v1038 = vunpack.c.h.b16 %v246
  %v1039 = vunpack.c.l.b16 %v247
  %v1040 = vunpack.c.h.b16 %v247
  %v1041 = vunpack.c.l.b16 %v248
  %v1042 = vunpack.c.h.b16 %v248
  %v1043 = vunpack.c.l.b16 %v249
  %v1044 = vunpack.c.h.b16 %v249
  %v1045 = vunpack.c.l.b16 %v250
  %v1046 = vunpack.c.h.b16 %v250
  %v1047 = vunpack.c.l.b16 %v251
  %v1048 = vunpack.c.h.b16 %v251
  %v1049 = vunpack.c.l.b16 %v252
  %v1050 = vunpack.c.h.b16 %v252
  %v1051 = vunpack.c.l.b16 %v253
  %v1052 = vunpack.c.h.b16 %v253
  %v1053 = vunpack.c.l.b16 %v254
  %v1054 = vunpack.c.h.b16 %v254
  %v1055 = vunpack.c.l.b16 %v255
  %v1056 = vunpack.c.h.b16 %v255
  %v1057 = vunpack.c.l.b16 %v256
  %v1058 = vunpack.c.h.b16 %v256
  %v1059 = vunpack.c.l.b16 %v257
  %v1060 = vunpack.c.h.b16 %v257
  %v1061 = vunpack.c.l.b16 %v258
  %v1062 = vunpack.c.h.b16 %v258
  %v1063 = vunpack.c.l.b16 %v259
  %v1064 = vunpack.c.h.b16 %v259
  %v1065 = vunpack.c.l.b16 %v260
  %v1066 = vunpack.c.h.b16 %v260
  %v1067 = vunpack.c.l.b16 %v261
  %v1068 = vunpack.c.h.b16 %v261
  %v1069 = vunpack.c.l.b16 %v262
  %v1070 = vunpack.c.h.b16 %v262
  %v1071 = vunpack.c.l.b16 %v263
  %v1072 = vunpack.c.h.b16 %v263
  %v1073 = vunpack.c.l.b16 %v264
  %v1074 = vunpack.c.h.b16 %v264
  %v1075 = vunpack.c.l.b16 %v265
  %v1076 = vunpack.c.h.b16 %v265
  %v1077 = vunpack.c.l.b16 %v266
  %v1078 = vunpack.c.h.b16 %v266
  %v1079 = vunpack.c.l.b16 %v267
  %v1080 = vunpack.c.h.b16 %v267
  %v1081 = vunpack.c.l.b16 %v268
  %v1082 = vunpack.c.h.b16 %v268
  %v1083 = vunpack.c.l.b16 %v269
  %v1084 = vunpack.c.h.b16 %v269
  %v1085 = vunpack.c.l.b16 %v270
  %v1086 = vunpack.c.h.b16 %v270
  %v1087 = vunpack.c.l.b16 %v271
  %v1088 = vunpack.c.h.b16 %v271
  %v1089 = vunpack.c.l.b16 %v272
  %v1090 = vunpack.c.h.b16 %v272
  %v1091 = vunpack.c.l.b16 %v273
  %v1092 = vunpack.c.h.b16 %v273
  %v1093 = vunpack.c.l.b16 %v274
  %v1094 = vunpack.c.h.b16 %v274
  %v1095 = vunpack.c.l.b16 %v275
  %v1096 = vunpack.c.h.b16 %v275
  %v1097 = vunpack.c.l.b16 %v276
  %v1098 = vunpack.c.h.b16 %v276
  %v1099 = vunpack.c.l.b16 %v277
  %v1100 = vunpack.c.h.b16 %v277
  %v1101 = vunpack.c.l.b16 %v278
  %v1102 = vunpack.c.h.b16 %v278
  %v1103 = vunpack.c.l.b16 %v279
  %v1104 = vunpack.c.h.b16 %v279
  %v1105 = vunpack.c.l.b16 %v280
  %v1106 = vunpack.c.h.b16 %v280
  %v1107 = vunpack.c.l.b16 %v281
  %v1108 = vunpack.c.h.b16 %v281
  %v1109 = vunpack.c.l.b16 %v282
  %v1110 = vunpack.c.h.b16 %v282
  %v1111 = vunpack.c.l.b16 %v283
  %v1112 = vunpack.c.h.b16 %v283
  %v1113 = vunpack.c.l.b16 %v284
  %v1114 = vunpack.c.h.b16 %v284
  %v1115 = vpack.c.b16 %v607, %v603
  %v1116 = vpack.c.b16 %v608, %v604
  %v1117 = vpack.c.b16 %v609, %v605
  %v1118 = vpack.c.b16 %v610, %v606
  %v1119 = vpack.c.b16 %v615, %v611
  %v1120 = vpack.c.b16 %v616, %v612
  %v1121 = vpack.c.b16 %v617, %v613
  %v1122 = vpack.c.b16 %v618, %v614
  %v1123 = vpack.c.b16 %v623, %v619
  %v1124 = vpack.c.b16 %v624, %v620
  %v1125 = vpack.c.b16 %v625, %v621
  %v1126 = vpack.c.b16 %v626, %v622
  %v1127 = vpack.c.b16 %v631, %v627
  %v1128 = vpack.c.b16 %v632, %v628
  %v1129 = vpack.c.b16 %v633, %v629
  %v1130 = vpack.c.b16 %v634, %v630
  %v1131 = vpack.c.b16 %v639, %v635
  %v1132 = vpack.c.b16 %v640, %v636
  %v1133 = vpack.c.b16 %v641, %v637
  %v1134 = vpack.c.b16 %v642, %v638
  %v1135 = vpack.c.b16 %v647, %v643
  %v1136 = vpack.c.b16 %v648, %v644
  %v1137 = vpack.c.b16 %v649, %v645
  %v1138 = vpack.c.b16 %v650, %v646
  %v1139 = vpack.c.b16 %v655, %v651
  %v1140 = vpack.c.b16 %v656, %v652
  %v1141 = vpack.c.b16 %v657, %v653
  %v1142 = vpack.c.b16 %v658, %v654
  %v1143 = vpack.c.b16 %v663, %v659
  %v1144 = vpack.c.b16 %v664, %v660
  %v1145 = vpack.c.b16 %v665, %v661
  %v1146 = vpack.c.b16 %v666, %v662
  %v1147 = vpack.c.b16 %v671, %v667
  %v1148 = vpack.c.b16 %v672, %v668
  %v1149 = vpack.c.b16 %v673, %v669
  %v1150 = vpack.c.b16 %v674, %v670
  %v1151 = vpack.c.b16 %v679, %v675
  %v1152 = vpack.c.b16 %v680, %v676
  %v1153 = vpack.c.b16 %v681, %v677
  %v1154 = vpack.c.b16 %v682, %v678
  %v1155 = vpack.c.b16 %v687, %v683
  %v1156 = vpack.c.b16 %v688, %v684
  %v1157 = vpack.c.b16 %v689, %v685
  %v1158 = vpack.c.b16 %v690, %v686
  %v1159 = vpack.c.b16 %v695, %v691
  %v1160 = vpack.c.b16 %v696, %v692
  %v1161 = vpack.c.b16 %v697, %v693
  %v1162 = vpack.c.b16 %v698, %v694
  %v1163 = vpack.c.b16 %v703, %v699
  %v1164 = vpack.c.b16 %v704, %v700
  %v1165 = vpack.c.b16 %v705, %v701
  %v1166 = vpack.c.b16 %v706, %v702
  %v1167 = vpack.c.b16 %v711, %v707
  %v1168 = vpack.c.b16 %v712, %v708
  %v1169 = vpack.c.b16 %v713, %v709
  %v1170 = vpack.c.b16 %v714, %v710
  %v1171 = vpack.c.b16 %v719, %v715
  %v1172 = vpack.c.b16 %v720, %v716
  %v1173 = vpack.c.b16 %v721, %v717
  %v1174 = vpack.c.b16 %v722, %v718
  %v1175 = vpack.c.b16 %v727, %v723
  %v1176 = vpack.c.b16 %v728, %v724
  %v1177 = vpack.c.b16 %v729, %v725
  %v1178 = vpack.c.b16 %v730, %v726
  %v1179 = vpack.c.b16 %v735, %v731
  %v1180 = vpack.c.b16 %v736, %v732
  %v1181 = vpack.c.b16 %v737, %v733
  %v1182 = vpack.c.b16 %v738, %v734
  %v1183 = vpack.c.b16 %v743, %v739
  %v1184 = vpack.c.b16 %v744, %v740
  %v1185 = vpack.c.b16 %v745, %v741
  %v1186 = vpack.c.b16 %v746, %v742
  %v1187 = vpack.c.b16 %v751, %v747
  %v1188 = vpack.c.b16 %v752, %v748
  %v1189 = vpack.c.b16 %v753, %v749
  %v1190 = vpack.c.b16 %v754, %v750
  %v1191 = vpack.c.b16 %v759, %v755
  %v1192 = vpack.c.b16 %v760, %v756
  %v1193 = vpack.c.b16 %v761, %v757
  %v1194 = vpack.c.b16 %v762, %v758
  %v1195 = vpack.c.b16 %v767, %v763
  %v1196 = vpack.c.b16 %v768, %v764
  %v1197 = vpack.c.b16 %v769, %v765
  %v1198 = vpack.c.b16 %v770, %v766
  %v1199 = vpack.c.b16 %v775, %v771
  %v1200 = vpack.c.b16 %v776, %v772
  %v1201 = vpack.c.b16 %v777, %v773
  %v1202 = vpack.c.b16 %v778, %v774
  %v1203 = vpack.c.b16 %v783, %v779
  %v1204 = vpack.c.b16 %v784, %v780
  %v1205 = vpack.c.b16 %v785, %v781
  %v1206 = vpack.c.b16 %v786, %v782
  %v1207 = vpack.c.b16 %v791, %v787
  %v1208 = vpack.c.b16 %v792, %v788
  %v1209 = vpack.c.b16 %v793, %v789
  %v1210 = vpack.c.b16 %v794, %v790
  %v1211 = vpack.c.b16 %v799, %v795
  %v1212 = vpack.c.b16 %v800, %v796
  %v1213 = vpack.c.b16 %v801, %v797
  %v1214 = vpack.c.b16 %v802, %v798
  %v1215 = vpack.c.b16 %v807, %v803
  %v1216 = vpack.c.b16 %v808, %v804
  %v1217 = vpack.c.b16 %v809, %v805
  %v1218 = vpack.c.b16 %v810, %v806
  %v1219 = vpack.c.b16 %v815, %v811
  %v1220 = vpack.c.b16 %v816, %v812
  %v1221 = vpack.c.b16 %v817, %v813
  %v1222 = vpack.c.b16 %v818, %v814
  %v1223 = vpack.c.b16 %v823, %v819
  %v1224 = vpack.c.b16 %v824, %v820
  %v1225 = vpack.c.b16 %v825, %v821
  %v1226 = vpack.c.b16 %v826, %v822
  %v1227 = vpack.c.b16 %v831, %v827
  %v1228 = vpack.c.b16 %v832, %v828
  %v1229 = vpack.c.b16 %v833, %v829
  %v1230 = vpack.c.b16 %v834, %v830
  %v1231 = vpack.c.b16 %v839, %v835
  %v1232 = vpack.c.b16 %v840, %v836
  %v1233 = vpack.c.b16 %v841, %v837
  %v1234 = vpack.c.b16 %v842, %v838
  %v1235 = vpack.c.b16 %v847, %v843
  %v1236 = vpack.c.b16 %v848, %v844
  %v1237 = vpack.c.b16 %v849, %v845
  %v1238 = vpack.c.b16 %v850, %v846
  %v1239 = vpack.c.b16 %v855, %v851
  %v1240 = vpack.c.b16 %v856, %v852
  %v1241 = vpack.c.b16 %v857, %v853
  %v1242 = vpack.c.b16 %v858, %v854
  %v1243 = vpack.c.b16 %v863, %v859
  %v1244 = vpack.c.b16 %v864, %v860
  %v1245 = vpack.c.b16 %v865, %v861
  %v1246 = vpack.c.b16 %v866, %v862
  %v1247 = vpack.c.b16 %v871, %v867
  %v1248 = vpack.c.b16 %v872, %v868
  %v1249 = vpack.c.b16 %v873, %v869
  %v1250 = vpack.c.b16 %v874, %v870
  %v1251 = vpack.c.b16 %v879, %v875
  %v1252 = vpack.c.b16 %v880, %v876
  %v1253 = vpack.c.b16 %v881, %v877
  %v1254 = vpack.c.b16 %v882, %v878
  %v1255 = vpack.c.b16 %v887, %v883
  %v1256 = vpack.c.b16 %v888, %v884
  %v1257 = vpack.c.b16 %v889, %v885
  %v1258 = vpack.c.b16 %v890, %v886
  %v1259 = vpack.c.b16 %v895, %v891
  %v1260 = vpack.c.b16 %v896, %v892
  %v1261 = vpack.c.b16 %v897, %v893
  %v1262 = vpack.c.b16 %v898, %v894
  %v1263 = vpack.c.b16 %v903, %v899
  %v1264 = vpack.c.b16 %v904, %v900
  %v1265 = vpack.c.b16 %v905, %v901
  %v1266 = vpack.c.b16 %v906, %v902
  %v1267 = vpack.c.b16 %v911, %v907
  %v1268 = vpack.c.b16 %v912, %v908
  %v1269 = vpack.c.b16 %v913, %v909
  %v1270 = vpack.c.b16 %v914, %v910
  %v1271 = vpack.c.b16 %v919, %v915
  %v1272 = vpack.c.b16 %v920, %v916
  %v1273 = vpack.c.b16 %v921, %v917
  %v1274 = vpack.c.b16 %v922, %v918
  %v1275 = vpack.c.b16 %v927, %v923
  %v1276 = vpack.c.b16 %v928, %v924
  %v1277 = vpack.c.b16 %v929, %v925
  %v1278 = vpack.c.b16 %v930, %v926
  %v1279 = vpack.c.b16 %v935, %v931
  %v1280 = vpack.c.b16 %v936, %v932
  %v1281 = vpack.c.b16 %v937, %v933
  %v1282 = vpack.c.b16 %v938, %v934
  %v1283 = vpack.c.b16 %v943, %v939
  %v1284 = vpack.c.b16 %v944, %v940
  %v1285 = vpack.c.b16 %v945, %v941
  %v1286 = vpack.c.b16 %v946, %v942
  %v1287 = vpack.c.b16 %v951, %v947
  %v1288 = vpack.c.b16 %v952, %v948
  %v1289 = vpack.c.b16 %v953, %v949
  %v1290 = vpack.c.b16 %v954, %v950
  %v1291 = vpack.c.b16 %v959, %v955
  %v1292 = vpack.c.b16 %v960, %v956
  %v1293 = vpack.c.b16 %v961, %v957
  %v1294 = vpack.c.b16 %v962, %v958
  %v1295 = vpack.c.b16 %v967, %v963
  %v1296 = vpack.c.b16 %v968, %v964
  %v1297 = vpack.c.b16 %v969, %v965
  %v1298 = vpack.c.b16 %v970, %v966
  %v1299 = vpack.c.b16 %v975, %v971
  %v1300 = vpack.c.b16 %v976, %v972
  %v1301 = vpack.c.b16 %v977, %v973
  %v1302 = vpack.c.b16 %v978, %v974
  %v1303 = vpack.c.b16 %v983, %v979
  %v1304 = vpack.c.b16 %v984, %v980
  %v1305 = vpack.c.b16 %v985, %v981
  %v1306 = vpack.c.b16 %v986, %v982
  %v1307 = vpack.c.b16 %v991, %v987
  %v1308 = vpack.c.b16 %v992, %v988
  %v1309 = vpack.c.b16 %v993, %v989
  %v1310 = vpack.c.b16 %v994, %v990
  %v1311 = vpack.c.b16 %v999, %v995
  %v1312 = vpack.c.b16 %v1000, %v996
  %v1313 = vpack.c.b16 %v1001, %v997
  %v1314 = vpack.c.b16 %v1002, %v998
  %v1315 = vpack.c.b16 %v1007, %v1003
  %v1316 = vpack.c.b16 %v1008, %v1004
  %v1317 = vpack.c.b16 %v1009, %v1005
  %v1318 = vpack.c.b16 %v1010, %v1006
  %v1319 = vpack.c.b16 %v1015, %v1011
  %v1320 = vpack.c.b16 %v1016, %v1012
  %v1321 = vpack.c.b16 %v1017, %v1013
  %v1322 = vpack.c.b16 %v1018, %v1014
  %v1323 = vpack.c.b16 %v1023, %v1019
  %v1324 = vpack.c.b16 %v1024, %v1020
  %v1325 = vpack.c.b16 %v1025, %v1021
  %v1326 = vpack.c.b16 %v1026, %v1022
  %v1327 = vpack.c.b16 %v1031, %v1027
  %v1328 = vpack.c.b16 %v1032, %v1028
  %v1329 = vpack.c.b16 %v1033, %v1029
  %v1330 = vpack.c.b16 %v1034, %v1030
  %v1331 = vpack.c.b16 %v1039, %v1035
  %v1332 = vpack.c.b16 %v1040, %v1036
  %v1333 = vpack.c.b16 %v1041, %v1037
  %v1334 = vpack.c.b16 %v1042, %v1038
  %v1335 = vpack.c.b16 %v1047, %v1043
  %v1336 = vpack.c.b16 %v1048, %v1044
  %v1337 = vpack.c.b16 %v1049, %v1045
  %v1338 = vpack.c.b16 %v1050, %v1046
  %v1339 = vpack.c.b16 %v1055, %v1051
  %v1340 = vpack.c.b16 %v1056, %v1052
  %v1341 = vpack.c.b16 %v1057, %v1053
  %v1342 = vpack.c.b16 %v1058, %v1054
  %v1343 = vpack.c.b16 %v1063, %v1059
  %v1344 = vpack.c.b16 %v1064, %v1060
  %v1345 = vpack.c.b16 %v1065, %v1061
  %v1346 = vpack.c.b16 %v1066, %v1062
  %v1347 = vpack.c.b16 %v1071, %v1067
  %v1348 = vpack.c.b16 %v1072, %v1068
  %v1349 = vpack.c.b16 %v1073, %v1069
  %v1350 = vpack.c.b16 %v1074, %v1070
  %v1351 = vpack.c.b16 %v1079, %v1075
  %v1352 = vpack.c.b16 %v1080, %v1076
  %v1353 = vpack.c.b16 %v1081, %v1077
  %v1354 = vpack.c.b16 %v1082, %v1078
  %v1355 = vpack.c.b16 %v1087, %v1083
  %v1356 = vpack.c.b16 %v1088, %v1084
  %v1357 = vpack.c.b16 %v1089, %v1085
  %v1358 = vpack.c.b16 %v1090, %v1086
  %v1359 = vpack.c.b16 %v1095, %v1091
  %v1360 = vpack.c.b16 %v1096, %v1092
  %v1361 = vpack.c.b16 %v1097, %v1093
  %v1362 = vpack.c.b16 %v1098, %v1094
  %v1363 = vpack.c.b16 %v1103, %v1099
  %v1364 = vpack.c.b16 %v1104, %v1100
  %v1365 = vpack.c.b16 %v1105, %v1101
  %v1366 = vpack.c.b16 %v1106, %v1102
  %v1367 = vpack.c.b16 %v1111, %v1107
  %v1368 = vpack.c.b16 %v1112, %v1108
  %v1369 = vpack.c.b16 %v1113, %v1109
  %v1370 = vpack.c.b16 %v1114, %v1110
  %1627 = vmatprep.subr.bf16.mxu0 %v1144
  %1628 = vmatpush1.bf16.msra.mxu0 %v1143
  %1629 = vmatprep.subr.bf16.mxu0 %v1140
  %1630 = vmatpush1.bf16.msra.mxu0 %v1139
  %1631 = vmatprep.subr.bf16.mxu0 %v1136
  %1632 = vmatpush1.bf16.msra.mxu0 %v1135
  %1633 = vmatprep.subr.bf16.mxu0 %v1132
  %1634 = vmatpush1.bf16.msra.mxu0 %v1131
  %1635 = vmatprep.subr.bf16.mxu0 %v1128
  %1636 = vmatpush1.bf16.msra.mxu0 %v1127
  %1637 = vmatprep.subr.bf16.mxu0 %v1124
  %1638 = vmatpush1.bf16.msra.mxu0 %v1123
  %1639 = vmatprep.subr.bf16.mxu0 %v1120
  %1640 = vmatpush1.bf16.msra.mxu0 %v1119
  %1641 = vmatprep.subr.bf16.mxu0 %v1116
  %1642 = vmatpush1.bf16.msra.mxu0 %v1115
  %1643 = vmatprep.subr.bf16.mxu0 %v1176
  %1644 = vmatpush2.bf16.msra.mxu0 %v1175
  %1645 = vmatprep.subr.bf16.mxu0 %v1172
  %1646 = vmatpush2.bf16.msra.mxu0 %v1171
  %1647 = vmatprep.subr.bf16.mxu0 %v1168
  %1648 = vmatpush2.bf16.msra.mxu0 %v1167
  %1649 = vmatprep.subr.bf16.mxu0 %v1164
  %1650 = vmatpush2.bf16.msra.mxu0 %v1163
  %1651 = vmatprep.subr.bf16.mxu0 %v1160
  %1652 = vmatpush2.bf16.msra.mxu0 %v1159
  %1653 = vmatprep.subr.bf16.mxu0 %v1156
  %1654 = vmatpush2.bf16.msra.mxu0 %v1155
  %1655 = vmatprep.subr.bf16.mxu0 %v1152
  %1656 = vmatpush2.bf16.msra.mxu0 %v1151
  %1657 = vmatprep.subr.bf16.mxu0 %v1148
  %1658 = vmatpush2.bf16.msra.mxu0 %v1147
  %1659 = vmatprep.mubr.bf16.mxu0 %v332
  %1660 = vmatmul.mubr.bf16.gmra.mxu0 %v331
  %v1661 = vpop.f32.mrf.mxu0
  %v1662 = vadd.f32 %v290, %v1661
  %v1663 = vpop.f32.mrf.mxu0
  %v1664 = vadd.f32 %v294, %v1663
  %v1665 = vpop.f32.mrf.mxu0
  %v1666 = vadd.f32 %v290, %v1665
  %v1667 = vpop.f32.mrf.mxu0
  %v1668 = vadd.f32 %v294, %v1667
  %1669 = vdwg.mxu0
  %1670 = vmatprep.subr.bf16.mxu0 %v1208
  %1671 = vmatpush1.bf16.msra.mxu0 %v1207
  %1672 = vmatprep.subr.bf16.mxu0 %v1204
  %1673 = vmatpush1.bf16.msra.mxu0 %v1203
  %1674 = vmatprep.subr.bf16.mxu0 %v1200
  %1675 = vmatpush1.bf16.msra.mxu0 %v1199
  %1676 = vmatprep.subr.bf16.mxu0 %v1196
  %1677 = vmatpush1.bf16.msra.mxu0 %v1195
  %1678 = vmatprep.subr.bf16.mxu0 %v1192
  %1679 = vmatpush1.bf16.msra.mxu0 %v1191
  %1680 = vmatprep.subr.bf16.mxu0 %v1188
  %1681 = vmatpush1.bf16.msra.mxu0 %v1187
  %1682 = vmatprep.subr.bf16.mxu0 %v1184
  %1683 = vmatpush1.bf16.msra.mxu0 %v1183
  %1684 = vmatprep.subr.bf16.mxu0 %v1180
  %1685 = vmatpush1.bf16.msra.mxu0 %v1179
  %1686 = vmatprep.subr.bf16.mxu0 %v1240
  %1687 = vmatpush2.bf16.msra.mxu0 %v1239
  %1688 = vmatprep.subr.bf16.mxu0 %v1236
  %1689 = vmatpush2.bf16.msra.mxu0 %v1235
  %1690 = vmatprep.subr.bf16.mxu0 %v1232
  %1691 = vmatpush2.bf16.msra.mxu0 %v1231
  %1692 = vmatprep.subr.bf16.mxu0 %v1228
  %1693 = vmatpush2.bf16.msra.mxu0 %v1227
  %1694 = vmatprep.subr.bf16.mxu0 %v1224
  %1695 = vmatpush2.bf16.msra.mxu0 %v1223
  %1696 = vmatprep.subr.bf16.mxu0 %v1220
  %1697 = vmatpush2.bf16.msra.mxu0 %v1219
  %1698 = vmatprep.subr.bf16.mxu0 %v1216
  %1699 = vmatpush2.bf16.msra.mxu0 %v1215
  %1700 = vmatprep.subr.bf16.mxu0 %v1212
  %1701 = vmatpush2.bf16.msra.mxu0 %v1211
  %1702 = vmatprep.mubr.bf16.mxu0 %v334
  %1703 = vmatmul.mubr.bf16.gmra.mxu0 %v333
  %v1704 = vpop.f32.mrf.mxu0
  %v1705 = vadd.f32 %v1662, %v1704
  %v1706 = vpop.f32.mrf.mxu0
  %v1707 = vadd.f32 %v1664, %v1706
  %v1708 = vpop.f32.mrf.mxu0
  %v1709 = vadd.f32 %v1666, %v1708
  %v1710 = vpop.f32.mrf.mxu0
  %v1711 = vadd.f32 %v1668, %v1710
  %1712 = vdwg.mxu0
  %1713 = vmatprep.subr.bf16.mxu0 %v1272
  %1714 = vmatpush1.bf16.msra.mxu0 %v1271
  %1715 = vmatprep.subr.bf16.mxu0 %v1268
  %1716 = vmatpush1.bf16.msra.mxu0 %v1267
  %1717 = vmatprep.subr.bf16.mxu0 %v1264
  %1718 = vmatpush1.bf16.msra.mxu0 %v1263
  %1719 = vmatprep.subr.bf16.mxu0 %v1260
  %1720 = vmatpush1.bf16.msra.mxu0 %v1259
  %1721 = vmatprep.subr.bf16.mxu0 %v1256
  %1722 = vmatpush1.bf16.msra.mxu0 %v1255
  %1723 = vmatprep.subr.bf16.mxu0 %v1252
  %1724 = vmatpush1.bf16.msra.mxu0 %v1251
  %1725 = vmatprep.subr.bf16.mxu0 %v1248
  %1726 = vmatpush1.bf16.msra.mxu0 %v1247
  %1727 = vmatprep.subr.bf16.mxu0 %v1244
  %1728 = vmatpush1.bf16.msra.mxu0 %v1243
  %1729 = vmatprep.subr.bf16.mxu0 %v1304
  %1730 = vmatpush2.bf16.msra.mxu0 %v1303
  %1731 = vmatprep.subr.bf16.mxu0 %v1300
  %1732 = vmatpush2.bf16.msra.mxu0 %v1299
  %1733 = vmatprep.subr.bf16.mxu0 %v1296
  %1734 = vmatpush2.bf16.msra.mxu0 %v1295
  %1735 = vmatprep.subr.bf16.mxu0 %v1292
  %1736 = vmatpush2.bf16.msra.mxu0 %v1291
  %1737 = vmatprep.subr.bf16.mxu0 %v1288
  %1738 = vmatpush2.bf16.msra.mxu0 %v1287
  %1739 = vmatprep.subr.bf16.mxu0 %v1284
  %1740 = vmatpush2.bf16.msra.mxu0 %v1283
  %1741 = vmatprep.subr.bf16.mxu0 %v1280
  %1742 = vmatpush2.bf16.msra.mxu0 %v1279
  %1743 = vmatprep.subr.bf16.mxu0 %v1276
  %1744 = vmatpush2.bf16.msra.mxu0 %v1275
  %1745 = vmatprep.mubr.bf16.mxu0 %v336
  %1746 = vmatmul.mubr.bf16.gmra.mxu0 %v335
  %v1747 = vpop.f32.mrf.mxu0
  %v1748 = vadd.f32 %v1705, %v1747
  %v1749 = vpop.f32.mrf.mxu0
  %v1750 = vadd.f32 %v1707, %v1749
  %v1751 = vpop.f32.mrf.mxu0
  %v1752 = vadd.f32 %v1709, %v1751
  %v1753 = vpop.f32.mrf.mxu0
  %v1754 = vadd.f32 %v1711, %v1753
  %1755 = vdwg.mxu0
  %1756 = vmatprep.subr.bf16.mxu0 %v1336
  %1757 = vmatpush1.bf16.msra.mxu0 %v1335
  %1758 = vmatprep.subr.bf16.mxu0 %v1332
  %1759 = vmatpush1.bf16.msra.mxu0 %v1331
  %1760 = vmatprep.subr.bf16.mxu0 %v1328
  %1761 = vmatpush1.bf16.msra.mxu0 %v1327
  %1762 = vmatprep.subr.bf16.mxu0 %v1324
  %1763 = vmatpush1.bf16.msra.mxu0 %v1323
  %1764 = vmatprep.subr.bf16.mxu0 %v1320
  %1765 = vmatpush1.bf16.msra.mxu0 %v1319
  %1766 = vmatprep.subr.bf16.mxu0 %v1316
  %1767 = vmatpush1.bf16.msra.mxu0 %v1315
  %1768 = vmatprep.subr.bf16.mxu0 %v1312
  %1769 = vmatpush1.bf16.msra.mxu0 %v1311
  %1770 = vmatprep.subr.bf16.mxu0 %v1308
  %1771 = vmatpush1.bf16.msra.mxu0 %v1307
  %1772 = vmatprep.subr.bf16.mxu0 %v1368
  %1773 = vmatpush2.bf16.msra.mxu0 %v1367
  %1774 = vmatprep.subr.bf16.mxu0 %v1364
  %1775 = vmatpush2.bf16.msra.mxu0 %v1363
  %1776 = vmatprep.subr.bf16.mxu0 %v1360
  %1777 = vmatpush2.bf16.msra.mxu0 %v1359
  %1778 = vmatprep.subr.bf16.mxu0 %v1356
  %1779 = vmatpush2.bf16.msra.mxu0 %v1355
  %1780 = vmatprep.subr.bf16.mxu0 %v1352
  %1781 = vmatpush2.bf16.msra.mxu0 %v1351
  %1782 = vmatprep.subr.bf16.mxu0 %v1348
  %1783 = vmatpush2.bf16.msra.mxu0 %v1347
  %1784 = vmatprep.subr.bf16.mxu0 %v1344
  %1785 = vmatpush2.bf16.msra.mxu0 %v1343
  %1786 = vmatprep.subr.bf16.mxu0 %v1340
  %1787 = vmatpush2.bf16.msra.mxu0 %v1339
  %1788 = vmatprep.mubr.bf16.mxu0 %v338
  %1789 = vmatmul.mubr.bf16.gmra.mxu0 %v337
  %v1790 = vpop.f32.mrf.mxu0
  %v1791 = vadd.f32 %v1748, %v1790
  %v1792 = vpop.f32.mrf.mxu0
  %v1793 = vadd.f32 %v1750, %v1792
  %v1794 = vpop.f32.mrf.mxu0
  %v1795 = vadd.f32 %v1752, %v1794
  %v1796 = vpop.f32.mrf.mxu0
  %v1797 = vadd.f32 %v1754, %v1796
  %1798 = vdwg.mxu0
  %1799 = vmatprep.subr.bf16.mxu0 %v1146
  %1800 = vmatpush1.bf16.msra.mxu0 %v1145
  %1801 = vmatprep.subr.bf16.mxu0 %v1142
  %1802 = vmatpush1.bf16.msra.mxu0 %v1141
  %1803 = vmatprep.subr.bf16.mxu0 %v1138
  %1804 = vmatpush1.bf16.msra.mxu0 %v1137
  %1805 = vmatprep.subr.bf16.mxu0 %v1134
  %1806 = vmatpush1.bf16.msra.mxu0 %v1133
  %1807 = vmatprep.subr.bf16.mxu0 %v1130
  %1808 = vmatpush1.bf16.msra.mxu0 %v1129
  %1809 = vmatprep.subr.bf16.mxu0 %v1126
  %1810 = vmatpush1.bf16.msra.mxu0 %v1125
  %1811 = vmatprep.subr.bf16.mxu0 %v1122
  %1812 = vmatpush1.bf16.msra.mxu0 %v1121
  %1813 = vmatprep.subr.bf16.mxu0 %v1118
  %1814 = vmatpush1.bf16.msra.mxu0 %v1117
  %1815 = vmatprep.subr.bf16.mxu0 %v1178
  %1816 = vmatpush2.bf16.msra.mxu0 %v1177
  %1817 = vmatprep.subr.bf16.mxu0 %v1174
  %1818 = vmatpush2.bf16.msra.mxu0 %v1173
  %1819 = vmatprep.subr.bf16.mxu0 %v1170
  %1820 = vmatpush2.bf16.msra.mxu0 %v1169
  %1821 = vmatprep.subr.bf16.mxu0 %v1166
  %1822 = vmatpush2.bf16.msra.mxu0 %v1165
  %1823 = vmatprep.subr.bf16.mxu0 %v1162
  %1824 = vmatpush2.bf16.msra.mxu0 %v1161
  %1825 = vmatprep.subr.bf16.mxu0 %v1158
  %1826 = vmatpush2.bf16.msra.mxu0 %v1157
  %1827 = vmatprep.subr.bf16.mxu0 %v1154
  %1828 = vmatpush2.bf16.msra.mxu0 %v1153
  %1829 = vmatprep.subr.bf16.mxu0 %v1150
  %1830 = vmatpush2.bf16.msra.mxu0 %v1149
  %1831 = vmatprep.mubr.bf16.mxu0 %v332
  %1832 = vmatmul.mubr.bf16.gmra.mxu0 %v331
  %v1833 = vpop.f32.mrf.mxu0
  %v1834 = vadd.f32 %v298, %v1833
  %v1835 = vpop.f32.mrf.mxu0
  %v1836 = vadd.f32 %v302, %v1835
  %v1837 = vpop.f32.mrf.mxu0
  %v1838 = vadd.f32 %v298, %v1837
  %v1839 = vpop.f32.mrf.mxu0
  %v1840 = vadd.f32 %v302, %v1839
  %1841 = vdwg.mxu0
  %1842 = vmatprep.subr.bf16.mxu0 %v1210
  %1843 = vmatpush1.bf16.msra.mxu0 %v1209
  %1844 = vmatprep.subr.bf16.mxu0 %v1206
  %1845 = vmatpush1.bf16.msra.mxu0 %v1205
  %1846 = vmatprep.subr.bf16.mxu0 %v1202
  %1847 = vmatpush1.bf16.msra.mxu0 %v1201
  %1848 = vmatprep.subr.bf16.mxu0 %v1198
  %1849 = vmatpush1.bf16.msra.mxu0 %v1197
  %1850 = vmatprep.subr.bf16.mxu0 %v1194
  %1851 = vmatpush1.bf16.msra.mxu0 %v1193
  %1852 = vmatprep.subr.bf16.mxu0 %v1190
  %1853 = vmatpush1.bf16.msra.mxu0 %v1189
  %1854 = vmatprep.subr.bf16.mxu0 %v1186
  %1855 = vmatpush1.bf16.msra.mxu0 %v1185
  %1856 = vmatprep.subr.bf16.mxu0 %v1182
  %1857 = vmatpush1.bf16.msra.mxu0 %v1181
  %1858 = vmatprep.subr.bf16.mxu0 %v1242
  %1859 = vmatpush2.bf16.msra.mxu0 %v1241
  %1860 = vmatprep.subr.bf16.mxu0 %v1238
  %1861 = vmatpush2.bf16.msra.mxu0 %v1237
  %1862 = vmatprep.subr.bf16.mxu0 %v1234
  %1863 = vmatpush2.bf16.msra.mxu0 %v1233
  %1864 = vmatprep.subr.bf16.mxu0 %v1230
  %1865 = vmatpush2.bf16.msra.mxu0 %v1229
  %1866 = vmatprep.subr.bf16.mxu0 %v1226
  %1867 = vmatpush2.bf16.msra.mxu0 %v1225
  %1868 = vmatprep.subr.bf16.mxu0 %v1222
  %1869 = vmatpush2.bf16.msra.mxu0 %v1221
  %1870 = vmatprep.subr.bf16.mxu0 %v1218
  %1871 = vmatpush2.bf16.msra.mxu0 %v1217
  %1872 = vmatprep.subr.bf16.mxu0 %v1214
  %1873 = vmatpush2.bf16.msra.mxu0 %v1213
  %1874 = vmatprep.mubr.bf16.mxu0 %v334
  %1875 = vmatmul.mubr.bf16.gmra.mxu0 %v333
  %v1876 = vpop.f32.mrf.mxu0
  %v1877 = vadd.f32 %v1834, %v1876
  %v1878 = vpop.f32.mrf.mxu0
  %v1879 = vadd.f32 %v1836, %v1878
  %v1880 = vpop.f32.mrf.mxu0
  %v1881 = vadd.f32 %v1838, %v1880
  %v1882 = vpop.f32.mrf.mxu0
  %v1883 = vadd.f32 %v1840, %v1882
  %1884 = vdwg.mxu0
  %1885 = vmatprep.subr.bf16.mxu0 %v1274
  %1886 = vmatpush1.bf16.msra.mxu0 %v1273
  %1887 = vmatprep.subr.bf16.mxu0 %v1270
  %1888 = vmatpush1.bf16.msra.mxu0 %v1269
  %1889 = vmatprep.subr.bf16.mxu0 %v1266
  %1890 = vmatpush1.bf16.msra.mxu0 %v1265
  %1891 = vmatprep.subr.bf16.mxu0 %v1262
  %1892 = vmatpush1.bf16.msra.mxu0 %v1261
  %1893 = vmatprep.subr.bf16.mxu0 %v1258
  %1894 = vmatpush1.bf16.msra.mxu0 %v1257
  %1895 = vmatprep.subr.bf16.mxu0 %v1254
  %1896 = vmatpush1.bf16.msra.mxu0 %v1253
  %1897 = vmatprep.subr.bf16.mxu0 %v1250
  %1898 = vmatpush1.bf16.msra.mxu0 %v1249
  %1899 = vmatprep.subr.bf16.mxu0 %v1246
  %1900 = vmatpush1.bf16.msra.mxu0 %v1245
  %1901 = vmatprep.subr.bf16.mxu0 %v1306
  %1902 = vmatpush2.bf16.msra.mxu0 %v1305
  %1903 = vmatprep.subr.bf16.mxu0 %v1302
  %1904 = vmatpush2.bf16.msra.mxu0 %v1301
  %1905 = vmatprep.subr.bf16.mxu0 %v1298
  %1906 = vmatpush2.bf16.msra.mxu0 %v1297
  %1907 = vmatprep.subr.bf16.mxu0 %v1294
  %1908 = vmatpush2.bf16.msra.mxu0 %v1293
  %1909 = vmatprep.subr.bf16.mxu0 %v1290
  %1910 = vmatpush2.bf16.msra.mxu0 %v1289
  %1911 = vmatprep.subr.bf16.mxu0 %v1286
  %1912 = vmatpush2.bf16.msra.mxu0 %v1285
  %1913 = vmatprep.subr.bf16.mxu0 %v1282
  %1914 = vmatpush2.bf16.msra.mxu0 %v1281
  %1915 = vmatprep.subr.bf16.mxu0 %v1278
  %1916 = vmatpush2.bf16.msra.mxu0 %v1277
  %1917 = vmatprep.mubr.bf16.mxu0 %v336
  %1918 = vmatmul.mubr.bf16.gmra.mxu0 %v335
  %v1919 = vpop.f32.mrf.mxu0
  %v1920 = vadd.f32 %v1877, %v1919
  %v1921 = vpop.f32.mrf.mxu0
  %v1922 = vadd.f32 %v1879, %v1921
  %v1923 = vpop.f32.mrf.mxu0
  %v1924 = vadd.f32 %v1881, %v1923
  %v1925 = vpop.f32.mrf.mxu0
  %v1926 = vadd.f32 %v1883, %v1925
  %1927 = vdwg.mxu0
  %1928 = vmatprep.subr.bf16.mxu0 %v1338
  %1929 = vmatpush1.bf16.msra.mxu0 %v1337
  %1930 = vmatprep.subr.bf16.mxu0 %v1334
  %1931 = vmatpush1.bf16.msra.mxu0 %v1333
  %1932 = vmatprep.subr.bf16.mxu0 %v1330
  %1933 = vmatpush1.bf16.msra.mxu0 %v1329
  %1934 = vmatprep.subr.bf16.mxu0 %v1326
  %1935 = vmatpush1.bf16.msra.mxu0 %v1325
  %1936 = vmatprep.subr.bf16.mxu0 %v1322
  %1937 = vmatpush1.bf16.msra.mxu0 %v1321
  %1938 = vmatprep.subr.bf16.mxu0 %v1318
  %1939 = vmatpush1.bf16.msra.mxu0 %v1317
  %1940 = vmatprep.subr.bf16.mxu0 %v1314
  %1941 = vmatpush1.bf16.msra.mxu0 %v1313
  %1942 = vmatprep.subr.bf16.mxu0 %v1310
  %1943 = vmatpush1.bf16.msra.mxu0 %v1309
  %1944 = vmatprep.subr.bf16.mxu0 %v1370
  %1945 = vmatpush2.bf16.msra.mxu0 %v1369
  %1946 = vmatprep.subr.bf16.mxu0 %v1366
  %1947 = vmatpush2.bf16.msra.mxu0 %v1365
  %1948 = vmatprep.subr.bf16.mxu0 %v1362
  %1949 = vmatpush2.bf16.msra.mxu0 %v1361
  %1950 = vmatprep.subr.bf16.mxu0 %v1358
  %1951 = vmatpush2.bf16.msra.mxu0 %v1357
  %1952 = vmatprep.subr.bf16.mxu0 %v1354
  %1953 = vmatpush2.bf16.msra.mxu0 %v1353
  %1954 = vmatprep.subr.bf16.mxu0 %v1350
  %1955 = vmatpush2.bf16.msra.mxu0 %v1349
  %1956 = vmatprep.subr.bf16.mxu0 %v1346
  %1957 = vmatpush2.bf16.msra.mxu0 %v1345
  %1958 = vmatprep.subr.bf16.mxu0 %v1342
  %1959 = vmatpush2.bf16.msra.mxu0 %v1341
  %1960 = vmatprep.mubr.bf16.mxu0 %v338
  %1961 = vmatmul.mubr.bf16.gmra.mxu0 %v337
  %v1962 = vpop.f32.mrf.mxu0
  %v1963 = vadd.f32 %v1920, %v1962
  %v1964 = vpop.f32.mrf.mxu0
  %v1965 = vadd.f32 %v1922, %v1964
  %v1966 = vpop.f32.mrf.mxu0
  %v1967 = vadd.f32 %v1924, %v1966
  %v1968 = vpop.f32.mrf.mxu0
  %v1969 = vadd.f32 %v1926, %v1968
  %1970 = vdwg.mxu0
  %v1971 = vmax.f32 %v1791, 0.0
  %v1972 = vmax.f32 %v1793, 0.0
  %v1973 = vmax.f32 %v1963, 0.0
  %v1974 = vmax.f32 %v1965, 0.0
  %v1975 = vmax.f32 %v1795, 0.0
  %v1976 = vmax.f32 %v1797, 0.0
  %v1977 = vmax.f32 %v1967, 0.0
  %v1978 = vmax.f32 %v1969, 0.0
  %v1979 = vpack.c.bf16 %v1975, %v1971
  %v1980 = vpack.c.bf16 %v1976, %v1972
  %v1981 = vpack.c.bf16 %v1977, %v1973
  %v1982 = vpack.c.bf16 %v1978, %v1974
  %v1983 = vld [vmem:[%s3] sm:$0xf]
  %v1984 = vld [vmem:[%s3 + $0x4] sm:$0xf]
  %v1985 = vld [vmem:[%s3 + $0x8] sm:$0xf]
  %v1986 = vld [vmem:[%s3 + $0xc] sm:$0xf]
  %v1987 = vld [vmem:[%s3 + $0x10] sm:$0xf]
  %v1988 = vld [vmem:[%s3 + $0x14] sm:$0xf]
  %v1989 = vld [vmem:[%s3 + $0x18] sm:$0xf]
  %v1990 = vld [vmem:[%s3 + $0x1c] sm:$0xf]
  %v1991 = vld [vmem:[%s3 + $0x20] sm:$0xf]
  %v1992 = vld [vmem:[%s3 + $0x24] sm:$0xf]
  %v1993 = vld [vmem:[%s3 + $0x28] sm:$0xf]
  %v1994 = vld [vmem:[%s3 + $0x2c] sm:$0xf]
  %v1995 = vld [vmem:[%s3 + $0x30] sm:$0xf]
  %v1996 = vld [vmem:[%s3 + $0x34] sm:$0xf]
  %v1997 = vld [vmem:[%s3 + $0x38] sm:$0xf]
  %v1998 = vld [vmem:[%s3 + $0x3c] sm:$0xf]
  %v1999 = vld [vmem:[%s3 + $0x40] sm:$0xf]
  %v2000 = vld [vmem:[%s3 + $0x44] sm:$0xf]
  %v2001 = vld [vmem:[%s3 + $0x48] sm:$0xf]
  %v2002 = vld [vmem:[%s3 + $0x4c] sm:$0xf]
  %v2003 = vld [vmem:[%s3 + $0x50] sm:$0xf]
  %v2004 = vld [vmem:[%s3 + $0x54] sm:$0xf]
  %v2005 = vld [vmem:[%s3 + $0x58] sm:$0xf]
  %v2006 = vld [vmem:[%s3 + $0x5c] sm:$0xf]
  %v2007 = vld [vmem:[%s3 + $0x60] sm:$0xf]
  %v2008 = vld [vmem:[%s3 + $0x64] sm:$0xf]
  %v2009 = vld [vmem:[%s3 + $0x68] sm:$0xf]
  %v2010 = vld [vmem:[%s3 + $0x6c] sm:$0xf]
  %v2011 = vld [vmem:[%s3 + $0x70] sm:$0xf]
  %v2012 = vld [vmem:[%s3 + $0x74] sm:$0xf]
  %v2013 = vld [vmem:[%s3 + $0x78] sm:$0xf]
  %v2014 = vld [vmem:[%s3 + $0x7c] sm:$0xf]
  %v2015 = vld [vmem:[%s3 + $0x80] sm:$0xf]
  %v2016 = vld [vmem:[%s3 + $0x84] sm:$0xf]
  %v2017 = vld [vmem:[%s3 + $0x88] sm:$0xf]
  %v2018 = vld [vmem:[%s3 + $0x8c] sm:$0xf]
  %v2019 = vld [vmem:[%s3 + $0x90] sm:$0xf]
  %v2020 = vld [vmem:[%s3 + $0x94] sm:$0xf]
  %v2021 = vld [vmem:[%s3 + $0x98] sm:$0xf]
  %v2022 = vld [vmem:[%s3 + $0x9c] sm:$0xf]
  %v2023 = vld [vmem:[%s3 + $0xa0] sm:$0xf]
  %v2024 = vld [vmem:[%s3 + $0xa4] sm:$0xf]
  %v2025 = vld [vmem:[%s3 + $0xa8] sm:$0xf]
  %v2026 = vld [vmem:[%s3 + $0xac] sm:$0xf]
  %v2027 = vld [vmem:[%s3 + $0xb0] sm:$0xf]
  %v2028 = vld [vmem:[%s3 + $0xb4] sm:$0xf]
  %v2029 = vld [vmem:[%s3 + $0xb8] sm:$0xf]
  %v2030 = vld [vmem:[%s3 + $0xbc] sm:$0xf]
  %v2031 = vld [vmem:[%s3 + $0xc0] sm:$0xf]
  %v2032 = vld [vmem:[%s3 + $0xc4] sm:$0xf]
  %v2033 = vld [vmem:[%s3 + $0xc8] sm:$0xf]
  %v2034 = vld [vmem:[%s3 + $0xcc] sm:$0xf]
  %v2035 = vld [vmem:[%s3 + $0xd0] sm:$0xf]
  %v2036 = vld [vmem:[%s3 + $0xd4] sm:$0xf]
  %v2037 = vld [vmem:[%s3 + $0xd8] sm:$0xf]
  %v2038 = vld [vmem:[%s3 + $0xdc] sm:$0xf]
  %v2039 = vld [vmem:[%s3 + $0xe0] sm:$0xf]
  %v2040 = vld [vmem:[%s3 + $0xe4] sm:$0xf]
  %v2041 = vld [vmem:[%s3 + $0xe8] sm:$0xf]
  %v2042 = vld [vmem:[%s3 + $0xec] sm:$0xf]
  %v2043 = vld [vmem:[%s3 + $0xf0] sm:$0xf]
  %v2044 = vld [vmem:[%s3 + $0xf4] sm:$0xf]
  %v2045 = vld [vmem:[%s3 + $0xf8] sm:$0xf]
  %v2046 = vld [vmem:[%s3 + $0xfc] sm:$0xf]
  %v2047 = vld [vmem:[%s4] sm:$0x1]
  %v2049 = vlaneseq
  %v2050 = vshrl.u32 %v2049, 7
  %v2051 = vsub.s32 0, %v2050
  %v2052 = vrot.slane %v2047, %v2051
  %v2118 = vunpack.c.l.b16 %v1983
  %v2119 = vunpack.c.l.b16 %v1984
  %v2120 = vunpack.c.l.b16 %v1985
  %v2121 = vunpack.c.l.b16 %v1986
  %v2122 = vunpack.c.l.b16 %v1987
  %v2123 = vunpack.c.l.b16 %v1988
  %v2124 = vunpack.c.l.b16 %v1989
  %v2125 = vunpack.c.l.b16 %v1990
  %v2126 = vunpack.c.l.b16 %v1991
  %v2127 = vunpack.c.l.b16 %v1992
  %v2128 = vunpack.c.l.b16 %v1993
  %v2129 = vunpack.c.l.b16 %v1994
  %v2130 = vunpack.c.l.b16 %v1995
  %v2131 = vunpack.c.l.b16 %v1996
  %v2132 = vunpack.c.l.b16 %v1997
  %v2133 = vunpack.c.l.b16 %v1998
  %v2134 = vunpack.c.l.b16 %v1999
  %v2135 = vunpack.c.l.b16 %v2000
  %v2136 = vunpack.c.l.b16 %v2001
  %v2137 = vunpack.c.l.b16 %v2002
  %v2138 = vunpack.c.l.b16 %v2003
  %v2139 = vunpack.c.l.b16 %v2004
  %v2140 = vunpack.c.l.b16 %v2005
  %v2141 = vunpack.c.l.b16 %v2006
  %v2142 = vunpack.c.l.b16 %v2007
  %v2143 = vunpack.c.l.b16 %v2008
  %v2144 = vunpack.c.l.b16 %v2009
  %v2145 = vunpack.c.l.b16 %v2010
  %v2146 = vunpack.c.l.b16 %v2011
  %v2147 = vunpack.c.l.b16 %v2012
  %v2148 = vunpack.c.l.b16 %v2013
  %v2149 = vunpack.c.l.b16 %v2014
  %v2150 = vunpack.c.l.b16 %v2015
  %v2151 = vunpack.c.l.b16 %v2016
  %v2152 = vunpack.c.l.b16 %v2017
  %v2153 = vunpack.c.l.b16 %v2018
  %v2154 = vunpack.c.l.b16 %v2019
  %v2155 = vunpack.c.l.b16 %v2020
  %v2156 = vunpack.c.l.b16 %v2021
  %v2157 = vunpack.c.l.b16 %v2022
  %v2158 = vunpack.c.l.b16 %v2023
  %v2159 = vunpack.c.l.b16 %v2024
  %v2160 = vunpack.c.l.b16 %v2025
  %v2161 = vunpack.c.l.b16 %v2026
  %v2162 = vunpack.c.l.b16 %v2027
  %v2163 = vunpack.c.l.b16 %v2028
  %v2164 = vunpack.c.l.b16 %v2029
  %v2165 = vunpack.c.l.b16 %v2030
  %v2166 = vunpack.c.l.b16 %v2031
  %v2167 = vunpack.c.l.b16 %v2032
  %v2168 = vunpack.c.l.b16 %v2033
  %v2169 = vunpack.c.l.b16 %v2034
  %v2170 = vunpack.c.l.b16 %v2035
  %v2171 = vunpack.c.l.b16 %v2036
  %v2172 = vunpack.c.l.b16 %v2037
  %v2173 = vunpack.c.l.b16 %v2038
  %v2174 = vunpack.c.l.b16 %v2039
  %v2175 = vunpack.c.l.b16 %v2040
  %v2176 = vunpack.c.l.b16 %v2041
  %v2177 = vunpack.c.l.b16 %v2042
  %v2178 = vunpack.c.l.b16 %v2043
  %v2179 = vunpack.c.l.b16 %v2044
  %v2180 = vunpack.c.l.b16 %v2045
  %v2181 = vunpack.c.l.b16 %v2046
  %v2182 = vpack.c.b16 %v2119, %v2118
  %v2183 = vpack.c.b16 %v2121, %v2120
  %v2184 = vpack.c.b16 %v2123, %v2122
  %v2185 = vpack.c.b16 %v2125, %v2124
  %v2186 = vpack.c.b16 %v2127, %v2126
  %v2187 = vpack.c.b16 %v2129, %v2128
  %v2188 = vpack.c.b16 %v2131, %v2130
  %v2189 = vpack.c.b16 %v2133, %v2132
  %v2190 = vpack.c.b16 %v2135, %v2134
  %v2191 = vpack.c.b16 %v2137, %v2136
  %v2192 = vpack.c.b16 %v2139, %v2138
  %v2193 = vpack.c.b16 %v2141, %v2140
  %v2194 = vpack.c.b16 %v2143, %v2142
  %v2195 = vpack.c.b16 %v2145, %v2144
  %v2196 = vpack.c.b16 %v2147, %v2146
  %v2197 = vpack.c.b16 %v2149, %v2148
  %v2198 = vpack.c.b16 %v2151, %v2150
  %v2199 = vpack.c.b16 %v2153, %v2152
  %v2200 = vpack.c.b16 %v2155, %v2154
  %v2201 = vpack.c.b16 %v2157, %v2156
  %v2202 = vpack.c.b16 %v2159, %v2158
  %v2203 = vpack.c.b16 %v2161, %v2160
  %v2204 = vpack.c.b16 %v2163, %v2162
  %v2205 = vpack.c.b16 %v2165, %v2164
  %v2206 = vpack.c.b16 %v2167, %v2166
  %v2207 = vpack.c.b16 %v2169, %v2168
  %v2208 = vpack.c.b16 %v2171, %v2170
  %v2209 = vpack.c.b16 %v2173, %v2172
  %v2210 = vpack.c.b16 %v2175, %v2174
  %v2211 = vpack.c.b16 %v2177, %v2176
  %v2212 = vpack.c.b16 %v2179, %v2178
  %v2213 = vpack.c.b16 %v2181, %v2180
  %2246 = vmatprep.subr.bf16.mxu0 0
  %2247 = vmatpush1.bf16.msra.mxu0 %v2189
  %2248 = vmatprep.subr.bf16.mxu0 0
  %2249 = vmatpush1.bf16.msra.mxu0 %v2188
  %2250 = vmatprep.subr.bf16.mxu0 0
  %2251 = vmatpush1.bf16.msra.mxu0 %v2187
  %2252 = vmatprep.subr.bf16.mxu0 0
  %2253 = vmatpush1.bf16.msra.mxu0 %v2186
  %2254 = vmatprep.subr.bf16.mxu0 0
  %2255 = vmatpush1.bf16.msra.mxu0 %v2185
  %2256 = vmatprep.subr.bf16.mxu0 0
  %2257 = vmatpush1.bf16.msra.mxu0 %v2184
  %2258 = vmatprep.subr.bf16.mxu0 0
  %2259 = vmatpush1.bf16.msra.mxu0 %v2183
  %2260 = vmatprep.subr.bf16.mxu0 0
  %2261 = vmatpush1.bf16.msra.mxu0 %v2182
  %2262 = vmatprep.subr.bf16.mxu0 0
  %2263 = vmatpush2.bf16.msra.mxu0 %v2197
  %2264 = vmatprep.subr.bf16.mxu0 0
  %2265 = vmatpush2.bf16.msra.mxu0 %v2196
  %2266 = vmatprep.subr.bf16.mxu0 0
  %2267 = vmatpush2.bf16.msra.mxu0 %v2195
  %2268 = vmatprep.subr.bf16.mxu0 0
  %2269 = vmatpush2.bf16.msra.mxu0 %v2194
  %2270 = vmatprep.subr.bf16.mxu0 0
  %2271 = vmatpush2.bf16.msra.mxu0 %v2193
  %2272 = vmatprep.subr.bf16.mxu0 0
  %2273 = vmatpush2.bf16.msra.mxu0 %v2192
  %2274 = vmatprep.subr.bf16.mxu0 0
  %2275 = vmatpush2.bf16.msra.mxu0 %v2191
  %2276 = vmatprep.subr.bf16.mxu0 0
  %2277 = vmatpush2.bf16.msra.mxu0 %v2190
  %2278 = vmatprep.mubr.bf16.mxu0 %v1980
  %2279 = vmatmul.mubr.bf16.gmra.mxu0 %v1979
  %v2280 = vpop.f32.mrf.mxu0
  %v2281 = vadd.f32 %v2052, %v2280
  %v2282 = vpop.f32.mrf.mxu0
  %v2283 = vpop.f32.mrf.mxu0
  %v2284 = vadd.f32 %v2052, %v2283
  %v2285 = vpop.f32.mrf.mxu0
  %2286 = vdwg.mxu0
  %2287 = vmatprep.subr.bf16.mxu0 0
  %2288 = vmatpush1.bf16.msra.mxu0 %v2205
  %2289 = vmatprep.subr.bf16.mxu0 0
  %2290 = vmatpush1.bf16.msra.mxu0 %v2204
  %2291 = vmatprep.subr.bf16.mxu0 0
  %2292 = vmatpush1.bf16.msra.mxu0 %v2203
  %2293 = vmatprep.subr.bf16.mxu0 0
  %2294 = vmatpush1.bf16.msra.mxu0 %v2202
  %2295 = vmatprep.subr.bf16.mxu0 0
  %2296 = vmatpush1.bf16.msra.mxu0 %v2201
  %2297 = vmatprep.subr.bf16.mxu0 0
  %2298 = vmatpush1.bf16.msra.mxu0 %v2200
  %2299 = vmatprep.subr.bf16.mxu0 0
  %2300 = vmatpush1.bf16.msra.mxu0 %v2199
  %2301 = vmatprep.subr.bf16.mxu0 0
  %2302 = vmatpush1.bf16.msra.mxu0 %v2198
  %2303 = vmatprep.subr.bf16.mxu0 0
  %2304 = vmatpush2.bf16.msra.mxu0 %v2213
  %2305 = vmatprep.subr.bf16.mxu0 0
  %2306 = vmatpush2.bf16.msra.mxu0 %v2212
  %2307 = vmatprep.subr.bf16.mxu0 0
  %2308 = vmatpush2.bf16.msra.mxu0 %v2211
  %2309 = vmatprep.subr.bf16.mxu0 0
  %2310 = vmatpush2.bf16.msra.mxu0 %v2210
  %2311 = vmatprep.subr.bf16.mxu0 0
  %2312 = vmatpush2.bf16.msra.mxu0 %v2209
  %2313 = vmatprep.subr.bf16.mxu0 0
  %2314 = vmatpush2.bf16.msra.mxu0 %v2208
  %2315 = vmatprep.subr.bf16.mxu0 0
  %2316 = vmatpush2.bf16.msra.mxu0 %v2207
  %2317 = vmatprep.subr.bf16.mxu0 0
  %2318 = vmatpush2.bf16.msra.mxu0 %v2206
  %2319 = vmatprep.mubr.bf16.mxu0 %v1982
  %2320 = vmatmul.mubr.bf16.gmra.mxu0 %v1981
  %v2321 = vpop.f32.mrf.mxu0
  %v2322 = vadd.f32 %v2281, %v2321
  %v2323 = vpop.f32.mrf.mxu0
  %v2324 = vpop.f32.mrf.mxu0
  %v2325 = vadd.f32 %v2284, %v2324
  %v2326 = vpop.f32.mrf.mxu0
  %2327 = vdwg.mxu0
  %2328 = vst [vmem:[%s5] sm:$0xff] %v2322
  %2329 = vst [vmem:[%s5 + $0x8] sm:$0xff] %v2325
  // Predicated region
  $region22: #{cnn_forward.5} parent=0 // pred_check
    _
  $region23: #{cnn_forward.5} parent=0 // pred_check_branch
    %2331 = sbr.rel (0) target = $region25
  $region24: #{cnn_forward.5} parent=0 // pred_region
    _
  $region25: #{cnn_forward.5} parent=0 // pred_fallthru
    _
  // Predicated region
  $region26: #{cnn_forward.5} parent=0 // pred_check
    _
  $region27: #{cnn_forward.5} parent=0 // pred_check_branch
    %2333 = sbr.rel (0) target = $region29
  $region28: #{cnn_forward.5} parent=0 // pred_region
    _
  $region29: #{cnn_forward.5} parent=0 // pred_fallthru
    _

// kernel: cnn_forward.4
$region0: #{cnn_forward.4}
  #allocation0 [shape = 'u32[]', space=smem, size = 0x4, offset = 0x4, fixed_abs, tag = 'smem constant byte address 0x4 - core index']
  #allocation1 [shape = 'u32[144,128]{1,0:T(1,128)}', space=vmem, size = 0x12000, scoped, tag = 'internal scratch']
  %s0 = inlined_call_operand.vmem [shape: bf16[2,2,6,384], index: 0, kind: input, shape index: {}]
  %s1 = inlined_call_operand.hbm [shape: bf16[5,384,512], index: 1, kind: input, shape index: {}]
  %s2 = inlined_call_operand.hbm [shape: f32[1,512], index: 2, kind: input, shape index: {}]
  %s3 = inlined_call_operand.vmem [shape: bf16[2,4,256], index: 3, kind: output, shape index: {}]
  %s4 = sld [smem:[#allocation0]]
  $region53: #{cnn_forward.4} parent=0
    _
  %s6 = ssub.s32 1, %s4
  %s7 = scalar_select 0, %s6, %s4
  $region1: #{cnn_forward.4} parent=0
    #allocation2 [shape = 'u8[1966080]{0}', space=vmem, size = 0x1e0000, scoped, tag = 'input window, operand 1, single buffered']
    #allocation3 [shape = 's32[2]{0}', space=sflag, size = 0x8, scoped, tag = 'scoped memory for cnn_forward.4']
    #allocation4 [shape = 'u8[2048]{0}', space=vmem, size = 0x800, scoped, tag = 'input window, operand 2, single buffered']
    #allocation5 [shape = 's32[1]{0}', space=sflag, size = 0x4, scoped, tag = 'scoped memory for cnn_forward.4']
    %8 = vsyncpa [#allocation3], 0
    %9 = vsyncpa [#allocation5], 0
    loop: start=0, step=1, limit=4
    $region2: #{cnn_forward.4} parent=1 // loop_pre_header
      _
    $region3: #{cnn_forward.4} parent=1 // loop_header
      %s11 = sphi 0, %s15
      %p12 = scmp.ge.s32.totalorder %s11, 4
      %s21 = sphi 0, %s23
      %s24 = sphi 0, %s21
      %s25 = sphi 0, %s24
      %s41 = sphi 0, %s25
      %s45 = sphi 0, %s45
      %s47 = sphi 0, %s45
      %s48 = sphi 0, %s47
      %s62 = sphi 0, %s48
      %s66 = sphi 0, %s66
      %s68 = sphi 0, %s66
      %s69 = sphi 0, %s68
      %s83 = sphi 0, %s69
      %s89 = sphi 0, %s91
      %s92 = sphi 0, %s89
      %s93 = sphi 0, %s92
      %s109 = sphi 0, %s93
    $region4: #{cnn_forward.4} parent=1 // loop_header_branch
      %14 = sbr.rel (%p12) target = $region8
    $region5: #{cnn_forward.4} parent=1 // loop_body
      %s16 = ssub.s32 %s11, 1
      %s17 = ssub.s32 %s11, 2
      %s18 = sadd.s32 %s11, 1
      %s19 = ssub.s32 %s11, %s18
      %p20 = scmp.eq.s32.totalorder %s19, 0
      %s22 = sadd.s32 %s21, 1
      %s23 = scalar_select %p20, %s21, %s22
      %p26 = pneg %p20
      %p27 = scmp.eq.s32.totalorder %s11, 1
      %p28 = por %p26, %p27
      %p29 = scmp.ne.s32.totalorder %s21, %s24
      %p30 = scmp.eq.s32.totalorder %s11, 0
      %p31 = por %p29, %p30
      %p32 = scmp.ne.s32.totalorder %s21, %s24
      %p33 = scmp.eq.s32.totalorder %s16, 1
      %p34 = por %p32, %p33
      %p35 = scmp.ne.s32.totalorder %s24, %s25
      %p36 = scmp.eq.s32.totalorder %s16, 0
      %p37 = por %p35, %p36
      %p38 = scmp.ne.s32.totalorder %s24, %s25
      %p39 = scmp.eq.s32.totalorder %s17, 1
      %p40 = por %p38, %p39
      %p42 = scmp.ne.s32.totalorder %s25, %s41
      %p43 = scmp.eq.s32.totalorder %s17, 0
      %p44 = por %p42, %p43
      %s46 = sadd.s32 %s45, 1
      %p49 = scmp.eq.s32.totalorder %s11, 1
      %p50 = scmp.ne.s32.totalorder %s45, %s47
      %p51 = scmp.eq.s32.totalorder %s11, 0
      %p52 = por %p50, %p51
      %p53 = scmp.ne.s32.totalorder %s45, %s47
      %p54 = scmp.eq.s32.totalorder %s16, 1
      %p55 = por %p53, %p54
      %p56 = scmp.ne.s32.totalorder %s47, %s48
      %p57 = scmp.eq.s32.totalorder %s16, 0
      %p58 = por %p56, %p57
      %p59 = scmp.ne.s32.totalorder %s47, %s48
      %p60 = scmp.eq.s32.totalorder %s17, 1
      %p61 = por %p59, %p60
      %p63 = scmp.ne.s32.totalorder %s48, %s62
      %p64 = scmp.eq.s32.totalorder %s17, 0
      %p65 = por %p63, %p64
      %s67 = sadd.s32 %s66, 1
      %p70 = scmp.eq.s32.totalorder %s11, 1
      %p71 = scmp.ne.s32.totalorder %s66, %s68
      %p72 = scmp.eq.s32.totalorder %s11, 0
      %p73 = por %p71, %p72
      %p74 = scmp.ne.s32.totalorder %s66, %s68
      %p75 = scmp.eq.s32.totalorder %s16, 1
      %p76 = por %p74, %p75
      %p77 = scmp.ne.s32.totalorder %s68, %s69
      %p78 = scmp.eq.s32.totalorder %s16, 0
      %p79 = por %p77, %p78
      %p80 = scmp.ne.s32.totalorder %s68, %s69
      %p81 = scmp.eq.s32.totalorder %s17, 1
      %p82 = por %p80, %p81
      %p84 = scmp.ne.s32.totalorder %s69, %s83
      %p85 = scmp.eq.s32.totalorder %s17, 0
      %p86 = por %p84, %p85
      %s87 = ssub.s32 %s11, %s18
      %p88 = scmp.eq.s32.totalorder %s87, 0
      %s90 = sadd.s32 %s89, 1
      %s91 = scalar_select %p88, %s89, %s90
      %p94 = pneg %p88
      %p95 = scmp.eq.s32.totalorder %s11, 1
      %p96 = por %p94, %p95
      %p97 = scmp.ne.s32.totalorder %s89, %s92
      %p98 = scmp.eq.s32.totalorder %s11, 0
      %p99 = por %p97, %p98
      %p100 = scmp.ne.s32.totalorder %s89, %s92
      %p101 = scmp.eq.s32.totalorder %s16, 1
      %p102 = por %p100, %p101
      %p103 = scmp.ne.s32.totalorder %s92, %s93
      %p104 = scmp.eq.s32.totalorder %s16, 0
      %p105 = por %p103, %p104
      %p106 = scmp.ne.s32.totalorder %s92, %s93
      %p107 = scmp.eq.s32.totalorder %s17, 1
      %p108 = por %p106, %p107
      %p110 = scmp.ne.s32.totalorder %s93, %s109
      %p111 = scmp.eq.s32.totalorder %s17, 0
      %p112 = por %p110, %p111
      %p113 = scmp.le.s32.totalorder 1, %s11
      %p114 = scmp.lt.s32.totalorder %s11, 3
      %p115 = pnand %p113, %p114
      %p116 = pneg %p115
      // Predicated region
      $region9: #{cnn_forward.4} parent=5 // pred_check
        _
      $region10: #{cnn_forward.4} parent=5 // pred_check_branch
        %118 = sbr.rel (%p115) target = $region12
      $region11: #{cnn_forward.4} parent=5 // pred_region
        %s119 = ssub.s32 %s11, 1
        // Predicated region
        $region13: #{cnn_forward.4} parent=11 // pred_check
          %p120 = pneg %p58
        $region14: #{cnn_forward.4} parent=11 // pred_check_branch
          %122 = sbr.rel (%p120) target = $region16
        $region15: #{cnn_forward.4} parent=11 // pred_region
          %s124 = ssub.s32 61440, 61440
          %125 = vsyncadd [#allocation3], %s124
          %s126 = sshll.u32 [#allocation2], 4
          %s127 = int_to_ptr.vmem [resolvable:$true] %s126
          %132 = dma.hbm_to_vmem [thread:$0]  %s1, 61440, %s127, [#allocation3], 256, 256, 16
        $region16: #{cnn_forward.4} parent=11 // pred_fallthru
          _
        // Predicated region
        $region17: #{cnn_forward.4} parent=11 // pred_check
          %p133 = pneg %p79
        $region18: #{cnn_forward.4} parent=11 // pred_check_branch
          %135 = sbr.rel (%p133) target = $region20
        $region19: #{cnn_forward.4} parent=11 // pred_region
          %s137 = ssub.s32 64, 64
          %138 = vsyncadd [#allocation5], %s137
          %s140 = sshll.u32 [#allocation4], 4
          %s141 = int_to_ptr.vmem [resolvable:$true] %s140
          %143 = dma.hbm_to_vmem [thread:$0]  %s2, 64, %s141, [#allocation5]
        $region20: #{cnn_forward.4} parent=11 // pred_fallthru
          _
      $region12: #{cnn_forward.4} parent=5 // pred_fallthru
        _
      %p144 = scmp.lt.s32.totalorder %s11, 2
      // Predicated region
      $region21: #{cnn_forward.4} parent=5 // pred_check
        %p145 = pneg %p144
      $region22: #{cnn_forward.4} parent=5 // pred_check_branch
        %147 = sbr.rel (%p145) target = $region24
      $region23: #{cnn_forward.4} parent=5 // pred_region
        // Predicated region
        $region25: #{cnn_forward.4} parent=23 // pred_check
          %p148 = pneg %p31
        $region26: #{cnn_forward.4} parent=23 // pred_check_branch
          %150 = sbr.rel (%p148) target = $region28
        $region27: #{cnn_forward.4} parent=23 // pred_region
          %p151 = scmp.lt.s32.totalorder %s11, 1
          %s152 = scalar_select %p151, %s11, 1
          %s153 = smul.addr %s152, 6
          %s154 = smul.addr %s153, 4
          %s155 = scalar_lea.vmem %s0, %s154
        $region28: #{cnn_forward.4} parent=23 // pred_fallthru
          _
      $region24: #{cnn_forward.4} parent=5 // pred_fallthru
        _
      %p156 = scmp.le.s32.totalorder 1, %s11
      %p157 = scmp.lt.s32.totalorder %s11, 3
      %p158 = pnand %p156, %p157
      %p159 = pneg %p158
      // Predicated region
      $region29: #{cnn_forward.4} parent=5 // pred_check
        _
      $region30: #{cnn_forward.4} parent=5 // pred_check_branch
        %161 = sbr.rel (%p158) target = $region32
      $region31: #{cnn_forward.4} parent=5 // pred_region
        %s162 = ssub.s32 %s11, 1
        // Predicated region
        $region33: #{cnn_forward.4} parent=31 // pred_check
          %p163 = pneg %p58
        $region34: #{cnn_forward.4} parent=31 // pred_check_branch
          %165 = sbr.rel (%p163) target = $region36
        $region35: #{cnn_forward.4} parent=31 // pred_region
          %166 = dma.done [#allocation3], 61440
        $region36: #{cnn_forward.4} parent=31 // pred_fallthru
          _
        // Predicated region
        $region37: #{cnn_forward.4} parent=31 // pred_check
          %p167 = pneg %p79
        $region38: #{cnn_forward.4} parent=31 // pred_check_branch
          %169 = sbr.rel (%p167) target = $region40
        $region39: #{cnn_forward.4} parent=31 // pred_region
          %170 = dma.done [#allocation5], 64
        $region40: #{cnn_forward.4} parent=31 // pred_fallthru
          _
        %p171 = scmp.lt.s32.totalorder %s16, 1
        %s172 = scalar_select %p171, %s16, 1
        %s173 = smul.addr %s172, 6
        %s174 = smul.addr %s173, 4
        %s175 = scalar_lea.vmem %s0, %s174
        %p176 = pneg %p37
        %p177 = pneg %p34
        %p178 = pneg %p58
        %p179 = pneg %p55
        %p180 = pneg %p79
        %p181 = pneg %p76
        %p182 = pneg %p105
        %p183 = pneg %p102
        %p184 = scmp.lt.s32.totalorder %s16, 1
        %s185 = scalar_select %p184, %s16, 1
        %s186 = smul.addr %s185, 2
        %s187 = smul.addr %s186, 2
        %s188 = scalar_lea.vmem %s3, %s187
        %p189 = scmp.lt.s32.totalorder %s16, 1
        %s190 = scalar_select %p189, %s16, 1
        %s191 = smul.addr %s190, 6
        %s192 = smul.addr %s191, 4
        %s193 = scalar_lea.vmem %s0, %s192
        %p194 = scmp.lt.s32.totalorder %s16, 1
        %s195 = scalar_select %p194, %s16, 1
        %s196 = smul.addr %s195, 2
        %s197 = smul.addr %s196, 2
        %s198 = scalar_lea.vmem %s3, %s197
        %v200 = vld [vmem:[#allocation4] sm:$0xf]
        %v201 = vlaneseq
        %v202 = vshrl.u32 %v201, 7
        %v203 = vld [vmem:[%s193] sm:$0x33]
        %v204 = vld [vmem:[%s193 + $0x8] sm:$0x3]
        %v205 = vld [vmem:[#allocation2] sm:$0xff]
        %v206 = vld [vmem:[#allocation2 + $0x8] sm:$0xff]
        %v207 = vld [vmem:[#allocation2 + $0x10] sm:$0xff]
        %v208 = vld [vmem:[#allocation2 + $0x18] sm:$0xff]
        %v209 = vld [vmem:[#allocation2 + $0x20] sm:$0xff]
        %v210 = vld [vmem:[#allocation2 + $0x28] sm:$0xff]
        %v211 = vld [vmem:[#allocation2 + $0x30] sm:$0xff]
        %v212 = vld [vmem:[#allocation2 + $0x38] sm:$0xff]
        %v213 = vld [vmem:[#allocation2 + $0x40] sm:$0xff]
        %v214 = vld [vmem:[#allocation2 + $0x48] sm:$0xff]
        %v215 = vld [vmem:[#allocation2 + $0x50] sm:$0xff]
        %v216 = vld [vmem:[#allocation2 + $0x58] sm:$0xff]
        %v217 = vld [vmem:[#allocation2 + $0x60] sm:$0xff]
        %v218 = vld [vmem:[#allocation2 + $0x68] sm:$0xff]
        %v219 = vld [vmem:[#allocation2 + $0x70] sm:$0xff]
        %v220 = vld [vmem:[#allocation2 + $0x78] sm:$0xff]
        %v221 = vld [vmem:[#allocation2 + $0x80] sm:$0xff]
        %v222 = vld [vmem:[#allocation2 + $0x88] sm:$0xff]
        %v223 = vld [vmem:[#allocation2 + $0x90] sm:$0xff]
        %v224 = vld [vmem:[#allocation2 + $0x98] sm:$0xff]
        %v225 = vld [vmem:[#allocation2 + $0xa0] sm:$0xff]
        %v226 = vld [vmem:[#allocation2 + $0xa8] sm:$0xff]
        %v227 = vld [vmem:[#allocation2 + $0xb0] sm:$0xff]
        %v228 = vld [vmem:[#allocation2 + $0xb8] sm:$0xff]
        %v229 = vld [vmem:[#allocation2 + $0xc0] sm:$0xff]
        %v230 = vld [vmem:[#allocation2 + $0xc8] sm:$0xff]
        %v231 = vld [vmem:[#allocation2 + $0xd0] sm:$0xff]
        %v232 = vld [vmem:[#allocation2 + $0xd8] sm:$0xff]
        %v233 = vld [vmem:[#allocation2 + $0xe0] sm:$0xff]
        %v234 = vld [vmem:[#allocation2 + $0xe8] sm:$0xff]
        %v235 = vld [vmem:[#allocation2 + $0xf0] sm:$0xff]
        %v236 = vld [vmem:[#allocation2 + $0xf8] sm:$0xff]
        %v237 = vld [vmem:[#allocation2 + $0x100] sm:$0xff]
        %v238 = vld [vmem:[#allocation2 + $0x108] sm:$0xff]
        %v239 = vld [vmem:[#allocation2 + $0x110] sm:$0xff]
        %v240 = vld [vmem:[#allocation2 + $0x118] sm:$0xff]
        %v241 = vld [vmem:[#allocation2 + $0x120] sm:$0xff]
        %v242 = vld [vmem:[#allocation2 + $0x128] sm:$0xff]
        %v243 = vld [vmem:[#allocation2 + $0x130] sm:$0xff]
        %v244 = vld [vmem:[#allocation2 + $0x138] sm:$0xff]
        %v245 = vld [vmem:[#allocation2 + $0x140] sm:$0xff]
        %v246 = vld [vmem:[#allocation2 + $0x148] sm:$0xff]
        %v247 = vld [vmem:[#allocation2 + $0x150] sm:$0xff]
        %v248 = vld [vmem:[#allocation2 + $0x158] sm:$0xff]
        %v249 = vld [vmem:[#allocation2 + $0x160] sm:$0xff]
        %v250 = vld [vmem:[#allocation2 + $0x168] sm:$0xff]
        %v251 = vld [vmem:[#allocation2 + $0x170] sm:$0xff]
        %v252 = vld [vmem:[#allocation2 + $0x178] sm:$0xff]
        %v253 = vld [vmem:[#allocation2 + $0x180] sm:$0xff]
        %v254 = vld [vmem:[#allocation2 + $0x188] sm:$0xff]
        %v255 = vld [vmem:[#allocation2 + $0x190] sm:$0xff]
        %v256 = vld [vmem:[#allocation2 + $0x198] sm:$0xff]
        %v257 = vld [vmem:[#allocation2 + $0x1a0] sm:$0xff]
        %v258 = vld [vmem:[#allocation2 + $0x1a8] sm:$0xff]
        %v259 = vld [vmem:[#allocation2 + $0x1b0] sm:$0xff]
        %v260 = vld [vmem:[#allocation2 + $0x1b8] sm:$0xff]
        %v261 = vld [vmem:[#allocation2 + $0x1c0] sm:$0xff]
        %v262 = vld [vmem:[#allocation2 + $0x1c8] sm:$0xff]
        %v263 = vld [vmem:[#allocation2 + $0x1d0] sm:$0xff]
        %v264 = vld [vmem:[#allocation2 + $0x1d8] sm:$0xff]
        %v265 = vld [vmem:[#allocation2 + $0x1e0] sm:$0xff]
        %v266 = vld [vmem:[#allocation2 + $0x1e8] sm:$0xff]
        %v267 = vld [vmem:[#allocation2 + $0x1f0] sm:$0xff]
        %v268 = vld [vmem:[#allocation2 + $0x1f8] sm:$0xff]
        %v269 = vld [vmem:[#allocation2 + $0x200] sm:$0xff]
        %v270 = vld [vmem:[#allocation2 + $0x208] sm:$0xff]
        %v271 = vld [vmem:[#allocation2 + $0x210] sm:$0xff]
        %v272 = vld [vmem:[#allocation2 + $0x218] sm:$0xff]
        %v273 = vld [vmem:[#allocation2 + $0x220] sm:$0xff]
        %v274 = vld [vmem:[#allocation2 + $0x228] sm:$0xff]
        %v275 = vld [vmem:[#allocation2 + $0x230] sm:$0xff]
        %v276 = vld [vmem:[#allocation2 + $0x238] sm:$0xff]
        %v277 = vld [vmem:[#allocation2 + $0x240] sm:$0xff]
        %v278 = vld [vmem:[#allocation2 + $0x248] sm:$0xff]
        %v279 = vld [vmem:[#allocation2 + $0x250] sm:$0xff]
        %v280 = vld [vmem:[#allocation2 + $0x258] sm:$0xff]
        %v281 = vld [vmem:[#allocation2 + $0x260] sm:$0xff]
        %v282 = vld [vmem:[#allocation2 + $0x268] sm:$0xff]
        %v283 = vld [vmem:[#allocation2 + $0x270] sm:$0xff]
        %v284 = vld [vmem:[#allocation2 + $0x278] sm:$0xff]
        %v285 = vld [vmem:[#allocation2 + $0x280] sm:$0xff]
        %v286 = vld [vmem:[#allocation2 + $0x288] sm:$0xff]
        %v287 = vld [vmem:[#allocation2 + $0x290] sm:$0xff]
        %v288 = vld [vmem:[#allocation2 + $0x298] sm:$0xff]
        %v289 = vld [vmem:[#allocation2 + $0x2a0] sm:$0xff]
        %v290 = vld [vmem:[#allocation2 + $0x2a8] sm:$0xff]
        %v291 = vld [vmem:[#allocation2 + $0x2b0] sm:$0xff]
        %v292 = vld [vmem:[#allocation2 + $0x2b8] sm:$0xff]
        %v293 = vld [vmem:[#allocation2 + $0x2c0] sm:$0xff]
        %v294 = vld [vmem:[#allocation2 + $0x2c8] sm:$0xff]
        %v295 = vld [vmem:[#allocation2 + $0x2d0] sm:$0xff]
        %v296 = vld [vmem:[#allocation2 + $0x2d8] sm:$0xff]
        %v297 = vld [vmem:[#allocation2 + $0x2e0] sm:$0xff]
        %v298 = vld [vmem:[#allocation2 + $0x2e8] sm:$0xff]
        %v299 = vld [vmem:[#allocation2 + $0x2f0] sm:$0xff]
        %v300 = vld [vmem:[#allocation2 + $0x2f8] sm:$0xff]
        %s301 = scalar_lea.vmem %s193, 12
        %v302 = vld [vmem:[%s301] sm:$0x33]
        %v303 = vld [vmem:[%s301 + $0x8] sm:$0x3]
        %s304 = scalar_lea.vmem [#allocation2], 768
        %v305 = vld [vmem:[%s304] sm:$0xff]
        %v306 = vld [vmem:[%s304 + $0x8] sm:$0xff]
        %v307 = vld [vmem:[%s304 + $0x10] sm:$0xff]
        %v308 = vld [vmem:[%s304 + $0x18] sm:$0xff]
        %v309 = vld [vmem:[%s304 + $0x20] sm:$0xff]
        %v310 = vld [vmem:[%s304 + $0x28] sm:$0xff]
        %v311 = vld [vmem:[%s304 + $0x30] sm:$0xff]
        %v312 = vld [vmem:[%s304 + $0x38] sm:$0xff]
        %v313 = vld [vmem:[%s304 + $0x40] sm:$0xff]
        %v314 = vld [vmem:[%s304 + $0x48] sm:$0xff]
        %v315 = vld [vmem:[%s304 + $0x50] sm:$0xff]
        %v316 = vld [vmem:[%s304 + $0x58] sm:$0xff]
        %v317 = vld [vmem:[%s304 + $0x60] sm:$0xff]
        %v318 = vld [vmem:[%s304 + $0x68] sm:$0xff]
        %v319 = vld [vmem:[%s304 + $0x70] sm:$0xff]
        %v320 = vld [vmem:[%s304 + $0x78] sm:$0xff]
        %v321 = vld [vmem:[%s304 + $0x80] sm:$0xff]
        %v322 = vld [vmem:[%s304 + $0x88] sm:$0xff]
        %v323 = vld [vmem:[%s304 + $0x90] sm:$0xff]
        %v324 = vld [vmem:[%s304 + $0x98] sm:$0xff]
        %v325 = vld [vmem:[%s304 + $0xa0] sm:$0xff]
        %v326 = vld [vmem:[%s304 + $0xa8] sm:$0xff]
        %v327 = vld [vmem:[%s304 + $0xb0] sm:$0xff]
        %v328 = vld [vmem:[%s304 + $0xb8] sm:$0xff]
        %v329 = vld [vmem:[%s304 + $0xc0] sm:$0xff]
        %v330 = vld [vmem:[%s304 + $0xc8] sm:$0xff]
        %v331 = vld [vmem:[%s304 + $0xd0] sm:$0xff]
        %v332 = vld [vmem:[%s304 + $0xd8] sm:$0xff]
        %v333 = vld [vmem:[%s304 + $0xe0] sm:$0xff]
        %v334 = vld [vmem:[%s304 + $0xe8] sm:$0xff]
        %v335 = vld [vmem:[%s304 + $0xf0] sm:$0xff]
        %v336 = vld [vmem:[%s304 + $0xf8] sm:$0xff]
        %v337 = vld [vmem:[%s304 + $0x100] sm:$0xff]
        %v338 = vld [vmem:[%s304 + $0x108] sm:$0xff]
        %v339 = vld [vmem:[%s304 + $0x110] sm:$0xff]
        %v340 = vld [vmem:[%s304 + $0x118] sm:$0xff]
        %v341 = vld [vmem:[%s304 + $0x120] sm:$0xff]
        %v342 = vld [vmem:[%s304 + $0x128] sm:$0xff]
        %v343 = vld [vmem:[%s304 + $0x130] sm:$0xff]
        %v344 = vld [vmem:[%s304 + $0x138] sm:$0xff]
        %v345 = vld [vmem:[%s304 + $0x140] sm:$0xff]
        %v346 = vld [vmem:[%s304 + $0x148] sm:$0xff]
        %v347 = vld [vmem:[%s304 + $0x150] sm:$0xff]
        %v348 = vld [vmem:[%s304 + $0x158] sm:$0xff]
        %v349 = vld [vmem:[%s304 + $0x160] sm:$0xff]
        %v350 = vld [vmem:[%s304 + $0x168] sm:$0xff]
        %v351 = vld [vmem:[%s304 + $0x170] sm:$0xff]
        %v352 = vld [vmem:[%s304 + $0x178] sm:$0xff]
        %v353 = vld [vmem:[%s304 + $0x180] sm:$0xff]
        %v354 = vld [vmem:[%s304 + $0x188] sm:$0xff]
        %v355 = vld [vmem:[%s304 + $0x190] sm:$0xff]
        %v356 = vld [vmem:[%s304 + $0x198] sm:$0xff]
        %v357 = vld [vmem:[%s304 + $0x1a0] sm:$0xff]
        %v358 = vld [vmem:[%s304 + $0x1a8] sm:$0xff]
        %v359 = vld [vmem:[%s304 + $0x1b0] sm:$0xff]
        %v360 = vld [vmem:[%s304 + $0x1b8] sm:$0xff]
        %v361 = vld [vmem:[%s304 + $0x1c0] sm:$0xff]
        %v362 = vld [vmem:[%s304 + $0x1c8] sm:$0xff]
        %v363 = vld [vmem:[%s304 + $0x1d0] sm:$0xff]
        %v364 = vld [vmem:[%s304 + $0x1d8] sm:$0xff]
        %v365 = vld [vmem:[%s304 + $0x1e0] sm:$0xff]
        %v366 = vld [vmem:[%s304 + $0x1e8] sm:$0xff]
        %v367 = vld [vmem:[%s304 + $0x1f0] sm:$0xff]
        %v368 = vld [vmem:[%s304 + $0x1f8] sm:$0xff]
        %v369 = vld [vmem:[%s304 + $0x200] sm:$0xff]
        %v370 = vld [vmem:[%s304 + $0x208] sm:$0xff]
        %v371 = vld [vmem:[%s304 + $0x210] sm:$0xff]
        %v372 = vld [vmem:[%s304 + $0x218] sm:$0xff]
        %v373 = vld [vmem:[%s304 + $0x220] sm:$0xff]
        %v374 = vld [vmem:[%s304 + $0x228] sm:$0xff]
        %v375 = vld [vmem:[%s304 + $0x230] sm:$0xff]
        %v376 = vld [vmem:[%s304 + $0x238] sm:$0xff]
        %v377 = vld [vmem:[%s304 + $0x240] sm:$0xff]
        %v378 = vld [vmem:[%s304 + $0x248] sm:$0xff]
        %v379 = vld [vmem:[%s304 + $0x250] sm:$0xff]
        %v380 = vld [vmem:[%s304 + $0x258] sm:$0xff]
        %v381 = vld [vmem:[%s304 + $0x260] sm:$0xff]
        %v382 = vld [vmem:[%s304 + $0x268] sm:$0xff]
        %v383 = vld [vmem:[%s304 + $0x270] sm:$0xff]
        %v384 = vld [vmem:[%s304 + $0x278] sm:$0xff]
        %v385 = vld [vmem:[%s304 + $0x280] sm:$0xff]
        %v386 = vld [vmem:[%s304 + $0x288] sm:$0xff]
        %v387 = vld [vmem:[%s304 + $0x290] sm:$0xff]
        %v388 = vld [vmem:[%s304 + $0x298] sm:$0xff]
        %v389 = vld [vmem:[%s304 + $0x2a0] sm:$0xff]
        %v390 = vld [vmem:[%s304 + $0x2a8] sm:$0xff]
        %v391 = vld [vmem:[%s304 + $0x2b0] sm:$0xff]
        %v392 = vld [vmem:[%s304 + $0x2b8] sm:$0xff]
        %v393 = vld [vmem:[%s304 + $0x2c0] sm:$0xff]
        %v394 = vld [vmem:[%s304 + $0x2c8] sm:$0xff]
        %v395 = vld [vmem:[%s304 + $0x2d0] sm:$0xff]
        %v396 = vld [vmem:[%s304 + $0x2d8] sm:$0xff]
        %v397 = vld [vmem:[%s304 + $0x2e0] sm:$0xff]
        %v398 = vld [vmem:[%s304 + $0x2e8] sm:$0xff]
        %v399 = vld [vmem:[%s304 + $0x2f0] sm:$0xff]
        %v400 = vld [vmem:[%s304 + $0x2f8] sm:$0xff]
        %v403 = vunpack.c.l.b16 %v302
        %v404 = vunpack.c.h.b16 %v302
        %v405 = vunpack.c.l.b16 %v303
        %v406 = vpack.c.b16 %v403, %v403
        %v407 = vpack.c.b16 %v404, %v404
        %v408 = vpack.c.b16 %v405, %v405
        %v508 = vunpack.c.l.b16 %v305
        %v509 = vunpack.c.h.b16 %v305
        %v510 = vunpack.c.l.b16 %v306
        %v511 = vunpack.c.h.b16 %v306
        %v512 = vunpack.c.l.b16 %v307
        %v513 = vunpack.c.h.b16 %v307
        %v514 = vunpack.c.l.b16 %v308
        %v515 = vunpack.c.h.b16 %v308
        %v516 = vunpack.c.l.b16 %v309
        %v517 = vunpack.c.h.b16 %v309
        %v518 = vunpack.c.l.b16 %v310
        %v519 = vunpack.c.h.b16 %v310
        %v520 = vunpack.c.l.b16 %v311
        %v521 = vunpack.c.h.b16 %v311
        %v522 = vunpack.c.l.b16 %v312
        %v523 = vunpack.c.h.b16 %v312
        %v524 = vunpack.c.l.b16 %v313
        %v525 = vunpack.c.h.b16 %v313
        %v526 = vunpack.c.l.b16 %v314
        %v527 = vunpack.c.h.b16 %v314
        %v528 = vunpack.c.l.b16 %v315
        %v529 = vunpack.c.h.b16 %v315
        %v530 = vunpack.c.l.b16 %v316
        %v531 = vunpack.c.h.b16 %v316
        %v532 = vunpack.c.l.b16 %v317
        %v533 = vunpack.c.h.b16 %v317
        %v534 = vunpack.c.l.b16 %v318
        %v535 = vunpack.c.h.b16 %v318
        %v536 = vunpack.c.l.b16 %v319
        %v537 = vunpack.c.h.b16 %v319
        %v538 = vunpack.c.l.b16 %v320
        %v539 = vunpack.c.h.b16 %v320
        %v540 = vunpack.c.l.b16 %v321
        %v541 = vunpack.c.h.b16 %v321
        %v542 = vunpack.c.l.b16 %v322
        %v543 = vunpack.c.h.b16 %v322
        %v544 = vunpack.c.l.b16 %v323
        %v545 = vunpack.c.h.b16 %v323
        %v546 = vunpack.c.l.b16 %v324
        %v547 = vunpack.c.h.b16 %v324
        %v548 = vunpack.c.l.b16 %v325
        %v549 = vunpack.c.h.b16 %v325
        %v550 = vunpack.c.l.b16 %v326
        %v551 = vunpack.c.h.b16 %v326
        %v552 = vunpack.c.l.b16 %v327
        %v553 = vunpack.c.h.b16 %v327
        %v554 = vunpack.c.l.b16 %v328
        %v555 = vunpack.c.h.b16 %v328
        %v556 = vunpack.c.l.b16 %v329
        %v557 = vunpack.c.h.b16 %v329
        %v558 = vunpack.c.l.b16 %v330
        %v559 = vunpack.c.h.b16 %v330
        %v560 = vunpack.c.l.b16 %v331
        %v561 = vunpack.c.h.b16 %v331
        %v562 = vunpack.c.l.b16 %v332
        %v563 = vunpack.c.h.b16 %v332
        %v564 = vunpack.c.l.b16 %v333
        %v565 = vunpack.c.h.b16 %v333
        %v566 = vunpack.c.l.b16 %v334
        %v567 = vunpack.c.h.b16 %v334
        %v568 = vunpack.c.l.b16 %v335
        %v569 = vunpack.c.h.b16 %v335
        %v570 = vunpack.c.l.b16 %v336
        %v571 = vunpack.c.h.b16 %v336
        %v572 = vunpack.c.l.b16 %v337
        %v573 = vunpack.c.h.b16 %v337
        %v574 = vunpack.c.l.b16 %v338
        %v575 = vunpack.c.h.b16 %v338
        %v576 = vunpack.c.l.b16 %v339
        %v577 = vunpack.c.h.b16 %v339
        %v578 = vunpack.c.l.b16 %v340
        %v579 = vunpack.c.h.b16 %v340
        %v580 = vunpack.c.l.b16 %v341
        %v581 = vunpack.c.h.b16 %v341
        %v582 = vunpack.c.l.b16 %v342
        %v583 = vunpack.c.h.b16 %v342
        %v584 = vunpack.c.l.b16 %v343
        %v585 = vunpack.c.h.b16 %v343
        %v586 = vunpack.c.l.b16 %v344
        %v587 = vunpack.c.h.b16 %v344
        %v588 = vunpack.c.l.b16 %v345
        %v589 = vunpack.c.h.b16 %v345
        %v590 = vunpack.c.l.b16 %v346
        %v591 = vunpack.c.h.b16 %v346
        %v592 = vunpack.c.l.b16 %v347
        %v593 = vunpack.c.h.b16 %v347
        %v594 = vunpack.c.l.b16 %v348
        %v595 = vunpack.c.h.b16 %v348
        %v596 = vunpack.c.l.b16 %v349
        %v597 = vunpack.c.h.b16 %v349
        %v598 = vunpack.c.l.b16 %v350
        %v599 = vunpack.c.h.b16 %v350
        %v600 = vunpack.c.l.b16 %v351
        %v601 = vunpack.c.h.b16 %v351
        %v602 = vunpack.c.l.b16 %v352
        %v603 = vunpack.c.h.b16 %v352
        %v604 = vunpack.c.l.b16 %v353
        %v605 = vunpack.c.h.b16 %v353
        %v606 = vunpack.c.l.b16 %v354
        %v607 = vunpack.c.h.b16 %v354
        %v608 = vunpack.c.l.b16 %v355
        %v609 = vunpack.c.h.b16 %v355
        %v610 = vunpack.c.l.b16 %v356
        %v611 = vunpack.c.h.b16 %v356
        %v612 = vunpack.c.l.b16 %v357
        %v613 = vunpack.c.h.b16 %v357
        %v614 = vunpack.c.l.b16 %v358
        %v615 = vunpack.c.h.b16 %v358
        %v616 = vunpack.c.l.b16 %v359
        %v617 = vunpack.c.h.b16 %v359
        %v618 = vunpack.c.l.b16 %v360
        %v619 = vunpack.c.h.b16 %v360
        %v620 = vunpack.c.l.b16 %v361
        %v621 = vunpack.c.h.b16 %v361
        %v622 = vunpack.c.l.b16 %v362
        %v623 = vunpack.c.h.b16 %v362
        %v624 = vunpack.c.l.b16 %v363
        %v625 = vunpack.c.h.b16 %v363
        %v626 = vunpack.c.l.b16 %v364
        %v627 = vunpack.c.h.b16 %v364
        %v628 = vunpack.c.l.b16 %v365
        %v629 = vunpack.c.h.b16 %v365
        %v630 = vunpack.c.l.b16 %v366
        %v631 = vunpack.c.h.b16 %v366
        %v632 = vunpack.c.l.b16 %v367
        %v633 = vunpack.c.h.b16 %v367
        %v634 = vunpack.c.l.b16 %v368
        %v635 = vunpack.c.h.b16 %v368
        %v636 = vunpack.c.l.b16 %v369
        %v637 = vunpack.c.h.b16 %v369
        %v638 = vunpack.c.l.b16 %v370
        %v639 = vunpack.c.h.b16 %v370
        %v640 = vunpack.c.l.b16 %v371
        %v641 = vunpack.c.h.b16 %v371
        %v642 = vunpack.c.l.b16 %v372
        %v643 = vunpack.c.h.b16 %v372
        %v644 = vunpack.c.l.b16 %v373
        %v645 = vunpack.c.h.b16 %v373
        %v646 = vunpack.c.l.b16 %v374
        %v647 = vunpack.c.h.b16 %v374
        %v648 = vunpack.c.l.b16 %v375
        %v649 = vunpack.c.h.b16 %v375
        %v650 = vunpack.c.l.b16 %v376
        %v651 = vunpack.c.h.b16 %v376
        %v652 = vunpack.c.l.b16 %v377
        %v653 = vunpack.c.h.b16 %v377
        %v654 = vunpack.c.l.b16 %v378
        %v655 = vunpack.c.h.b16 %v378
        %v656 = vunpack.c.l.b16 %v379
        %v657 = vunpack.c.h.b16 %v379
        %v658 = vunpack.c.l.b16 %v380
        %v659 = vunpack.c.h.b16 %v380
        %v660 = vunpack.c.l.b16 %v381
        %v661 = vunpack.c.h.b16 %v381
        %v662 = vunpack.c.l.b16 %v382
        %v663 = vunpack.c.h.b16 %v382
        %v664 = vunpack.c.l.b16 %v383
        %v665 = vunpack.c.h.b16 %v383
        %v666 = vunpack.c.l.b16 %v384
        %v667 = vunpack.c.h.b16 %v384
        %v668 = vunpack.c.l.b16 %v385
        %v669 = vunpack.c.h.b16 %v385
        %v670 = vunpack.c.l.b16 %v386
        %v671 = vunpack.c.h.b16 %v386
        %v672 = vunpack.c.l.b16 %v387
        %v673 = vunpack.c.h.b16 %v387
        %v674 = vunpack.c.l.b16 %v388
        %v675 = vunpack.c.h.b16 %v388
        %v676 = vunpack.c.l.b16 %v389
        %v677 = vunpack.c.h.b16 %v389
        %v678 = vunpack.c.l.b16 %v390
        %v679 = vunpack.c.h.b16 %v390
        %v680 = vunpack.c.l.b16 %v391
        %v681 = vunpack.c.h.b16 %v391
        %v682 = vunpack.c.l.b16 %v392
        %v683 = vunpack.c.h.b16 %v392
        %v684 = vunpack.c.l.b16 %v393
        %v685 = vunpack.c.h.b16 %v393
        %v686 = vunpack.c.l.b16 %v394
        %v687 = vunpack.c.h.b16 %v394
        %v688 = vunpack.c.l.b16 %v395
        %v689 = vunpack.c.h.b16 %v395
        %v690 = vunpack.c.l.b16 %v396
        %v691 = vunpack.c.h.b16 %v396
        %v692 = vunpack.c.l.b16 %v397
        %v693 = vunpack.c.h.b16 %v397
        %v694 = vunpack.c.l.b16 %v398
        %v695 = vunpack.c.h.b16 %v398
        %v696 = vunpack.c.l.b16 %v399
        %v697 = vunpack.c.h.b16 %v399
        %v698 = vunpack.c.l.b16 %v400
        %v699 = vunpack.c.h.b16 %v400
        %v700 = vpack.c.b16 %v512, %v508
        %v701 = vpack.c.b16 %v513, %v509
        %v702 = vpack.c.b16 %v514, %v510
        %v703 = vpack.c.b16 %v515, %v511
        %v704 = vpack.c.b16 %v520, %v516
        %v705 = vpack.c.b16 %v521, %v517
        %v706 = vpack.c.b16 %v522, %v518
        %v707 = vpack.c.b16 %v523, %v519
        %v708 = vpack.c.b16 %v528, %v524
        %v709 = vpack.c.b16 %v529, %v525
        %v710 = vpack.c.b16 %v530, %v526
        %v711 = vpack.c.b16 %v531, %v527
        %v712 = vpack.c.b16 %v536, %v532
        %v713 = vpack.c.b16 %v537, %v533
        %v714 = vpack.c.b16 %v538, %v534
        %v715 = vpack.c.b16 %v539, %v535
        %v716 = vpack.c.b16 %v544, %v540
        %v717 = vpack.c.b16 %v545, %v541
        %v718 = vpack.c.b16 %v546, %v542
        %v719 = vpack.c.b16 %v547, %v543
        %v720 = vpack.c.b16 %v552, %v548
        %v721 = vpack.c.b16 %v553, %v549
        %v722 = vpack.c.b16 %v554, %v550
        %v723 = vpack.c.b16 %v555, %v551
        %v724 = vpack.c.b16 %v560, %v556
        %v725 = vpack.c.b16 %v561, %v557
        %v726 = vpack.c.b16 %v562, %v558
        %v727 = vpack.c.b16 %v563, %v559
        %v728 = vpack.c.b16 %v568, %v564
        %v729 = vpack.c.b16 %v569, %v565
        %v730 = vpack.c.b16 %v570, %v566
        %v731 = vpack.c.b16 %v571, %v567
        %v732 = vpack.c.b16 %v576, %v572
        %v733 = vpack.c.b16 %v577, %v573
        %v734 = vpack.c.b16 %v578, %v574
        %v735 = vpack.c.b16 %v579, %v575
        %v736 = vpack.c.b16 %v584, %v580
        %v737 = vpack.c.b16 %v585, %v581
        %v738 = vpack.c.b16 %v586, %v582
        %v739 = vpack.c.b16 %v587, %v583
        %v740 = vpack.c.b16 %v592, %v588
        %v741 = vpack.c.b16 %v593, %v589
        %v742 = vpack.c.b16 %v594, %v590
        %v743 = vpack.c.b16 %v595, %v591
        %v744 = vpack.c.b16 %v600, %v596
        %v745 = vpack.c.b16 %v601, %v597
        %v746 = vpack.c.b16 %v602, %v598
        %v747 = vpack.c.b16 %v603, %v599
        %v748 = vpack.c.b16 %v608, %v604
        %v749 = vpack.c.b16 %v609, %v605
        %v750 = vpack.c.b16 %v610, %v606
        %v751 = vpack.c.b16 %v611, %v607
        %v752 = vpack.c.b16 %v616, %v612
        %v753 = vpack.c.b16 %v617, %v613
        %v754 = vpack.c.b16 %v618, %v614
        %v755 = vpack.c.b16 %v619, %v615
        %v756 = vpack.c.b16 %v624, %v620
        %v757 = vpack.c.b16 %v625, %v621
        %v758 = vpack.c.b16 %v626, %v622
        %v759 = vpack.c.b16 %v627, %v623
        %v760 = vpack.c.b16 %v632, %v628
        %v761 = vpack.c.b16 %v633, %v629
        %v762 = vpack.c.b16 %v634, %v630
        %v763 = vpack.c.b16 %v635, %v631
        %v764 = vpack.c.b16 %v640, %v636
        %v765 = vpack.c.b16 %v641, %v637
        %v766 = vpack.c.b16 %v642, %v638
        %v767 = vpack.c.b16 %v643, %v639
        %v768 = vpack.c.b16 %v648, %v644
        %v769 = vpack.c.b16 %v649, %v645
        %v770 = vpack.c.b16 %v650, %v646
        %v771 = vpack.c.b16 %v651, %v647
        %v772 = vpack.c.b16 %v656, %v652
        %v773 = vpack.c.b16 %v657, %v653
        %v774 = vpack.c.b16 %v658, %v654
        %v775 = vpack.c.b16 %v659, %v655
        %v776 = vpack.c.b16 %v664, %v660
        %v777 = vpack.c.b16 %v665, %v661
        %v778 = vpack.c.b16 %v666, %v662
        %v779 = vpack.c.b16 %v667, %v663
        %v780 = vpack.c.b16 %v672, %v668
        %v781 = vpack.c.b16 %v673, %v669
        %v782 = vpack.c.b16 %v674, %v670
        %v783 = vpack.c.b16 %v675, %v671
        %v784 = vpack.c.b16 %v680, %v676
        %v785 = vpack.c.b16 %v681, %v677
        %v786 = vpack.c.b16 %v682, %v678
        %v787 = vpack.c.b16 %v683, %v679
        %v788 = vpack.c.b16 %v688, %v684
        %v789 = vpack.c.b16 %v689, %v685
        %v790 = vpack.c.b16 %v690, %v686
        %v791 = vpack.c.b16 %v691, %v687
        %v792 = vpack.c.b16 %v696, %v692
        %v793 = vpack.c.b16 %v697, %v693
        %v794 = vpack.c.b16 %v698, %v694
        %v795 = vpack.c.b16 %v699, %v695
        %892 = vmatprep.subr.bf16.mxu0 %v729
        %893 = vmatpush1.bf16.msra.mxu0 %v728
        %894 = vmatprep.subr.bf16.mxu0 %v725
        %895 = vmatpush1.bf16.msra.mxu0 %v724
        %896 = vmatprep.subr.bf16.mxu0 %v721
        %897 = vmatpush1.bf16.msra.mxu0 %v720
        %898 = vmatprep.subr.bf16.mxu0 %v717
        %899 = vmatpush1.bf16.msra.mxu0 %v716
        %900 = vmatprep.subr.bf16.mxu0 %v713
        %901 = vmatpush1.bf16.msra.mxu0 %v712
        %902 = vmatprep.subr.bf16.mxu0 %v709
        %903 = vmatpush1.bf16.msra.mxu0 %v708
        %904 = vmatprep.subr.bf16.mxu0 %v705
        %905 = vmatpush1.bf16.msra.mxu0 %v704
        %906 = vmatprep.subr.bf16.mxu0 %v701
        %907 = vmatpush1.bf16.msra.mxu0 %v700
        %908 = vmatprep.subr.bf16.mxu0 %v761
        %909 = vmatpush2.bf16.msra.mxu0 %v760
        %910 = vmatprep.subr.bf16.mxu0 %v757
        %911 = vmatpush2.bf16.msra.mxu0 %v756
        %912 = vmatprep.subr.bf16.mxu0 %v753
        %913 = vmatpush2.bf16.msra.mxu0 %v752
        %914 = vmatprep.subr.bf16.mxu0 %v749
        %915 = vmatpush2.bf16.msra.mxu0 %v748
        %916 = vmatprep.subr.bf16.mxu0 %v745
        %917 = vmatpush2.bf16.msra.mxu0 %v744
        %918 = vmatprep.subr.bf16.mxu0 %v741
        %919 = vmatpush2.bf16.msra.mxu0 %v740
        %920 = vmatprep.subr.bf16.mxu0 %v737
        %921 = vmatpush2.bf16.msra.mxu0 %v736
        %922 = vmatprep.subr.bf16.mxu0 %v733
        %923 = vmatpush2.bf16.msra.mxu0 %v732
        %924 = vmatprep.mubr.bf16.mxu0 %v407
        %925 = vmatmul.mubr.bf16.gmra.mxu0 %v406
        %v926 = vpop.f32.mrf.mxu0
        %v927 = vadd.f32 0.0, %v926
        %v928 = vpop.f32.mrf.mxu0
        %v929 = vadd.f32 0.0, %v928
        %v930 = vpop.f32.mrf.mxu0
        %v931 = vpop.f32.mrf.mxu0
        %932 = vdwg.mxu0
        %933 = vmatprep.subr.bf16.mxu0 %v793
        %934 = vmatpush1.bf16.msra.mxu0 %v792
        %935 = vmatprep.subr.bf16.mxu0 %v789
        %936 = vmatpush1.bf16.msra.mxu0 %v788
        %937 = vmatprep.subr.bf16.mxu0 %v785
        %938 = vmatpush1.bf16.msra.mxu0 %v784
        %939 = vmatprep.subr.bf16.mxu0 %v781
        %940 = vmatpush1.bf16.msra.mxu0 %v780
        %941 = vmatprep.subr.bf16.mxu0 %v777
        %942 = vmatpush1.bf16.msra.mxu0 %v776
        %943 = vmatprep.subr.bf16.mxu0 %v773
        %944 = vmatpush1.bf16.msra.mxu0 %v772
        %945 = vmatprep.subr.bf16.mxu0 %v769
        %946 = vmatpush1.bf16.msra.mxu0 %v768
        %947 = vmatprep.subr.bf16.mxu0 %v765
        %948 = vmatpush1.bf16.msra.mxu0 %v764
        %949 = vmatprep.subr.bf16.mxu0 0
        %950 = vmatpush2.bf16.msra.mxu0 0
        %951 = vmatprep.subr.bf16.mxu0 0
        %952 = vmatpush2.bf16.msra.mxu0 0
        %953 = vmatprep.subr.bf16.mxu0 0
        %954 = vmatpush2.bf16.msra.mxu0 0
        %955 = vmatprep.subr.bf16.mxu0 0
        %956 = vmatpush2.bf16.msra.mxu0 0
        %957 = vmatprep.subr.bf16.mxu0 0
        %958 = vmatpush2.bf16.msra.mxu0 0
        %959 = vmatprep.subr.bf16.mxu0 0
        %960 = vmatpush2.bf16.msra.mxu0 0
        %961 = vmatprep.subr.bf16.mxu0 0
        %962 = vmatpush2.bf16.msra.mxu0 0
        %963 = vmatprep.subr.bf16.mxu0 0
        %964 = vmatpush2.bf16.msra.mxu0 0
        %965 = vmatprep.mubr.bf16.mxu0 0
        %966 = vmatmul.mubr.bf16.gmra.mxu0 %v408
        %v967 = vpop.f32.mrf.mxu0
        %v968 = vadd.f32 %v927, %v967
        %v969 = vpop.f32.mrf.mxu0
        %v970 = vadd.f32 %v929, %v969
        %v971 = vpop.f32.mrf.mxu0
        %v972 = vpop.f32.mrf.mxu0
        %973 = vdwg.mxu0
        %974 = vmatprep.subr.bf16.mxu0 %v731
        %975 = vmatpush1.bf16.msra.mxu0 %v730
        %976 = vmatprep.subr.bf16.mxu0 %v727
        %977 = vmatpush1.bf16.msra.mxu0 %v726
        %978 = vmatprep.subr.bf16.mxu0 %v723
        %979 = vmatpush1.bf16.msra.mxu0 %v722
        %980 = vmatprep.subr.bf16.mxu0 %v719
        %981 = vmatpush1.bf16.msra.mxu0 %v718
        %982 = vmatprep.subr.bf16.mxu0 %v715
        %983 = vmatpush1.bf16.msra.mxu0 %v714
        %984 = vmatprep.subr.bf16.mxu0 %v711
        %985 = vmatpush1.bf16.msra.mxu0 %v710
        %986 = vmatprep.subr.bf16.mxu0 %v707
        %987 = vmatpush1.bf16.msra.mxu0 %v706
        %988 = vmatprep.subr.bf16.mxu0 %v703
        %989 = vmatpush1.bf16.msra.mxu0 %v702
        %990 = vmatprep.subr.bf16.mxu0 %v763
        %991 = vmatpush2.bf16.msra.mxu0 %v762
        %992 = vmatprep.subr.bf16.mxu0 %v759
        %993 = vmatpush2.bf16.msra.mxu0 %v758
        %994 = vmatprep.subr.bf16.mxu0 %v755
        %995 = vmatpush2.bf16.msra.mxu0 %v754
        %996 = vmatprep.subr.bf16.mxu0 %v751
        %997 = vmatpush2.bf16.msra.mxu0 %v750
        %998 = vmatprep.subr.bf16.mxu0 %v747
        %999 = vmatpush2.bf16.msra.mxu0 %v746
        %1000 = vmatprep.subr.bf16.mxu0 %v743
        %1001 = vmatpush2.bf16.msra.mxu0 %v742
        %1002 = vmatprep.subr.bf16.mxu0 %v739
        %1003 = vmatpush2.bf16.msra.mxu0 %v738
        %1004 = vmatprep.subr.bf16.mxu0 %v735
        %1005 = vmatpush2.bf16.msra.mxu0 %v734
        %1006 = vmatprep.mubr.bf16.mxu0 %v407
        %1007 = vmatmul.mubr.bf16.gmra.mxu0 %v406
        %v1008 = vpop.f32.mrf.mxu0
        %v1009 = vadd.f32 0.0, %v1008
        %v1010 = vpop.f32.mrf.mxu0
        %v1011 = vadd.f32 0.0, %v1010
        %v1012 = vpop.f32.mrf.mxu0
        %v1013 = vpop.f32.mrf.mxu0
        %1014 = vdwg.mxu0
        %1015 = vmatprep.subr.bf16.mxu0 %v795
        %1016 = vmatpush1.bf16.msra.mxu0 %v794
        %1017 = vmatprep.subr.bf16.mxu0 %v791
        %1018 = vmatpush1.bf16.msra.mxu0 %v790
        %1019 = vmatprep.subr.bf16.mxu0 %v787
        %1020 = vmatpush1.bf16.msra.mxu0 %v786
        %1021 = vmatprep.subr.bf16.mxu0 %v783
        %1022 = vmatpush1.bf16.msra.mxu0 %v782
        %1023 = vmatprep.subr.bf16.mxu0 %v779
        %1024 = vmatpush1.bf16.msra.mxu0 %v778
        %1025 = vmatprep.subr.bf16.mxu0 %v775
        %1026 = vmatpush1.bf16.msra.mxu0 %v774
        %1027 = vmatprep.subr.bf16.mxu0 %v771
        %1028 = vmatpush1.bf16.msra.mxu0 %v770
        %1029 = vmatprep.subr.bf16.mxu0 %v767
        %1030 = vmatpush1.bf16.msra.mxu0 %v766
        %1031 = vmatprep.subr.bf16.mxu0 0
        %1032 = vmatpush2.bf16.msra.mxu0 0
        %1033 = vmatprep.subr.bf16.mxu0 0
        %1034 = vmatpush2.bf16.msra.mxu0 0
        %1035 = vmatprep.subr.bf16.mxu0 0
        %1036 = vmatpush2.bf16.msra.mxu0 0
        %1037 = vmatprep.subr.bf16.mxu0 0
        %1038 = vmatpush2.bf16.msra.mxu0 0
        %1039 = vmatprep.subr.bf16.mxu0 0
        %1040 = vmatpush2.bf16.msra.mxu0 0
        %1041 = vmatprep.subr.bf16.mxu0 0
        %1042 = vmatpush2.bf16.msra.mxu0 0
        %1043 = vmatprep.subr.bf16.mxu0 0
        %1044 = vmatpush2.bf16.msra.mxu0 0
        %1045 = vmatprep.subr.bf16.mxu0 0
        %1046 = vmatpush2.bf16.msra.mxu0 0
        %1047 = vmatprep.mubr.bf16.mxu0 0
        %1048 = vmatmul.mubr.bf16.gmra.mxu0 %v408
        %v1049 = vpop.f32.mrf.mxu0
        %v1050 = vadd.f32 %v1009, %v1049
        %v1051 = vpop.f32.mrf.mxu0
        %v1052 = vadd.f32 %v1011, %v1051
        %v1053 = vpop.f32.mrf.mxu0
        %v1054 = vpop.f32.mrf.mxu0
        %1055 = vdwg.mxu0
        %v1058 = vunpack.c.l.b16 %v203
        %v1059 = vunpack.c.h.b16 %v203
        %v1060 = vunpack.c.l.b16 %v204
        %v1061 = vpack.c.b16 %v1058, %v1058
        %v1062 = vpack.c.b16 %v1059, %v1059
        %v1063 = vpack.c.b16 %v1060, %v1060
        %v1163 = vunpack.c.l.b16 %v205
        %v1164 = vunpack.c.h.b16 %v205
        %v1165 = vunpack.c.l.b16 %v206
        %v1166 = vunpack.c.h.b16 %v206
        %v1167 = vunpack.c.l.b16 %v207
        %v1168 = vunpack.c.h.b16 %v207
        %v1169 = vunpack.c.l.b16 %v208
        %v1170 = vunpack.c.h.b16 %v208
        %v1171 = vunpack.c.l.b16 %v209
        %v1172 = vunpack.c.h.b16 %v209
        %v1173 = vunpack.c.l.b16 %v210
        %v1174 = vunpack.c.h.b16 %v210
        %v1175 = vunpack.c.l.b16 %v211
        %v1176 = vunpack.c.h.b16 %v211
        %v1177 = vunpack.c.l.b16 %v212
        %v1178 = vunpack.c.h.b16 %v212
        %v1179 = vunpack.c.l.b16 %v213
        %v1180 = vunpack.c.h.b16 %v213
        %v1181 = vunpack.c.l.b16 %v214
        %v1182 = vunpack.c.h.b16 %v214
        %v1183 = vunpack.c.l.b16 %v215
        %v1184 = vunpack.c.h.b16 %v215
        %v1185 = vunpack.c.l.b16 %v216
        %v1186 = vunpack.c.h.b16 %v216
        %v1187 = vunpack.c.l.b16 %v217
        %v1188 = vunpack.c.h.b16 %v217
        %v1189 = vunpack.c.l.b16 %v218
        %v1190 = vunpack.c.h.b16 %v218
        %v1191 = vunpack.c.l.b16 %v219
        %v1192 = vunpack.c.h.b16 %v219
        %v1193 = vunpack.c.l.b16 %v220
        %v1194 = vunpack.c.h.b16 %v220
        %v1195 = vunpack.c.l.b16 %v221
        %v1196 = vunpack.c.h.b16 %v221
        %v1197 = vunpack.c.l.b16 %v222
        %v1198 = vunpack.c.h.b16 %v222
        %v1199 = vunpack.c.l.b16 %v223
        %v1200 = vunpack.c.h.b16 %v223
        %v1201 = vunpack.c.l.b16 %v224
        %v1202 = vunpack.c.h.b16 %v224
        %v1203 = vunpack.c.l.b16 %v225
        %v1204 = vunpack.c.h.b16 %v225
        %v1205 = vunpack.c.l.b16 %v226
        %v1206 = vunpack.c.h.b16 %v226
        %v1207 = vunpack.c.l.b16 %v227
        %v1208 = vunpack.c.h.b16 %v227
        %v1209 = vunpack.c.l.b16 %v228
        %v1210 = vunpack.c.h.b16 %v228
        %v1211 = vunpack.c.l.b16 %v229
        %v1212 = vunpack.c.h.b16 %v229
        %v1213 = vunpack.c.l.b16 %v230
        %v1214 = vunpack.c.h.b16 %v230
        %v1215 = vunpack.c.l.b16 %v231
        %v1216 = vunpack.c.h.b16 %v231
        %v1217 = vunpack.c.l.b16 %v232
        %v1218 = vunpack.c.h.b16 %v232
        %v1219 = vunpack.c.l.b16 %v233
        %v1220 = vunpack.c.h.b16 %v233
        %v1221 = vunpack.c.l.b16 %v234
        %v1222 = vunpack.c.h.b16 %v234
        %v1223 = vunpack.c.l.b16 %v235
        %v1224 = vunpack.c.h.b16 %v235
        %v1225 = vunpack.c.l.b16 %v236
        %v1226 = vunpack.c.h.b16 %v236
        %v1227 = vunpack.c.l.b16 %v237
        %v1228 = vunpack.c.h.b16 %v237
        %v1229 = vunpack.c.l.b16 %v238
        %v1230 = vunpack.c.h.b16 %v238
        %v1231 = vunpack.c.l.b16 %v239
        %v1232 = vunpack.c.h.b16 %v239
        %v1233 = vunpack.c.l.b16 %v240
        %v1234 = vunpack.c.h.b16 %v240
        %v1235 = vunpack.c.l.b16 %v241
        %v1236 = vunpack.c.h.b16 %v241
        %v1237 = vunpack.c.l.b16 %v242
        %v1238 = vunpack.c.h.b16 %v242
        %v1239 = vunpack.c.l.b16 %v243
        %v1240 = vunpack.c.h.b16 %v243
        %v1241 = vunpack.c.l.b16 %v244
        %v1242 = vunpack.c.h.b16 %v244
        %v1243 = vunpack.c.l.b16 %v245
        %v1244 = vunpack.c.h.b16 %v245
        %v1245 = vunpack.c.l.b16 %v246
        %v1246 = vunpack.c.h.b16 %v246
        %v1247 = vunpack.c.l.b16 %v247
        %v1248 = vunpack.c.h.b16 %v247
        %v1249 = vunpack.c.l.b16 %v248
        %v1250 = vunpack.c.h.b16 %v248
        %v1251 = vunpack.c.l.b16 %v249
        %v1252 = vunpack.c.h.b16 %v249
        %v1253 = vunpack.c.l.b16 %v250
        %v1254 = vunpack.c.h.b16 %v250
        %v1255 = vunpack.c.l.b16 %v251
        %v1256 = vunpack.c.h.b16 %v251
        %v1257 = vunpack.c.l.b16 %v252
        %v1258 = vunpack.c.h.b16 %v252
        %v1259 = vunpack.c.l.b16 %v253
        %v1260 = vunpack.c.h.b16 %v253
        %v1261 = vunpack.c.l.b16 %v254
        %v1262 = vunpack.c.h.b16 %v254
        %v1263 = vunpack.c.l.b16 %v255
        %v1264 = vunpack.c.h.b16 %v255
        %v1265 = vunpack.c.l.b16 %v256
        %v1266 = vunpack.c.h.b16 %v256
        %v1267 = vunpack.c.l.b16 %v257
        %v1268 = vunpack.c.h.b16 %v257
        %v1269 = vunpack.c.l.b16 %v258
        %v1270 = vunpack.c.h.b16 %v258
        %v1271 = vunpack.c.l.b16 %v259
        %v1272 = vunpack.c.h.b16 %v259
        %v1273 = vunpack.c.l.b16 %v260
        %v1274 = vunpack.c.h.b16 %v260
        %v1275 = vunpack.c.l.b16 %v261
        %v1276 = vunpack.c.h.b16 %v261
        %v1277 = vunpack.c.l.b16 %v262
        %v1278 = vunpack.c.h.b16 %v262
        %v1279 = vunpack.c.l.b16 %v263
        %v1280 = vunpack.c.h.b16 %v263
        %v1281 = vunpack.c.l.b16 %v264
        %v1282 = vunpack.c.h.b16 %v264
        %v1283 = vunpack.c.l.b16 %v265
        %v1284 = vunpack.c.h.b16 %v265
        %v1285 = vunpack.c.l.b16 %v266
        %v1286 = vunpack.c.h.b16 %v266
        %v1287 = vunpack.c.l.b16 %v267
        %v1288 = vunpack.c.h.b16 %v267
        %v1289 = vunpack.c.l.b16 %v268
        %v1290 = vunpack.c.h.b16 %v268
        %v1291 = vunpack.c.l.b16 %v269
        %v1292 = vunpack.c.h.b16 %v269
        %v1293 = vunpack.c.l.b16 %v270
        %v1294 = vunpack.c.h.b16 %v270
        %v1295 = vunpack.c.l.b16 %v271
        %v1296 = vunpack.c.h.b16 %v271
        %v1297 = vunpack.c.l.b16 %v272
        %v1298 = vunpack.c.h.b16 %v272
        %v1299 = vunpack.c.l.b16 %v273
        %v1300 = vunpack.c.h.b16 %v273
        %v1301 = vunpack.c.l.b16 %v274
        %v1302 = vunpack.c.h.b16 %v274
        %v1303 = vunpack.c.l.b16 %v275
        %v1304 = vunpack.c.h.b16 %v275
        %v1305 = vunpack.c.l.b16 %v276
        %v1306 = vunpack.c.h.b16 %v276
        %v1307 = vunpack.c.l.b16 %v277
        %v1308 = vunpack.c.h.b16 %v277
        %v1309 = vunpack.c.l.b16 %v278
        %v1310 = vunpack.c.h.b16 %v278
        %v1311 = vunpack.c.l.b16 %v279
        %v1312 = vunpack.c.h.b16 %v279
        %v1313 = vunpack.c.l.b16 %v280
        %v1314 = vunpack.c.h.b16 %v280
        %v1315 = vunpack.c.l.b16 %v281
        %v1316 = vunpack.c.h.b16 %v281
        %v1317 = vunpack.c.l.b16 %v282
        %v1318 = vunpack.c.h.b16 %v282
        %v1319 = vunpack.c.l.b16 %v283
        %v1320 = vunpack.c.h.b16 %v283
        %v1321 = vunpack.c.l.b16 %v284
        %v1322 = vunpack.c.h.b16 %v284
        %v1323 = vunpack.c.l.b16 %v285
        %v1324 = vunpack.c.h.b16 %v285
        %v1325 = vunpack.c.l.b16 %v286
        %v1326 = vunpack.c.h.b16 %v286
        %v1327 = vunpack.c.l.b16 %v287
        %v1328 = vunpack.c.h.b16 %v287
        %v1329 = vunpack.c.l.b16 %v288
        %v1330 = vunpack.c.h.b16 %v288
        %v1331 = vunpack.c.l.b16 %v289
        %v1332 = vunpack.c.h.b16 %v289
        %v1333 = vunpack.c.l.b16 %v290
        %v1334 = vunpack.c.h.b16 %v290
        %v1335 = vunpack.c.l.b16 %v291
        %v1336 = vunpack.c.h.b16 %v291
        %v1337 = vunpack.c.l.b16 %v292
        %v1338 = vunpack.c.h.b16 %v292
        %v1339 = vunpack.c.l.b16 %v293
        %v1340 = vunpack.c.h.b16 %v293
        %v1341 = vunpack.c.l.b16 %v294
        %v1342 = vunpack.c.h.b16 %v294
        %v1343 = vunpack.c.l.b16 %v295
        %v1344 = vunpack.c.h.b16 %v295
        %v1345 = vunpack.c.l.b16 %v296
        %v1346 = vunpack.c.h.b16 %v296
        %v1347 = vunpack.c.l.b16 %v297
        %v1348 = vunpack.c.h.b16 %v297
        %v1349 = vunpack.c.l.b16 %v298
        %v1350 = vunpack.c.h.b16 %v298
        %v1351 = vunpack.c.l.b16 %v299
        %v1352 = vunpack.c.h.b16 %v299
        %v1353 = vunpack.c.l.b16 %v300
        %v1354 = vunpack.c.h.b16 %v300
        %v1355 = vpack.c.b16 %v1167, %v1163
        %v1356 = vpack.c.b16 %v1168, %v1164
        %v1357 = vpack.c.b16 %v1169, %v1165
        %v1358 = vpack.c.b16 %v1170, %v1166
        %v1359 = vpack.c.b16 %v1175, %v1171
        %v1360 = vpack.c.b16 %v1176, %v1172
        %v1361 = vpack.c.b16 %v1177, %v1173
        %v1362 = vpack.c.b16 %v1178, %v1174
        %v1363 = vpack.c.b16 %v1183, %v1179
        %v1364 = vpack.c.b16 %v1184, %v1180
        %v1365 = vpack.c.b16 %v1185, %v1181
        %v1366 = vpack.c.b16 %v1186, %v1182
        %v1367 = vpack.c.b16 %v1191, %v1187
        %v1368 = vpack.c.b16 %v1192, %v1188
        %v1369 = vpack.c.b16 %v1193, %v1189
        %v1370 = vpack.c.b16 %v1194, %v1190
        %v1371 = vpack.c.b16 %v1199, %v1195
        %v1372 = vpack.c.b16 %v1200, %v1196
        %v1373 = vpack.c.b16 %v1201, %v1197
        %v1374 = vpack.c.b16 %v1202, %v1198
        %v1375 = vpack.c.b16 %v1207, %v1203
        %v1376 = vpack.c.b16 %v1208, %v1204
        %v1377 = vpack.c.b16 %v1209, %v1205
        %v1378 = vpack.c.b16 %v1210, %v1206
        %v1379 = vpack.c.b16 %v1215, %v1211
        %v1380 = vpack.c.b16 %v1216, %v1212
        %v1381 = vpack.c.b16 %v1217, %v1213
        %v1382 = vpack.c.b16 %v1218, %v1214
        %v1383 = vpack.c.b16 %v1223, %v1219
        %v1384 = vpack.c.b16 %v1224, %v1220
        %v1385 = vpack.c.b16 %v1225, %v1221
        %v1386 = vpack.c.b16 %v1226, %v1222
        %v1387 = vpack.c.b16 %v1231, %v1227
        %v1388 = vpack.c.b16 %v1232, %v1228
        %v1389 = vpack.c.b16 %v1233, %v1229
        %v1390 = vpack.c.b16 %v1234, %v1230
        %v1391 = vpack.c.b16 %v1239, %v1235
        %v1392 = vpack.c.b16 %v1240, %v1236
        %v1393 = vpack.c.b16 %v1241, %v1237
        %v1394 = vpack.c.b16 %v1242, %v1238
        %v1395 = vpack.c.b16 %v1247, %v1243
        %v1396 = vpack.c.b16 %v1248, %v1244
        %v1397 = vpack.c.b16 %v1249, %v1245
        %v1398 = vpack.c.b16 %v1250, %v1246
        %v1399 = vpack.c.b16 %v1255, %v1251
        %v1400 = vpack.c.b16 %v1256, %v1252
        %v1401 = vpack.c.b16 %v1257, %v1253
        %v1402 = vpack.c.b16 %v1258, %v1254
        %v1403 = vpack.c.b16 %v1263, %v1259
        %v1404 = vpack.c.b16 %v1264, %v1260
        %v1405 = vpack.c.b16 %v1265, %v1261
        %v1406 = vpack.c.b16 %v1266, %v1262
        %v1407 = vpack.c.b16 %v1271, %v1267
        %v1408 = vpack.c.b16 %v1272, %v1268
        %v1409 = vpack.c.b16 %v1273, %v1269
        %v1410 = vpack.c.b16 %v1274, %v1270
        %v1411 = vpack.c.b16 %v1279, %v1275
        %v1412 = vpack.c.b16 %v1280, %v1276
        %v1413 = vpack.c.b16 %v1281, %v1277
        %v1414 = vpack.c.b16 %v1282, %v1278
        %v1415 = vpack.c.b16 %v1287, %v1283
        %v1416 = vpack.c.b16 %v1288, %v1284
        %v1417 = vpack.c.b16 %v1289, %v1285
        %v1418 = vpack.c.b16 %v1290, %v1286
        %v1419 = vpack.c.b16 %v1295, %v1291
        %v1420 = vpack.c.b16 %v1296, %v1292
        %v1421 = vpack.c.b16 %v1297, %v1293
        %v1422 = vpack.c.b16 %v1298, %v1294
        %v1423 = vpack.c.b16 %v1303, %v1299
        %v1424 = vpack.c.b16 %v1304, %v1300
        %v1425 = vpack.c.b16 %v1305, %v1301
        %v1426 = vpack.c.b16 %v1306, %v1302
        %v1427 = vpack.c.b16 %v1311, %v1307
        %v1428 = vpack.c.b16 %v1312, %v1308
        %v1429 = vpack.c.b16 %v1313, %v1309
        %v1430 = vpack.c.b16 %v1314, %v1310
        %v1431 = vpack.c.b16 %v1319, %v1315
        %v1432 = vpack.c.b16 %v1320, %v1316
        %v1433 = vpack.c.b16 %v1321, %v1317
        %v1434 = vpack.c.b16 %v1322, %v1318
        %v1435 = vpack.c.b16 %v1327, %v1323
        %v1436 = vpack.c.b16 %v1328, %v1324
        %v1437 = vpack.c.b16 %v1329, %v1325
        %v1438 = vpack.c.b16 %v1330, %v1326
        %v1439 = vpack.c.b16 %v1335, %v1331
        %v1440 = vpack.c.b16 %v1336, %v1332
        %v1441 = vpack.c.b16 %v1337, %v1333
        %v1442 = vpack.c.b16 %v1338, %v1334
        %v1443 = vpack.c.b16 %v1343, %v1339
        %v1444 = vpack.c.b16 %v1344, %v1340
        %v1445 = vpack.c.b16 %v1345, %v1341
        %v1446 = vpack.c.b16 %v1346, %v1342
        %v1447 = vpack.c.b16 %v1351, %v1347
        %v1448 = vpack.c.b16 %v1352, %v1348
        %v1449 = vpack.c.b16 %v1353, %v1349
        %v1450 = vpack.c.b16 %v1354, %v1350
        %1547 = vmatprep.subr.bf16.mxu0 %v1384
        %1548 = vmatpush1.bf16.msra.mxu0 %v1383
        %1549 = vmatprep.subr.bf16.mxu0 %v1380
        %1550 = vmatpush1.bf16.msra.mxu0 %v1379
        %1551 = vmatprep.subr.bf16.mxu0 %v1376
        %1552 = vmatpush1.bf16.msra.mxu0 %v1375
        %1553 = vmatprep.subr.bf16.mxu0 %v1372
        %1554 = vmatpush1.bf16.msra.mxu0 %v1371
        %1555 = vmatprep.subr.bf16.mxu0 %v1368
        %1556 = vmatpush1.bf16.msra.mxu0 %v1367
        %1557 = vmatprep.subr.bf16.mxu0 %v1364
        %1558 = vmatpush1.bf16.msra.mxu0 %v1363
        %1559 = vmatprep.subr.bf16.mxu0 %v1360
        %1560 = vmatpush1.bf16.msra.mxu0 %v1359
        %1561 = vmatprep.subr.bf16.mxu0 %v1356
        %1562 = vmatpush1.bf16.msra.mxu0 %v1355
        %1563 = vmatprep.subr.bf16.mxu0 %v1416
        %1564 = vmatpush2.bf16.msra.mxu0 %v1415
        %1565 = vmatprep.subr.bf16.mxu0 %v1412
        %1566 = vmatpush2.bf16.msra.mxu0 %v1411
        %1567 = vmatprep.subr.bf16.mxu0 %v1408
        %1568 = vmatpush2.bf16.msra.mxu0 %v1407
        %1569 = vmatprep.subr.bf16.mxu0 %v1404
        %1570 = vmatpush2.bf16.msra.mxu0 %v1403
        %1571 = vmatprep.subr.bf16.mxu0 %v1400
        %1572 = vmatpush2.bf16.msra.mxu0 %v1399
        %1573 = vmatprep.subr.bf16.mxu0 %v1396
        %1574 = vmatpush2.bf16.msra.mxu0 %v1395
        %1575 = vmatprep.subr.bf16.mxu0 %v1392
        %1576 = vmatpush2.bf16.msra.mxu0 %v1391
        %1577 = vmatprep.subr.bf16.mxu0 %v1388
        %1578 = vmatpush2.bf16.msra.mxu0 %v1387
        %1579 = vmatprep.mubr.bf16.mxu0 %v1062
        %1580 = vmatmul.mubr.bf16.gmra.mxu0 %v1061
        %v1581 = vpop.f32.mrf.mxu0
        %v1582 = vadd.f32 %v968, %v1581
        %v1583 = vpop.f32.mrf.mxu0
        %v1584 = vadd.f32 %v970, %v1583
        %v1585 = vpop.f32.mrf.mxu0
        %v1586 = vpop.f32.mrf.mxu0
        %1587 = vdwg.mxu0
        %1588 = vmatprep.subr.bf16.mxu0 %v1448
        %1589 = vmatpush1.bf16.msra.mxu0 %v1447
        %1590 = vmatprep.subr.bf16.mxu0 %v1444
        %1591 = vmatpush1.bf16.msra.mxu0 %v1443
        %1592 = vmatprep.subr.bf16.mxu0 %v1440
        %1593 = vmatpush1.bf16.msra.mxu0 %v1439
        %1594 = vmatprep.subr.bf16.mxu0 %v1436
        %1595 = vmatpush1.bf16.msra.mxu0 %v1435
        %1596 = vmatprep.subr.bf16.mxu0 %v1432
        %1597 = vmatpush1.bf16.msra.mxu0 %v1431
        %1598 = vmatprep.subr.bf16.mxu0 %v1428
        %1599 = vmatpush1.bf16.msra.mxu0 %v1427
        %1600 = vmatprep.subr.bf16.mxu0 %v1424
        %1601 = vmatpush1.bf16.msra.mxu0 %v1423
        %1602 = vmatprep.subr.bf16.mxu0 %v1420
        %1603 = vmatpush1.bf16.msra.mxu0 %v1419
        %1604 = vmatprep.subr.bf16.mxu0 0
        %1605 = vmatpush2.bf16.msra.mxu0 0
        %1606 = vmatprep.subr.bf16.mxu0 0
        %1607 = vmatpush2.bf16.msra.mxu0 0
        %1608 = vmatprep.subr.bf16.mxu0 0
        %1609 = vmatpush2.bf16.msra.mxu0 0
        %1610 = vmatprep.subr.bf16.mxu0 0
        %1611 = vmatpush2.bf16.msra.mxu0 0
        %1612 = vmatprep.subr.bf16.mxu0 0
        %1613 = vmatpush2.bf16.msra.mxu0 0
        %1614 = vmatprep.subr.bf16.mxu0 0
        %1615 = vmatpush2.bf16.msra.mxu0 0
        %1616 = vmatprep.subr.bf16.mxu0 0
        %1617 = vmatpush2.bf16.msra.mxu0 0
        %1618 = vmatprep.subr.bf16.mxu0 0
        %1619 = vmatpush2.bf16.msra.mxu0 0
        %1620 = vmatprep.mubr.bf16.mxu0 0
        %1621 = vmatmul.mubr.bf16.gmra.mxu0 %v1063
        %v1622 = vpop.f32.mrf.mxu0
        %v1623 = vadd.f32 %v1582, %v1622
        %v1624 = vpop.f32.mrf.mxu0
        %v1625 = vadd.f32 %v1584, %v1624
        %v1626 = vpop.f32.mrf.mxu0
        %v1627 = vpop.f32.mrf.mxu0
        %1628 = vdwg.mxu0
        %1629 = vmatprep.subr.bf16.mxu0 %v1386
        %1630 = vmatpush1.bf16.msra.mxu0 %v1385
        %1631 = vmatprep.subr.bf16.mxu0 %v1382
        %1632 = vmatpush1.bf16.msra.mxu0 %v1381
        %1633 = vmatprep.subr.bf16.mxu0 %v1378
        %1634 = vmatpush1.bf16.msra.mxu0 %v1377
        %1635 = vmatprep.subr.bf16.mxu0 %v1374
        %1636 = vmatpush1.bf16.msra.mxu0 %v1373
        %1637 = vmatprep.subr.bf16.mxu0 %v1370
        %1638 = vmatpush1.bf16.msra.mxu0 %v1369
        %1639 = vmatprep.subr.bf16.mxu0 %v1366
        %1640 = vmatpush1.bf16.msra.mxu0 %v1365
        %1641 = vmatprep.subr.bf16.mxu0 %v1362
        %1642 = vmatpush1.bf16.msra.mxu0 %v1361
        %1643 = vmatprep.subr.bf16.mxu0 %v1358
        %1644 = vmatpush1.bf16.msra.mxu0 %v1357
        %1645 = vmatprep.subr.bf16.mxu0 %v1418
        %1646 = vmatpush2.bf16.msra.mxu0 %v1417
        %1647 = vmatprep.subr.bf16.mxu0 %v1414
        %1648 = vmatpush2.bf16.msra.mxu0 %v1413
        %1649 = vmatprep.subr.bf16.mxu0 %v1410
        %1650 = vmatpush2.bf16.msra.mxu0 %v1409
        %1651 = vmatprep.subr.bf16.mxu0 %v1406
        %1652 = vmatpush2.bf16.msra.mxu0 %v1405
        %1653 = vmatprep.subr.bf16.mxu0 %v1402
        %1654 = vmatpush2.bf16.msra.mxu0 %v1401
        %1655 = vmatprep.subr.bf16.mxu0 %v1398
        %1656 = vmatpush2.bf16.msra.mxu0 %v1397
        %1657 = vmatprep.subr.bf16.mxu0 %v1394
        %1658 = vmatpush2.bf16.msra.mxu0 %v1393
        %1659 = vmatprep.subr.bf16.mxu0 %v1390
        %1660 = vmatpush2.bf16.msra.mxu0 %v1389
        %1661 = vmatprep.mubr.bf16.mxu0 %v1062
        %1662 = vmatmul.mubr.bf16.gmra.mxu0 %v1061
        %v1663 = vpop.f32.mrf.mxu0
        %v1664 = vadd.f32 %v1050, %v1663
        %v1665 = vpop.f32.mrf.mxu0
        %v1666 = vadd.f32 %v1052, %v1665
        %v1667 = vpop.f32.mrf.mxu0
        %v1668 = vpop.f32.mrf.mxu0
        %1669 = vdwg.mxu0
        %1670 = vmatprep.subr.bf16.mxu0 %v1450
        %1671 = vmatpush1.bf16.msra.mxu0 %v1449
        %1672 = vmatprep.subr.bf16.mxu0 %v1446
        %1673 = vmatpush1.bf16.msra.mxu0 %v1445
        %1674 = vmatprep.subr.bf16.mxu0 %v1442
        %1675 = vmatpush1.bf16.msra.mxu0 %v1441
        %1676 = vmatprep.subr.bf16.mxu0 %v1438
        %1677 = vmatpush1.bf16.msra.mxu0 %v1437
        %1678 = vmatprep.subr.bf16.mxu0 %v1434
        %1679 = vmatpush1.bf16.msra.mxu0 %v1433
        %1680 = vmatprep.subr.bf16.mxu0 %v1430
        %1681 = vmatpush1.bf16.msra.mxu0 %v1429
        %1682 = vmatprep.subr.bf16.mxu0 %v1426
        %1683 = vmatpush1.bf16.msra.mxu0 %v1425
        %1684 = vmatprep.subr.bf16.mxu0 %v1422
        %1685 = vmatpush1.bf16.msra.mxu0 %v1421
        %1686 = vmatprep.subr.bf16.mxu0 0
        %1687 = vmatpush2.bf16.msra.mxu0 0
        %1688 = vmatprep.subr.bf16.mxu0 0
        %1689 = vmatpush2.bf16.msra.mxu0 0
        %1690 = vmatprep.subr.bf16.mxu0 0
        %1691 = vmatpush2.bf16.msra.mxu0 0
        %1692 = vmatprep.subr.bf16.mxu0 0
        %1693 = vmatpush2.bf16.msra.mxu0 0
        %1694 = vmatprep.subr.bf16.mxu0 0
        %1695 = vmatpush2.bf16.msra.mxu0 0
        %1696 = vmatprep.subr.bf16.mxu0 0
        %1697 = vmatpush2.bf16.msra.mxu0 0
        %1698 = vmatprep.subr.bf16.mxu0 0
        %1699 = vmatpush2.bf16.msra.mxu0 0
        %1700 = vmatprep.subr.bf16.mxu0 0
        %1701 = vmatpush2.bf16.msra.mxu0 0
        %1702 = vmatprep.mubr.bf16.mxu0 0
        %1703 = vmatmul.mubr.bf16.gmra.mxu0 %v1063
        %v1704 = vpop.f32.mrf.mxu0
        %v1705 = vadd.f32 %v1664, %v1704
        %v1706 = vpop.f32.mrf.mxu0
        %v1707 = vadd.f32 %v1666, %v1706
        %v1708 = vpop.f32.mrf.mxu0
        %v1709 = vpop.f32.mrf.mxu0
        %1710 = vdwg.mxu0
        %v1711 = vld [vmem:[%s193] sm:$0x77]
        %v1712 = vld [vmem:[%s193 + $0x8] sm:$0x7]
        %s1713 = scalar_lea.vmem [#allocation2], 1536
        %v1714 = vld [vmem:[%s1713] sm:$0xff]
        %v1715 = vld [vmem:[%s1713 + $0x8] sm:$0xff]
        %v1716 = vld [vmem:[%s1713 + $0x10] sm:$0xff]
        %v1717 = vld [vmem:[%s1713 + $0x18] sm:$0xff]
        %v1718 = vld [vmem:[%s1713 + $0x20] sm:$0xff]
        %v1719 = vld [vmem:[%s1713 + $0x28] sm:$0xff]
        %v1720 = vld [vmem:[%s1713 + $0x30] sm:$0xff]
        %v1721 = vld [vmem:[%s1713 + $0x38] sm:$0xff]
        %v1722 = vld [vmem:[%s1713 + $0x40] sm:$0xff]
        %v1723 = vld [vmem:[%s1713 + $0x48] sm:$0xff]
        %v1724 = vld [vmem:[%s1713 + $0x50] sm:$0xff]
        %v1725 = vld [vmem:[%s1713 + $0x58] sm:$0xff]
        %v1726 = vld [vmem:[%s1713 + $0x60] sm:$0xff]
        %v1727 = vld [vmem:[%s1713 + $0x68] sm:$0xff]
        %v1728 = vld [vmem:[%s1713 + $0x70] sm:$0xff]
        %v1729 = vld [vmem:[%s1713 + $0x78] sm:$0xff]
        %v1730 = vld [vmem:[%s1713 + $0x80] sm:$0xff]
        %v1731 = vld [vmem:[%s1713 + $0x88] sm:$0xff]
        %v1732 = vld [vmem:[%s1713 + $0x90] sm:$0xff]
        %v1733 = vld [vmem:[%s1713 + $0x98] sm:$0xff]
        %v1734 = vld [vmem:[%s1713 + $0xa0] sm:$0xff]
        %v1735 = vld [vmem:[%s1713 + $0xa8] sm:$0xff]
        %v1736 = vld [vmem:[%s1713 + $0xb0] sm:$0xff]
        %v1737 = vld [vmem:[%s1713 + $0xb8] sm:$0xff]
        %v1738 = vld [vmem:[%s1713 + $0xc0] sm:$0xff]
        %v1739 = vld [vmem:[%s1713 + $0xc8] sm:$0xff]
        %v1740 = vld [vmem:[%s1713 + $0xd0] sm:$0xff]
        %v1741 = vld [vmem:[%s1713 + $0xd8] sm:$0xff]
        %v1742 = vld [vmem:[%s1713 + $0xe0] sm:$0xff]
        %v1743 = vld [vmem:[%s1713 + $0xe8] sm:$0xff]
        %v1744 = vld [vmem:[%s1713 + $0xf0] sm:$0xff]
        %v1745 = vld [vmem:[%s1713 + $0xf8] sm:$0xff]
        %v1746 = vld [vmem:[%s1713 + $0x100] sm:$0xff]
        %v1747 = vld [vmem:[%s1713 + $0x108] sm:$0xff]
        %v1748 = vld [vmem:[%s1713 + $0x110] sm:$0xff]
        %v1749 = vld [vmem:[%s1713 + $0x118] sm:$0xff]
        %v1750 = vld [vmem:[%s1713 + $0x120] sm:$0xff]
        %v1751 = vld [vmem:[%s1713 + $0x128] sm:$0xff]
        %v1752 = vld [vmem:[%s1713 + $0x130] sm:$0xff]
        %v1753 = vld [vmem:[%s1713 + $0x138] sm:$0xff]
        %v1754 = vld [vmem:[%s1713 + $0x140] sm:$0xff]
        %v1755 = vld [vmem:[%s1713 + $0x148] sm:$0xff]
        %v1756 = vld [vmem:[%s1713 + $0x150] sm:$0xff]
        %v1757 = vld [vmem:[%s1713 + $0x158] sm:$0xff]
        %v1758 = vld [vmem:[%s1713 + $0x160] sm:$0xff]
        %v1759 = vld [vmem:[%s1713 + $0x168] sm:$0xff]
        %v1760 = vld [vmem:[%s1713 + $0x170] sm:$0xff]
        %v1761 = vld [vmem:[%s1713 + $0x178] sm:$0xff]
        %v1762 = vld [vmem:[%s1713 + $0x180] sm:$0xff]
        %v1763 = vld [vmem:[%s1713 + $0x188] sm:$0xff]
        %v1764 = vld [vmem:[%s1713 + $0x190] sm:$0xff]
        %v1765 = vld [vmem:[%s1713 + $0x198] sm:$0xff]
        %v1766 = vld [vmem:[%s1713 + $0x1a0] sm:$0xff]
        %v1767 = vld [vmem:[%s1713 + $0x1a8] sm:$0xff]
        %v1768 = vld [vmem:[%s1713 + $0x1b0] sm:$0xff]
        %v1769 = vld [vmem:[%s1713 + $0x1b8] sm:$0xff]
        %v1770 = vld [vmem:[%s1713 + $0x1c0] sm:$0xff]
        %v1771 = vld [vmem:[%s1713 + $0x1c8] sm:$0xff]
        %v1772 = vld [vmem:[%s1713 + $0x1d0] sm:$0xff]
        %v1773 = vld [vmem:[%s1713 + $0x1d8] sm:$0xff]
        %v1774 = vld [vmem:[%s1713 + $0x1e0] sm:$0xff]
        %v1775 = vld [vmem:[%s1713 + $0x1e8] sm:$0xff]
        %v1776 = vld [vmem:[%s1713 + $0x1f0] sm:$0xff]
        %v1777 = vld [vmem:[%s1713 + $0x1f8] sm:$0xff]
        %v1778 = vld [vmem:[%s1713 + $0x200] sm:$0xff]
        %v1779 = vld [vmem:[%s1713 + $0x208] sm:$0xff]
        %v1780 = vld [vmem:[%s1713 + $0x210] sm:$0xff]
        %v1781 = vld [vmem:[%s1713 + $0x218] sm:$0xff]
        %v1782 = vld [vmem:[%s1713 + $0x220] sm:$0xff]
        %v1783 = vld [vmem:[%s1713 + $0x228] sm:$0xff]
        %v1784 = vld [vmem:[%s1713 + $0x230] sm:$0xff]
        %v1785 = vld [vmem:[%s1713 + $0x238] sm:$0xff]
        %v1786 = vld [vmem:[%s1713 + $0x240] sm:$0xff]
        %v1787 = vld [vmem:[%s1713 + $0x248] sm:$0xff]
        %v1788 = vld [vmem:[%s1713 + $0x250] sm:$0xff]
        %v1789 = vld [vmem:[%s1713 + $0x258] sm:$0xff]
        %v1790 = vld [vmem:[%s1713 + $0x260] sm:$0xff]
        %v1791 = vld [vmem:[%s1713 + $0x268] sm:$0xff]
        %v1792 = vld [vmem:[%s1713 + $0x270] sm:$0xff]
        %v1793 = vld [vmem:[%s1713 + $0x278] sm:$0xff]
        %v1794 = vld [vmem:[%s1713 + $0x280] sm:$0xff]
        %v1795 = vld [vmem:[%s1713 + $0x288] sm:$0xff]
        %v1796 = vld [vmem:[%s1713 + $0x290] sm:$0xff]
        %v1797 = vld [vmem:[%s1713 + $0x298] sm:$0xff]
        %v1798 = vld [vmem:[%s1713 + $0x2a0] sm:$0xff]
        %v1799 = vld [vmem:[%s1713 + $0x2a8] sm:$0xff]
        %v1800 = vld [vmem:[%s1713 + $0x2b0] sm:$0xff]
        %v1801 = vld [vmem:[%s1713 + $0x2b8] sm:$0xff]
        %v1802 = vld [vmem:[%s1713 + $0x2c0] sm:$0xff]
        %v1803 = vld [vmem:[%s1713 + $0x2c8] sm:$0xff]
        %v1804 = vld [vmem:[%s1713 + $0x2d0] sm:$0xff]
        %v1805 = vld [vmem:[%s1713 + $0x2d8] sm:$0xff]
        %v1806 = vld [vmem:[%s1713 + $0x2e0] sm:$0xff]
        %v1807 = vld [vmem:[%s1713 + $0x2e8] sm:$0xff]
        %v1808 = vld [vmem:[%s1713 + $0x2f0] sm:$0xff]
        %v1809 = vld [vmem:[%s1713 + $0x2f8] sm:$0xff]
        %v1812 = vunpack.c.l.b16 %v1711
        %v1813 = vunpack.c.h.b16 %v1711
        %v1814 = vunpack.c.l.b16 %v1712
        %v1815 = vpack.c.b16 %v1812, %v1812
        %v1816 = vpack.c.b16 %v1813, %v1813
        %v1817 = vpack.c.b16 %v1814, %v1814
        %v1819 = vshrl.u32 %v1815, 16
        %v1821 = vshll.u32 %v1815, 16
        %v1823 = vrot.slane %v1821, 1
        %v1824 = vor.u32 %v1819, %v1823
        %v1826 = vshrl.u32 %v1816, 16
        %v1828 = vshll.u32 %v1816, 16
        %v1830 = vrot.slane %v1828, 1
        %v1831 = vor.u32 %v1826, %v1830
        %v1833 = vshrl.u32 %v1817, 16
        %v1835 = vshll.u32 %v1817, 16
        %v1837 = vrot.slane %v1835, 1
        %v1838 = vor.u32 %v1833, %v1837
        %v1938 = vunpack.c.l.b16 %v1714
        %v1939 = vunpack.c.h.b16 %v1714
        %v1940 = vunpack.c.l.b16 %v1715
        %v1941 = vunpack.c.h.b16 %v1715
        %v1942 = vunpack.c.l.b16 %v1716
        %v1943 = vunpack.c.h.b16 %v1716
        %v1944 = vunpack.c.l.b16 %v1717
        %v1945 = vunpack.c.h.b16 %v1717
        %v1946 = vunpack.c.l.b16 %v1718
        %v1947 = vunpack.c.h.b16 %v1718
        %v1948 = vunpack.c.l.b16 %v1719
        %v1949 = vunpack.c.h.b16 %v1719
        %v1950 = vunpack.c.l.b16 %v1720
        %v1951 = vunpack.c.h.b16 %v1720
        %v1952 = vunpack.c.l.b16 %v1721
        %v1953 = vunpack.c.h.b16 %v1721
        %v1954 = vunpack.c.l.b16 %v1722
        %v1955 = vunpack.c.h.b16 %v1722
        %v1956 = vunpack.c.l.b16 %v1723
        %v1957 = vunpack.c.h.b16 %v1723
        %v1958 = vunpack.c.l.b16 %v1724
        %v1959 = vunpack.c.h.b16 %v1724
        %v1960 = vunpack.c.l.b16 %v1725
        %v1961 = vunpack.c.h.b16 %v1725
        %v1962 = vunpack.c.l.b16 %v1726
        %v1963 = vunpack.c.h.b16 %v1726
        %v1964 = vunpack.c.l.b16 %v1727
        %v1965 = vunpack.c.h.b16 %v1727
        %v1966 = vunpack.c.l.b16 %v1728
        %v1967 = vunpack.c.h.b16 %v1728
        %v1968 = vunpack.c.l.b16 %v1729
        %v1969 = vunpack.c.h.b16 %v1729
        %v1970 = vunpack.c.l.b16 %v1730
        %v1971 = vunpack.c.h.b16 %v1730
        %v1972 = vunpack.c.l.b16 %v1731
        %v1973 = vunpack.c.h.b16 %v1731
        %v1974 = vunpack.c.l.b16 %v1732
        %v1975 = vunpack.c.h.b16 %v1732
        %v1976 = vunpack.c.l.b16 %v1733
        %v1977 = vunpack.c.h.b16 %v1733
        %v1978 = vunpack.c.l.b16 %v1734
        %v1979 = vunpack.c.h.b16 %v1734
        %v1980 = vunpack.c.l.b16 %v1735
        %v1981 = vunpack.c.h.b16 %v1735
        %v1982 = vunpack.c.l.b16 %v1736
        %v1983 = vunpack.c.h.b16 %v1736
        %v1984 = vunpack.c.l.b16 %v1737
        %v1985 = vunpack.c.h.b16 %v1737
        %v1986 = vunpack.c.l.b16 %v1738
        %v1987 = vunpack.c.h.b16 %v1738
        %v1988 = vunpack.c.l.b16 %v1739
        %v1989 = vunpack.c.h.b16 %v1739
        %v1990 = vunpack.c.l.b16 %v1740
        %v1991 = vunpack.c.h.b16 %v1740
        %v1992 = vunpack.c.l.b16 %v1741
        %v1993 = vunpack.c.h.b16 %v1741
        %v1994 = vunpack.c.l.b16 %v1742
        %v1995 = vunpack.c.h.b16 %v1742
        %v1996 = vunpack.c.l.b16 %v1743
        %v1997 = vunpack.c.h.b16 %v1743
        %v1998 = vunpack.c.l.b16 %v1744
        %v1999 = vunpack.c.h.b16 %v1744
        %v2000 = vunpack.c.l.b16 %v1745
        %v2001 = vunpack.c.h.b16 %v1745
        %v2002 = vunpack.c.l.b16 %v1746
        %v2003 = vunpack.c.h.b16 %v1746
        %v2004 = vunpack.c.l.b16 %v1747
        %v2005 = vunpack.c.h.b16 %v1747
        %v2006 = vunpack.c.l.b16 %v1748
        %v2007 = vunpack.c.h.b16 %v1748
        %v2008 = vunpack.c.l.b16 %v1749
        %v2009 = vunpack.c.h.b16 %v1749
        %v2010 = vunpack.c.l.b16 %v1750
        %v2011 = vunpack.c.h.b16 %v1750
        %v2012 = vunpack.c.l.b16 %v1751
        %v2013 = vunpack.c.h.b16 %v1751
        %v2014 = vunpack.c.l.b16 %v1752
        %v2015 = vunpack.c.h.b16 %v1752
        %v2016 = vunpack.c.l.b16 %v1753
        %v2017 = vunpack.c.h.b16 %v1753
        %v2018 = vunpack.c.l.b16 %v1754
        %v2019 = vunpack.c.h.b16 %v1754
        %v2020 = vunpack.c.l.b16 %v1755
        %v2021 = vunpack.c.h.b16 %v1755
        %v2022 = vunpack.c.l.b16 %v1756
        %v2023 = vunpack.c.h.b16 %v1756
        %v2024 = vunpack.c.l.b16 %v1757
        %v2025 = vunpack.c.h.b16 %v1757
        %v2026 = vunpack.c.l.b16 %v1758
        %v2027 = vunpack.c.h.b16 %v1758
        %v2028 = vunpack.c.l.b16 %v1759
        %v2029 = vunpack.c.h.b16 %v1759
        %v2030 = vunpack.c.l.b16 %v1760
        %v2031 = vunpack.c.h.b16 %v1760
        %v2032 = vunpack.c.l.b16 %v1761
        %v2033 = vunpack.c.h.b16 %v1761
        %v2034 = vunpack.c.l.b16 %v1762
        %v2035 = vunpack.c.h.b16 %v1762
        %v2036 = vunpack.c.l.b16 %v1763
        %v2037 = vunpack.c.h.b16 %v1763
        %v2038 = vunpack.c.l.b16 %v1764
        %v2039 = vunpack.c.h.b16 %v1764
        %v2040 = vunpack.c.l.b16 %v1765
        %v2041 = vunpack.c.h.b16 %v1765
        %v2042 = vunpack.c.l.b16 %v1766
        %v2043 = vunpack.c.h.b16 %v1766
        %v2044 = vunpack.c.l.b16 %v1767
        %v2045 = vunpack.c.h.b16 %v1767
        %v2046 = vunpack.c.l.b16 %v1768
        %v2047 = vunpack.c.h.b16 %v1768
        %v2048 = vunpack.c.l.b16 %v1769
        %v2049 = vunpack.c.h.b16 %v1769
        %v2050 = vunpack.c.l.b16 %v1770
        %v2051 = vunpack.c.h.b16 %v1770
        %v2052 = vunpack.c.l.b16 %v1771
        %v2053 = vunpack.c.h.b16 %v1771
        %v2054 = vunpack.c.l.b16 %v1772
        %v2055 = vunpack.c.h.b16 %v1772
        %v2056 = vunpack.c.l.b16 %v1773
        %v2057 = vunpack.c.h.b16 %v1773
        %v2058 = vunpack.c.l.b16 %v1774
        %v2059 = vunpack.c.h.b16 %v1774
        %v2060 = vunpack.c.l.b16 %v1775
        %v2061 = vunpack.c.h.b16 %v1775
        %v2062 = vunpack.c.l.b16 %v1776
        %v2063 = vunpack.c.h.b16 %v1776
        %v2064 = vunpack.c.l.b16 %v1777
        %v2065 = vunpack.c.h.b16 %v1777
        %v2066 = vunpack.c.l.b16 %v1778
        %v2067 = vunpack.c.h.b16 %v1778
        %v2068 = vunpack.c.l.b16 %v1779
        %v2069 = vunpack.c.h.b16 %v1779
        %v2070 = vunpack.c.l.b16 %v1780
        %v2071 = vunpack.c.h.b16 %v1780
        %v2072 = vunpack.c.l.b16 %v1781
        %v2073 = vunpack.c.h.b16 %v1781
        %v2074 = vunpack.c.l.b16 %v1782
        %v2075 = vunpack.c.h.b16 %v1782
        %v2076 = vunpack.c.l.b16 %v1783
        %v2077 = vunpack.c.h.b16 %v1783
        %v2078 = vunpack.c.l.b16 %v1784
        %v2079 = vunpack.c.h.b16 %v1784
        %v2080 = vunpack.c.l.b16 %v1785
        %v2081 = vunpack.c.h.b16 %v1785
        %v2082 = vunpack.c.l.b16 %v1786
        %v2083 = vunpack.c.h.b16 %v1786
        %v2084 = vunpack.c.l.b16 %v1787
        %v2085 = vunpack.c.h.b16 %v1787
        %v2086 = vunpack.c.l.b16 %v1788
        %v2087 = vunpack.c.h.b16 %v1788
        %v2088 = vunpack.c.l.b16 %v1789
        %v2089 = vunpack.c.h.b16 %v1789
        %v2090 = vunpack.c.l.b16 %v1790
        %v2091 = vunpack.c.h.b16 %v1790
        %v2092 = vunpack.c.l.b16 %v1791
        %v2093 = vunpack.c.h.b16 %v1791
        %v2094 = vunpack.c.l.b16 %v1792
        %v2095 = vunpack.c.h.b16 %v1792
        %v2096 = vunpack.c.l.b16 %v1793
        %v2097 = vunpack.c.h.b16 %v1793
        %v2098 = vunpack.c.l.b16 %v1794
        %v2099 = vunpack.c.h.b16 %v1794
        %v2100 = vunpack.c.l.b16 %v1795
        %v2101 = vunpack.c.h.b16 %v1795
        %v2102 = vunpack.c.l.b16 %v1796
        %v2103 = vunpack.c.h.b16 %v1796
        %v2104 = vunpack.c.l.b16 %v1797
        %v2105 = vunpack.c.h.b16 %v1797
        %v2106 = vunpack.c.l.b16 %v1798
        %v2107 = vunpack.c.h.b16 %v1798
        %v2108 = vunpack.c.l.b16 %v1799
        %v2109 = vunpack.c.h.b16 %v1799
        %v2110 = vunpack.c.l.b16 %v1800
        %v2111 = vunpack.c.h.b16 %v1800
        %v2112 = vunpack.c.l.b16 %v1801
        %v2113 = vunpack.c.h.b16 %v1801
        %v2114 = vunpack.c.l.b16 %v1802
        %v2115 = vunpack.c.h.b16 %v1802
        %v2116 = vunpack.c.l.b16 %v1803
        %v2117 = vunpack.c.h.b16 %v1803
        %v2118 = vunpack.c.l.b16 %v1804
        %v2119 = vunpack.c.h.b16 %v1804
        %v2120 = vunpack.c.l.b16 %v1805
        %v2121 = vunpack.c.h.b16 %v1805
        %v2122 = vunpack.c.l.b16 %v1806
        %v2123 = vunpack.c.h.b16 %v1806
        %v2124 = vunpack.c.l.b16 %v1807
        %v2125 = vunpack.c.h.b16 %v1807
        %v2126 = vunpack.c.l.b16 %v1808
        %v2127 = vunpack.c.h.b16 %v1808
        %v2128 = vunpack.c.l.b16 %v1809
        %v2129 = vunpack.c.h.b16 %v1809
        %v2130 = vpack.c.b16 %v1942, %v1938
        %v2131 = vpack.c.b16 %v1943, %v1939
        %v2132 = vpack.c.b16 %v1944, %v1940
        %v2133 = vpack.c.b16 %v1945, %v1941
        %v2134 = vpack.c.b16 %v1950, %v1946
        %v2135 = vpack.c.b16 %v1951, %v1947
        %v2136 = vpack.c.b16 %v1952, %v1948
        %v2137 = vpack.c.b16 %v1953, %v1949
        %v2138 = vpack.c.b16 %v1958, %v1954
        %v2139 = vpack.c.b16 %v1959, %v1955
        %v2140 = vpack.c.b16 %v1960, %v1956
        %v2141 = vpack.c.b16 %v1961, %v1957
        %v2142 = vpack.c.b16 %v1966, %v1962
        %v2143 = vpack.c.b16 %v1967, %v1963
        %v2144 = vpack.c.b16 %v1968, %v1964
        %v2145 = vpack.c.b16 %v1969, %v1965
        %v2146 = vpack.c.b16 %v1974, %v1970
        %v2147 = vpack.c.b16 %v1975, %v1971
        %v2148 = vpack.c.b16 %v1976, %v1972
        %v2149 = vpack.c.b16 %v1977, %v1973
        %v2150 = vpack.c.b16 %v1982, %v1978
        %v2151 = vpack.c.b16 %v1983, %v1979
        %v2152 = vpack.c.b16 %v1984, %v1980
        %v2153 = vpack.c.b16 %v1985, %v1981
        %v2154 = vpack.c.b16 %v1990, %v1986
        %v2155 = vpack.c.b16 %v1991, %v1987
        %v2156 = vpack.c.b16 %v1992, %v1988
        %v2157 = vpack.c.b16 %v1993, %v1989
        %v2158 = vpack.c.b16 %v1998, %v1994
        %v2159 = vpack.c.b16 %v1999, %v1995
        %v2160 = vpack.c.b16 %v2000, %v1996
        %v2161 = vpack.c.b16 %v2001, %v1997
        %v2162 = vpack.c.b16 %v2006, %v2002
        %v2163 = vpack.c.b16 %v2007, %v2003
        %v2164 = vpack.c.b16 %v2008, %v2004
        %v2165 = vpack.c.b16 %v2009, %v2005
        %v2166 = vpack.c.b16 %v2014, %v2010
        %v2167 = vpack.c.b16 %v2015, %v2011
        %v2168 = vpack.c.b16 %v2016, %v2012
        %v2169 = vpack.c.b16 %v2017, %v2013
        %v2170 = vpack.c.b16 %v2022, %v2018
        %v2171 = vpack.c.b16 %v2023, %v2019
        %v2172 = vpack.c.b16 %v2024, %v2020
        %v2173 = vpack.c.b16 %v2025, %v2021
        %v2174 = vpack.c.b16 %v2030, %v2026
        %v2175 = vpack.c.b16 %v2031, %v2027
        %v2176 = vpack.c.b16 %v2032, %v2028
        %v2177 = vpack.c.b16 %v2033, %v2029
        %v2178 = vpack.c.b16 %v2038, %v2034
        %v2179 = vpack.c.b16 %v2039, %v2035
        %v2180 = vpack.c.b16 %v2040, %v2036
        %v2181 = vpack.c.b16 %v2041, %v2037
        %v2182 = vpack.c.b16 %v2046, %v2042
        %v2183 = vpack.c.b16 %v2047, %v2043
        %v2184 = vpack.c.b16 %v2048, %v2044
        %v2185 = vpack.c.b16 %v2049, %v2045
        %v2186 = vpack.c.b16 %v2054, %v2050
        %v2187 = vpack.c.b16 %v2055, %v2051
        %v2188 = vpack.c.b16 %v2056, %v2052
        %v2189 = vpack.c.b16 %v2057, %v2053
        %v2190 = vpack.c.b16 %v2062, %v2058
        %v2191 = vpack.c.b16 %v2063, %v2059
        %v2192 = vpack.c.b16 %v2064, %v2060
        %v2193 = vpack.c.b16 %v2065, %v2061
        %v2194 = vpack.c.b16 %v2070, %v2066
        %v2195 = vpack.c.b16 %v2071, %v2067
        %v2196 = vpack.c.b16 %v2072, %v2068
        %v2197 = vpack.c.b16 %v2073, %v2069
        %v2198 = vpack.c.b16 %v2078, %v2074
        %v2199 = vpack.c.b16 %v2079, %v2075
        %v2200 = vpack.c.b16 %v2080, %v2076
        %v2201 = vpack.c.b16 %v2081, %v2077
        %v2202 = vpack.c.b16 %v2086, %v2082
        %v2203 = vpack.c.b16 %v2087, %v2083
        %v2204 = vpack.c.b16 %v2088, %v2084
        %v2205 = vpack.c.b16 %v2089, %v2085
        %v2206 = vpack.c.b16 %v2094, %v2090
        %v2207 = vpack.c.b16 %v2095, %v2091
        %v2208 = vpack.c.b16 %v2096, %v2092
        %v2209 = vpack.c.b16 %v2097, %v2093
        %v2210 = vpack.c.b16 %v2102, %v2098
        %v2211 = vpack.c.b16 %v2103, %v2099
        %v2212 = vpack.c.b16 %v2104, %v2100
        %v2213 = vpack.c.b16 %v2105, %v2101
        %v2214 = vpack.c.b16 %v2110, %v2106
        %v2215 = vpack.c.b16 %v2111, %v2107
        %v2216 = vpack.c.b16 %v2112, %v2108
        %v2217 = vpack.c.b16 %v2113, %v2109
        %v2218 = vpack.c.b16 %v2118, %v2114
        %v2219 = vpack.c.b16 %v2119, %v2115
        %v2220 = vpack.c.b16 %v2120, %v2116
        %v2221 = vpack.c.b16 %v2121, %v2117
        %v2222 = vpack.c.b16 %v2126, %v2122
        %v2223 = vpack.c.b16 %v2127, %v2123
        %v2224 = vpack.c.b16 %v2128, %v2124
        %v2225 = vpack.c.b16 %v2129, %v2125
        %2322 = vmatprep.subr.bf16.mxu0 %v2159
        %2323 = vmatpush1.bf16.msra.mxu0 %v2158
        %2324 = vmatprep.subr.bf16.mxu0 %v2155
        %2325 = vmatpush1.bf16.msra.mxu0 %v2154
        %2326 = vmatprep.subr.bf16.mxu0 %v2151
        %2327 = vmatpush1.bf16.msra.mxu0 %v2150
        %2328 = vmatprep.subr.bf16.mxu0 %v2147
        %2329 = vmatpush1.bf16.msra.mxu0 %v2146
        %2330 = vmatprep.subr.bf16.mxu0 %v2143
        %2331 = vmatpush1.bf16.msra.mxu0 %v2142
        %2332 = vmatprep.subr.bf16.mxu0 %v2139
        %2333 = vmatpush1.bf16.msra.mxu0 %v2138
        %2334 = vmatprep.subr.bf16.mxu0 %v2135
        %2335 = vmatpush1.bf16.msra.mxu0 %v2134
        %2336 = vmatprep.subr.bf16.mxu0 %v2131
        %2337 = vmatpush1.bf16.msra.mxu0 %v2130
        %2338 = vmatprep.subr.bf16.mxu0 %v2191
        %2339 = vmatpush2.bf16.msra.mxu0 %v2190
        %2340 = vmatprep.subr.bf16.mxu0 %v2187
        %2341 = vmatpush2.bf16.msra.mxu0 %v2186
        %2342 = vmatprep.subr.bf16.mxu0 %v2183
        %2343 = vmatpush2.bf16.msra.mxu0 %v2182
        %2344 = vmatprep.subr.bf16.mxu0 %v2179
        %2345 = vmatpush2.bf16.msra.mxu0 %v2178
        %2346 = vmatprep.subr.bf16.mxu0 %v2175
        %2347 = vmatpush2.bf16.msra.mxu0 %v2174
        %2348 = vmatprep.subr.bf16.mxu0 %v2171
        %2349 = vmatpush2.bf16.msra.mxu0 %v2170
        %2350 = vmatprep.subr.bf16.mxu0 %v2167
        %2351 = vmatpush2.bf16.msra.mxu0 %v2166
        %2352 = vmatprep.subr.bf16.mxu0 %v2163
        %2353 = vmatpush2.bf16.msra.mxu0 %v2162
        %2354 = vmatprep.mubr.bf16.mxu0 %v1831
        %2355 = vmatmul.mubr.bf16.gmra.mxu0 %v1824
        %v2356 = vpop.f32.mrf.mxu0
        %v2357 = vadd.f32 0.0, %v2356
        %v2358 = vpop.f32.mrf.mxu0
        %v2359 = vadd.f32 0.0, %v2358
        %v2360 = vpop.f32.mrf.mxu0
        %v2361 = vpop.f32.mrf.mxu0
        %2362 = vdwg.mxu0
        %2363 = vmatprep.subr.bf16.mxu0 %v2223
        %2364 = vmatpush1.bf16.msra.mxu0 %v2222
        %2365 = vmatprep.subr.bf16.mxu0 %v2219
        %2366 = vmatpush1.bf16.msra.mxu0 %v2218
        %2367 = vmatprep.subr.bf16.mxu0 %v2215
        %2368 = vmatpush1.bf16.msra.mxu0 %v2214
        %2369 = vmatprep.subr.bf16.mxu0 %v2211
        %2370 = vmatpush1.bf16.msra.mxu0 %v2210
        %2371 = vmatprep.subr.bf16.mxu0 %v2207
        %2372 = vmatpush1.bf16.msra.mxu0 %v2206
        %2373 = vmatprep.subr.bf16.mxu0 %v2203
        %2374 = vmatpush1.bf16.msra.mxu0 %v2202
        %2375 = vmatprep.subr.bf16.mxu0 %v2199
        %2376 = vmatpush1.bf16.msra.mxu0 %v2198
        %2377 = vmatprep.subr.bf16.mxu0 %v2195
        %2378 = vmatpush1.bf16.msra.mxu0 %v2194
        %2379 = vmatprep.subr.bf16.mxu0 0
        %2380 = vmatpush2.bf16.msra.mxu0 0
        %2381 = vmatprep.subr.bf16.mxu0 0
        %2382 = vmatpush2.bf16.msra.mxu0 0
        %2383 = vmatprep.subr.bf16.mxu0 0
        %2384 = vmatpush2.bf16.msra.mxu0 0
        %2385 = vmatprep.subr.bf16.mxu0 0
        %2386 = vmatpush2.bf16.msra.mxu0 0
        %2387 = vmatprep.subr.bf16.mxu0 0
        %2388 = vmatpush2.bf16.msra.mxu0 0
        %2389 = vmatprep.subr.bf16.mxu0 0
        %2390 = vmatpush2.bf16.msra.mxu0 0
        %2391 = vmatprep.subr.bf16.mxu0 0
        %2392 = vmatpush2.bf16.msra.mxu0 0
        %2393 = vmatprep.subr.bf16.mxu0 0
        %2394 = vmatpush2.bf16.msra.mxu0 0
        %2395 = vmatprep.mubr.bf16.mxu0 0
        %2396 = vmatmul.mubr.bf16.gmra.mxu0 %v1838
        %v2397 = vpop.f32.mrf.mxu0
        %v2398 = vadd.f32 %v2357, %v2397
        %v2399 = vpop.f32.mrf.mxu0
        %v2400 = vadd.f32 %v2359, %v2399
        %v2401 = vpop.f32.mrf.mxu0
        %v2402 = vpop.f32.mrf.mxu0
        %2403 = vdwg.mxu0
        %2404 = vmatprep.subr.bf16.mxu0 %v2161
        %2405 = vmatpush1.bf16.msra.mxu0 %v2160
        %2406 = vmatprep.subr.bf16.mxu0 %v2157
        %2407 = vmatpush1.bf16.msra.mxu0 %v2156
        %2408 = vmatprep.subr.bf16.mxu0 %v2153
        %2409 = vmatpush1.bf16.msra.mxu0 %v2152
        %2410 = vmatprep.subr.bf16.mxu0 %v2149
        %2411 = vmatpush1.bf16.msra.mxu0 %v2148
        %2412 = vmatprep.subr.bf16.mxu0 %v2145
        %2413 = vmatpush1.bf16.msra.mxu0 %v2144
        %2414 = vmatprep.subr.bf16.mxu0 %v2141
        %2415 = vmatpush1.bf16.msra.mxu0 %v2140
        %2416 = vmatprep.subr.bf16.mxu0 %v2137
        %2417 = vmatpush1.bf16.msra.mxu0 %v2136
        %2418 = vmatprep.subr.bf16.mxu0 %v2133
        %2419 = vmatpush1.bf16.msra.mxu0 %v2132
        %2420 = vmatprep.subr.bf16.mxu0 %v2193
        %2421 = vmatpush2.bf16.msra.mxu0 %v2192
        %2422 = vmatprep.subr.bf16.mxu0 %v2189
        %2423 = vmatpush2.bf16.msra.mxu0 %v2188
        %2424 = vmatprep.subr.bf16.mxu0 %v2185
        %2425 = vmatpush2.bf16.msra.mxu0 %v2184
        %2426 = vmatprep.subr.bf16.mxu0 %v2181
        %2427 = vmatpush2.bf16.msra.mxu0 %v2180
        %2428 = vmatprep.subr.bf16.mxu0 %v2177
        %2429 = vmatpush2.bf16.msra.mxu0 %v2176
        %2430 = vmatprep.subr.bf16.mxu0 %v2173
        %2431 = vmatpush2.bf16.msra.mxu0 %v2172
        %2432 = vmatprep.subr.bf16.mxu0 %v2169
        %2433 = vmatpush2.bf16.msra.mxu0 %v2168
        %2434 = vmatprep.subr.bf16.mxu0 %v2165
        %2435 = vmatpush2.bf16.msra.mxu0 %v2164
        %2436 = vmatprep.mubr.bf16.mxu0 %v1831
        %2437 = vmatmul.mubr.bf16.gmra.mxu0 %v1824
        %v2438 = vpop.f32.mrf.mxu0
        %v2439 = vadd.f32 0.0, %v2438
        %v2440 = vpop.f32.mrf.mxu0
        %v2441 = vadd.f32 0.0, %v2440
        %v2442 = vpop.f32.mrf.mxu0
        %v2443 = vpop.f32.mrf.mxu0
        %2444 = vdwg.mxu0
        %2445 = vmatprep.subr.bf16.mxu0 %v2225
        %2446 = vmatpush1.bf16.msra.mxu0 %v2224
        %2447 = vmatprep.subr.bf16.mxu0 %v2221
        %2448 = vmatpush1.bf16.msra.mxu0 %v2220
        %2449 = vmatprep.subr.bf16.mxu0 %v2217
        %2450 = vmatpush1.bf16.msra.mxu0 %v2216
        %2451 = vmatprep.subr.bf16.mxu0 %v2213
        %2452 = vmatpush1.bf16.msra.mxu0 %v2212
        %2453 = vmatprep.subr.bf16.mxu0 %v2209
        %2454 = vmatpush1.bf16.msra.mxu0 %v2208
        %2455 = vmatprep.subr.bf16.mxu0 %v2205
        %2456 = vmatpush1.bf16.msra.mxu0 %v2204
        %2457 = vmatprep.subr.bf16.mxu0 %v2201
        %2458 = vmatpush1.bf16.msra.mxu0 %v2200
        %2459 = vmatprep.subr.bf16.mxu0 %v2197
        %2460 = vmatpush1.bf16.msra.mxu0 %v2196
        %2461 = vmatprep.subr.bf16.mxu0 0
        %2462 = vmatpush2.bf16.msra.mxu0 0
        %2463 = vmatprep.subr.bf16.mxu0 0
        %2464 = vmatpush2.bf16.msra.mxu0 0
        %2465 = vmatprep.subr.bf16.mxu0 0
        %2466 = vmatpush2.bf16.msra.mxu0 0
        %2467 = vmatprep.subr.bf16.mxu0 0
        %2468 = vmatpush2.bf16.msra.mxu0 0
        %2469 = vmatprep.subr.bf16.mxu0 0
        %2470 = vmatpush2.bf16.msra.mxu0 0
        %2471 = vmatprep.subr.bf16.mxu0 0
        %2472 = vmatpush2.bf16.msra.mxu0 0
        %2473 = vmatprep.subr.bf16.mxu0 0
        %2474 = vmatpush2.bf16.msra.mxu0 0
        %2475 = vmatprep.subr.bf16.mxu0 0
        %2476 = vmatpush2.bf16.msra.mxu0 0
        %2477 = vmatprep.mubr.bf16.mxu0 0
        %2478 = vmatmul.mubr.bf16.gmra.mxu0 %v1838
        %v2479 = vpop.f32.mrf.mxu0
        %v2480 = vadd.f32 %v2439, %v2479
        %v2481 = vpop.f32.mrf.mxu0
        %v2482 = vadd.f32 %v2441, %v2481
        %v2483 = vpop.f32.mrf.mxu0
        %v2484 = vpop.f32.mrf.mxu0
        %2485 = vdwg.mxu0
        %v2486 = vadd.f32 %v1623, %v2398
        %v2487 = vadd.f32 %v1625, %v2400
        %v2488 = vadd.f32 %v1705, %v2480
        %v2489 = vadd.f32 %v1707, %v2482
        %2490 = vmatprep.subr.bf16.mxu0 %v729
        %2491 = vmatpush1.bf16.msra.mxu0 %v728
        %2492 = vmatprep.subr.bf16.mxu0 %v725
        %2493 = vmatpush1.bf16.msra.mxu0 %v724
        %2494 = vmatprep.subr.bf16.mxu0 %v721
        %2495 = vmatpush1.bf16.msra.mxu0 %v720
        %2496 = vmatprep.subr.bf16.mxu0 %v717
        %2497 = vmatpush1.bf16.msra.mxu0 %v716
        %2498 = vmatprep.subr.bf16.mxu0 %v713
        %2499 = vmatpush1.bf16.msra.mxu0 %v712
        %2500 = vmatprep.subr.bf16.mxu0 %v709
        %2501 = vmatpush1.bf16.msra.mxu0 %v708
        %2502 = vmatprep.subr.bf16.mxu0 %v705
        %2503 = vmatpush1.bf16.msra.mxu0 %v704
        %2504 = vmatprep.subr.bf16.mxu0 %v701
        %2505 = vmatpush1.bf16.msra.mxu0 %v700
        %2506 = vmatprep.subr.bf16.mxu0 %v761
        %2507 = vmatpush2.bf16.msra.mxu0 %v760
        %2508 = vmatprep.subr.bf16.mxu0 %v757
        %2509 = vmatpush2.bf16.msra.mxu0 %v756
        %2510 = vmatprep.subr.bf16.mxu0 %v753
        %2511 = vmatpush2.bf16.msra.mxu0 %v752
        %2512 = vmatprep.subr.bf16.mxu0 %v749
        %2513 = vmatpush2.bf16.msra.mxu0 %v748
        %2514 = vmatprep.subr.bf16.mxu0 %v745
        %2515 = vmatpush2.bf16.msra.mxu0 %v744
        %2516 = vmatprep.subr.bf16.mxu0 %v741
        %2517 = vmatpush2.bf16.msra.mxu0 %v740
        %2518 = vmatprep.subr.bf16.mxu0 %v737
        %2519 = vmatpush2.bf16.msra.mxu0 %v736
        %2520 = vmatprep.subr.bf16.mxu0 %v733
        %2521 = vmatpush2.bf16.msra.mxu0 %v732
        %2522 = vmatprep.mubr.bf16.mxu0 %v1831
        %2523 = vmatmul.mubr.bf16.gmra.mxu0 %v1824
        %v2524 = vpop.f32.mrf.mxu0
        %v2525 = vadd.f32 0.0, %v2524
        %v2526 = vpop.f32.mrf.mxu0
        %v2527 = vadd.f32 0.0, %v2526
        %v2528 = vpop.f32.mrf.mxu0
        %v2529 = vpop.f32.mrf.mxu0
        %2530 = vdwg.mxu0
        %2531 = vmatprep.subr.bf16.mxu0 %v793
        %2532 = vmatpush1.bf16.msra.mxu0 %v792
        %2533 = vmatprep.subr.bf16.mxu0 %v789
        %2534 = vmatpush1.bf16.msra.mxu0 %v788
        %2535 = vmatprep.subr.bf16.mxu0 %v785
        %2536 = vmatpush1.bf16.msra.mxu0 %v784
        %2537 = vmatprep.subr.bf16.mxu0 %v781
        %2538 = vmatpush1.bf16.msra.mxu0 %v780
        %2539 = vmatprep.subr.bf16.mxu0 %v777
        %2540 = vmatpush1.bf16.msra.mxu0 %v776
        %2541 = vmatprep.subr.bf16.mxu0 %v773
        %2542 = vmatpush1.bf16.msra.mxu0 %v772
        %2543 = vmatprep.subr.bf16.mxu0 %v769
        %2544 = vmatpush1.bf16.msra.mxu0 %v768
        %2545 = vmatprep.subr.bf16.mxu0 %v765
        %2546 = vmatpush1.bf16.msra.mxu0 %v764
        %2547 = vmatprep.subr.bf16.mxu0 0
        %2548 = vmatpush2.bf16.msra.mxu0 0
        %2549 = vmatprep.subr.bf16.mxu0 0
        %2550 = vmatpush2.bf16.msra.mxu0 0
        %2551 = vmatprep.subr.bf16.mxu0 0
        %2552 = vmatpush2.bf16.msra.mxu0 0
        %2553 = vmatprep.subr.bf16.mxu0 0
        %2554 = vmatpush2.bf16.msra.mxu0 0
        %2555 = vmatprep.subr.bf16.mxu0 0
        %2556 = vmatpush2.bf16.msra.mxu0 0
        %2557 = vmatprep.subr.bf16.mxu0 0
        %2558 = vmatpush2.bf16.msra.mxu0 0
        %2559 = vmatprep.subr.bf16.mxu0 0
        %2560 = vmatpush2.bf16.msra.mxu0 0
        %2561 = vmatprep.subr.bf16.mxu0 0
        %2562 = vmatpush2.bf16.msra.mxu0 0
        %2563 = vmatprep.mubr.bf16.mxu0 0
        %2564 = vmatmul.mubr.bf16.gmra.mxu0 %v1838
        %v2565 = vpop.f32.mrf.mxu0
        %v2566 = vadd.f32 %v2525, %v2565
        %v2567 = vpop.f32.mrf.mxu0
        %v2568 = vadd.f32 %v2527, %v2567
        %v2569 = vpop.f32.mrf.mxu0
        %v2570 = vpop.f32.mrf.mxu0
        %2571 = vdwg.mxu0
        %2572 = vmatprep.subr.bf16.mxu0 %v731
        %2573 = vmatpush1.bf16.msra.mxu0 %v730
        %2574 = vmatprep.subr.bf16.mxu0 %v727
        %2575 = vmatpush1.bf16.msra.mxu0 %v726
        %2576 = vmatprep.subr.bf16.mxu0 %v723
        %2577 = vmatpush1.bf16.msra.mxu0 %v722
        %2578 = vmatprep.subr.bf16.mxu0 %v719
        %2579 = vmatpush1.bf16.msra.mxu0 %v718
        %2580 = vmatprep.subr.bf16.mxu0 %v715
        %2581 = vmatpush1.bf16.msra.mxu0 %v714
        %2582 = vmatprep.subr.bf16.mxu0 %v711
        %2583 = vmatpush1.bf16.msra.mxu0 %v710
        %2584 = vmatprep.subr.bf16.mxu0 %v707
        %2585 = vmatpush1.bf16.msra.mxu0 %v706
        %2586 = vmatprep.subr.bf16.mxu0 %v703
        %2587 = vmatpush1.bf16.msra.mxu0 %v702
        %2588 = vmatprep.subr.bf16.mxu0 %v763
        %2589 = vmatpush2.bf16.msra.mxu0 %v762
        %2590 = vmatprep.subr.bf16.mxu0 %v759
        %2591 = vmatpush2.bf16.msra.mxu0 %v758
        %2592 = vmatprep.subr.bf16.mxu0 %v755
        %2593 = vmatpush2.bf16.msra.mxu0 %v754
        %2594 = vmatprep.subr.bf16.mxu0 %v751
        %2595 = vmatpush2.bf16.msra.mxu0 %v750
        %2596 = vmatprep.subr.bf16.mxu0 %v747
        %2597 = vmatpush2.bf16.msra.mxu0 %v746
        %2598 = vmatprep.subr.bf16.mxu0 %v743
        %2599 = vmatpush2.bf16.msra.mxu0 %v742
        %2600 = vmatprep.subr.bf16.mxu0 %v739
        %2601 = vmatpush2.bf16.msra.mxu0 %v738
        %2602 = vmatprep.subr.bf16.mxu0 %v735
        %2603 = vmatpush2.bf16.msra.mxu0 %v734
        %2604 = vmatprep.mubr.bf16.mxu0 %v1831
        %2605 = vmatmul.mubr.bf16.gmra.mxu0 %v1824
        %v2606 = vpop.f32.mrf.mxu0
        %v2607 = vadd.f32 0.0, %v2606
        %v2608 = vpop.f32.mrf.mxu0
        %v2609 = vadd.f32 0.0, %v2608
        %v2610 = vpop.f32.mrf.mxu0
        %v2611 = vpop.f32.mrf.mxu0
        %2612 = vdwg.mxu0
        %2613 = vmatprep.subr.bf16.mxu0 %v795
        %2614 = vmatpush1.bf16.msra.mxu0 %v794
        %2615 = vmatprep.subr.bf16.mxu0 %v791
        %2616 = vmatpush1.bf16.msra.mxu0 %v790
        %2617 = vmatprep.subr.bf16.mxu0 %v787
        %2618 = vmatpush1.bf16.msra.mxu0 %v786
        %2619 = vmatprep.subr.bf16.mxu0 %v783
        %2620 = vmatpush1.bf16.msra.mxu0 %v782
        %2621 = vmatprep.subr.bf16.mxu0 %v779
        %2622 = vmatpush1.bf16.msra.mxu0 %v778
        %2623 = vmatprep.subr.bf16.mxu0 %v775
        %2624 = vmatpush1.bf16.msra.mxu0 %v774
        %2625 = vmatprep.subr.bf16.mxu0 %v771
        %2626 = vmatpush1.bf16.msra.mxu0 %v770
        %2627 = vmatprep.subr.bf16.mxu0 %v767
        %2628 = vmatpush1.bf16.msra.mxu0 %v766
        %2629 = vmatprep.subr.bf16.mxu0 0
        %2630 = vmatpush2.bf16.msra.mxu0 0
        %2631 = vmatprep.subr.bf16.mxu0 0
        %2632 = vmatpush2.bf16.msra.mxu0 0
        %2633 = vmatprep.subr.bf16.mxu0 0
        %2634 = vmatpush2.bf16.msra.mxu0 0
        %2635 = vmatprep.subr.bf16.mxu0 0
        %2636 = vmatpush2.bf16.msra.mxu0 0
        %2637 = vmatprep.subr.bf16.mxu0 0
        %2638 = vmatpush2.bf16.msra.mxu0 0
        %2639 = vmatprep.subr.bf16.mxu0 0
        %2640 = vmatpush2.bf16.msra.mxu0 0
        %2641 = vmatprep.subr.bf16.mxu0 0
        %2642 = vmatpush2.bf16.msra.mxu0 0
        %2643 = vmatprep.subr.bf16.mxu0 0
        %2644 = vmatpush2.bf16.msra.mxu0 0
        %2645 = vmatprep.mubr.bf16.mxu0 0
        %2646 = vmatmul.mubr.bf16.gmra.mxu0 %v1838
        %v2647 = vpop.f32.mrf.mxu0
        %v2648 = vadd.f32 %v2607, %v2647
        %v2649 = vpop.f32.mrf.mxu0
        %v2650 = vadd.f32 %v2609, %v2649
        %v2651 = vpop.f32.mrf.mxu0
        %v2652 = vpop.f32.mrf.mxu0
        %2653 = vdwg.mxu0
        %2654 = vmatprep.subr.bf16.mxu0 %v1384
        %2655 = vmatpush1.bf16.msra.mxu0 %v1383
        %2656 = vmatprep.subr.bf16.mxu0 %v1380
        %2657 = vmatpush1.bf16.msra.mxu0 %v1379
        %2658 = vmatprep.subr.bf16.mxu0 %v1376
        %2659 = vmatpush1.bf16.msra.mxu0 %v1375
        %2660 = vmatprep.subr.bf16.mxu0 %v1372
        %2661 = vmatpush1.bf16.msra.mxu0 %v1371
        %2662 = vmatprep.subr.bf16.mxu0 %v1368
        %2663 = vmatpush1.bf16.msra.mxu0 %v1367
        %2664 = vmatprep.subr.bf16.mxu0 %v1364
        %2665 = vmatpush1.bf16.msra.mxu0 %v1363
        %2666 = vmatprep.subr.bf16.mxu0 %v1360
        %2667 = vmatpush1.bf16.msra.mxu0 %v1359
        %2668 = vmatprep.subr.bf16.mxu0 %v1356
        %2669 = vmatpush1.bf16.msra.mxu0 %v1355
        %2670 = vmatprep.subr.bf16.mxu0 %v1416
        %2671 = vmatpush2.bf16.msra.mxu0 %v1415
        %2672 = vmatprep.subr.bf16.mxu0 %v1412
        %2673 = vmatpush2.bf16.msra.mxu0 %v1411
        %2674 = vmatprep.subr.bf16.mxu0 %v1408
        %2675 = vmatpush2.bf16.msra.mxu0 %v1407
        %2676 = vmatprep.subr.bf16.mxu0 %v1404
        %2677 = vmatpush2.bf16.msra.mxu0 %v1403
        %2678 = vmatprep.subr.bf16.mxu0 %v1400
        %2679 = vmatpush2.bf16.msra.mxu0 %v1399
        %2680 = vmatprep.subr.bf16.mxu0 %v1396
        %2681 = vmatpush2.bf16.msra.mxu0 %v1395
        %2682 = vmatprep.subr.bf16.mxu0 %v1392
        %2683 = vmatpush2.bf16.msra.mxu0 %v1391
        %2684 = vmatprep.subr.bf16.mxu0 %v1388
        %2685 = vmatpush2.bf16.msra.mxu0 %v1387
        %2686 = vmatprep.mubr.bf16.mxu0 %v407
        %2687 = vmatmul.mubr.bf16.gmra.mxu0 %v406
        %v2688 = vpop.f32.mrf.mxu0
        %v2689 = vadd.f32 %v2566, %v2688
        %v2690 = vpop.f32.mrf.mxu0
        %v2691 = vadd.f32 %v2568, %v2690
        %v2692 = vpop.f32.mrf.mxu0
        %v2693 = vpop.f32.mrf.mxu0
        %2694 = vdwg.mxu0
        %2695 = vmatprep.subr.bf16.mxu0 %v1448
        %2696 = vmatpush1.bf16.msra.mxu0 %v1447
        %2697 = vmatprep.subr.bf16.mxu0 %v1444
        %2698 = vmatpush1.bf16.msra.mxu0 %v1443
        %2699 = vmatprep.subr.bf16.mxu0 %v1440
        %2700 = vmatpush1.bf16.msra.mxu0 %v1439
        %2701 = vmatprep.subr.bf16.mxu0 %v1436
        %2702 = vmatpush1.bf16.msra.mxu0 %v1435
        %2703 = vmatprep.subr.bf16.mxu0 %v1432
        %2704 = vmatpush1.bf16.msra.mxu0 %v1431
        %2705 = vmatprep.subr.bf16.mxu0 %v1428
        %2706 = vmatpush1.bf16.msra.mxu0 %v1427
        %2707 = vmatprep.subr.bf16.mxu0 %v1424
        %2708 = vmatpush1.bf16.msra.mxu0 %v1423
        %2709 = vmatprep.subr.bf16.mxu0 %v1420
        %2710 = vmatpush1.bf16.msra.mxu0 %v1419
        %2711 = vmatprep.subr.bf16.mxu0 0
        %2712 = vmatpush2.bf16.msra.mxu0 0
        %2713 = vmatprep.subr.bf16.mxu0 0
        %2714 = vmatpush2.bf16.msra.mxu0 0
        %2715 = vmatprep.subr.bf16.mxu0 0
        %2716 = vmatpush2.bf16.msra.mxu0 0
        %2717 = vmatprep.subr.bf16.mxu0 0
        %2718 = vmatpush2.bf16.msra.mxu0 0
        %2719 = vmatprep.subr.bf16.mxu0 0
        %2720 = vmatpush2.bf16.msra.mxu0 0
        %2721 = vmatprep.subr.bf16.mxu0 0
        %2722 = vmatpush2.bf16.msra.mxu0 0
        %2723 = vmatprep.subr.bf16.mxu0 0
        %2724 = vmatpush2.bf16.msra.mxu0 0
        %2725 = vmatprep.subr.bf16.mxu0 0
        %2726 = vmatpush2.bf16.msra.mxu0 0
        %2727 = vmatprep.mubr.bf16.mxu0 0
        %2728 = vmatmul.mubr.bf16.gmra.mxu0 %v408
        %v2729 = vpop.f32.mrf.mxu0
        %v2730 = vadd.f32 %v2689, %v2729
        %v2731 = vpop.f32.mrf.mxu0
        %v2732 = vadd.f32 %v2691, %v2731
        %v2733 = vpop.f32.mrf.mxu0
        %v2734 = vpop.f32.mrf.mxu0
        %2735 = vdwg.mxu0
        %2736 = vmatprep.subr.bf16.mxu0 %v1386
        %2737 = vmatpush1.bf16.msra.mxu0 %v1385
        %2738 = vmatprep.subr.bf16.mxu0 %v1382
        %2739 = vmatpush1.bf16.msra.mxu0 %v1381
        %2740 = vmatprep.subr.bf16.mxu0 %v1378
        %2741 = vmatpush1.bf16.msra.mxu0 %v1377
        %2742 = vmatprep.subr.bf16.mxu0 %v1374
        %2743 = vmatpush1.bf16.msra.mxu0 %v1373
        %2744 = vmatprep.subr.bf16.mxu0 %v1370
        %2745 = vmatpush1.bf16.msra.mxu0 %v1369
        %2746 = vmatprep.subr.bf16.mxu0 %v1366
        %2747 = vmatpush1.bf16.msra.mxu0 %v1365
        %2748 = vmatprep.subr.bf16.mxu0 %v1362
        %2749 = vmatpush1.bf16.msra.mxu0 %v1361
        %2750 = vmatprep.subr.bf16.mxu0 %v1358
        %2751 = vmatpush1.bf16.msra.mxu0 %v1357
        %2752 = vmatprep.subr.bf16.mxu0 %v1418
        %2753 = vmatpush2.bf16.msra.mxu0 %v1417
        %2754 = vmatprep.subr.bf16.mxu0 %v1414
        %2755 = vmatpush2.bf16.msra.mxu0 %v1413
        %2756 = vmatprep.subr.bf16.mxu0 %v1410
        %2757 = vmatpush2.bf16.msra.mxu0 %v1409
        %2758 = vmatprep.subr.bf16.mxu0 %v1406
        %2759 = vmatpush2.bf16.msra.mxu0 %v1405
        %2760 = vmatprep.subr.bf16.mxu0 %v1402
        %2761 = vmatpush2.bf16.msra.mxu0 %v1401
        %2762 = vmatprep.subr.bf16.mxu0 %v1398
        %2763 = vmatpush2.bf16.msra.mxu0 %v1397
        %2764 = vmatprep.subr.bf16.mxu0 %v1394
        %2765 = vmatpush2.bf16.msra.mxu0 %v1393
        %2766 = vmatprep.subr.bf16.mxu0 %v1390
        %2767 = vmatpush2.bf16.msra.mxu0 %v1389
        %2768 = vmatprep.mubr.bf16.mxu0 %v407
        %2769 = vmatmul.mubr.bf16.gmra.mxu0 %v406
        %v2770 = vpop.f32.mrf.mxu0
        %v2771 = vadd.f32 %v2648, %v2770
        %v2772 = vpop.f32.mrf.mxu0
        %v2773 = vadd.f32 %v2650, %v2772
        %v2774 = vpop.f32.mrf.mxu0
        %v2775 = vpop.f32.mrf.mxu0
        %2776 = vdwg.mxu0
        %2777 = vmatprep.subr.bf16.mxu0 %v1450
        %2778 = vmatpush1.bf16.msra.mxu0 %v1449
        %2779 = vmatprep.subr.bf16.mxu0 %v1446
        %2780 = vmatpush1.bf16.msra.mxu0 %v1445
        %2781 = vmatprep.subr.bf16.mxu0 %v1442
        %2782 = vmatpush1.bf16.msra.mxu0 %v1441
        %2783 = vmatprep.subr.bf16.mxu0 %v1438
        %2784 = vmatpush1.bf16.msra.mxu0 %v1437
        %2785 = vmatprep.subr.bf16.mxu0 %v1434
        %2786 = vmatpush1.bf16.msra.mxu0 %v1433
        %2787 = vmatprep.subr.bf16.mxu0 %v1430
        %2788 = vmatpush1.bf16.msra.mxu0 %v1429
        %2789 = vmatprep.subr.bf16.mxu0 %v1426
        %2790 = vmatpush1.bf16.msra.mxu0 %v1425
        %2791 = vmatprep.subr.bf16.mxu0 %v1422
        %2792 = vmatpush1.bf16.msra.mxu0 %v1421
        %2793 = vmatprep.subr.bf16.mxu0 0
        %2794 = vmatpush2.bf16.msra.mxu0 0
        %2795 = vmatprep.subr.bf16.mxu0 0
        %2796 = vmatpush2.bf16.msra.mxu0 0
        %2797 = vmatprep.subr.bf16.mxu0 0
        %2798 = vmatpush2.bf16.msra.mxu0 0
        %2799 = vmatprep.subr.bf16.mxu0 0
        %2800 = vmatpush2.bf16.msra.mxu0 0
        %2801 = vmatprep.subr.bf16.mxu0 0
        %2802 = vmatpush2.bf16.msra.mxu0 0
        %2803 = vmatprep.subr.bf16.mxu0 0
        %2804 = vmatpush2.bf16.msra.mxu0 0
        %2805 = vmatprep.subr.bf16.mxu0 0
        %2806 = vmatpush2.bf16.msra.mxu0 0
        %2807 = vmatprep.subr.bf16.mxu0 0
        %2808 = vmatpush2.bf16.msra.mxu0 0
        %2809 = vmatprep.mubr.bf16.mxu0 0
        %2810 = vmatmul.mubr.bf16.gmra.mxu0 %v408
        %v2811 = vpop.f32.mrf.mxu0
        %v2812 = vadd.f32 %v2771, %v2811
        %v2813 = vpop.f32.mrf.mxu0
        %v2814 = vadd.f32 %v2773, %v2813
        %v2815 = vpop.f32.mrf.mxu0
        %v2816 = vpop.f32.mrf.mxu0
        %2817 = vdwg.mxu0
        %v2818 = vld [vmem:[%s301] sm:$0x77]
        %v2819 = vld [vmem:[%s301 + $0x8] sm:$0x7]
        %s2820 = scalar_lea.vmem [#allocation2], 2304
        %v2821 = vld [vmem:[%s2820] sm:$0xff]
        %v2822 = vld [vmem:[%s2820 + $0x8] sm:$0xff]
        %v2823 = vld [vmem:[%s2820 + $0x10] sm:$0xff]
        %v2824 = vld [vmem:[%s2820 + $0x18] sm:$0xff]
        %v2825 = vld [vmem:[%s2820 + $0x20] sm:$0xff]
        %v2826 = vld [vmem:[%s2820 + $0x28] sm:$0xff]
        %v2827 = vld [vmem:[%s2820 + $0x30] sm:$0xff]
        %v2828 = vld [vmem:[%s2820 + $0x38] sm:$0xff]
        %v2829 = vld [vmem:[%s2820 + $0x40] sm:$0xff]
        %v2830 = vld [vmem:[%s2820 + $0x48] sm:$0xff]
        %v2831 = vld [vmem:[%s2820 + $0x50] sm:$0xff]
        %v2832 = vld [vmem:[%s2820 + $0x58] sm:$0xff]
        %v2833 = vld [vmem:[%s2820 + $0x60] sm:$0xff]
        %v2834 = vld [vmem:[%s2820 + $0x68] sm:$0xff]
        %v2835 = vld [vmem:[%s2820 + $0x70] sm:$0xff]
        %v2836 = vld [vmem:[%s2820 + $0x78] sm:$0xff]
        %v2837 = vld [vmem:[%s2820 + $0x80] sm:$0xff]
        %v2838 = vld [vmem:[%s2820 + $0x88] sm:$0xff]
        %v2839 = vld [vmem:[%s2820 + $0x90] sm:$0xff]
        %v2840 = vld [vmem:[%s2820 + $0x98] sm:$0xff]
        %v2841 = vld [vmem:[%s2820 + $0xa0] sm:$0xff]
        %v2842 = vld [vmem:[%s2820 + $0xa8] sm:$0xff]
        %v2843 = vld [vmem:[%s2820 + $0xb0] sm:$0xff]
        %v2844 = vld [vmem:[%s2820 + $0xb8] sm:$0xff]
        %v2845 = vld [vmem:[%s2820 + $0xc0] sm:$0xff]
        %v2846 = vld [vmem:[%s2820 + $0xc8] sm:$0xff]
        %v2847 = vld [vmem:[%s2820 + $0xd0] sm:$0xff]
        %v2848 = vld [vmem:[%s2820 + $0xd8] sm:$0xff]
        %v2849 = vld [vmem:[%s2820 + $0xe0] sm:$0xff]
        %v2850 = vld [vmem:[%s2820 + $0xe8] sm:$0xff]
        %v2851 = vld [vmem:[%s2820 + $0xf0] sm:$0xff]
        %v2852 = vld [vmem:[%s2820 + $0xf8] sm:$0xff]
        %v2853 = vld [vmem:[%s2820 + $0x100] sm:$0xff]
        %v2854 = vld [vmem:[%s2820 + $0x108] sm:$0xff]
        %v2855 = vld [vmem:[%s2820 + $0x110] sm:$0xff]
        %v2856 = vld [vmem:[%s2820 + $0x118] sm:$0xff]
        %v2857 = vld [vmem:[%s2820 + $0x120] sm:$0xff]
        %v2858 = vld [vmem:[%s2820 + $0x128] sm:$0xff]
        %v2859 = vld [vmem:[%s2820 + $0x130] sm:$0xff]
        %v2860 = vld [vmem:[%s2820 + $0x138] sm:$0xff]
        %v2861 = vld [vmem:[%s2820 + $0x140] sm:$0xff]
        %v2862 = vld [vmem:[%s2820 + $0x148] sm:$0xff]
        %v2863 = vld [vmem:[%s2820 + $0x150] sm:$0xff]
        %v2864 = vld [vmem:[%s2820 + $0x158] sm:$0xff]
        %v2865 = vld [vmem:[%s2820 + $0x160] sm:$0xff]
        %v2866 = vld [vmem:[%s2820 + $0x168] sm:$0xff]
        %v2867 = vld [vmem:[%s2820 + $0x170] sm:$0xff]
        %v2868 = vld [vmem:[%s2820 + $0x178] sm:$0xff]
        %v2869 = vld [vmem:[%s2820 + $0x180] sm:$0xff]
        %v2870 = vld [vmem:[%s2820 + $0x188] sm:$0xff]
        %v2871 = vld [vmem:[%s2820 + $0x190] sm:$0xff]
        %v2872 = vld [vmem:[%s2820 + $0x198] sm:$0xff]
        %v2873 = vld [vmem:[%s2820 + $0x1a0] sm:$0xff]
        %v2874 = vld [vmem:[%s2820 + $0x1a8] sm:$0xff]
        %v2875 = vld [vmem:[%s2820 + $0x1b0] sm:$0xff]
        %v2876 = vld [vmem:[%s2820 + $0x1b8] sm:$0xff]
        %v2877 = vld [vmem:[%s2820 + $0x1c0] sm:$0xff]
        %v2878 = vld [vmem:[%s2820 + $0x1c8] sm:$0xff]
        %v2879 = vld [vmem:[%s2820 + $0x1d0] sm:$0xff]
        %v2880 = vld [vmem:[%s2820 + $0x1d8] sm:$0xff]
        %v2881 = vld [vmem:[%s2820 + $0x1e0] sm:$0xff]
        %v2882 = vld [vmem:[%s2820 + $0x1e8] sm:$0xff]
        %v2883 = vld [vmem:[%s2820 + $0x1f0] sm:$0xff]
        %v2884 = vld [vmem:[%s2820 + $0x1f8] sm:$0xff]
        %v2885 = vld [vmem:[%s2820 + $0x200] sm:$0xff]
        %v2886 = vld [vmem:[%s2820 + $0x208] sm:$0xff]
        %v2887 = vld [vmem:[%s2820 + $0x210] sm:$0xff]
        %v2888 = vld [vmem:[%s2820 + $0x218] sm:$0xff]
        %v2889 = vld [vmem:[%s2820 + $0x220] sm:$0xff]
        %v2890 = vld [vmem:[%s2820 + $0x228] sm:$0xff]
        %v2891 = vld [vmem:[%s2820 + $0x230] sm:$0xff]
        %v2892 = vld [vmem:[%s2820 + $0x238] sm:$0xff]
        %v2893 = vld [vmem:[%s2820 + $0x240] sm:$0xff]
        %v2894 = vld [vmem:[%s2820 + $0x248] sm:$0xff]
        %v2895 = vld [vmem:[%s2820 + $0x250] sm:$0xff]
        %v2896 = vld [vmem:[%s2820 + $0x258] sm:$0xff]
        %v2897 = vld [vmem:[%s2820 + $0x260] sm:$0xff]
        %v2898 = vld [vmem:[%s2820 + $0x268] sm:$0xff]
        %v2899 = vld [vmem:[%s2820 + $0x270] sm:$0xff]
        %v2900 = vld [vmem:[%s2820 + $0x278] sm:$0xff]
        %v2901 = vld [vmem:[%s2820 + $0x280] sm:$0xff]
        %v2902 = vld [vmem:[%s2820 + $0x288] sm:$0xff]
        %v2903 = vld [vmem:[%s2820 + $0x290] sm:$0xff]
        %v2904 = vld [vmem:[%s2820 + $0x298] sm:$0xff]
        %v2905 = vld [vmem:[%s2820 + $0x2a0] sm:$0xff]
        %v2906 = vld [vmem:[%s2820 + $0x2a8] sm:$0xff]
        %v2907 = vld [vmem:[%s2820 + $0x2b0] sm:$0xff]
        %v2908 = vld [vmem:[%s2820 + $0x2b8] sm:$0xff]
        %v2909 = vld [vmem:[%s2820 + $0x2c0] sm:$0xff]
        %v2910 = vld [vmem:[%s2820 + $0x2c8] sm:$0xff]
        %v2911 = vld [vmem:[%s2820 + $0x2d0] sm:$0xff]
        %v2912 = vld [vmem:[%s2820 + $0x2d8] sm:$0xff]
        %v2913 = vld [vmem:[%s2820 + $0x2e0] sm:$0xff]
        %v2914 = vld [vmem:[%s2820 + $0x2e8] sm:$0xff]
        %v2915 = vld [vmem:[%s2820 + $0x2f0] sm:$0xff]
        %v2916 = vld [vmem:[%s2820 + $0x2f8] sm:$0xff]
        %v2919 = vunpack.c.l.b16 %v2818
        %v2920 = vunpack.c.h.b16 %v2818
        %v2921 = vunpack.c.l.b16 %v2819
        %v2922 = vpack.c.b16 %v2919, %v2919
        %v2923 = vpack.c.b16 %v2920, %v2920
        %v2924 = vpack.c.b16 %v2921, %v2921
        %v2926 = vshrl.u32 %v2922, 16
        %v2928 = vshll.u32 %v2922, 16
        %v2930 = vrot.slane %v2928, 1
        %v2931 = vor.u32 %v2926, %v2930
        %v2933 = vshrl.u32 %v2923, 16
        %v2935 = vshll.u32 %v2923, 16
        %v2937 = vrot.slane %v2935, 1
        %v2938 = vor.u32 %v2933, %v2937
        %v2940 = vshrl.u32 %v2924, 16
        %v2942 = vshll.u32 %v2924, 16
        %v2944 = vrot.slane %v2942, 1
        %v2945 = vor.u32 %v2940, %v2944
        %v3045 = vunpack.c.l.b16 %v2821
        %v3046 = vunpack.c.h.b16 %v2821
        %v3047 = vunpack.c.l.b16 %v2822
        %v3048 = vunpack.c.h.b16 %v2822
        %v3049 = vunpack.c.l.b16 %v2823
        %v3050 = vunpack.c.h.b16 %v2823
        %v3051 = vunpack.c.l.b16 %v2824
        %v3052 = vunpack.c.h.b16 %v2824
        %v3053 = vunpack.c.l.b16 %v2825
        %v3054 = vunpack.c.h.b16 %v2825
        %v3055 = vunpack.c.l.b16 %v2826
        %v3056 = vunpack.c.h.b16 %v2826
        %v3057 = vunpack.c.l.b16 %v2827
        %v3058 = vunpack.c.h.b16 %v2827
        %v3059 = vunpack.c.l.b16 %v2828
        %v3060 = vunpack.c.h.b16 %v2828
        %v3061 = vunpack.c.l.b16 %v2829
        %v3062 = vunpack.c.h.b16 %v2829
        %v3063 = vunpack.c.l.b16 %v2830
        %v3064 = vunpack.c.h.b16 %v2830
        %v3065 = vunpack.c.l.b16 %v2831
        %v3066 = vunpack.c.h.b16 %v2831
        %v3067 = vunpack.c.l.b16 %v2832
        %v3068 = vunpack.c.h.b16 %v2832
        %v3069 = vunpack.c.l.b16 %v2833
        %v3070 = vunpack.c.h.b16 %v2833
        %v3071 = vunpack.c.l.b16 %v2834
        %v3072 = vunpack.c.h.b16 %v2834
        %v3073 = vunpack.c.l.b16 %v2835
        %v3074 = vunpack.c.h.b16 %v2835
        %v3075 = vunpack.c.l.b16 %v2836
        %v3076 = vunpack.c.h.b16 %v2836
        %v3077 = vunpack.c.l.b16 %v2837
        %v3078 = vunpack.c.h.b16 %v2837
        %v3079 = vunpack.c.l.b16 %v2838
        %v3080 = vunpack.c.h.b16 %v2838
        %v3081 = vunpack.c.l.b16 %v2839
        %v3082 = vunpack.c.h.b16 %v2839
        %v3083 = vunpack.c.l.b16 %v2840
        %v3084 = vunpack.c.h.b16 %v2840
        %v3085 = vunpack.c.l.b16 %v2841
        %v3086 = vunpack.c.h.b16 %v2841
        %v3087 = vunpack.c.l.b16 %v2842
        %v3088 = vunpack.c.h.b16 %v2842
        %v3089 = vunpack.c.l.b16 %v2843
        %v3090 = vunpack.c.h.b16 %v2843
        %v3091 = vunpack.c.l.b16 %v2844
        %v3092 = vunpack.c.h.b16 %v2844
        %v3093 = vunpack.c.l.b16 %v2845
        %v3094 = vunpack.c.h.b16 %v2845
        %v3095 = vunpack.c.l.b16 %v2846
        %v3096 = vunpack.c.h.b16 %v2846
        %v3097 = vunpack.c.l.b16 %v2847
        %v3098 = vunpack.c.h.b16 %v2847
        %v3099 = vunpack.c.l.b16 %v2848
        %v3100 = vunpack.c.h.b16 %v2848
        %v3101 = vunpack.c.l.b16 %v2849
        %v3102 = vunpack.c.h.b16 %v2849
        %v3103 = vunpack.c.l.b16 %v2850
        %v3104 = vunpack.c.h.b16 %v2850
        %v3105 = vunpack.c.l.b16 %v2851
        %v3106 = vunpack.c.h.b16 %v2851
        %v3107 = vunpack.c.l.b16 %v2852
        %v3108 = vunpack.c.h.b16 %v2852
        %v3109 = vunpack.c.l.b16 %v2853
        %v3110 = vunpack.c.h.b16 %v2853
        %v3111 = vunpack.c.l.b16 %v2854
        %v3112 = vunpack.c.h.b16 %v2854
        %v3113 = vunpack.c.l.b16 %v2855
        %v3114 = vunpack.c.h.b16 %v2855
        %v3115 = vunpack.c.l.b16 %v2856
        %v3116 = vunpack.c.h.b16 %v2856
        %v3117 = vunpack.c.l.b16 %v2857
        %v3118 = vunpack.c.h.b16 %v2857
        %v3119 = vunpack.c.l.b16 %v2858
        %v3120 = vunpack.c.h.b16 %v2858
        %v3121 = vunpack.c.l.b16 %v2859
        %v3122 = vunpack.c.h.b16 %v2859
        %v3123 = vunpack.c.l.b16 %v2860
        %v3124 = vunpack.c.h.b16 %v2860
        %v3125 = vunpack.c.l.b16 %v2861
        %v3126 = vunpack.c.h.b16 %v2861
        %v3127 = vunpack.c.l.b16 %v2862
        %v3128 = vunpack.c.h.b16 %v2862
        %v3129 = vunpack.c.l.b16 %v2863
        %v3130 = vunpack.c.h.b16 %v2863
        %v3131 = vunpack.c.l.b16 %v2864
        %v3132 = vunpack.c.h.b16 %v2864
        %v3133 = vunpack.c.l.b16 %v2865
        %v3134 = vunpack.c.h.b16 %v2865
        %v3135 = vunpack.c.l.b16 %v2866
        %v3136 = vunpack.c.h.b16 %v2866
        %v3137 = vunpack.c.l.b16 %v2867
        %v3138 = vunpack.c.h.b16 %v2867
        %v3139 = vunpack.c.l.b16 %v2868
        %v3140 = vunpack.c.h.b16 %v2868
        %v3141 = vunpack.c.l.b16 %v2869
        %v3142 = vunpack.c.h.b16 %v2869
        %v3143 = vunpack.c.l.b16 %v2870
        %v3144 = vunpack.c.h.b16 %v2870
        %v3145 = vunpack.c.l.b16 %v2871
        %v3146 = vunpack.c.h.b16 %v2871
        %v3147 = vunpack.c.l.b16 %v2872
        %v3148 = vunpack.c.h.b16 %v2872
        %v3149 = vunpack.c.l.b16 %v2873
        %v3150 = vunpack.c.h.b16 %v2873
        %v3151 = vunpack.c.l.b16 %v2874
        %v3152 = vunpack.c.h.b16 %v2874
        %v3153 = vunpack.c.l.b16 %v2875
        %v3154 = vunpack.c.h.b16 %v2875
        %v3155 = vunpack.c.l.b16 %v2876
        %v3156 = vunpack.c.h.b16 %v2876
        %v3157 = vunpack.c.l.b16 %v2877
        %v3158 = vunpack.c.h.b16 %v2877
        %v3159 = vunpack.c.l.b16 %v2878
        %v3160 = vunpack.c.h.b16 %v2878
        %v3161 = vunpack.c.l.b16 %v2879
        %v3162 = vunpack.c.h.b16 %v2879
        %v3163 = vunpack.c.l.b16 %v2880
        %v3164 = vunpack.c.h.b16 %v2880
        %v3165 = vunpack.c.l.b16 %v2881
        %v3166 = vunpack.c.h.b16 %v2881
        %v3167 = vunpack.c.l.b16 %v2882
        %v3168 = vunpack.c.h.b16 %v2882
        %v3169 = vunpack.c.l.b16 %v2883
        %v3170 = vunpack.c.h.b16 %v2883
        %v3171 = vunpack.c.l.b16 %v2884
        %v3172 = vunpack.c.h.b16 %v2884
        %v3173 = vunpack.c.l.b16 %v2885
        %v3174 = vunpack.c.h.b16 %v2885
        %v3175 = vunpack.c.l.b16 %v2886
        %v3176 = vunpack.c.h.b16 %v2886
        %v3177 = vunpack.c.l.b16 %v2887
        %v3178 = vunpack.c.h.b16 %v2887
        %v3179 = vunpack.c.l.b16 %v2888
        %v3180 = vunpack.c.h.b16 %v2888
        %v3181 = vunpack.c.l.b16 %v2889
        %v3182 = vunpack.c.h.b16 %v2889
        %v3183 = vunpack.c.l.b16 %v2890
        %v3184 = vunpack.c.h.b16 %v2890
        %v3185 = vunpack.c.l.b16 %v2891
        %v3186 = vunpack.c.h.b16 %v2891
        %v3187 = vunpack.c.l.b16 %v2892
        %v3188 = vunpack.c.h.b16 %v2892
        %v3189 = vunpack.c.l.b16 %v2893
        %v3190 = vunpack.c.h.b16 %v2893
        %v3191 = vunpack.c.l.b16 %v2894
        %v3192 = vunpack.c.h.b16 %v2894
        %v3193 = vunpack.c.l.b16 %v2895
        %v3194 = vunpack.c.h.b16 %v2895
        %v3195 = vunpack.c.l.b16 %v2896
        %v3196 = vunpack.c.h.b16 %v2896
        %v3197 = vunpack.c.l.b16 %v2897
        %v3198 = vunpack.c.h.b16 %v2897
        %v3199 = vunpack.c.l.b16 %v2898
        %v3200 = vunpack.c.h.b16 %v2898
        %v3201 = vunpack.c.l.b16 %v2899
        %v3202 = vunpack.c.h.b16 %v2899
        %v3203 = vunpack.c.l.b16 %v2900
        %v3204 = vunpack.c.h.b16 %v2900
        %v3205 = vunpack.c.l.b16 %v2901
        %v3206 = vunpack.c.h.b16 %v2901
        %v3207 = vunpack.c.l.b16 %v2902
        %v3208 = vunpack.c.h.b16 %v2902
        %v3209 = vunpack.c.l.b16 %v2903
        %v3210 = vunpack.c.h.b16 %v2903
        %v3211 = vunpack.c.l.b16 %v2904
        %v3212 = vunpack.c.h.b16 %v2904
        %v3213 = vunpack.c.l.b16 %v2905
        %v3214 = vunpack.c.h.b16 %v2905
        %v3215 = vunpack.c.l.b16 %v2906
        %v3216 = vunpack.c.h.b16 %v2906
        %v3217 = vunpack.c.l.b16 %v2907
        %v3218 = vunpack.c.h.b16 %v2907
        %v3219 = vunpack.c.l.b16 %v2908
        %v3220 = vunpack.c.h.b16 %v2908
        %v3221 = vunpack.c.l.b16 %v2909
        %v3222 = vunpack.c.h.b16 %v2909
        %v3223 = vunpack.c.l.b16 %v2910
        %v3224 = vunpack.c.h.b16 %v2910
        %v3225 = vunpack.c.l.b16 %v2911
        %v3226 = vunpack.c.h.b16 %v2911
        %v3227 = vunpack.c.l.b16 %v2912
        %v3228 = vunpack.c.h.b16 %v2912
        %v3229 = vunpack.c.l.b16 %v2913
        %v3230 = vunpack.c.h.b16 %v2913
        %v3231 = vunpack.c.l.b16 %v2914
        %v3232 = vunpack.c.h.b16 %v2914
        %v3233 = vunpack.c.l.b16 %v2915
        %v3234 = vunpack.c.h.b16 %v2915
        %v3235 = vunpack.c.l.b16 %v2916
        %v3236 = vunpack.c.h.b16 %v2916
        %v3237 = vpack.c.b16 %v3049, %v3045
        %v3238 = vpack.c.b16 %v3050, %v3046
        %v3239 = vpack.c.b16 %v3051, %v3047
        %v3240 = vpack.c.b16 %v3052, %v3048
        %v3241 = vpack.c.b16 %v3057, %v3053
        %v3242 = vpack.c.b16 %v3058, %v3054
        %v3243 = vpack.c.b16 %v3059, %v3055
        %v3244 = vpack.c.b16 %v3060, %v3056
        %v3245 = vpack.c.b16 %v3065, %v3061
        %v3246 = vpack.c.b16 %v3066, %v3062
        %v3247 = vpack.c.b16 %v3067, %v3063
        %v3248 = vpack.c.b16 %v3068, %v3064
        %v3249 = vpack.c.b16 %v3073, %v3069
        %v3250 = vpack.c.b16 %v3074, %v3070
        %v3251 = vpack.c.b16 %v3075, %v3071
        %v3252 = vpack.c.b16 %v3076, %v3072
        %v3253 = vpack.c.b16 %v3081, %v3077
        %v3254 = vpack.c.b16 %v3082, %v3078
        %v3255 = vpack.c.b16 %v3083, %v3079
        %v3256 = vpack.c.b16 %v3084, %v3080
        %v3257 = vpack.c.b16 %v3089, %v3085
        %v3258 = vpack.c.b16 %v3090, %v3086
        %v3259 = vpack.c.b16 %v3091, %v3087
        %v3260 = vpack.c.b16 %v3092, %v3088
        %v3261 = vpack.c.b16 %v3097, %v3093
        %v3262 = vpack.c.b16 %v3098, %v3094
        %v3263 = vpack.c.b16 %v3099, %v3095
        %v3264 = vpack.c.b16 %v3100, %v3096
        %v3265 = vpack.c.b16 %v3105, %v3101
        %v3266 = vpack.c.b16 %v3106, %v3102
        %v3267 = vpack.c.b16 %v3107, %v3103
        %v3268 = vpack.c.b16 %v3108, %v3104
        %v3269 = vpack.c.b16 %v3113, %v3109
        %v3270 = vpack.c.b16 %v3114, %v3110
        %v3271 = vpack.c.b16 %v3115, %v3111
        %v3272 = vpack.c.b16 %v3116, %v3112
        %v3273 = vpack.c.b16 %v3121, %v3117
        %v3274 = vpack.c.b16 %v3122, %v3118
        %v3275 = vpack.c.b16 %v3123, %v3119
        %v3276 = vpack.c.b16 %v3124, %v3120
        %v3277 = vpack.c.b16 %v3129, %v3125
        %v3278 = vpack.c.b16 %v3130, %v3126
        %v3279 = vpack.c.b16 %v3131, %v3127
        %v3280 = vpack.c.b16 %v3132, %v3128
        %v3281 = vpack.c.b16 %v3137, %v3133
        %v3282 = vpack.c.b16 %v3138, %v3134
        %v3283 = vpack.c.b16 %v3139, %v3135
        %v3284 = vpack.c.b16 %v3140, %v3136
        %v3285 = vpack.c.b16 %v3145, %v3141
        %v3286 = vpack.c.b16 %v3146, %v3142
        %v3287 = vpack.c.b16 %v3147, %v3143
        %v3288 = vpack.c.b16 %v3148, %v3144
        %v3289 = vpack.c.b16 %v3153, %v3149
        %v3290 = vpack.c.b16 %v3154, %v3150
        %v3291 = vpack.c.b16 %v3155, %v3151
        %v3292 = vpack.c.b16 %v3156, %v3152
        %v3293 = vpack.c.b16 %v3161, %v3157
        %v3294 = vpack.c.b16 %v3162, %v3158
        %v3295 = vpack.c.b16 %v3163, %v3159
        %v3296 = vpack.c.b16 %v3164, %v3160
        %v3297 = vpack.c.b16 %v3169, %v3165
        %v3298 = vpack.c.b16 %v3170, %v3166
        %v3299 = vpack.c.b16 %v3171, %v3167
        %v3300 = vpack.c.b16 %v3172, %v3168
        %v3301 = vpack.c.b16 %v3177, %v3173
        %v3302 = vpack.c.b16 %v3178, %v3174
        %v3303 = vpack.c.b16 %v3179, %v3175
        %v3304 = vpack.c.b16 %v3180, %v3176
        %v3305 = vpack.c.b16 %v3185, %v3181
        %v3306 = vpack.c.b16 %v3186, %v3182
        %v3307 = vpack.c.b16 %v3187, %v3183
        %v3308 = vpack.c.b16 %v3188, %v3184
        %v3309 = vpack.c.b16 %v3193, %v3189
        %v3310 = vpack.c.b16 %v3194, %v3190
        %v3311 = vpack.c.b16 %v3195, %v3191
        %v3312 = vpack.c.b16 %v3196, %v3192
        %v3313 = vpack.c.b16 %v3201, %v3197
        %v3314 = vpack.c.b16 %v3202, %v3198
        %v3315 = vpack.c.b16 %v3203, %v3199
        %v3316 = vpack.c.b16 %v3204, %v3200
        %v3317 = vpack.c.b16 %v3209, %v3205
        %v3318 = vpack.c.b16 %v3210, %v3206
        %v3319 = vpack.c.b16 %v3211, %v3207
        %v3320 = vpack.c.b16 %v3212, %v3208
        %v3321 = vpack.c.b16 %v3217, %v3213
        %v3322 = vpack.c.b16 %v3218, %v3214
        %v3323 = vpack.c.b16 %v3219, %v3215
        %v3324 = vpack.c.b16 %v3220, %v3216
        %v3325 = vpack.c.b16 %v3225, %v3221
        %v3326 = vpack.c.b16 %v3226, %v3222
        %v3327 = vpack.c.b16 %v3227, %v3223
        %v3328 = vpack.c.b16 %v3228, %v3224
        %v3329 = vpack.c.b16 %v3233, %v3229
        %v3330 = vpack.c.b16 %v3234, %v3230
        %v3331 = vpack.c.b16 %v3235, %v3231
        %v3332 = vpack.c.b16 %v3236, %v3232
        %3429 = vmatprep.subr.bf16.mxu0 %v3266
        %3430 = vmatpush1.bf16.msra.mxu0 %v3265
        %3431 = vmatprep.subr.bf16.mxu0 %v3262
        %3432 = vmatpush1.bf16.msra.mxu0 %v3261
        %3433 = vmatprep.subr.bf16.mxu0 %v3258
        %3434 = vmatpush1.bf16.msra.mxu0 %v3257
        %3435 = vmatprep.subr.bf16.mxu0 %v3254
        %3436 = vmatpush1.bf16.msra.mxu0 %v3253
        %3437 = vmatprep.subr.bf16.mxu0 %v3250
        %3438 = vmatpush1.bf16.msra.mxu0 %v3249
        %3439 = vmatprep.subr.bf16.mxu0 %v3246
        %3440 = vmatpush1.bf16.msra.mxu0 %v3245
        %3441 = vmatprep.subr.bf16.mxu0 %v3242
        %3442 = vmatpush1.bf16.msra.mxu0 %v3241
        %3443 = vmatprep.subr.bf16.mxu0 %v3238
        %3444 = vmatpush1.bf16.msra.mxu0 %v3237
        %3445 = vmatprep.subr.bf16.mxu0 %v3298
        %3446 = vmatpush2.bf16.msra.mxu0 %v3297
        %3447 = vmatprep.subr.bf16.mxu0 %v3294
        %3448 = vmatpush2.bf16.msra.mxu0 %v3293
        %3449 = vmatprep.subr.bf16.mxu0 %v3290
        %3450 = vmatpush2.bf16.msra.mxu0 %v3289
        %3451 = vmatprep.subr.bf16.mxu0 %v3286
        %3452 = vmatpush2.bf16.msra.mxu0 %v3285
        %3453 = vmatprep.subr.bf16.mxu0 %v3282
        %3454 = vmatpush2.bf16.msra.mxu0 %v3281
        %3455 = vmatprep.subr.bf16.mxu0 %v3278
        %3456 = vmatpush2.bf16.msra.mxu0 %v3277
        %3457 = vmatprep.subr.bf16.mxu0 %v3274
        %3458 = vmatpush2.bf16.msra.mxu0 %v3273
        %3459 = vmatprep.subr.bf16.mxu0 %v3270
        %3460 = vmatpush2.bf16.msra.mxu0 %v3269
        %3461 = vmatprep.mubr.bf16.mxu0 %v2938
        %3462 = vmatmul.mubr.bf16.gmra.mxu0 %v2931
        %v3463 = vpop.f32.mrf.mxu0
        %v3464 = vadd.f32 0.0, %v3463
        %v3465 = vpop.f32.mrf.mxu0
        %v3466 = vadd.f32 0.0, %v3465
        %v3467 = vpop.f32.mrf.mxu0
        %v3468 = vpop.f32.mrf.mxu0
        %3469 = vdwg.mxu0
        %3470 = vmatprep.subr.bf16.mxu0 %v3330
        %3471 = vmatpush1.bf16.msra.mxu0 %v3329
        %3472 = vmatprep.subr.bf16.mxu0 %v3326
        %3473 = vmatpush1.bf16.msra.mxu0 %v3325
        %3474 = vmatprep.subr.bf16.mxu0 %v3322
        %3475 = vmatpush1.bf16.msra.mxu0 %v3321
        %3476 = vmatprep.subr.bf16.mxu0 %v3318
        %3477 = vmatpush1.bf16.msra.mxu0 %v3317
        %3478 = vmatprep.subr.bf16.mxu0 %v3314
        %3479 = vmatpush1.bf16.msra.mxu0 %v3313
        %3480 = vmatprep.subr.bf16.mxu0 %v3310
        %3481 = vmatpush1.bf16.msra.mxu0 %v3309
        %3482 = vmatprep.subr.bf16.mxu0 %v3306
        %3483 = vmatpush1.bf16.msra.mxu0 %v3305
        %3484 = vmatprep.subr.bf16.mxu0 %v3302
        %3485 = vmatpush1.bf16.msra.mxu0 %v3301
        %3486 = vmatprep.subr.bf16.mxu0 0
        %3487 = vmatpush2.bf16.msra.mxu0 0
        %3488 = vmatprep.subr.bf16.mxu0 0
        %3489 = vmatpush2.bf16.msra.mxu0 0
        %3490 = vmatprep.subr.bf16.mxu0 0
        %3491 = vmatpush2.bf16.msra.mxu0 0
        %3492 = vmatprep.subr.bf16.mxu0 0
        %3493 = vmatpush2.bf16.msra.mxu0 0
        %3494 = vmatprep.subr.bf16.mxu0 0
        %3495 = vmatpush2.bf16.msra.mxu0 0
        %3496 = vmatprep.subr.bf16.mxu0 0
        %3497 = vmatpush2.bf16.msra.mxu0 0
        %3498 = vmatprep.subr.bf16.mxu0 0
        %3499 = vmatpush2.bf16.msra.mxu0 0
        %3500 = vmatprep.subr.bf16.mxu0 0
        %3501 = vmatpush2.bf16.msra.mxu0 0
        %3502 = vmatprep.mubr.bf16.mxu0 0
        %3503 = vmatmul.mubr.bf16.gmra.mxu0 %v2945
        %v3504 = vpop.f32.mrf.mxu0
        %v3505 = vadd.f32 %v3464, %v3504
        %v3506 = vpop.f32.mrf.mxu0
        %v3507 = vadd.f32 %v3466, %v3506
        %v3508 = vpop.f32.mrf.mxu0
        %v3509 = vpop.f32.mrf.mxu0
        %3510 = vdwg.mxu0
        %3511 = vmatprep.subr.bf16.mxu0 %v3268
        %3512 = vmatpush1.bf16.msra.mxu0 %v3267
        %3513 = vmatprep.subr.bf16.mxu0 %v3264
        %3514 = vmatpush1.bf16.msra.mxu0 %v3263
        %3515 = vmatprep.subr.bf16.mxu0 %v3260
        %3516 = vmatpush1.bf16.msra.mxu0 %v3259
        %3517 = vmatprep.subr.bf16.mxu0 %v3256
        %3518 = vmatpush1.bf16.msra.mxu0 %v3255
        %3519 = vmatprep.subr.bf16.mxu0 %v3252
        %3520 = vmatpush1.bf16.msra.mxu0 %v3251
        %3521 = vmatprep.subr.bf16.mxu0 %v3248
        %3522 = vmatpush1.bf16.msra.mxu0 %v3247
        %3523 = vmatprep.subr.bf16.mxu0 %v3244
        %3524 = vmatpush1.bf16.msra.mxu0 %v3243
        %3525 = vmatprep.subr.bf16.mxu0 %v3240
        %3526 = vmatpush1.bf16.msra.mxu0 %v3239
        %3527 = vmatprep.subr.bf16.mxu0 %v3300
        %3528 = vmatpush2.bf16.msra.mxu0 %v3299
        %3529 = vmatprep.subr.bf16.mxu0 %v3296
        %3530 = vmatpush2.bf16.msra.mxu0 %v3295
        %3531 = vmatprep.subr.bf16.mxu0 %v3292
        %3532 = vmatpush2.bf16.msra.mxu0 %v3291
        %3533 = vmatprep.subr.bf16.mxu0 %v3288
        %3534 = vmatpush2.bf16.msra.mxu0 %v3287
        %3535 = vmatprep.subr.bf16.mxu0 %v3284
        %3536 = vmatpush2.bf16.msra.mxu0 %v3283
        %3537 = vmatprep.subr.bf16.mxu0 %v3280
        %3538 = vmatpush2.bf16.msra.mxu0 %v3279
        %3539 = vmatprep.subr.bf16.mxu0 %v3276
        %3540 = vmatpush2.bf16.msra.mxu0 %v3275
        %3541 = vmatprep.subr.bf16.mxu0 %v3272
        %3542 = vmatpush2.bf16.msra.mxu0 %v3271
        %3543 = vmatprep.mubr.bf16.mxu0 %v2938
        %3544 = vmatmul.mubr.bf16.gmra.mxu0 %v2931
        %v3545 = vpop.f32.mrf.mxu0
        %v3546 = vadd.f32 0.0, %v3545
        %v3547 = vpop.f32.mrf.mxu0
        %v3548 = vadd.f32 0.0, %v3547
        %v3549 = vpop.f32.mrf.mxu0
        %v3550 = vpop.f32.mrf.mxu0
        %3551 = vdwg.mxu0
        %3552 = vmatprep.subr.bf16.mxu0 %v3332
        %3553 = vmatpush1.bf16.msra.mxu0 %v3331
        %3554 = vmatprep.subr.bf16.mxu0 %v3328
        %3555 = vmatpush1.bf16.msra.mxu0 %v3327
        %3556 = vmatprep.subr.bf16.mxu0 %v3324
        %3557 = vmatpush1.bf16.msra.mxu0 %v3323
        %3558 = vmatprep.subr.bf16.mxu0 %v3320
        %3559 = vmatpush1.bf16.msra.mxu0 %v3319
        %3560 = vmatprep.subr.bf16.mxu0 %v3316
        %3561 = vmatpush1.bf16.msra.mxu0 %v3315
        %3562 = vmatprep.subr.bf16.mxu0 %v3312
        %3563 = vmatpush1.bf16.msra.mxu0 %v3311
        %3564 = vmatprep.subr.bf16.mxu0 %v3308
        %3565 = vmatpush1.bf16.msra.mxu0 %v3307
        %3566 = vmatprep.subr.bf16.mxu0 %v3304
        %3567 = vmatpush1.bf16.msra.mxu0 %v3303
        %3568 = vmatprep.subr.bf16.mxu0 0
        %3569 = vmatpush2.bf16.msra.mxu0 0
        %3570 = vmatprep.subr.bf16.mxu0 0
        %3571 = vmatpush2.bf16.msra.mxu0 0
        %3572 = vmatprep.subr.bf16.mxu0 0
        %3573 = vmatpush2.bf16.msra.mxu0 0
        %3574 = vmatprep.subr.bf16.mxu0 0
        %3575 = vmatpush2.bf16.msra.mxu0 0
        %3576 = vmatprep.subr.bf16.mxu0 0
        %3577 = vmatpush2.bf16.msra.mxu0 0
        %3578 = vmatprep.subr.bf16.mxu0 0
        %3579 = vmatpush2.bf16.msra.mxu0 0
        %3580 = vmatprep.subr.bf16.mxu0 0
        %3581 = vmatpush2.bf16.msra.mxu0 0
        %3582 = vmatprep.subr.bf16.mxu0 0
        %3583 = vmatpush2.bf16.msra.mxu0 0
        %3584 = vmatprep.mubr.bf16.mxu0 0
        %3585 = vmatmul.mubr.bf16.gmra.mxu0 %v2945
        %v3586 = vpop.f32.mrf.mxu0
        %v3587 = vadd.f32 %v3546, %v3586
        %v3588 = vpop.f32.mrf.mxu0
        %v3589 = vadd.f32 %v3548, %v3588
        %v3590 = vpop.f32.mrf.mxu0
        %v3591 = vpop.f32.mrf.mxu0
        %3592 = vdwg.mxu0
        %v3593 = vadd.f32 %v2486, %v3505
        %v3594 = vadd.f32 %v2487, %v3507
        %v3595 = vadd.f32 %v2488, %v3587
        %v3596 = vadd.f32 %v2489, %v3589
        %3597 = vmatprep.subr.bf16.mxu0 %v2159
        %3598 = vmatpush1.bf16.msra.mxu0 %v2158
        %3599 = vmatprep.subr.bf16.mxu0 %v2155
        %3600 = vmatpush1.bf16.msra.mxu0 %v2154
        %3601 = vmatprep.subr.bf16.mxu0 %v2151
        %3602 = vmatpush1.bf16.msra.mxu0 %v2150
        %3603 = vmatprep.subr.bf16.mxu0 %v2147
        %3604 = vmatpush1.bf16.msra.mxu0 %v2146
        %3605 = vmatprep.subr.bf16.mxu0 %v2143
        %3606 = vmatpush1.bf16.msra.mxu0 %v2142
        %3607 = vmatprep.subr.bf16.mxu0 %v2139
        %3608 = vmatpush1.bf16.msra.mxu0 %v2138
        %3609 = vmatprep.subr.bf16.mxu0 %v2135
        %3610 = vmatpush1.bf16.msra.mxu0 %v2134
        %3611 = vmatprep.subr.bf16.mxu0 %v2131
        %3612 = vmatpush1.bf16.msra.mxu0 %v2130
        %3613 = vmatprep.subr.bf16.mxu0 %v2191
        %3614 = vmatpush2.bf16.msra.mxu0 %v2190
        %3615 = vmatprep.subr.bf16.mxu0 %v2187
        %3616 = vmatpush2.bf16.msra.mxu0 %v2186
        %3617 = vmatprep.subr.bf16.mxu0 %v2183
        %3618 = vmatpush2.bf16.msra.mxu0 %v2182
        %3619 = vmatprep.subr.bf16.mxu0 %v2179
        %3620 = vmatpush2.bf16.msra.mxu0 %v2178
        %3621 = vmatprep.subr.bf16.mxu0 %v2175
        %3622 = vmatpush2.bf16.msra.mxu0 %v2174
        %3623 = vmatprep.subr.bf16.mxu0 %v2171
        %3624 = vmatpush2.bf16.msra.mxu0 %v2170
        %3625 = vmatprep.subr.bf16.mxu0 %v2167
        %3626 = vmatpush2.bf16.msra.mxu0 %v2166
        %3627 = vmatprep.subr.bf16.mxu0 %v2163
        %3628 = vmatpush2.bf16.msra.mxu0 %v2162
        %3629 = vmatprep.mubr.bf16.mxu0 %v2938
        %3630 = vmatmul.mubr.bf16.gmra.mxu0 %v2931
        %v3631 = vpop.f32.mrf.mxu0
        %v3632 = vadd.f32 0.0, %v3631
        %v3633 = vpop.f32.mrf.mxu0
        %v3634 = vadd.f32 0.0, %v3633
        %v3635 = vpop.f32.mrf.mxu0
        %v3636 = vpop.f32.mrf.mxu0
        %3637 = vdwg.mxu0
        %3638 = vmatprep.subr.bf16.mxu0 %v2223
        %3639 = vmatpush1.bf16.msra.mxu0 %v2222
        %3640 = vmatprep.subr.bf16.mxu0 %v2219
        %3641 = vmatpush1.bf16.msra.mxu0 %v2218
        %3642 = vmatprep.subr.bf16.mxu0 %v2215
        %3643 = vmatpush1.bf16.msra.mxu0 %v2214
        %3644 = vmatprep.subr.bf16.mxu0 %v2211
        %3645 = vmatpush1.bf16.msra.mxu0 %v2210
        %3646 = vmatprep.subr.bf16.mxu0 %v2207
        %3647 = vmatpush1.bf16.msra.mxu0 %v2206
        %3648 = vmatprep.subr.bf16.mxu0 %v2203
        %3649 = vmatpush1.bf16.msra.mxu0 %v2202
        %3650 = vmatprep.subr.bf16.mxu0 %v2199
        %3651 = vmatpush1.bf16.msra.mxu0 %v2198
        %3652 = vmatprep.subr.bf16.mxu0 %v2195
        %3653 = vmatpush1.bf16.msra.mxu0 %v2194
        %3654 = vmatprep.subr.bf16.mxu0 0
        %3655 = vmatpush2.bf16.msra.mxu0 0
        %3656 = vmatprep.subr.bf16.mxu0 0
        %3657 = vmatpush2.bf16.msra.mxu0 0
        %3658 = vmatprep.subr.bf16.mxu0 0
        %3659 = vmatpush2.bf16.msra.mxu0 0
        %3660 = vmatprep.subr.bf16.mxu0 0
        %3661 = vmatpush2.bf16.msra.mxu0 0
        %3662 = vmatprep.subr.bf16.mxu0 0
        %3663 = vmatpush2.bf16.msra.mxu0 0
        %3664 = vmatprep.subr.bf16.mxu0 0
        %3665 = vmatpush2.bf16.msra.mxu0 0
        %3666 = vmatprep.subr.bf16.mxu0 0
        %3667 = vmatpush2.bf16.msra.mxu0 0
        %3668 = vmatprep.subr.bf16.mxu0 0
        %3669 = vmatpush2.bf16.msra.mxu0 0
        %3670 = vmatprep.mubr.bf16.mxu0 0
        %3671 = vmatmul.mubr.bf16.gmra.mxu0 %v2945
        %v3672 = vpop.f32.mrf.mxu0
        %v3673 = vadd.f32 %v3632, %v3672
        %v3674 = vpop.f32.mrf.mxu0
        %v3675 = vadd.f32 %v3634, %v3674
        %v3676 = vpop.f32.mrf.mxu0
        %v3677 = vpop.f32.mrf.mxu0
        %3678 = vdwg.mxu0
        %3679 = vmatprep.subr.bf16.mxu0 %v2161
        %3680 = vmatpush1.bf16.msra.mxu0 %v2160
        %3681 = vmatprep.subr.bf16.mxu0 %v2157
        %3682 = vmatpush1.bf16.msra.mxu0 %v2156
        %3683 = vmatprep.subr.bf16.mxu0 %v2153
        %3684 = vmatpush1.bf16.msra.mxu0 %v2152
        %3685 = vmatprep.subr.bf16.mxu0 %v2149
        %3686 = vmatpush1.bf16.msra.mxu0 %v2148
        %3687 = vmatprep.subr.bf16.mxu0 %v2145
        %3688 = vmatpush1.bf16.msra.mxu0 %v2144
        %3689 = vmatprep.subr.bf16.mxu0 %v2141
        %3690 = vmatpush1.bf16.msra.mxu0 %v2140
        %3691 = vmatprep.subr.bf16.mxu0 %v2137
        %3692 = vmatpush1.bf16.msra.mxu0 %v2136
        %3693 = vmatprep.subr.bf16.mxu0 %v2133
        %3694 = vmatpush1.bf16.msra.mxu0 %v2132
        %3695 = vmatprep.subr.bf16.mxu0 %v2193
        %3696 = vmatpush2.bf16.msra.mxu0 %v2192
        %3697 = vmatprep.subr.bf16.mxu0 %v2189
        %3698 = vmatpush2.bf16.msra.mxu0 %v2188
        %3699 = vmatprep.subr.bf16.mxu0 %v2185
        %3700 = vmatpush2.bf16.msra.mxu0 %v2184
        %3701 = vmatprep.subr.bf16.mxu0 %v2181
        %3702 = vmatpush2.bf16.msra.mxu0 %v2180
        %3703 = vmatprep.subr.bf16.mxu0 %v2177
        %3704 = vmatpush2.bf16.msra.mxu0 %v2176
        %3705 = vmatprep.subr.bf16.mxu0 %v2173
        %3706 = vmatpush2.bf16.msra.mxu0 %v2172
        %3707 = vmatprep.subr.bf16.mxu0 %v2169
        %3708 = vmatpush2.bf16.msra.mxu0 %v2168
        %3709 = vmatprep.subr.bf16.mxu0 %v2165
        %3710 = vmatpush2.bf16.msra.mxu0 %v2164
        %3711 = vmatprep.mubr.bf16.mxu0 %v2938
        %3712 = vmatmul.mubr.bf16.gmra.mxu0 %v2931
        %v3713 = vpop.f32.mrf.mxu0
        %v3714 = vadd.f32 0.0, %v3713
        %v3715 = vpop.f32.mrf.mxu0
        %v3716 = vadd.f32 0.0, %v3715
        %v3717 = vpop.f32.mrf.mxu0
        %v3718 = vpop.f32.mrf.mxu0
        %3719 = vdwg.mxu0
        %3720 = vmatprep.subr.bf16.mxu0 %v2225
        %3721 = vmatpush1.bf16.msra.mxu0 %v2224
        %3722 = vmatprep.subr.bf16.mxu0 %v2221
        %3723 = vmatpush1.bf16.msra.mxu0 %v2220
        %3724 = vmatprep.subr.bf16.mxu0 %v2217
        %3725 = vmatpush1.bf16.msra.mxu0 %v2216
        %3726 = vmatprep.subr.bf16.mxu0 %v2213
        %3727 = vmatpush1.bf16.msra.mxu0 %v2212
        %3728 = vmatprep.subr.bf16.mxu0 %v2209
        %3729 = vmatpush1.bf16.msra.mxu0 %v2208
        %3730 = vmatprep.subr.bf16.mxu0 %v2205
        %3731 = vmatpush1.bf16.msra.mxu0 %v2204
        %3732 = vmatprep.subr.bf16.mxu0 %v2201
        %3733 = vmatpush1.bf16.msra.mxu0 %v2200
        %3734 = vmatprep.subr.bf16.mxu0 %v2197
        %3735 = vmatpush1.bf16.msra.mxu0 %v2196
        %3736 = vmatprep.subr.bf16.mxu0 0
        %3737 = vmatpush2.bf16.msra.mxu0 0
        %3738 = vmatprep.subr.bf16.mxu0 0
        %3739 = vmatpush2.bf16.msra.mxu0 0
        %3740 = vmatprep.subr.bf16.mxu0 0
        %3741 = vmatpush2.bf16.msra.mxu0 0
        %3742 = vmatprep.subr.bf16.mxu0 0
        %3743 = vmatpush2.bf16.msra.mxu0 0
        %3744 = vmatprep.subr.bf16.mxu0 0
        %3745 = vmatpush2.bf16.msra.mxu0 0
        %3746 = vmatprep.subr.bf16.mxu0 0
        %3747 = vmatpush2.bf16.msra.mxu0 0
        %3748 = vmatprep.subr.bf16.mxu0 0
        %3749 = vmatpush2.bf16.msra.mxu0 0
        %3750 = vmatprep.subr.bf16.mxu0 0
        %3751 = vmatpush2.bf16.msra.mxu0 0
        %3752 = vmatprep.mubr.bf16.mxu0 0
        %3753 = vmatmul.mubr.bf16.gmra.mxu0 %v2945
        %v3754 = vpop.f32.mrf.mxu0
        %v3755 = vadd.f32 %v3714, %v3754
        %v3756 = vpop.f32.mrf.mxu0
        %v3757 = vadd.f32 %v3716, %v3756
        %v3758 = vpop.f32.mrf.mxu0
        %v3759 = vpop.f32.mrf.mxu0
        %3760 = vdwg.mxu0
        %v3761 = vadd.f32 %v2730, %v3673
        %v3762 = vadd.f32 %v2732, %v3675
        %v3763 = vadd.f32 %v2812, %v3755
        %v3764 = vadd.f32 %v2814, %v3757
        %v3765 = vld [vmem:[%s193] sm:$0x66]
        %v3766 = vld [vmem:[%s193 + $0x8] sm:$0x6]
        %s3767 = scalar_lea.vmem [#allocation2], 3072
        %v3768 = vld [vmem:[%s3767] sm:$0xff]
        %v3769 = vld [vmem:[%s3767 + $0x8] sm:$0xff]
        %v3770 = vld [vmem:[%s3767 + $0x10] sm:$0xff]
        %v3771 = vld [vmem:[%s3767 + $0x18] sm:$0xff]
        %v3772 = vld [vmem:[%s3767 + $0x20] sm:$0xff]
        %v3773 = vld [vmem:[%s3767 + $0x28] sm:$0xff]
        %v3774 = vld [vmem:[%s3767 + $0x30] sm:$0xff]
        %v3775 = vld [vmem:[%s3767 + $0x38] sm:$0xff]
        %v3776 = vld [vmem:[%s3767 + $0x40] sm:$0xff]
        %v3777 = vld [vmem:[%s3767 + $0x48] sm:$0xff]
        %v3778 = vld [vmem:[%s3767 + $0x50] sm:$0xff]
        %v3779 = vld [vmem:[%s3767 + $0x58] sm:$0xff]
        %v3780 = vld [vmem:[%s3767 + $0x60] sm:$0xff]
        %v3781 = vld [vmem:[%s3767 + $0x68] sm:$0xff]
        %v3782 = vld [vmem:[%s3767 + $0x70] sm:$0xff]
        %v3783 = vld [vmem:[%s3767 + $0x78] sm:$0xff]
        %v3784 = vld [vmem:[%s3767 + $0x80] sm:$0xff]
        %v3785 = vld [vmem:[%s3767 + $0x88] sm:$0xff]
        %v3786 = vld [vmem:[%s3767 + $0x90] sm:$0xff]
        %v3787 = vld [vmem:[%s3767 + $0x98] sm:$0xff]
        %v3788 = vld [vmem:[%s3767 + $0xa0] sm:$0xff]
        %v3789 = vld [vmem:[%s3767 + $0xa8] sm:$0xff]
        %v3790 = vld [vmem:[%s3767 + $0xb0] sm:$0xff]
        %v3791 = vld [vmem:[%s3767 + $0xb8] sm:$0xff]
        %v3792 = vld [vmem:[%s3767 + $0xc0] sm:$0xff]
        %v3793 = vld [vmem:[%s3767 + $0xc8] sm:$0xff]
        %v3794 = vld [vmem:[%s3767 + $0xd0] sm:$0xff]
        %v3795 = vld [vmem:[%s3767 + $0xd8] sm:$0xff]
        %v3796 = vld [vmem:[%s3767 + $0xe0] sm:$0xff]
        %v3797 = vld [vmem:[%s3767 + $0xe8] sm:$0xff]
        %v3798 = vld [vmem:[%s3767 + $0xf0] sm:$0xff]
        %v3799 = vld [vmem:[%s3767 + $0xf8] sm:$0xff]
        %v3800 = vld [vmem:[%s3767 + $0x100] sm:$0xff]
        %v3801 = vld [vmem:[%s3767 + $0x108] sm:$0xff]
        %v3802 = vld [vmem:[%s3767 + $0x110] sm:$0xff]
        %v3803 = vld [vmem:[%s3767 + $0x118] sm:$0xff]
        %v3804 = vld [vmem:[%s3767 + $0x120] sm:$0xff]
        %v3805 = vld [vmem:[%s3767 + $0x128] sm:$0xff]
        %v3806 = vld [vmem:[%s3767 + $0x130] sm:$0xff]
        %v3807 = vld [vmem:[%s3767 + $0x138] sm:$0xff]
        %v3808 = vld [vmem:[%s3767 + $0x140] sm:$0xff]
        %v3809 = vld [vmem:[%s3767 + $0x148] sm:$0xff]
        %v3810 = vld [vmem:[%s3767 + $0x150] sm:$0xff]
        %v3811 = vld [vmem:[%s3767 + $0x158] sm:$0xff]
        %v3812 = vld [vmem:[%s3767 + $0x160] sm:$0xff]
        %v3813 = vld [vmem:[%s3767 + $0x168] sm:$0xff]
        %v3814 = vld [vmem:[%s3767 + $0x170] sm:$0xff]
        %v3815 = vld [vmem:[%s3767 + $0x178] sm:$0xff]
        %v3816 = vld [vmem:[%s3767 + $0x180] sm:$0xff]
        %v3817 = vld [vmem:[%s3767 + $0x188] sm:$0xff]
        %v3818 = vld [vmem:[%s3767 + $0x190] sm:$0xff]
        %v3819 = vld [vmem:[%s3767 + $0x198] sm:$0xff]
        %v3820 = vld [vmem:[%s3767 + $0x1a0] sm:$0xff]
        %v3821 = vld [vmem:[%s3767 + $0x1a8] sm:$0xff]
        %v3822 = vld [vmem:[%s3767 + $0x1b0] sm:$0xff]
        %v3823 = vld [vmem:[%s3767 + $0x1b8] sm:$0xff]
        %v3824 = vld [vmem:[%s3767 + $0x1c0] sm:$0xff]
        %v3825 = vld [vmem:[%s3767 + $0x1c8] sm:$0xff]
        %v3826 = vld [vmem:[%s3767 + $0x1d0] sm:$0xff]
        %v3827 = vld [vmem:[%s3767 + $0x1d8] sm:$0xff]
        %v3828 = vld [vmem:[%s3767 + $0x1e0] sm:$0xff]
        %v3829 = vld [vmem:[%s3767 + $0x1e8] sm:$0xff]
        %v3830 = vld [vmem:[%s3767 + $0x1f0] sm:$0xff]
        %v3831 = vld [vmem:[%s3767 + $0x1f8] sm:$0xff]
        %v3832 = vld [vmem:[%s3767 + $0x200] sm:$0xff]
        %v3833 = vld [vmem:[%s3767 + $0x208] sm:$0xff]
        %v3834 = vld [vmem:[%s3767 + $0x210] sm:$0xff]
        %v3835 = vld [vmem:[%s3767 + $0x218] sm:$0xff]
        %v3836 = vld [vmem:[%s3767 + $0x220] sm:$0xff]
        %v3837 = vld [vmem:[%s3767 + $0x228] sm:$0xff]
        %v3838 = vld [vmem:[%s3767 + $0x230] sm:$0xff]
        %v3839 = vld [vmem:[%s3767 + $0x238] sm:$0xff]
        %v3840 = vld [vmem:[%s3767 + $0x240] sm:$0xff]
        %v3841 = vld [vmem:[%s3767 + $0x248] sm:$0xff]
        %v3842 = vld [vmem:[%s3767 + $0x250] sm:$0xff]
        %v3843 = vld [vmem:[%s3767 + $0x258] sm:$0xff]
        %v3844 = vld [vmem:[%s3767 + $0x260] sm:$0xff]
        %v3845 = vld [vmem:[%s3767 + $0x268] sm:$0xff]
        %v3846 = vld [vmem:[%s3767 + $0x270] sm:$0xff]
        %v3847 = vld [vmem:[%s3767 + $0x278] sm:$0xff]
        %v3848 = vld [vmem:[%s3767 + $0x280] sm:$0xff]
        %v3849 = vld [vmem:[%s3767 + $0x288] sm:$0xff]
        %v3850 = vld [vmem:[%s3767 + $0x290] sm:$0xff]
        %v3851 = vld [vmem:[%s3767 + $0x298] sm:$0xff]
        %v3852 = vld [vmem:[%s3767 + $0x2a0] sm:$0xff]
        %v3853 = vld [vmem:[%s3767 + $0x2a8] sm:$0xff]
        %v3854 = vld [vmem:[%s3767 + $0x2b0] sm:$0xff]
        %v3855 = vld [vmem:[%s3767 + $0x2b8] sm:$0xff]
        %v3856 = vld [vmem:[%s3767 + $0x2c0] sm:$0xff]
        %v3857 = vld [vmem:[%s3767 + $0x2c8] sm:$0xff]
        %v3858 = vld [vmem:[%s3767 + $0x2d0] sm:$0xff]
        %v3859 = vld [vmem:[%s3767 + $0x2d8] sm:$0xff]
        %v3860 = vld [vmem:[%s3767 + $0x2e0] sm:$0xff]
        %v3861 = vld [vmem:[%s3767 + $0x2e8] sm:$0xff]
        %v3862 = vld [vmem:[%s3767 + $0x2f0] sm:$0xff]
        %v3863 = vld [vmem:[%s3767 + $0x2f8] sm:$0xff]
        %v3866 = vunpack.c.l.b16 %v3765
        %v3867 = vunpack.c.h.b16 %v3765
        %v3868 = vunpack.c.l.b16 %v3766
        %v3869 = vpack.c.b16 %v3866, %v3866
        %v3870 = vpack.c.b16 %v3867, %v3867
        %v3871 = vpack.c.b16 %v3868, %v3868
        %v3872 = vrot.slane %v3869, 1
        %v3873 = vrot.slane %v3870, 1
        %v3874 = vrot.slane %v3871, 1
        %v3974 = vunpack.c.l.b16 %v3768
        %v3975 = vunpack.c.h.b16 %v3768
        %v3976 = vunpack.c.l.b16 %v3769
        %v3977 = vunpack.c.h.b16 %v3769
        %v3978 = vunpack.c.l.b16 %v3770
        %v3979 = vunpack.c.h.b16 %v3770
        %v3980 = vunpack.c.l.b16 %v3771
        %v3981 = vunpack.c.h.b16 %v3771
        %v3982 = vunpack.c.l.b16 %v3772
        %v3983 = vunpack.c.h.b16 %v3772
        %v3984 = vunpack.c.l.b16 %v3773
        %v3985 = vunpack.c.h.b16 %v3773
        %v3986 = vunpack.c.l.b16 %v3774
        %v3987 = vunpack.c.h.b16 %v3774
        %v3988 = vunpack.c.l.b16 %v3775
        %v3989 = vunpack.c.h.b16 %v3775
        %v3990 = vunpack.c.l.b16 %v3776
        %v3991 = vunpack.c.h.b16 %v3776
        %v3992 = vunpack.c.l.b16 %v3777
        %v3993 = vunpack.c.h.b16 %v3777
        %v3994 = vunpack.c.l.b16 %v3778
        %v3995 = vunpack.c.h.b16 %v3778
        %v3996 = vunpack.c.l.b16 %v3779
        %v3997 = vunpack.c.h.b16 %v3779
        %v3998 = vunpack.c.l.b16 %v3780
        %v3999 = vunpack.c.h.b16 %v3780
        %v4000 = vunpack.c.l.b16 %v3781
        %v4001 = vunpack.c.h.b16 %v3781
        %v4002 = vunpack.c.l.b16 %v3782
        %v4003 = vunpack.c.h.b16 %v3782
        %v4004 = vunpack.c.l.b16 %v3783
        %v4005 = vunpack.c.h.b16 %v3783
        %v4006 = vunpack.c.l.b16 %v3784
        %v4007 = vunpack.c.h.b16 %v3784
        %v4008 = vunpack.c.l.b16 %v3785
        %v4009 = vunpack.c.h.b16 %v3785
        %v4010 = vunpack.c.l.b16 %v3786
        %v4011 = vunpack.c.h.b16 %v3786
        %v4012 = vunpack.c.l.b16 %v3787
        %v4013 = vunpack.c.h.b16 %v3787
        %v4014 = vunpack.c.l.b16 %v3788
        %v4015 = vunpack.c.h.b16 %v3788
        %v4016 = vunpack.c.l.b16 %v3789
        %v4017 = vunpack.c.h.b16 %v3789
        %v4018 = vunpack.c.l.b16 %v3790
        %v4019 = vunpack.c.h.b16 %v3790
        %v4020 = vunpack.c.l.b16 %v3791
        %v4021 = vunpack.c.h.b16 %v3791
        %v4022 = vunpack.c.l.b16 %v3792
        %v4023 = vunpack.c.h.b16 %v3792
        %v4024 = vunpack.c.l.b16 %v3793
        %v4025 = vunpack.c.h.b16 %v3793
        %v4026 = vunpack.c.l.b16 %v3794
        %v4027 = vunpack.c.h.b16 %v3794
        %v4028 = vunpack.c.l.b16 %v3795
        %v4029 = vunpack.c.h.b16 %v3795
        %v4030 = vunpack.c.l.b16 %v3796
        %v4031 = vunpack.c.h.b16 %v3796
        %v4032 = vunpack.c.l.b16 %v3797
        %v4033 = vunpack.c.h.b16 %v3797
        %v4034 = vunpack.c.l.b16 %v3798
        %v4035 = vunpack.c.h.b16 %v3798
        %v4036 = vunpack.c.l.b16 %v3799
        %v4037 = vunpack.c.h.b16 %v3799
        %v4038 = vunpack.c.l.b16 %v3800
        %v4039 = vunpack.c.h.b16 %v3800
        %v4040 = vunpack.c.l.b16 %v3801
        %v4041 = vunpack.c.h.b16 %v3801
        %v4042 = vunpack.c.l.b16 %v3802
        %v4043 = vunpack.c.h.b16 %v3802
        %v4044 = vunpack.c.l.b16 %v3803
        %v4045 = vunpack.c.h.b16 %v3803
        %v4046 = vunpack.c.l.b16 %v3804
        %v4047 = vunpack.c.h.b16 %v3804
        %v4048 = vunpack.c.l.b16 %v3805
        %v4049 = vunpack.c.h.b16 %v3805
        %v4050 = vunpack.c.l.b16 %v3806
        %v4051 = vunpack.c.h.b16 %v3806
        %v4052 = vunpack.c.l.b16 %v3807
        %v4053 = vunpack.c.h.b16 %v3807
        %v4054 = vunpack.c.l.b16 %v3808
        %v4055 = vunpack.c.h.b16 %v3808
        %v4056 = vunpack.c.l.b16 %v3809
        %v4057 = vunpack.c.h.b16 %v3809
        %v4058 = vunpack.c.l.b16 %v3810
        %v4059 = vunpack.c.h.b16 %v3810
        %v4060 = vunpack.c.l.b16 %v3811
        %v4061 = vunpack.c.h.b16 %v3811
        %v4062 = vunpack.c.l.b16 %v3812
        %v4063 = vunpack.c.h.b16 %v3812
        %v4064 = vunpack.c.l.b16 %v3813
        %v4065 = vunpack.c.h.b16 %v3813
        %v4066 = vunpack.c.l.b16 %v3814
        %v4067 = vunpack.c.h.b16 %v3814
        %v4068 = vunpack.c.l.b16 %v3815
        %v4069 = vunpack.c.h.b16 %v3815
        %v4070 = vunpack.c.l.b16 %v3816
        %v4071 = vunpack.c.h.b16 %v3816
        %v4072 = vunpack.c.l.b16 %v3817
        %v4073 = vunpack.c.h.b16 %v3817
        %v4074 = vunpack.c.l.b16 %v3818
        %v4075 = vunpack.c.h.b16 %v3818
        %v4076 = vunpack.c.l.b16 %v3819
        %v4077 = vunpack.c.h.b16 %v3819
        %v4078 = vunpack.c.l.b16 %v3820
        %v4079 = vunpack.c.h.b16 %v3820
        %v4080 = vunpack.c.l.b16 %v3821
        %v4081 = vunpack.c.h.b16 %v3821
        %v4082 = vunpack.c.l.b16 %v3822
        %v4083 = vunpack.c.h.b16 %v3822
        %v4084 = vunpack.c.l.b16 %v3823
        %v4085 = vunpack.c.h.b16 %v3823
        %v4086 = vunpack.c.l.b16 %v3824
        %v4087 = vunpack.c.h.b16 %v3824
        %v4088 = vunpack.c.l.b16 %v3825
        %v4089 = vunpack.c.h.b16 %v3825
        %v4090 = vunpack.c.l.b16 %v3826
        %v4091 = vunpack.c.h.b16 %v3826
        %v4092 = vunpack.c.l.b16 %v3827
        %v4093 = vunpack.c.h.b16 %v3827
        %v4094 = vunpack.c.l.b16 %v3828
        %v4095 = vunpack.c.h.b16 %v3828
        %v4096 = vunpack.c.l.b16 %v3829
        %v4097 = vunpack.c.h.b16 %v3829
        %v4098 = vunpack.c.l.b16 %v3830
        %v4099 = vunpack.c.h.b16 %v3830
        %v4100 = vunpack.c.l.b16 %v3831
        %v4101 = vunpack.c.h.b16 %v3831
        %v4102 = vunpack.c.l.b16 %v3832
        %v4103 = vunpack.c.h.b16 %v3832
        %v4104 = vunpack.c.l.b16 %v3833
        %v4105 = vunpack.c.h.b16 %v3833
        %v4106 = vunpack.c.l.b16 %v3834
        %v4107 = vunpack.c.h.b16 %v3834
        %v4108 = vunpack.c.l.b16 %v3835
        %v4109 = vunpack.c.h.b16 %v3835
        %v4110 = vunpack.c.l.b16 %v3836
        %v4111 = vunpack.c.h.b16 %v3836
        %v4112 = vunpack.c.l.b16 %v3837
        %v4113 = vunpack.c.h.b16 %v3837
        %v4114 = vunpack.c.l.b16 %v3838
        %v4115 = vunpack.c.h.b16 %v3838
        %v4116 = vunpack.c.l.b16 %v3839
        %v4117 = vunpack.c.h.b16 %v3839
        %v4118 = vunpack.c.l.b16 %v3840
        %v4119 = vunpack.c.h.b16 %v3840
        %v4120 = vunpack.c.l.b16 %v3841
        %v4121 = vunpack.c.h.b16 %v3841
        %v4122 = vunpack.c.l.b16 %v3842
        %v4123 = vunpack.c.h.b16 %v3842
        %v4124 = vunpack.c.l.b16 %v3843
        %v4125 = vunpack.c.h.b16 %v3843
        %v4126 = vunpack.c.l.b16 %v3844
        %v4127 = vunpack.c.h.b16 %v3844
        %v4128 = vunpack.c.l.b16 %v3845
        %v4129 = vunpack.c.h.b16 %v3845
        %v4130 = vunpack.c.l.b16 %v3846
        %v4131 = vunpack.c.h.b16 %v3846
        %v4132 = vunpack.c.l.b16 %v3847
        %v4133 = vunpack.c.h.b16 %v3847
        %v4134 = vunpack.c.l.b16 %v3848
        %v4135 = vunpack.c.h.b16 %v3848
        %v4136 = vunpack.c.l.b16 %v3849
        %v4137 = vunpack.c.h.b16 %v3849
        %v4138 = vunpack.c.l.b16 %v3850
        %v4139 = vunpack.c.h.b16 %v3850
        %v4140 = vunpack.c.l.b16 %v3851
        %v4141 = vunpack.c.h.b16 %v3851
        %v4142 = vunpack.c.l.b16 %v3852
        %v4143 = vunpack.c.h.b16 %v3852
        %v4144 = vunpack.c.l.b16 %v3853
        %v4145 = vunpack.c.h.b16 %v3853
        %v4146 = vunpack.c.l.b16 %v3854
        %v4147 = vunpack.c.h.b16 %v3854
        %v4148 = vunpack.c.l.b16 %v3855
        %v4149 = vunpack.c.h.b16 %v3855
        %v4150 = vunpack.c.l.b16 %v3856
        %v4151 = vunpack.c.h.b16 %v3856
        %v4152 = vunpack.c.l.b16 %v3857
        %v4153 = vunpack.c.h.b16 %v3857
        %v4154 = vunpack.c.l.b16 %v3858
        %v4155 = vunpack.c.h.b16 %v3858
        %v4156 = vunpack.c.l.b16 %v3859
        %v4157 = vunpack.c.h.b16 %v3859
        %v4158 = vunpack.c.l.b16 %v3860
        %v4159 = vunpack.c.h.b16 %v3860
        %v4160 = vunpack.c.l.b16 %v3861
        %v4161 = vunpack.c.h.b16 %v3861
        %v4162 = vunpack.c.l.b16 %v3862
        %v4163 = vunpack.c.h.b16 %v3862
        %v4164 = vunpack.c.l.b16 %v3863
        %v4165 = vunpack.c.h.b16 %v3863
        %v4166 = vpack.c.b16 %v3978, %v3974
        %v4167 = vpack.c.b16 %v3979, %v3975
        %v4168 = vpack.c.b16 %v3980, %v3976
        %v4169 = vpack.c.b16 %v3981, %v3977
        %v4170 = vpack.c.b16 %v3986, %v3982
        %v4171 = vpack.c.b16 %v3987, %v3983
        %v4172 = vpack.c.b16 %v3988, %v3984
        %v4173 = vpack.c.b16 %v3989, %v3985
        %v4174 = vpack.c.b16 %v3994, %v3990
        %v4175 = vpack.c.b16 %v3995, %v3991
        %v4176 = vpack.c.b16 %v3996, %v3992
        %v4177 = vpack.c.b16 %v3997, %v3993
        %v4178 = vpack.c.b16 %v4002, %v3998
        %v4179 = vpack.c.b16 %v4003, %v3999
        %v4180 = vpack.c.b16 %v4004, %v4000
        %v4181 = vpack.c.b16 %v4005, %v4001
        %v4182 = vpack.c.b16 %v4010, %v4006
        %v4183 = vpack.c.b16 %v4011, %v4007
        %v4184 = vpack.c.b16 %v4012, %v4008
        %v4185 = vpack.c.b16 %v4013, %v4009
        %v4186 = vpack.c.b16 %v4018, %v4014
        %v4187 = vpack.c.b16 %v4019, %v4015
        %v4188 = vpack.c.b16 %v4020, %v4016
        %v4189 = vpack.c.b16 %v4021, %v4017
        %v4190 = vpack.c.b16 %v4026, %v4022
        %v4191 = vpack.c.b16 %v4027, %v4023
        %v4192 = vpack.c.b16 %v4028, %v4024
        %v4193 = vpack.c.b16 %v4029, %v4025
        %v4194 = vpack.c.b16 %v4034, %v4030
        %v4195 = vpack.c.b16 %v4035, %v4031
        %v4196 = vpack.c.b16 %v4036, %v4032
        %v4197 = vpack.c.b16 %v4037, %v4033
        %v4198 = vpack.c.b16 %v4042, %v4038
        %v4199 = vpack.c.b16 %v4043, %v4039
        %v4200 = vpack.c.b16 %v4044, %v4040
        %v4201 = vpack.c.b16 %v4045, %v4041
        %v4202 = vpack.c.b16 %v4050, %v4046
        %v4203 = vpack.c.b16 %v4051, %v4047
        %v4204 = vpack.c.b16 %v4052, %v4048
        %v4205 = vpack.c.b16 %v4053, %v4049
        %v4206 = vpack.c.b16 %v4058, %v4054
        %v4207 = vpack.c.b16 %v4059, %v4055
        %v4208 = vpack.c.b16 %v4060, %v4056
        %v4209 = vpack.c.b16 %v4061, %v4057
        %v4210 = vpack.c.b16 %v4066, %v4062
        %v4211 = vpack.c.b16 %v4067, %v4063
        %v4212 = vpack.c.b16 %v4068, %v4064
        %v4213 = vpack.c.b16 %v4069, %v4065
        %v4214 = vpack.c.b16 %v4074, %v4070
        %v4215 = vpack.c.b16 %v4075, %v4071
        %v4216 = vpack.c.b16 %v4076, %v4072
        %v4217 = vpack.c.b16 %v4077, %v4073
        %v4218 = vpack.c.b16 %v4082, %v4078
        %v4219 = vpack.c.b16 %v4083, %v4079
        %v4220 = vpack.c.b16 %v4084, %v4080
        %v4221 = vpack.c.b16 %v4085, %v4081
        %v4222 = vpack.c.b16 %v4090, %v4086
        %v4223 = vpack.c.b16 %v4091, %v4087
        %v4224 = vpack.c.b16 %v4092, %v4088
        %v4225 = vpack.c.b16 %v4093, %v4089
        %v4226 = vpack.c.b16 %v4098, %v4094
        %v4227 = vpack.c.b16 %v4099, %v4095
        %v4228 = vpack.c.b16 %v4100, %v4096
        %v4229 = vpack.c.b16 %v4101, %v4097
        %v4230 = vpack.c.b16 %v4106, %v4102
        %v4231 = vpack.c.b16 %v4107, %v4103
        %v4232 = vpack.c.b16 %v4108, %v4104
        %v4233 = vpack.c.b16 %v4109, %v4105
        %v4234 = vpack.c.b16 %v4114, %v4110
        %v4235 = vpack.c.b16 %v4115, %v4111
        %v4236 = vpack.c.b16 %v4116, %v4112
        %v4237 = vpack.c.b16 %v4117, %v4113
        %v4238 = vpack.c.b16 %v4122, %v4118
        %v4239 = vpack.c.b16 %v4123, %v4119
        %v4240 = vpack.c.b16 %v4124, %v4120
        %v4241 = vpack.c.b16 %v4125, %v4121
        %v4242 = vpack.c.b16 %v4130, %v4126
        %v4243 = vpack.c.b16 %v4131, %v4127
        %v4244 = vpack.c.b16 %v4132, %v4128
        %v4245 = vpack.c.b16 %v4133, %v4129
        %v4246 = vpack.c.b16 %v4138, %v4134
        %v4247 = vpack.c.b16 %v4139, %v4135
        %v4248 = vpack.c.b16 %v4140, %v4136
        %v4249 = vpack.c.b16 %v4141, %v4137
        %v4250 = vpack.c.b16 %v4146, %v4142
        %v4251 = vpack.c.b16 %v4147, %v4143
        %v4252 = vpack.c.b16 %v4148, %v4144
        %v4253 = vpack.c.b16 %v4149, %v4145
        %v4254 = vpack.c.b16 %v4154, %v4150
        %v4255 = vpack.c.b16 %v4155, %v4151
        %v4256 = vpack.c.b16 %v4156, %v4152
        %v4257 = vpack.c.b16 %v4157, %v4153
        %v4258 = vpack.c.b16 %v4162, %v4158
        %v4259 = vpack.c.b16 %v4163, %v4159
        %v4260 = vpack.c.b16 %v4164, %v4160
        %v4261 = vpack.c.b16 %v4165, %v4161
        %4358 = vmatprep.subr.bf16.mxu0 %v4195
        %4359 = vmatpush1.bf16.msra.mxu0 %v4194
        %4360 = vmatprep.subr.bf16.mxu0 %v4191
        %4361 = vmatpush1.bf16.msra.mxu0 %v4190
        %4362 = vmatprep.subr.bf16.mxu0 %v4187
        %4363 = vmatpush1.bf16.msra.mxu0 %v4186
        %4364 = vmatprep.subr.bf16.mxu0 %v4183
        %4365 = vmatpush1.bf16.msra.mxu0 %v4182
        %4366 = vmatprep.subr.bf16.mxu0 %v4179
        %4367 = vmatpush1.bf16.msra.mxu0 %v4178
        %4368 = vmatprep.subr.bf16.mxu0 %v4175
        %4369 = vmatpush1.bf16.msra.mxu0 %v4174
        %4370 = vmatprep.subr.bf16.mxu0 %v4171
        %4371 = vmatpush1.bf16.msra.mxu0 %v4170
        %4372 = vmatprep.subr.bf16.mxu0 %v4167
        %4373 = vmatpush1.bf16.msra.mxu0 %v4166
        %4374 = vmatprep.subr.bf16.mxu0 %v4227
        %4375 = vmatpush2.bf16.msra.mxu0 %v4226
        %4376 = vmatprep.subr.bf16.mxu0 %v4223
        %4377 = vmatpush2.bf16.msra.mxu0 %v4222
        %4378 = vmatprep.subr.bf16.mxu0 %v4219
        %4379 = vmatpush2.bf16.msra.mxu0 %v4218
        %4380 = vmatprep.subr.bf16.mxu0 %v4215
        %4381 = vmatpush2.bf16.msra.mxu0 %v4214
        %4382 = vmatprep.subr.bf16.mxu0 %v4211
        %4383 = vmatpush2.bf16.msra.mxu0 %v4210
        %4384 = vmatprep.subr.bf16.mxu0 %v4207
        %4385 = vmatpush2.bf16.msra.mxu0 %v4206
        %4386 = vmatprep.subr.bf16.mxu0 %v4203
        %4387 = vmatpush2.bf16.msra.mxu0 %v4202
        %4388 = vmatprep.subr.bf16.mxu0 %v4199
        %4389 = vmatpush2.bf16.msra.mxu0 %v4198
        %4390 = vmatprep.mubr.bf16.mxu0 %v3873
        %4391 = vmatmul.mubr.bf16.gmra.mxu0 %v3872
        %v4392 = vpop.f32.mrf.mxu0
        %v4393 = vadd.f32 0.0, %v4392
        %v4394 = vpop.f32.mrf.mxu0
        %v4395 = vadd.f32 0.0, %v4394
        %v4396 = vpop.f32.mrf.mxu0
        %v4397 = vpop.f32.mrf.mxu0
        %4398 = vdwg.mxu0
        %4399 = vmatprep.subr.bf16.mxu0 %v4259
        %4400 = vmatpush1.bf16.msra.mxu0 %v4258
        %4401 = vmatprep.subr.bf16.mxu0 %v4255
        %4402 = vmatpush1.bf16.msra.mxu0 %v4254
        %4403 = vmatprep.subr.bf16.mxu0 %v4251
        %4404 = vmatpush1.bf16.msra.mxu0 %v4250
        %4405 = vmatprep.subr.bf16.mxu0 %v4247
        %4406 = vmatpush1.bf16.msra.mxu0 %v4246
        %4407 = vmatprep.subr.bf16.mxu0 %v4243
        %4408 = vmatpush1.bf16.msra.mxu0 %v4242
        %4409 = vmatprep.subr.bf16.mxu0 %v4239
        %4410 = vmatpush1.bf16.msra.mxu0 %v4238
        %4411 = vmatprep.subr.bf16.mxu0 %v4235
        %4412 = vmatpush1.bf16.msra.mxu0 %v4234
        %4413 = vmatprep.subr.bf16.mxu0 %v4231
        %4414 = vmatpush1.bf16.msra.mxu0 %v4230
        %4415 = vmatprep.subr.bf16.mxu0 0
        %4416 = vmatpush2.bf16.msra.mxu0 0
        %4417 = vmatprep.subr.bf16.mxu0 0
        %4418 = vmatpush2.bf16.msra.mxu0 0
        %4419 = vmatprep.subr.bf16.mxu0 0
        %4420 = vmatpush2.bf16.msra.mxu0 0
        %4421 = vmatprep.subr.bf16.mxu0 0
        %4422 = vmatpush2.bf16.msra.mxu0 0
        %4423 = vmatprep.subr.bf16.mxu0 0
        %4424 = vmatpush2.bf16.msra.mxu0 0
        %4425 = vmatprep.subr.bf16.mxu0 0
        %4426 = vmatpush2.bf16.msra.mxu0 0
        %4427 = vmatprep.subr.bf16.mxu0 0
        %4428 = vmatpush2.bf16.msra.mxu0 0
        %4429 = vmatprep.subr.bf16.mxu0 0
        %4430 = vmatpush2.bf16.msra.mxu0 0
        %4431 = vmatprep.mubr.bf16.mxu0 0
        %4432 = vmatmul.mubr.bf16.gmra.mxu0 %v3874
        %v4433 = vpop.f32.mrf.mxu0
        %v4434 = vadd.f32 %v4393, %v4433
        %v4435 = vpop.f32.mrf.mxu0
        %v4436 = vadd.f32 %v4395, %v4435
        %v4437 = vpop.f32.mrf.mxu0
        %v4438 = vpop.f32.mrf.mxu0
        %4439 = vdwg.mxu0
        %4440 = vmatprep.subr.bf16.mxu0 %v4197
        %4441 = vmatpush1.bf16.msra.mxu0 %v4196
        %4442 = vmatprep.subr.bf16.mxu0 %v4193
        %4443 = vmatpush1.bf16.msra.mxu0 %v4192
        %4444 = vmatprep.subr.bf16.mxu0 %v4189
        %4445 = vmatpush1.bf16.msra.mxu0 %v4188
        %4446 = vmatprep.subr.bf16.mxu0 %v4185
        %4447 = vmatpush1.bf16.msra.mxu0 %v4184
        %4448 = vmatprep.subr.bf16.mxu0 %v4181
        %4449 = vmatpush1.bf16.msra.mxu0 %v4180
        %4450 = vmatprep.subr.bf16.mxu0 %v4177
        %4451 = vmatpush1.bf16.msra.mxu0 %v4176
        %4452 = vmatprep.subr.bf16.mxu0 %v4173
        %4453 = vmatpush1.bf16.msra.mxu0 %v4172
        %4454 = vmatprep.subr.bf16.mxu0 %v4169
        %4455 = vmatpush1.bf16.msra.mxu0 %v4168
        %4456 = vmatprep.subr.bf16.mxu0 %v4229
        %4457 = vmatpush2.bf16.msra.mxu0 %v4228
        %4458 = vmatprep.subr.bf16.mxu0 %v4225
        %4459 = vmatpush2.bf16.msra.mxu0 %v4224
        %4460 = vmatprep.subr.bf16.mxu0 %v4221
        %4461 = vmatpush2.bf16.msra.mxu0 %v4220
        %4462 = vmatprep.subr.bf16.mxu0 %v4217
        %4463 = vmatpush2.bf16.msra.mxu0 %v4216
        %4464 = vmatprep.subr.bf16.mxu0 %v4213
        %4465 = vmatpush2.bf16.msra.mxu0 %v4212
        %4466 = vmatprep.subr.bf16.mxu0 %v4209
        %4467 = vmatpush2.bf16.msra.mxu0 %v4208
        %4468 = vmatprep.subr.bf16.mxu0 %v4205
        %4469 = vmatpush2.bf16.msra.mxu0 %v4204
        %4470 = vmatprep.subr.bf16.mxu0 %v4201
        %4471 = vmatpush2.bf16.msra.mxu0 %v4200
        %4472 = vmatprep.mubr.bf16.mxu0 %v3873
        %4473 = vmatmul.mubr.bf16.gmra.mxu0 %v3872
        %v4474 = vpop.f32.mrf.mxu0
        %v4475 = vadd.f32 0.0, %v4474
        %v4476 = vpop.f32.mrf.mxu0
        %v4477 = vadd.f32 0.0, %v4476
        %v4478 = vpop.f32.mrf.mxu0
        %v4479 = vpop.f32.mrf.mxu0
        %4480 = vdwg.mxu0
        %4481 = vmatprep.subr.bf16.mxu0 %v4261
        %4482 = vmatpush1.bf16.msra.mxu0 %v4260
        %4483 = vmatprep.subr.bf16.mxu0 %v4257
        %4484 = vmatpush1.bf16.msra.mxu0 %v4256
        %4485 = vmatprep.subr.bf16.mxu0 %v4253
        %4486 = vmatpush1.bf16.msra.mxu0 %v4252
        %4487 = vmatprep.subr.bf16.mxu0 %v4249
        %4488 = vmatpush1.bf16.msra.mxu0 %v4248
        %4489 = vmatprep.subr.bf16.mxu0 %v4245
        %4490 = vmatpush1.bf16.msra.mxu0 %v4244
        %4491 = vmatprep.subr.bf16.mxu0 %v4241
        %4492 = vmatpush1.bf16.msra.mxu0 %v4240
        %4493 = vmatprep.subr.bf16.mxu0 %v4237
        %4494 = vmatpush1.bf16.msra.mxu0 %v4236
        %4495 = vmatprep.subr.bf16.mxu0 %v4233
        %4496 = vmatpush1.bf16.msra.mxu0 %v4232
        %4497 = vmatprep.subr.bf16.mxu0 0
        %4498 = vmatpush2.bf16.msra.mxu0 0
        %4499 = vmatprep.subr.bf16.mxu0 0
        %4500 = vmatpush2.bf16.msra.mxu0 0
        %4501 = vmatprep.subr.bf16.mxu0 0
        %4502 = vmatpush2.bf16.msra.mxu0 0
        %4503 = vmatprep.subr.bf16.mxu0 0
        %4504 = vmatpush2.bf16.msra.mxu0 0
        %4505 = vmatprep.subr.bf16.mxu0 0
        %4506 = vmatpush2.bf16.msra.mxu0 0
        %4507 = vmatprep.subr.bf16.mxu0 0
        %4508 = vmatpush2.bf16.msra.mxu0 0
        %4509 = vmatprep.subr.bf16.mxu0 0
        %4510 = vmatpush2.bf16.msra.mxu0 0
        %4511 = vmatprep.subr.bf16.mxu0 0
        %4512 = vmatpush2.bf16.msra.mxu0 0
        %4513 = vmatprep.mubr.bf16.mxu0 0
        %4514 = vmatmul.mubr.bf16.gmra.mxu0 %v3874
        %v4515 = vpop.f32.mrf.mxu0
        %v4516 = vadd.f32 %v4475, %v4515
        %v4517 = vpop.f32.mrf.mxu0
        %v4518 = vadd.f32 %v4477, %v4517
        %v4519 = vpop.f32.mrf.mxu0
        %v4520 = vpop.f32.mrf.mxu0
        %4521 = vdwg.mxu0
        %v4522 = vadd.f32 %v3593, %v4434
        %v4523 = vadd.f32 %v3594, %v4436
        %v4524 = vadd.f32 %v3595, %v4516
        %v4525 = vadd.f32 %v3596, %v4518
        %4526 = vmatprep.subr.bf16.mxu0 %v3266
        %4527 = vmatpush1.bf16.msra.mxu0 %v3265
        %4528 = vmatprep.subr.bf16.mxu0 %v3262
        %4529 = vmatpush1.bf16.msra.mxu0 %v3261
        %4530 = vmatprep.subr.bf16.mxu0 %v3258
        %4531 = vmatpush1.bf16.msra.mxu0 %v3257
        %4532 = vmatprep.subr.bf16.mxu0 %v3254
        %4533 = vmatpush1.bf16.msra.mxu0 %v3253
        %4534 = vmatprep.subr.bf16.mxu0 %v3250
        %4535 = vmatpush1.bf16.msra.mxu0 %v3249
        %4536 = vmatprep.subr.bf16.mxu0 %v3246
        %4537 = vmatpush1.bf16.msra.mxu0 %v3245
        %4538 = vmatprep.subr.bf16.mxu0 %v3242
        %4539 = vmatpush1.bf16.msra.mxu0 %v3241
        %4540 = vmatprep.subr.bf16.mxu0 %v3238
        %4541 = vmatpush1.bf16.msra.mxu0 %v3237
        %4542 = vmatprep.subr.bf16.mxu0 %v3298
        %4543 = vmatpush2.bf16.msra.mxu0 %v3297
        %4544 = vmatprep.subr.bf16.mxu0 %v3294
        %4545 = vmatpush2.bf16.msra.mxu0 %v3293
        %4546 = vmatprep.subr.bf16.mxu0 %v3290
        %4547 = vmatpush2.bf16.msra.mxu0 %v3289
        %4548 = vmatprep.subr.bf16.mxu0 %v3286
        %4549 = vmatpush2.bf16.msra.mxu0 %v3285
        %4550 = vmatprep.subr.bf16.mxu0 %v3282
        %4551 = vmatpush2.bf16.msra.mxu0 %v3281
        %4552 = vmatprep.subr.bf16.mxu0 %v3278
        %4553 = vmatpush2.bf16.msra.mxu0 %v3277
        %4554 = vmatprep.subr.bf16.mxu0 %v3274
        %4555 = vmatpush2.bf16.msra.mxu0 %v3273
        %4556 = vmatprep.subr.bf16.mxu0 %v3270
        %4557 = vmatpush2.bf16.msra.mxu0 %v3269
        %4558 = vmatprep.mubr.bf16.mxu0 %v3873
        %4559 = vmatmul.mubr.bf16.gmra.mxu0 %v3872
        %v4560 = vpop.f32.mrf.mxu0
        %v4561 = vadd.f32 0.0, %v4560
        %v4562 = vpop.f32.mrf.mxu0
        %v4563 = vadd.f32 0.0, %v4562
        %v4564 = vpop.f32.mrf.mxu0
        %v4565 = vpop.f32.mrf.mxu0
        %4566 = vdwg.mxu0
        %4567 = vmatprep.subr.bf16.mxu0 %v3330
        %4568 = vmatpush1.bf16.msra.mxu0 %v3329
        %4569 = vmatprep.subr.bf16.mxu0 %v3326
        %4570 = vmatpush1.bf16.msra.mxu0 %v3325
        %4571 = vmatprep.subr.bf16.mxu0 %v3322
        %4572 = vmatpush1.bf16.msra.mxu0 %v3321
        %4573 = vmatprep.subr.bf16.mxu0 %v3318
        %4574 = vmatpush1.bf16.msra.mxu0 %v3317
        %4575 = vmatprep.subr.bf16.mxu0 %v3314
        %4576 = vmatpush1.bf16.msra.mxu0 %v3313
        %4577 = vmatprep.subr.bf16.mxu0 %v3310
        %4578 = vmatpush1.bf16.msra.mxu0 %v3309
        %4579 = vmatprep.subr.bf16.mxu0 %v3306
        %4580 = vmatpush1.bf16.msra.mxu0 %v3305
        %4581 = vmatprep.subr.bf16.mxu0 %v3302
        %4582 = vmatpush1.bf16.msra.mxu0 %v3301
        %4583 = vmatprep.subr.bf16.mxu0 0
        %4584 = vmatpush2.bf16.msra.mxu0 0
        %4585 = vmatprep.subr.bf16.mxu0 0
        %4586 = vmatpush2.bf16.msra.mxu0 0
        %4587 = vmatprep.subr.bf16.mxu0 0
        %4588 = vmatpush2.bf16.msra.mxu0 0
        %4589 = vmatprep.subr.bf16.mxu0 0
        %4590 = vmatpush2.bf16.msra.mxu0 0
        %4591 = vmatprep.subr.bf16.mxu0 0
        %4592 = vmatpush2.bf16.msra.mxu0 0
        %4593 = vmatprep.subr.bf16.mxu0 0
        %4594 = vmatpush2.bf16.msra.mxu0 0
        %4595 = vmatprep.subr.bf16.mxu0 0
        %4596 = vmatpush2.bf16.msra.mxu0 0
        %4597 = vmatprep.subr.bf16.mxu0 0
        %4598 = vmatpush2.bf16.msra.mxu0 0
        %4599 = vmatprep.mubr.bf16.mxu0 0
        %4600 = vmatmul.mubr.bf16.gmra.mxu0 %v3874
        %v4601 = vpop.f32.mrf.mxu0
        %v4602 = vadd.f32 %v4561, %v4601
        %v4603 = vpop.f32.mrf.mxu0
        %v4604 = vadd.f32 %v4563, %v4603
        %v4605 = vpop.f32.mrf.mxu0
        %v4606 = vpop.f32.mrf.mxu0
        %4607 = vdwg.mxu0
        %4608 = vmatprep.subr.bf16.mxu0 %v3268
        %4609 = vmatpush1.bf16.msra.mxu0 %v3267
        %4610 = vmatprep.subr.bf16.mxu0 %v3264
        %4611 = vmatpush1.bf16.msra.mxu0 %v3263
        %4612 = vmatprep.subr.bf16.mxu0 %v3260
        %4613 = vmatpush1.bf16.msra.mxu0 %v3259
        %4614 = vmatprep.subr.bf16.mxu0 %v3256
        %4615 = vmatpush1.bf16.msra.mxu0 %v3255
        %4616 = vmatprep.subr.bf16.mxu0 %v3252
        %4617 = vmatpush1.bf16.msra.mxu0 %v3251
        %4618 = vmatprep.subr.bf16.mxu0 %v3248
        %4619 = vmatpush1.bf16.msra.mxu0 %v3247
        %4620 = vmatprep.subr.bf16.mxu0 %v3244
        %4621 = vmatpush1.bf16.msra.mxu0 %v3243
        %4622 = vmatprep.subr.bf16.mxu0 %v3240
        %4623 = vmatpush1.bf16.msra.mxu0 %v3239
        %4624 = vmatprep.subr.bf16.mxu0 %v3300
        %4625 = vmatpush2.bf16.msra.mxu0 %v3299
        %4626 = vmatprep.subr.bf16.mxu0 %v3296
        %4627 = vmatpush2.bf16.msra.mxu0 %v3295
        %4628 = vmatprep.subr.bf16.mxu0 %v3292
        %4629 = vmatpush2.bf16.msra.mxu0 %v3291
        %4630 = vmatprep.subr.bf16.mxu0 %v3288
        %4631 = vmatpush2.bf16.msra.mxu0 %v3287
        %4632 = vmatprep.subr.bf16.mxu0 %v3284
        %4633 = vmatpush2.bf16.msra.mxu0 %v3283
        %4634 = vmatprep.subr.bf16.mxu0 %v3280
        %4635 = vmatpush2.bf16.msra.mxu0 %v3279
        %4636 = vmatprep.subr.bf16.mxu0 %v3276
        %4637 = vmatpush2.bf16.msra.mxu0 %v3275
        %4638 = vmatprep.subr.bf16.mxu0 %v3272
        %4639 = vmatpush2.bf16.msra.mxu0 %v3271
        %4640 = vmatprep.mubr.bf16.mxu0 %v3873
        %4641 = vmatmul.mubr.bf16.gmra.mxu0 %v3872
        %v4642 = vpop.f32.mrf.mxu0
        %v4643 = vadd.f32 0.0, %v4642
        %v4644 = vpop.f32.mrf.mxu0
        %v4645 = vadd.f32 0.0, %v4644
        %v4646 = vpop.f32.mrf.mxu0
        %v4647 = vpop.f32.mrf.mxu0
        %4648 = vdwg.mxu0
        %4649 = vmatprep.subr.bf16.mxu0 %v3332
        %4650 = vmatpush1.bf16.msra.mxu0 %v3331
        %4651 = vmatprep.subr.bf16.mxu0 %v3328
        %4652 = vmatpush1.bf16.msra.mxu0 %v3327
        %4653 = vmatprep.subr.bf16.mxu0 %v3324
        %4654 = vmatpush1.bf16.msra.mxu0 %v3323
        %4655 = vmatprep.subr.bf16.mxu0 %v3320
        %4656 = vmatpush1.bf16.msra.mxu0 %v3319
        %4657 = vmatprep.subr.bf16.mxu0 %v3316
        %4658 = vmatpush1.bf16.msra.mxu0 %v3315
        %4659 = vmatprep.subr.bf16.mxu0 %v3312
        %4660 = vmatpush1.bf16.msra.mxu0 %v3311
        %4661 = vmatprep.subr.bf16.mxu0 %v3308
        %4662 = vmatpush1.bf16.msra.mxu0 %v3307
        %4663 = vmatprep.subr.bf16.mxu0 %v3304
        %4664 = vmatpush1.bf16.msra.mxu0 %v3303
        %4665 = vmatprep.subr.bf16.mxu0 0
        %4666 = vmatpush2.bf16.msra.mxu0 0
        %4667 = vmatprep.subr.bf16.mxu0 0
        %4668 = vmatpush2.bf16.msra.mxu0 0
        %4669 = vmatprep.subr.bf16.mxu0 0
        %4670 = vmatpush2.bf16.msra.mxu0 0
        %4671 = vmatprep.subr.bf16.mxu0 0
        %4672 = vmatpush2.bf16.msra.mxu0 0
        %4673 = vmatprep.subr.bf16.mxu0 0
        %4674 = vmatpush2.bf16.msra.mxu0 0
        %4675 = vmatprep.subr.bf16.mxu0 0
        %4676 = vmatpush2.bf16.msra.mxu0 0
        %4677 = vmatprep.subr.bf16.mxu0 0
        %4678 = vmatpush2.bf16.msra.mxu0 0
        %4679 = vmatprep.subr.bf16.mxu0 0
        %4680 = vmatpush2.bf16.msra.mxu0 0
        %4681 = vmatprep.mubr.bf16.mxu0 0
        %4682 = vmatmul.mubr.bf16.gmra.mxu0 %v3874
        %v4683 = vpop.f32.mrf.mxu0
        %v4684 = vadd.f32 %v4643, %v4683
        %v4685 = vpop.f32.mrf.mxu0
        %v4686 = vadd.f32 %v4645, %v4685
        %v4687 = vpop.f32.mrf.mxu0
        %v4688 = vpop.f32.mrf.mxu0
        %4689 = vdwg.mxu0
        %v4690 = vadd.f32 %v3761, %v4602
        %v4691 = vadd.f32 %v3762, %v4604
        %v4692 = vadd.f32 %v3763, %v4684
        %v4693 = vadd.f32 %v3764, %v4686
        %v4694 = vld [vmem:[%s301] sm:$0x66]
        %v4695 = vld [vmem:[%s301 + $0x8] sm:$0x6]
        %v4698 = vunpack.c.l.b16 %v4694
        %v4699 = vunpack.c.h.b16 %v4694
        %v4700 = vunpack.c.l.b16 %v4695
        %v4701 = vpack.c.b16 %v4698, %v4698
        %v4702 = vpack.c.b16 %v4699, %v4699
        %v4703 = vpack.c.b16 %v4700, %v4700
        %v4704 = vrot.slane %v4701, 1
        %v4705 = vrot.slane %v4702, 1
        %v4706 = vrot.slane %v4703, 1
        %4710 = vmatprep.subr.bf16.mxu0 %v4195
        %4711 = vmatpush1.bf16.msra.mxu0 %v4194
        %4712 = vmatprep.subr.bf16.mxu0 %v4191
        %4713 = vmatpush1.bf16.msra.mxu0 %v4190
        %4714 = vmatprep.subr.bf16.mxu0 %v4187
        %4715 = vmatpush1.bf16.msra.mxu0 %v4186
        %4716 = vmatprep.subr.bf16.mxu0 %v4183
        %4717 = vmatpush1.bf16.msra.mxu0 %v4182
        %4718 = vmatprep.subr.bf16.mxu0 %v4179
        %4719 = vmatpush1.bf16.msra.mxu0 %v4178
        %4720 = vmatprep.subr.bf16.mxu0 %v4175
        %4721 = vmatpush1.bf16.msra.mxu0 %v4174
        %4722 = vmatprep.subr.bf16.mxu0 %v4171
        %4723 = vmatpush1.bf16.msra.mxu0 %v4170
        %4724 = vmatprep.subr.bf16.mxu0 %v4167
        %4725 = vmatpush1.bf16.msra.mxu0 %v4166
        %4726 = vmatprep.subr.bf16.mxu0 %v4227
        %4727 = vmatpush2.bf16.msra.mxu0 %v4226
        %4728 = vmatprep.subr.bf16.mxu0 %v4223
        %4729 = vmatpush2.bf16.msra.mxu0 %v4222
        %4730 = vmatprep.subr.bf16.mxu0 %v4219
        %4731 = vmatpush2.bf16.msra.mxu0 %v4218
        %4732 = vmatprep.subr.bf16.mxu0 %v4215
        %4733 = vmatpush2.bf16.msra.mxu0 %v4214
        %4734 = vmatprep.subr.bf16.mxu0 %v4211
        %4735 = vmatpush2.bf16.msra.mxu0 %v4210
        %4736 = vmatprep.subr.bf16.mxu0 %v4207
        %4737 = vmatpush2.bf16.msra.mxu0 %v4206
        %4738 = vmatprep.subr.bf16.mxu0 %v4203
        %4739 = vmatpush2.bf16.msra.mxu0 %v4202
        %4740 = vmatprep.subr.bf16.mxu0 %v4199
        %4741 = vmatpush2.bf16.msra.mxu0 %v4198
        %4742 = vmatprep.mubr.bf16.mxu0 %v4705
        %4743 = vmatmul.mubr.bf16.gmra.mxu0 %v4704
        %v4744 = vpop.f32.mrf.mxu0
        %v4745 = vadd.f32 0.0, %v4744
        %v4746 = vpop.f32.mrf.mxu0
        %v4747 = vadd.f32 0.0, %v4746
        %v4748 = vpop.f32.mrf.mxu0
        %v4749 = vpop.f32.mrf.mxu0
        %4750 = vdwg.mxu0
        %4751 = vmatprep.subr.bf16.mxu0 %v4259
        %4752 = vmatpush1.bf16.msra.mxu0 %v4258
        %4753 = vmatprep.subr.bf16.mxu0 %v4255
        %4754 = vmatpush1.bf16.msra.mxu0 %v4254
        %4755 = vmatprep.subr.bf16.mxu0 %v4251
        %4756 = vmatpush1.bf16.msra.mxu0 %v4250
        %4757 = vmatprep.subr.bf16.mxu0 %v4247
        %4758 = vmatpush1.bf16.msra.mxu0 %v4246
        %4759 = vmatprep.subr.bf16.mxu0 %v4243
        %4760 = vmatpush1.bf16.msra.mxu0 %v4242
        %4761 = vmatprep.subr.bf16.mxu0 %v4239
        %4762 = vmatpush1.bf16.msra.mxu0 %v4238
        %4763 = vmatprep.subr.bf16.mxu0 %v4235
        %4764 = vmatpush1.bf16.msra.mxu0 %v4234
        %4765 = vmatprep.subr.bf16.mxu0 %v4231
        %4766 = vmatpush1.bf16.msra.mxu0 %v4230
        %4767 = vmatprep.subr.bf16.mxu0 0
        %4768 = vmatpush2.bf16.msra.mxu0 0
        %4769 = vmatprep.subr.bf16.mxu0 0
        %4770 = vmatpush2.bf16.msra.mxu0 0
        %4771 = vmatprep.subr.bf16.mxu0 0
        %4772 = vmatpush2.bf16.msra.mxu0 0
        %4773 = vmatprep.subr.bf16.mxu0 0
        %4774 = vmatpush2.bf16.msra.mxu0 0
        %4775 = vmatprep.subr.bf16.mxu0 0
        %4776 = vmatpush2.bf16.msra.mxu0 0
        %4777 = vmatprep.subr.bf16.mxu0 0
        %4778 = vmatpush2.bf16.msra.mxu0 0
        %4779 = vmatprep.subr.bf16.mxu0 0
        %4780 = vmatpush2.bf16.msra.mxu0 0
        %4781 = vmatprep.subr.bf16.mxu0 0
        %4782 = vmatpush2.bf16.msra.mxu0 0
        %4783 = vmatprep.mubr.bf16.mxu0 0
        %4784 = vmatmul.mubr.bf16.gmra.mxu0 %v4706
        %v4785 = vpop.f32.mrf.mxu0
        %v4786 = vadd.f32 %v4745, %v4785
        %v4787 = vpop.f32.mrf.mxu0
        %v4788 = vadd.f32 %v4747, %v4787
        %v4789 = vpop.f32.mrf.mxu0
        %v4790 = vpop.f32.mrf.mxu0
        %4791 = vdwg.mxu0
        %4792 = vmatprep.subr.bf16.mxu0 %v4197
        %4793 = vmatpush1.bf16.msra.mxu0 %v4196
        %4794 = vmatprep.subr.bf16.mxu0 %v4193
        %4795 = vmatpush1.bf16.msra.mxu0 %v4192
        %4796 = vmatprep.subr.bf16.mxu0 %v4189
        %4797 = vmatpush1.bf16.msra.mxu0 %v4188
        %4798 = vmatprep.subr.bf16.mxu0 %v4185
        %4799 = vmatpush1.bf16.msra.mxu0 %v4184
        %4800 = vmatprep.subr.bf16.mxu0 %v4181
        %4801 = vmatpush1.bf16.msra.mxu0 %v4180
        %4802 = vmatprep.subr.bf16.mxu0 %v4177
        %4803 = vmatpush1.bf16.msra.mxu0 %v4176
        %4804 = vmatprep.subr.bf16.mxu0 %v4173
        %4805 = vmatpush1.bf16.msra.mxu0 %v4172
        %4806 = vmatprep.subr.bf16.mxu0 %v4169
        %4807 = vmatpush1.bf16.msra.mxu0 %v4168
        %4808 = vmatprep.subr.bf16.mxu0 %v4229
        %4809 = vmatpush2.bf16.msra.mxu0 %v4228
        %4810 = vmatprep.subr.bf16.mxu0 %v4225
        %4811 = vmatpush2.bf16.msra.mxu0 %v4224
        %4812 = vmatprep.subr.bf16.mxu0 %v4221
        %4813 = vmatpush2.bf16.msra.mxu0 %v4220
        %4814 = vmatprep.subr.bf16.mxu0 %v4217
        %4815 = vmatpush2.bf16.msra.mxu0 %v4216
        %4816 = vmatprep.subr.bf16.mxu0 %v4213
        %4817 = vmatpush2.bf16.msra.mxu0 %v4212
        %4818 = vmatprep.subr.bf16.mxu0 %v4209
        %4819 = vmatpush2.bf16.msra.mxu0 %v4208
        %4820 = vmatprep.subr.bf16.mxu0 %v4205
        %4821 = vmatpush2.bf16.msra.mxu0 %v4204
        %4822 = vmatprep.subr.bf16.mxu0 %v4201
        %4823 = vmatpush2.bf16.msra.mxu0 %v4200
        %4824 = vmatprep.mubr.bf16.mxu0 %v4705
        %4825 = vmatmul.mubr.bf16.gmra.mxu0 %v4704
        %v4826 = vpop.f32.mrf.mxu0
        %v4827 = vadd.f32 0.0, %v4826
        %v4828 = vpop.f32.mrf.mxu0
        %v4829 = vadd.f32 0.0, %v4828
        %v4830 = vpop.f32.mrf.mxu0
        %v4831 = vpop.f32.mrf.mxu0
        %4832 = vdwg.mxu0
        %4833 = vmatprep.subr.bf16.mxu0 %v4261
        %4834 = vmatpush1.bf16.msra.mxu0 %v4260
        %4835 = vmatprep.subr.bf16.mxu0 %v4257
        %4836 = vmatpush1.bf16.msra.mxu0 %v4256
        %4837 = vmatprep.subr.bf16.mxu0 %v4253
        %4838 = vmatpush1.bf16.msra.mxu0 %v4252
        %4839 = vmatprep.subr.bf16.mxu0 %v4249
        %4840 = vmatpush1.bf16.msra.mxu0 %v4248
        %4841 = vmatprep.subr.bf16.mxu0 %v4245
        %4842 = vmatpush1.bf16.msra.mxu0 %v4244
        %4843 = vmatprep.subr.bf16.mxu0 %v4241
        %4844 = vmatpush1.bf16.msra.mxu0 %v4240
        %4845 = vmatprep.subr.bf16.mxu0 %v4237
        %4846 = vmatpush1.bf16.msra.mxu0 %v4236
        %4847 = vmatprep.subr.bf16.mxu0 %v4233
        %4848 = vmatpush1.bf16.msra.mxu0 %v4232
        %4849 = vmatprep.subr.bf16.mxu0 0
        %4850 = vmatpush2.bf16.msra.mxu0 0
        %4851 = vmatprep.subr.bf16.mxu0 0
        %4852 = vmatpush2.bf16.msra.mxu0 0
        %4853 = vmatprep.subr.bf16.mxu0 0
        %4854 = vmatpush2.bf16.msra.mxu0 0
        %4855 = vmatprep.subr.bf16.mxu0 0
        %4856 = vmatpush2.bf16.msra.mxu0 0
        %4857 = vmatprep.subr.bf16.mxu0 0
        %4858 = vmatpush2.bf16.msra.mxu0 0
        %4859 = vmatprep.subr.bf16.mxu0 0
        %4860 = vmatpush2.bf16.msra.mxu0 0
        %4861 = vmatprep.subr.bf16.mxu0 0
        %4862 = vmatpush2.bf16.msra.mxu0 0
        %4863 = vmatprep.subr.bf16.mxu0 0
        %4864 = vmatpush2.bf16.msra.mxu0 0
        %4865 = vmatprep.mubr.bf16.mxu0 0
        %4866 = vmatmul.mubr.bf16.gmra.mxu0 %v4706
        %v4867 = vpop.f32.mrf.mxu0
        %v4868 = vadd.f32 %v4827, %v4867
        %v4869 = vpop.f32.mrf.mxu0
        %v4870 = vadd.f32 %v4829, %v4869
        %v4871 = vpop.f32.mrf.mxu0
        %v4872 = vpop.f32.mrf.mxu0
        %4873 = vdwg.mxu0
        %v4874 = vadd.f32 %v4690, %v4786
        %v4875 = vadd.f32 %v4691, %v4788
        %v4876 = vadd.f32 %v4692, %v4868
        %v4877 = vadd.f32 %v4693, %v4870
        %v4879 = vlaneseq
        %v4880 = vshrl.u32 %v4879, 7
        %v4881 = vsub.s32 0, %v4880
        %v4882 = vrot.slane %v200, %v4881
        %v4883 = vlaneseq
        %v4884 = vshrl.u32 %v4883, 7
        %v4885 = vsub.s32 1, %v4884
        %v4886 = vrot.slane %v200, %v4885
        %v4887 = vlaneseq
        %v4888 = vshrl.u32 %v4887, 7
        %v4889 = vsub.s32 2, %v4888
        %v4890 = vrot.slane %v200, %v4889
        %v4891 = vlaneseq
        %v4892 = vshrl.u32 %v4891, 7
        %v4893 = vsub.s32 3, %v4892
        %v4894 = vrot.slane %v200, %v4893
        %v4899 = vadd.f32 %v4522, %v4882
        %v4900 = vadd.f32 %v4523, %v4886
        %v4901 = vadd.f32 %v4524, %v4890
        %v4902 = vadd.f32 %v4525, %v4894
        %v4903 = vmax.f32 %v4899, 0.0
        %v4904 = vmax.f32 %v4900, 0.0
        %v4905 = vmax.f32 %v4901, 0.0
        %v4906 = vmax.f32 %v4902, 0.0
        %v4907 = vadd.f32 %v4874, %v4882
        %v4908 = vadd.f32 %v4875, %v4886
        %v4909 = vadd.f32 %v4876, %v4890
        %v4910 = vadd.f32 %v4877, %v4894
        %v4911 = vmax.f32 %v4907, 0.0
        %v4912 = vmax.f32 %v4908, 0.0
        %v4913 = vmax.f32 %v4909, 0.0
        %v4914 = vmax.f32 %v4910, 0.0
        %vm4915 = vcmp.ge.s32.totalorder %v202, 1
        %v4916 = vsel %vm4915, 1, 0
        %vm4917 = vcmp.eq.s32.totalorder %v4916, 1
        %v4918 = vsel %vm4917, %v4903, 0.0
        %v4919 = vsel %vm4917, %v4904, 0.0
        %v4920 = vsel %vm4917, %v4905, 0.0
        %v4921 = vsel %vm4917, %v4906, 0.0
        %vm4922 = vcmp.le.s32.totalorder %v202, 2
        %v4923 = vsel %vm4922, 1, 0
        %vm4924 = vcmp.eq.s32.totalorder %v4923, 1
        %v4925 = vsel %vm4924, %v4911, 0.0
        %v4926 = vsel %vm4924, %v4912, 0.0
        %v4927 = vsel %vm4924, %v4913, 0.0
        %v4928 = vsel %vm4924, %v4914, 0.0
        %v4929 = vmax.f32 %v4918, %v4925
        %v4930 = vmax.f32 %v4919, %v4926
        %v4931 = vmax.f32 %v4920, %v4927
        %v4932 = vmax.f32 %v4921, %v4928
        %v4933 = vmax.f32 %v4929, %v4931
        %v4934 = vmax.f32 %v4930, %v4932
        %v4935 = vpack.c.bf16 %v4933, %v4933
        %v4936 = vpack.c.bf16 %v4934, %v4934
        %v4939 = vcombine.low %v4935, %v4936
        %v4941 = vunpack.c.l.s4 1983009808
        %v4942 = vunpack.c.0.s8 %v4941
        %v4943 = vlaneseq
        %v4944 = vshrl.u32 %v4943, 7
        %v4945 = vsub.s32 %v4942, %v4944
        %v4946 = vrot.slane %v4939, %v4945
        %4948 = vst [vmem:[%s198] sm:$0xf] %v4946
        %p4949 = scmp.lt.s32.totalorder %s16, 1
        %s4950 = scalar_select %p4949, %s16, 1
        %s4951 = smul.addr %s4950, 2
        %s4952 = smul.addr %s4951, 2
        %s4953 = scalar_lea.vmem %s3, %s4952
        // Predicated region
        $region41: #{cnn_forward.4} parent=31 // pred_check
          %p4954 = pneg %p102
        $region42: #{cnn_forward.4} parent=31 // pred_check_branch
          %4956 = sbr.rel (%p4954) target = $region44
        $region43: #{cnn_forward.4} parent=31 // pred_region
          _
        $region44: #{cnn_forward.4} parent=31 // pred_fallthru
          _
      $region32: #{cnn_forward.4} parent=5 // pred_fallthru
        _
      %p4957 = scmp.le.s32.totalorder 2, %s11
      // Predicated region
      $region45: #{cnn_forward.4} parent=5 // pred_check
        %p4958 = pneg %p4957
      $region46: #{cnn_forward.4} parent=5 // pred_check_branch
        %4960 = sbr.rel (%p4958) target = $region48
      $region47: #{cnn_forward.4} parent=5 // pred_region
        %s4961 = ssub.s32 %s11, 2
        // Predicated region
        $region49: #{cnn_forward.4} parent=47 // pred_check
          %p4962 = pneg %p108
        $region50: #{cnn_forward.4} parent=47 // pred_check_branch
          %4964 = sbr.rel (%p4962) target = $region52
        $region51: #{cnn_forward.4} parent=47 // pred_region
          %p4965 = scmp.lt.s32.totalorder %s17, 1
          %s4966 = scalar_select %p4965, %s17, 1
          %s4967 = smul.addr %s4966, 2
          %s4968 = smul.addr %s4967, 2
          %s4969 = scalar_lea.vmem %s3, %s4968
        $region52: #{cnn_forward.4} parent=47 // pred_fallthru
          _
      $region48: #{cnn_forward.4} parent=5 // pred_fallthru
        _
    $region6: #{cnn_forward.4} parent=1 // loop_footer
      %s15 = sadd.s32 1, %s11
    $region7: #{cnn_forward.4} parent=1 // loop_footer_branch
      %10 = sbr.rel target = $region3
    $region8: #{cnn_forward.4} parent=1 // loop_exit
      _
    %4970 = vsyncpa [#allocation3], 1
    %s4971 = scalar_lea.sflag [#allocation3], 1
    %4972 = vsyncpa %s4971, 1
    %4973 = vsyncpa [#allocation5], 1

</llo_original>
